<compile_context>
chip_gen: v7x
topology: tpu7x:2x2x1
jax: 0.10.0
libtpu: 0.0.40
codegen_flags: <defaults>
</compile_context>

<pallas_src>
import math

import jax
import jax.numpy as jnp
from jax import lax
from jax.experimental import pallas as pl
from jax.experimental.pallas import tpu as pltpu

# ----------------------------- configuration --------------------------------
BATCH = 2
ENC_IN = 4
DEC_IN = 4
C_OUT = 4
SEQ_LEN = 16
LABEL_LEN = 8
PRED_LEN = 8                       # out_len
D_MODEL = 64
N_HEADS = 4
D_HEAD = D_MODEL // N_HEADS
E_LAYERS = 2
D_LAYERS = 1
D_FF = 64
NUM_TIME_FEATURES = 2
DEC_LEN = LABEL_LEN + PRED_LEN
HL = N_HEADS * SEQ_LEN             # head-stacked row count (= 64)

assert D_FF == D_MODEL, "vecs-slab packing assumes d_ff == d_model"
assert DEC_LEN == SEQ_LEN, "shared masks / shift constants assume equal lengths"

_F32 = jnp.float32
_SCALE = 1.0 / math.sqrt(D_HEAD)
_NEG = -1e30

# ----- packed-slab row offsets (static Python constants) ---------------------
# mats slab (10, 64, 64): [wo_enc0, wo_enc1, wo_dec_self, wo_cross, w1 x3, w2 x3]
_W1_BASE, _W2_BASE = 4, 7
# vecs slab (28, 1, 64): [bo x4 | b1 x3 | b2 x3 | (ln gamma, ln beta) x9]
_BO_BASE, _B1_BASE, _B2_BASE, _LN_BASE = 0, 4, 7, 10
# sel slab (3, 64, 64): [block-diag mask, block-diag+causal mask, mix pick]
_MASK_FULL, _MASK_CAUSAL, _MIX_SEL = 0, 1, 2


# --------------------------- in-kernel helpers -------------------------------
def _erf(x):
    # TODO(synk): exact-erf GELU realised with the Abramowitz-Stegun 7.1.26
    # polynomial (|abs err| < 1.5e-7) so only exp/abs/where need to lower.
    p = 0.3275911
    a1, a2, a3, a4, a5 = (0.254829592, -0.284496736, 1.421413741,
                          -1.453152027, 1.061405429)
    sgn = jnp.where(x < 0.0, -1.0, 1.0)
    z = jnp.abs(x)
    t = 1.0 / (1.0 + p * z)
    poly = ((((a5 * t + a4) * t + a3) * t + a2) * t + a1) * t
    return sgn * (1.0 - poly * jnp.exp(-z * z))


def _gelu(x):
    return 0.5 * x * (1.0 + _erf(x * (1.0 / math.sqrt(2.0))))


# ------------------------------ fused kernel ---------------------------------
def _informer_kernel(x_ref, embw_ref, embadd_ref, shift_ref, qkv_ref,
                     mats_ref, vecs_ref, sel_ref, proj_ref, o_ref):
    f32 = jnp.float32

    def dot(a, b):
        return jnp.dot(a, b, preferred_element_type=f32)

    def vec(i):                       # (1, D_MODEL) bias / LN row
        return vecs_ref[i]

    def layer_norm(x, p):             # LayerNorm over features, eps=1e-5
        g = vec(_LN_BASE + 2 * p)
        b = vec(_LN_BASE + 2 * p + 1)
        mean = jnp.mean(x, axis=-1, keepdims=True)
        xc = x - mean
        var = jnp.mean(xc * xc, axis=-1, keepdims=True)
        return xc * lax.rsqrt(var + 1e-5) * g + b

    s_prev = shift_ref[0]             # circular shift: row i -> tok[i-1]
    s_next = shift_ref[1]             # circular shift: row i -> tok[i+1]

    def embed(tok, e):
        # TokenEmbedding (Conv1d k=3, circular) expressed as 3 tap matmuls on
        # shift-permuted inputs + precomputed (timeF-linear + PE + bias) add.
        base = 3 * e
        y = dot(dot(s_prev, tok), embw_ref[base + 0])
        y = y + dot(tok, embw_ref[base + 1])
        y = y + dot(dot(s_next, tok), embw_ref[base + 2])
        return y + embadd_ref[e]

    def stack_heads(t):               # (L, H*Dh) -> (H*L, Dh), head-major rows
        return jnp.concatenate(
            [t[:, h * D_HEAD:(h + 1) * D_HEAD] for h in range(N_HEADS)], axis=0)

    def attention(x_q, x_kv, a, mask_idx, *, mix, cross):
        """Multi-head FullAttention + output projection (head-batched)."""
        lq = x_q.shape[0]
        wb = qkv_ref[a]                          # (D+1, 3D): rows 0..D-1 = W
        w = wb[0:D_MODEL, :]
        b = wb[D_MODEL:D_MODEL + 1, :]
        if cross:
            q = dot(x_q, w[:, 0:D_MODEL]) + b[:, 0:D_MODEL]
            kv = dot(x_kv, w[:, D_MODEL:3 * D_MODEL]) + b[:, D_MODEL:3 * D_MODEL]
            k = kv[:, 0:D_MODEL]
            v = kv[:, D_MODEL:2 * D_MODEL]
        else:
            qkv = dot(x_q, w) + b                # fused QKV projection
            q = qkv[:, 0:D_MODEL]
            k = qkv[:, D_MODEL:2 * D_MODEL]
            v = qkv[:, 2 * D_MODEL:3 * D_MODEL]

        qs = stack_heads(q)                      # (H*L, Dh)
        ks = stack_heads(k)
        vs = stack_heads(v)

        # One score matmul for all heads; cross-head blocks are killed by the
        # precomputed block-diagonal (+causal) additive mask.  The 1/sqrt(Dh)
        # scale is already folded into the Q weights.
        s = lax.dot_general(qs, ks, (((1,), (1,)), ((), ())),
                            preferred_element_type=f32) + sel_ref[mask_idx]
        m = jnp.max(s, axis=-1, keepdims=True)
        e = jnp.exp(s - m)
        p = e / jnp.sum(e, axis=-1, keepdims=True)
        z = dot(p, vs)                           # (H*L, Dh) per-head contexts

        wo = mats_ref[a]                         # (D, D) output projection
        y = None
        if mix:
            # Informer mix=True: transpose(2,1).view(L,-1) scramble via a
            # host-precomputed constant pick matrix (rows j*L+l pick z[H*l+j]).
            ms = sel_ref[_MIX_SEL]
            for j in range(N_HEADS):
                pj = ms[j * lq:(j + 1) * lq, :]
                contrib = dot(dot(pj, z), wo[j * D_HEAD:(j + 1) * D_HEAD, :])
                y = contrib if y is None else y + contrib
        else:
            # concat(heads) @ Wo == sum_h oh @ Wo_rowblock_h (acc chain)
            for h in range(N_HEADS):
                contrib = dot(z[h * lq:(h + 1) * lq, :],
                              wo[h * D_HEAD:(h + 1) * D_HEAD, :])
                y = contrib if y is None else y + contrib
        return y + vec(_BO_BASE + a)

    def ffn(x, i):
        h = _gelu(dot(x, mats_ref[_W1_BASE + i]) + vec(_B1_BASE + i))
        return dot(h, mats_ref[_W2_BASE + i]) + vec(_B2_BASE + i)

    # ---------------- encoder ----------------
    x_tok = x_ref[...]                           # (SEQ_LEN, ENC_IN)
    enc = embed(x_tok, 0)
    for i in range(E_LAYERS):
        a = attention(enc, enc, i, _MASK_FULL, mix=False, cross=False)
        x1 = layer_norm(enc + a, 2 * i)
        enc = layer_norm(x1 + ffn(x1, i), 2 * i + 1)
    enc = layer_norm(enc, 4)                     # encoder final LayerNorm

    # ---------------- decoder ----------------
    dec_tok = jnp.concatenate(
        [x_tok[SEQ_LEN - LABEL_LEN:, :],
         jnp.zeros((PRED_LEN, DEC_IN), f32)], axis=0)   # [label tokens ; zeros]
    dec = embed(dec_tok, 1)
    sa = attention(dec, dec, 2, _MASK_CAUSAL, mix=True, cross=False)
    x1 = layer_norm(dec + sa, 5)
    ca = attention(x1, enc, 3, _MASK_FULL, mix=False, cross=True)
    x2 = layer_norm(x1 + ca, 6)
    dec = layer_norm(x2 + ffn(x2, 2), 7)
    dec = layer_norm(dec, 8)                     # decoder final LayerNorm

    # ---------------- projection ----------------
    proj = proj_ref[...]                         # (D+1, C_OUT)
    o_ref[...] = (dot(dec, proj[0:D_MODEL, :])
                  + proj[D_MODEL:D_MODEL + 1, :]).astype(o_ref.dtype)


# ------------------------------- full forward --------------------------------
def _full_spec(arr):
    zero = (0,) * arr.ndim
    return pl.BlockSpec(tuple(arr.shape), lambda b, _z=zero: _z)


def informer_forward(params, history_data, future_data):
    # history_data: [B, enc_in, seq_len]   future_data: [B, enc_in, out_len]
    # future_data's VALUES never reach the output (only its time-feature marks
    # do, and those are parameter-derived and folded into emb_add at init).
    del future_data
    B = history_data.shape[0]
    x_tok = jnp.transpose(history_data, (0, 2, 1)).astype(_F32)   # [B, L, N]

    weights = params["weights"]
    in_specs = ([pl.BlockSpec((None, SEQ_LEN, ENC_IN), lambda b: (b, 0, 0))]
                + [_full_spec(w) for w in weights])

    out = pl.pallas_call(
        _informer_kernel,
        out_shape=jax.ShapeDtypeStruct((B, DEC_LEN, C_OUT), _F32),
        grid=(B,),
        in_specs=in_specs,
        out_specs=pl.BlockSpec((None, DEC_LEN, C_OUT), lambda b: (b, 0, 0)),
        compiler_params=pltpu.CompilerParams(
            dimension_semantics=("parallel",)),
    )(x_tok, *weights)

    pred = out[:, -PRED_LEN:, :]                 # [B, P, c_out]
    return jnp.transpose(pred, (0, 2, 1))        # [B, c_out, P]


# ------------------------------ parameter init -------------------------------
def make_positional_embedding(max_len, d_model):
    pos = jnp.arange(max_len, dtype=_F32)[:, None]
    div = jnp.exp(jnp.arange(0, d_model, 2, dtype=_F32)
                  * (-math.log(10000.0) / d_model))
    ang = pos * div
    pe = jnp.zeros((max_len, d_model), _F32)
    pe = pe.at[:, 0::2].set(jnp.sin(ang))
    pe = pe.at[:, 1::2].set(jnp.cos(ang))
    return pe


def init_params(seed=0):
    keys = list(jax.random.split(jax.random.PRNGKey(seed), 64))
    kit = iter(keys)

    def rnd(shape, scale=0.05):
        return (scale * jax.random.normal(next(kit), shape)).astype(_F32)

    def xavier(shape):
        fan_out, fan_in = shape
        bound = math.sqrt(6.0 / (fan_in + fan_out))
        return jax.random.uniform(next(kit), shape, _F32, -bound, bound)

    pe = make_positional_embedding(SEQ_LEN, D_MODEL)
    history_emb = xavier((SEQ_LEN, ENC_IN))
    future_emb = xavier((PRED_LEN, ENC_IN))

    def avg_pool(x):   # AvgPool2d((3,1), stride=1, pad=(1,0)), count_include_pad
        xp = jnp.pad(x, ((1, 1), (0, 0)))
        return (xp[:-2] + xp[1:-1] + xp[2:]) / 3.0

    # Time-feature marks (node 0 column of the pooled node-embedding chain) -
    # parameter-only, so computed once here and folded into the embedding adds.
    ne1, ne2 = history_emb, future_emb
    mh, mf = [], []
    for _ in range(NUM_TIME_FEATURES):
        mh.append(ne1[:, 0])
        mf.append(ne2[:, 0])
        ne1 = avg_pool(ne1)
        ne2 = avg_pool(ne2)
    mark_enc = jnp.stack(mh, axis=-1)                            # (SEQ_LEN, F)
    mark_fut = jnp.stack(mf, axis=-1)                            # (PRED_LEN, F)
    mark_dec = jnp.concatenate([mark_enc[SEQ_LEN - LABEL_LEN:], mark_fut], 0)

    # --- DataEmbedding (enc / dec): token-conv taps + fused additive term ---
    embw_rows, embadd_rows = [], []
    for marks in (mark_enc, mark_dec):
        w_conv = rnd((D_MODEL, ENC_IN, 3))       # torch Conv1d weight layout
        for t in range(3):                       # tap 0: x[i-1], 1: x[i], 2: x[i+1]
            embw_rows.append(jnp.transpose(w_conv[:, :, t]))     # (C, D)
        w_time = rnd((NUM_TIME_FEATURES, D_MODEL))               # timeF linear
        b_time = jnp.zeros((D_MODEL,), _F32)
        embadd_rows.append(marks @ w_time + pe[:SEQ_LEN] + b_time[None, :])
    embw = jnp.stack(embw_rows, 0)               # (6, ENC_IN, D_MODEL)
    embadd = jnp.stack(embadd_rows, 0)           # (2, SEQ_LEN, D_MODEL)

    # --- constant circular-shift permutations for the k=3 conv ---
    idx = jnp.arange(SEQ_LEN)
    s_prev = (idx[None, :] == ((idx[:, None] - 1) % SEQ_LEN)).astype(_F32)
    s_next = (idx[None, :] == ((idx[:, None] + 1) % SEQ_LEN)).astype(_F32)
    shifts = jnp.stack([s_prev, s_next], 0)      # (2, 16, 16)

    # --- attention packs: a = 0 enc0, 1 enc1, 2 dec-self(mix), 3 cross ---
    qkv_slabs, wo_list, bo_list = [], [], []
    for _ in range(4):
        wq, wk, wv, wo = (rnd((D_MODEL, D_MODEL)) for _ in range(4))
        # softmax 1/sqrt(Dh) scale folded into the Q weights (biases are zero).
        wqkv = jnp.concatenate([wq * _SCALE, wk, wv], axis=1)    # (D, 3D)
        bqkv = jnp.zeros((1, 3 * D_MODEL), _F32)
        qkv_slabs.append(jnp.concatenate([wqkv, bqkv], axis=0))  # (D+1, 3D)
        wo_list.append(wo)
        bo_list.append(jnp.zeros((1, D_MODEL), _F32))
    qkv = jnp.stack(qkv_slabs, 0)                # (4, 65, 192)

    # --- FFN weights (enc layer 0, enc layer 1, dec layer) ---
    w1_list = [rnd((D_MODEL, D_FF)) for _ in range(3)]
    w2_list = [rnd((D_FF, D_MODEL)) for _ in range(3)]
    mats = jnp.stack(wo_list + w1_list + w2_list, 0)             # (10, 64, 64)

    b1_list = [jnp.zeros((1, D_FF), _F32) for _ in range(3)]
    b2_list = [jnp.zeros((1, D_MODEL), _F32) for _ in range(3)]
    ln_rows = []
    for _ in range(9):                     # enc0(2), enc1(2), enc_norm,
        ln_rows.append(jnp.ones((1, D_MODEL), _F32))   # dec(3), dec_norm
        ln_rows.append(jnp.zeros((1, D_MODEL), _F32))
    vecs = jnp.stack(bo_list + b1_list + b2_list + ln_rows, 0)   # (28, 1, 64)

    # --- head-batched attention masks + mix pick constants ---
    r = jnp.arange(HL)
    rh, rl = r[:, None] // SEQ_LEN, r[:, None] % SEQ_LEN
    ch, cl = r[None, :] // SEQ_LEN, r[None, :] % SEQ_LEN
    blockdiag = jnp.where(rh == ch, 0.0, _NEG)
    causal = jnp.where((rh == ch) & (cl <= rl), 0.0, _NEG)
    # mix pick: P[j*L + l, m] = 1 iff m == H*l + j  (Informer transpose+view)
    mixsel = (r[None, :] == (N_HEADS * rl + rh)).astype(_F32)
    sel = jnp.stack([blockdiag, causal, mixsel], 0).astype(_F32)  # (3, 64, 64)

    # --- final projection (weight rows 0..D-1, bias row D) ---
    proj = jnp.concatenate([rnd((D_MODEL, C_OUT)),
                            jnp.zeros((1, C_OUT), _F32)], axis=0)  # (65, 4)

    weights = (embw, embadd, shifts, qkv, mats, vecs, sel, proj)
    return dict(history_emb=history_emb, future_emb=future_emb, weights=weights)


# ----------------------------------- main -------------------------------------
if __name__ == "__main__":
    params = init_params(0)
    kh, kf = jax.random.split(jax.random.PRNGKey(0))
    history_data = jax.random.normal(kh, (BATCH, ENC_IN, SEQ_LEN), _F32)
    future_data = jax.random.normal(kf, (BATCH, ENC_IN, PRED_LEN), _F32)

    fwd = jax.jit(informer_forward)
    out = jax.block_until_ready(fwd(params, history_data, future_data))

    assert out.shape == (BATCH, C_OUT, PRED_LEN), out.shape
    assert bool(jnp.all(jnp.isfinite(out)))
    print("KERNEL_OK")
</pallas_src>

<mosaic_0001>
module attributes {stable_mosaic.version = 11 : i64} {
  func.func @_informer_kernel(%arg0: i32, %arg1: memref<1x16x4xf32, #tpu.memory_space<vmem>>, %arg2: memref<6x4x64xf32, #tpu.memory_space<vmem>>, %arg3: memref<2x16x64xf32, #tpu.memory_space<vmem>>, %arg4: memref<2x16x16xf32, #tpu.memory_space<vmem>>, %arg5: memref<4x65x192xf32, #tpu.memory_space<vmem>>, %arg6: memref<10x64x64xf32, #tpu.memory_space<vmem>>, %arg7: memref<28x1x64xf32, #tpu.memory_space<vmem>>, %arg8: memref<3x64x64xf32, #tpu.memory_space<vmem>>, %arg9: memref<65x4xf32, #tpu.memory_space<vmem>>, %arg10: memref<1x16x4xf32, #tpu.memory_space<vmem>>) attributes {dimension_semantics = [#tpu.dimension_semantics<parallel>], iteration_bounds = array<i64: 2>, scalar_prefetch = 0 : i64, scratch_operands = 0 : i64, tpu.core_type = #tpu.core_type<tc>, window_params = [{transform_indices = @transform_0, window_bounds = array<i64: 1, 16, 4>}, {pipeline_mode = #tpu.pipeline_mode<synchronous>, transform_indices = @transform_1, window_bounds = array<i64: 6, 4, 64>}, {pipeline_mode = #tpu.pipeline_mode<synchronous>, transform_indices = @transform_2, window_bounds = array<i64: 2, 16, 64>}, {pipeline_mode = #tpu.pipeline_mode<synchronous>, transform_indices = @transform_3, window_bounds = array<i64: 2, 16, 16>}, {pipeline_mode = #tpu.pipeline_mode<synchronous>, transform_indices = @transform_4, window_bounds = array<i64: 4, 65, 192>}, {pipeline_mode = #tpu.pipeline_mode<synchronous>, transform_indices = @transform_5, window_bounds = array<i64: 10, 64, 64>}, {pipeline_mode = #tpu.pipeline_mode<synchronous>, transform_indices = @transform_6, window_bounds = array<i64: 28, 1, 64>}, {pipeline_mode = #tpu.pipeline_mode<synchronous>, transform_indices = @transform_7, window_bounds = array<i64: 3, 64, 64>}, {pipeline_mode = #tpu.pipeline_mode<synchronous>, transform_indices = @transform_8, window_bounds = array<i64: 65, 4>}, {transform_indices = @transform_9, window_bounds = array<i64: 1, 16, 4>}]} {
    %c0 = arith.constant 0 : index
    %c0_0 = arith.constant 0 : index
    %c0_1 = arith.constant 0 : index
    %0 = vector.load %arg4[%c0, %c0_0, %c0_1] : memref<2x16x16xf32, #tpu.memory_space<vmem>>, vector<1x16x16xf32>
    %1 = vector.shape_cast %0 : vector<1x16x16xf32> to vector<16x16xf32>
    %c1 = arith.constant 1 : index
    %c0_2 = arith.constant 0 : index
    %c0_3 = arith.constant 0 : index
    %2 = vector.load %arg4[%c1, %c0_2, %c0_3] : memref<2x16x16xf32, #tpu.memory_space<vmem>>, vector<1x16x16xf32>
    %3 = vector.shape_cast %2 : vector<1x16x16xf32> to vector<16x16xf32>
    %c0_4 = arith.constant 0 : index
    %c0_5 = arith.constant 0 : index
    %c0_6 = arith.constant 0 : index
    %4 = vector.load %arg1[%c0_4, %c0_5, %c0_6] : memref<1x16x4xf32, #tpu.memory_space<vmem>>, vector<1x16x4xf32>
    %5 = vector.shape_cast %4 : vector<1x16x4xf32> to vector<16x4xf32>
    %cst = arith.constant dense<0.000000e+00> : vector<16x4xf32>
    %6 = tpu.matmul %1, %5, %cst {dimension_numbers = #tpu.dot_dimension_numbers<[1], [0], [0], [1], [0, 0, 1, 1], [], []>} : vector<16x16xf32>, vector<16x4xf32>, vector<16x4xf32> -> vector<16x4xf32>
    %c0_7 = arith.constant 0 : index
    %c0_8 = arith.constant 0 : index
    %c0_9 = arith.constant 0 : index
    %7 = vector.load %arg2[%c0_7, %c0_8, %c0_9] : memref<6x4x64xf32, #tpu.memory_space<vmem>>, vector<1x4x64xf32>
    %8 = vector.shape_cast %7 : vector<1x4x64xf32> to vector<4x64xf32>
    %cst_10 = arith.constant dense<0.000000e+00> : vector<16x64xf32>
    %9 = tpu.matmul %6, %8, %cst_10 {dimension_numbers = #tpu.dot_dimension_numbers<[1], [0], [0], [1], [0, 0, 1, 1], [], []>} : vector<16x4xf32>, vector<4x64xf32>, vector<16x64xf32> -> vector<16x64xf32>
    %c1_11 = arith.constant 1 : index
    %c0_12 = arith.constant 0 : index
    %c0_13 = arith.constant 0 : index
    %10 = vector.load %arg2[%c1_11, %c0_12, %c0_13] : memref<6x4x64xf32, #tpu.memory_space<vmem>>, vector<1x4x64xf32>
    %11 = vector.shape_cast %10 : vector<1x4x64xf32> to vector<4x64xf32>
    %cst_14 = arith.constant dense<0.000000e+00> : vector<16x64xf32>
    %12 = tpu.matmul %5, %11, %cst_14 {dimension_numbers = #tpu.dot_dimension_numbers<[1], [0], [0], [1], [0, 0, 1, 1], [], []>} : vector<16x4xf32>, vector<4x64xf32>, vector<16x64xf32> -> vector<16x64xf32>
    %13 = arith.addf %9, %12 : vector<16x64xf32>
    %cst_15 = arith.constant dense<0.000000e+00> : vector<16x4xf32>
    %14 = tpu.matmul %3, %5, %cst_15 {dimension_numbers = #tpu.dot_dimension_numbers<[1], [0], [0], [1], [0, 0, 1, 1], [], []>} : vector<16x16xf32>, vector<16x4xf32>, vector<16x4xf32> -> vector<16x4xf32>
    %c2 = arith.constant 2 : index
    %c0_16 = arith.constant 0 : index
    %c0_17 = arith.constant 0 : index
    %15 = vector.load %arg2[%c2, %c0_16, %c0_17] : memref<6x4x64xf32, #tpu.memory_space<vmem>>, vector<1x4x64xf32>
    %16 = vector.shape_cast %15 : vector<1x4x64xf32> to vector<4x64xf32>
    %cst_18 = arith.constant dense<0.000000e+00> : vector<16x64xf32>
    %17 = tpu.matmul %14, %16, %cst_18 {dimension_numbers = #tpu.dot_dimension_numbers<[1], [0], [0], [1], [0, 0, 1, 1], [], []>} : vector<16x4xf32>, vector<4x64xf32>, vector<16x64xf32> -> vector<16x64xf32>
    %18 = arith.addf %13, %17 : vector<16x64xf32>
    %c0_19 = arith.constant 0 : index
    %c0_20 = arith.constant 0 : index
    %c0_21 = arith.constant 0 : index
    %19 = vector.load %arg3[%c0_19, %c0_20, %c0_21] : memref<2x16x64xf32, #tpu.memory_space<vmem>>, vector<1x16x64xf32>
    %20 = vector.shape_cast %19 : vector<1x16x64xf32> to vector<16x64xf32>
    %21 = arith.addf %18, %20 : vector<16x64xf32>
    %c0_22 = arith.constant 0 : index
    %c0_23 = arith.constant 0 : index
    %c0_24 = arith.constant 0 : index
    %22 = vector.load %arg5[%c0_22, %c0_23, %c0_24] : memref<4x65x192xf32, #tpu.memory_space<vmem>>, vector<1x65x192xf32>
    %23 = vector.shape_cast %22 : vector<1x65x192xf32> to vector<65x192xf32>
    %24 = vector.extract_strided_slice %23 {offsets = [0, 0], sizes = [64, 192], strides = [1, 1]} : vector<65x192xf32> to vector<64x192xf32>
    %25 = vector.extract_strided_slice %23 {offsets = [64, 0], sizes = [1, 192], strides = [1, 1]} : vector<65x192xf32> to vector<1x192xf32>
    %cst_25 = arith.constant dense<0.000000e+00> : vector<16x192xf32>
    %26 = tpu.matmul %21, %24, %cst_25 {dimension_numbers = #tpu.dot_dimension_numbers<[1], [0], [0], [1], [0, 0, 1, 1], [], []>} : vector<16x64xf32>, vector<64x192xf32>, vector<16x192xf32> -> vector<16x192xf32>
    %27 = vector.broadcast %25 : vector<1x192xf32> to vector<16x192xf32>
    %28 = arith.addf %26, %27 : vector<16x192xf32>
    %29 = vector.extract_strided_slice %28 {offsets = [0, 0], sizes = [16, 64], strides = [1, 1]} : vector<16x192xf32> to vector<16x64xf32>
    %30 = vector.extract_strided_slice %28 {offsets = [0, 64], sizes = [16, 64], strides = [1, 1]} : vector<16x192xf32> to vector<16x64xf32>
    %31 = vector.extract_strided_slice %28 {offsets = [0, 128], sizes = [16, 64], strides = [1, 1]} : vector<16x192xf32> to vector<16x64xf32>
    %32 = vector.extract_strided_slice %29 {offsets = [0, 0], sizes = [16, 16], strides = [1, 1]} : vector<16x64xf32> to vector<16x16xf32>
    %33 = vector.extract_strided_slice %29 {offsets = [0, 16], sizes = [16, 16], strides = [1, 1]} : vector<16x64xf32> to vector<16x16xf32>
    %34 = vector.extract_strided_slice %29 {offsets = [0, 32], sizes = [16, 16], strides = [1, 1]} : vector<16x64xf32> to vector<16x16xf32>
    %35 = vector.extract_strided_slice %29 {offsets = [0, 48], sizes = [16, 16], strides = [1, 1]} : vector<16x64xf32> to vector<16x16xf32>
    %36 = tpu.concatenate %32, %33, %34, %35 in 0 : vector<16x16xf32>, vector<16x16xf32>, vector<16x16xf32>, vector<16x16xf32> -> vector<64x16xf32>
    %37 = vector.extract_strided_slice %30 {offsets = [0, 0], sizes = [16, 16], strides = [1, 1]} : vector<16x64xf32> to vector<16x16xf32>
    %38 = vector.extract_strided_slice %30 {offsets = [0, 16], sizes = [16, 16], strides = [1, 1]} : vector<16x64xf32> to vector<16x16xf32>
    %39 = vector.extract_strided_slice %30 {offsets = [0, 32], sizes = [16, 16], strides = [1, 1]} : vector<16x64xf32> to vector<16x16xf32>
    %40 = vector.extract_strided_slice %30 {offsets = [0, 48], sizes = [16, 16], strides = [1, 1]} : vector<16x64xf32> to vector<16x16xf32>
    %41 = tpu.concatenate %37, %38, %39, %40 in 0 : vector<16x16xf32>, vector<16x16xf32>, vector<16x16xf32>, vector<16x16xf32> -> vector<64x16xf32>
    %42 = vector.extract_strided_slice %31 {offsets = [0, 0], sizes = [16, 16], strides = [1, 1]} : vector<16x64xf32> to vector<16x16xf32>
    %43 = vector.extract_strided_slice %31 {offsets = [0, 16], sizes = [16, 16], strides = [1, 1]} : vector<16x64xf32> to vector<16x16xf32>
    %44 = vector.extract_strided_slice %31 {offsets = [0, 32], sizes = [16, 16], strides = [1, 1]} : vector<16x64xf32> to vector<16x16xf32>
    %45 = vector.extract_strided_slice %31 {offsets = [0, 48], sizes = [16, 16], strides = [1, 1]} : vector<16x64xf32> to vector<16x16xf32>
    %46 = tpu.concatenate %42, %43, %44, %45 in 0 : vector<16x16xf32>, vector<16x16xf32>, vector<16x16xf32>, vector<16x16xf32> -> vector<64x16xf32>
    %cst_26 = arith.constant dense<0.000000e+00> : vector<64x64xf32>
    %47 = tpu.matmul %36, %41, %cst_26 {dimension_numbers = #tpu.dot_dimension_numbers<[1], [1], [0], [0], [0, 0, 1, 0], [], []>} : vector<64x16xf32>, vector<64x16xf32>, vector<64x64xf32> -> vector<64x64xf32>
    %c0_27 = arith.constant 0 : index
    %c0_28 = arith.constant 0 : index
    %c0_29 = arith.constant 0 : index
    %48 = vector.load %arg8[%c0_27, %c0_28, %c0_29] : memref<3x64x64xf32, #tpu.memory_space<vmem>>, vector<1x64x64xf32>
    %49 = vector.shape_cast %48 : vector<1x64x64xf32> to vector<64x64xf32>
    %50 = arith.addf %47, %49 : vector<64x64xf32>
    %cst_30 = arith.constant dense<0xFF800000> : vector<64xf32>
    %51 = vector.multi_reduction <maximumf>, %50, %cst_30 [1] : vector<64x64xf32> to vector<64xf32>
    %52 = vector.shape_cast %51 : vector<64xf32> to vector<64x1xf32>
    %53 = vector.broadcast %52 : vector<64x1xf32> to vector<64x64xf32>
    %54 = arith.subf %50, %53 : vector<64x64xf32>
    %55 = math.exp %54 : vector<64x64xf32>
    %cst_31 = arith.constant dense<0.000000e+00> : vector<64xf32>
    %56 = vector.multi_reduction <add>, %55, %cst_31 [1] : vector<64x64xf32> to vector<64xf32>
    %57 = vector.shape_cast %56 : vector<64xf32> to vector<64x1xf32>
    %58 = vector.broadcast %57 : vector<64x1xf32> to vector<64x64xf32>
    %59 = arith.divf %55, %58 : vector<64x64xf32>
    %cst_32 = arith.constant dense<0.000000e+00> : vector<64x16xf32>
    %60 = tpu.matmul %59, %46, %cst_32 {dimension_numbers = #tpu.dot_dimension_numbers<[1], [0], [0], [1], [0, 0, 1, 1], [], []>} : vector<64x64xf32>, vector<64x16xf32>, vector<64x16xf32> -> vector<64x16xf32>
    %c0_33 = arith.constant 0 : index
    %c0_34 = arith.constant 0 : index
    %c0_35 = arith.constant 0 : index
    %61 = vector.load %arg6[%c0_33, %c0_34, %c0_35] : memref<10x64x64xf32, #tpu.memory_space<vmem>>, vector<1x64x64xf32>
    %62 = vector.shape_cast %61 : vector<1x64x64xf32> to vector<64x64xf32>
    %63 = vector.extract_strided_slice %60 {offsets = [0, 0], sizes = [16, 16], strides = [1, 1]} : vector<64x16xf32> to vector<16x16xf32>
    %64 = vector.extract_strided_slice %62 {offsets = [0, 0], sizes = [16, 64], strides = [1, 1]} : vector<64x64xf32> to vector<16x64xf32>
    %cst_36 = arith.constant dense<0.000000e+00> : vector<16x64xf32>
    %65 = tpu.matmul %63, %64, %cst_36 {dimension_numbers = #tpu.dot_dimension_numbers<[1], [0], [0], [1], [0, 0, 1, 1], [], []>} : vector<16x16xf32>, vector<16x64xf32>, vector<16x64xf32> -> vector<16x64xf32>
    %66 = vector.extract_strided_slice %60 {offsets = [16, 0], sizes = [16, 16], strides = [1, 1]} : vector<64x16xf32> to vector<16x16xf32>
    %67 = vector.extract_strided_slice %62 {offsets = [16, 0], sizes = [16, 64], strides = [1, 1]} : vector<64x64xf32> to vector<16x64xf32>
    %cst_37 = arith.constant dense<0.000000e+00> : vector<16x64xf32>
    %68 = tpu.matmul %66, %67, %cst_37 {dimension_numbers = #tpu.dot_dimension_numbers<[1], [0], [0], [1], [0, 0, 1, 1], [], []>} : vector<16x16xf32>, vector<16x64xf32>, vector<16x64xf32> -> vector<16x64xf32>
    %69 = arith.addf %65, %68 : vector<16x64xf32>
    %70 = vector.extract_strided_slice %60 {offsets = [32, 0], sizes = [16, 16], strides = [1, 1]} : vector<64x16xf32> to vector<16x16xf32>
    %71 = vector.extract_strided_slice %62 {offsets = [32, 0], sizes = [16, 64], strides = [1, 1]} : vector<64x64xf32> to vector<16x64xf32>
    %cst_38 = arith.constant dense<0.000000e+00> : vector<16x64xf32>
    %72 = tpu.matmul %70, %71, %cst_38 {dimension_numbers = #tpu.dot_dimension_numbers<[1], [0], [0], [1], [0, 0, 1, 1], [], []>} : vector<16x16xf32>, vector<16x64xf32>, vector<16x64xf32> -> vector<16x64xf32>
    %73 = arith.addf %69, %72 : vector<16x64xf32>
    %74 = vector.extract_strided_slice %60 {offsets = [48, 0], sizes = [16, 16], strides = [1, 1]} : vector<64x16xf32> to vector<16x16xf32>
    %75 = vector.extract_strided_slice %62 {offsets = [48, 0], sizes = [16, 64], strides = [1, 1]} : vector<64x64xf32> to vector<16x64xf32>
    %cst_39 = arith.constant dense<0.000000e+00> : vector<16x64xf32>
    %76 = tpu.matmul %74, %75, %cst_39 {dimension_numbers = #tpu.dot_dimension_numbers<[1], [0], [0], [1], [0, 0, 1, 1], [], []>} : vector<16x16xf32>, vector<16x64xf32>, vector<16x64xf32> -> vector<16x64xf32>
    %77 = arith.addf %73, %76 : vector<16x64xf32>
    %c0_40 = arith.constant 0 : index
    %c0_41 = arith.constant 0 : index
    %c0_42 = arith.constant 0 : index
    %78 = vector.load %arg7[%c0_40, %c0_41, %c0_42] : memref<28x1x64xf32, #tpu.memory_space<vmem>>, vector<1x1x64xf32>
    %79 = vector.shape_cast %78 : vector<1x1x64xf32> to vector<1x64xf32>
    %80 = vector.broadcast %79 : vector<1x64xf32> to vector<16x64xf32>
    %81 = arith.addf %77, %80 : vector<16x64xf32>
    %82 = arith.addf %21, %81 : vector<16x64xf32>
    %c10 = arith.constant 10 : index
    %c0_43 = arith.constant 0 : index
    %c0_44 = arith.constant 0 : index
    %83 = vector.load %arg7[%c10, %c0_43, %c0_44] : memref<28x1x64xf32, #tpu.memory_space<vmem>>, vector<1x1x64xf32>
    %84 = vector.shape_cast %83 : vector<1x1x64xf32> to vector<1x64xf32>
    %c11 = arith.constant 11 : index
    %c0_45 = arith.constant 0 : index
    %c0_46 = arith.constant 0 : index
    %85 = vector.load %arg7[%c11, %c0_45, %c0_46] : memref<28x1x64xf32, #tpu.memory_space<vmem>>, vector<1x1x64xf32>
    %86 = vector.shape_cast %85 : vector<1x1x64xf32> to vector<1x64xf32>
    %cst_47 = arith.constant dense<0.000000e+00> : vector<16xf32>
    %87 = vector.multi_reduction <add>, %82, %cst_47 [1] : vector<16x64xf32> to vector<16xf32>
    %88 = vector.shape_cast %87 : vector<16xf32> to vector<16x1xf32>
    %cst_48 = arith.constant 6.400000e+01 : f32
    %89 = vector.broadcast %cst_48 : f32 to vector<16x1xf32>
    %90 = arith.divf %88, %89 : vector<16x1xf32>
    %91 = vector.broadcast %90 : vector<16x1xf32> to vector<16x64xf32>
    %92 = arith.subf %82, %91 : vector<16x64xf32>
    %93 = arith.mulf %92, %92 : vector<16x64xf32>
    %cst_49 = arith.constant dense<0.000000e+00> : vector<16xf32>
    %94 = vector.multi_reduction <add>, %93, %cst_49 [1] : vector<16x64xf32> to vector<16xf32>
    %95 = vector.shape_cast %94 : vector<16xf32> to vector<16x1xf32>
    %cst_50 = arith.constant 6.400000e+01 : f32
    %96 = vector.broadcast %cst_50 : f32 to vector<16x1xf32>
    %97 = arith.divf %95, %96 : vector<16x1xf32>
    %cst_51 = arith.constant 9.99999974E-6 : f32
    %98 = vector.broadcast %cst_51 : f32 to vector<16x1xf32>
    %99 = arith.addf %97, %98 : vector<16x1xf32>
    %100 = math.rsqrt %99 : vector<16x1xf32>
    %101 = vector.broadcast %100 : vector<16x1xf32> to vector<16x64xf32>
    %102 = arith.mulf %92, %101 : vector<16x64xf32>
    %103 = vector.broadcast %84 : vector<1x64xf32> to vector<16x64xf32>
    %104 = arith.mulf %102, %103 : vector<16x64xf32>
    %105 = vector.broadcast %86 : vector<1x64xf32> to vector<16x64xf32>
    %106 = arith.addf %104, %105 : vector<16x64xf32>
    %c4 = arith.constant 4 : index
    %c0_52 = arith.constant 0 : index
    %c0_53 = arith.constant 0 : index
    %107 = vector.load %arg6[%c4, %c0_52, %c0_53] : memref<10x64x64xf32, #tpu.memory_space<vmem>>, vector<1x64x64xf32>
    %108 = vector.shape_cast %107 : vector<1x64x64xf32> to vector<64x64xf32>
    %cst_54 = arith.constant dense<0.000000e+00> : vector<16x64xf32>
    %109 = tpu.matmul %106, %108, %cst_54 {dimension_numbers = #tpu.dot_dimension_numbers<[1], [0], [0], [1], [0, 0, 1, 1], [], []>} : vector<16x64xf32>, vector<64x64xf32>, vector<16x64xf32> -> vector<16x64xf32>
    %c4_55 = arith.constant 4 : index
    %c0_56 = arith.constant 0 : index
    %c0_57 = arith.constant 0 : index
    %110 = vector.load %arg7[%c4_55, %c0_56, %c0_57] : memref<28x1x64xf32, #tpu.memory_space<vmem>>, vector<1x1x64xf32>
    %111 = vector.shape_cast %110 : vector<1x1x64xf32> to vector<1x64xf32>
    %112 = vector.broadcast %111 : vector<1x64xf32> to vector<16x64xf32>
    %113 = arith.addf %109, %112 : vector<16x64xf32>
    %cst_58 = arith.constant 5.000000e-01 : f32
    %114 = vector.broadcast %cst_58 : f32 to vector<16x64xf32>
    %115 = arith.mulf %114, %113 : vector<16x64xf32>
    %cst_59 = arith.constant 0.707106769 : f32
    %116 = vector.broadcast %cst_59 : f32 to vector<16x64xf32>
    %117 = arith.mulf %113, %116 : vector<16x64xf32>
    %cst_60 = arith.constant 0.000000e+00 : f32
    %118 = vector.broadcast %cst_60 : f32 to vector<16x64xf32>
    %119 = arith.cmpf olt, %117, %118 : vector<16x64xf32>
    %cst_61 = arith.constant -1.000000e+00 : f32
    %cst_62 = arith.constant 1.000000e+00 : f32
    %120 = vector.broadcast %cst_61 : f32 to vector<16x64xf32>
    %121 = vector.broadcast %cst_62 : f32 to vector<16x64xf32>
    %122 = arith.select %119, %120, %121 : vector<16x64xi1>, vector<16x64xf32>
    %123 = math.absf %117 : vector<16x64xf32>
    %cst_63 = arith.constant 0.327591091 : f32
    %124 = vector.broadcast %cst_63 : f32 to vector<16x64xf32>
    %125 = arith.mulf %124, %123 : vector<16x64xf32>
    %cst_64 = arith.constant 1.000000e+00 : f32
    %126 = vector.broadcast %cst_64 : f32 to vector<16x64xf32>
    %127 = arith.addf %126, %125 : vector<16x64xf32>
    %cst_65 = arith.constant 1.000000e+00 : f32
    %128 = vector.broadcast %cst_65 : f32 to vector<16x64xf32>
    %129 = arith.divf %128, %127 : vector<16x64xf32>
    %cst_66 = arith.constant 1.06140542 : f32
    %130 = vector.broadcast %cst_66 : f32 to vector<16x64xf32>
    %131 = arith.mulf %130, %129 : vector<16x64xf32>
    %cst_67 = arith.constant -1.45315206 : f32
    %132 = vector.broadcast %cst_67 : f32 to vector<16x64xf32>
    %133 = arith.addf %131, %132 : vector<16x64xf32>
    %134 = arith.mulf %133, %129 : vector<16x64xf32>
    %cst_68 = arith.constant 1.42141378 : f32
    %135 = vector.broadcast %cst_68 : f32 to vector<16x64xf32>
    %136 = arith.addf %134, %135 : vector<16x64xf32>
    %137 = arith.mulf %136, %129 : vector<16x64xf32>
    %cst_69 = arith.constant -0.284496725 : f32
    %138 = vector.broadcast %cst_69 : f32 to vector<16x64xf32>
    %139 = arith.addf %137, %138 : vector<16x64xf32>
    %140 = arith.mulf %139, %129 : vector<16x64xf32>
    %cst_70 = arith.constant 0.254829586 : f32
    %141 = vector.broadcast %cst_70 : f32 to vector<16x64xf32>
    %142 = arith.addf %140, %141 : vector<16x64xf32>
    %143 = arith.mulf %142, %129 : vector<16x64xf32>
    %cst_71 = arith.constant 0.000000e+00 : f32
    %144 = vector.broadcast %cst_71 : f32 to vector<16x64xf32>
    %145 = arith.subf %144, %123 : vector<16x64xf32>
    %146 = arith.mulf %145, %123 : vector<16x64xf32>
    %147 = math.exp %146 : vector<16x64xf32>
    %148 = arith.mulf %143, %147 : vector<16x64xf32>
    %cst_72 = arith.constant 1.000000e+00 : f32
    %149 = vector.broadcast %cst_72 : f32 to vector<16x64xf32>
    %150 = arith.subf %149, %148 : vector<16x64xf32>
    %151 = arith.mulf %122, %150 : vector<16x64xf32>
    %cst_73 = arith.constant 1.000000e+00 : f32
    %152 = vector.broadcast %cst_73 : f32 to vector<16x64xf32>
    %153 = arith.addf %152, %151 : vector<16x64xf32>
    %154 = arith.mulf %115, %153 : vector<16x64xf32>
    %c7 = arith.constant 7 : index
    %c0_74 = arith.constant 0 : index
    %c0_75 = arith.constant 0 : index
    %155 = vector.load %arg6[%c7, %c0_74, %c0_75] : memref<10x64x64xf32, #tpu.memory_space<vmem>>, vector<1x64x64xf32>
    %156 = vector.shape_cast %155 : vector<1x64x64xf32> to vector<64x64xf32>
    %cst_76 = arith.constant dense<0.000000e+00> : vector<16x64xf32>
    %157 = tpu.matmul %154, %156, %cst_76 {dimension_numbers = #tpu.dot_dimension_numbers<[1], [0], [0], [1], [0, 0, 1, 1], [], []>} : vector<16x64xf32>, vector<64x64xf32>, vector<16x64xf32> -> vector<16x64xf32>
    %c7_77 = arith.constant 7 : index
    %c0_78 = arith.constant 0 : index
    %c0_79 = arith.constant 0 : index
    %158 = vector.load %arg7[%c7_77, %c0_78, %c0_79] : memref<28x1x64xf32, #tpu.memory_space<vmem>>, vector<1x1x64xf32>
    %159 = vector.shape_cast %158 : vector<1x1x64xf32> to vector<1x64xf32>
    %160 = vector.broadcast %159 : vector<1x64xf32> to vector<16x64xf32>
    %161 = arith.addf %157, %160 : vector<16x64xf32>
    %162 = arith.addf %106, %161 : vector<16x64xf32>
    %c12 = arith.constant 12 : index
    %c0_80 = arith.constant 0 : index
    %c0_81 = arith.constant 0 : index
    %163 = vector.load %arg7[%c12, %c0_80, %c0_81] : memref<28x1x64xf32, #tpu.memory_space<vmem>>, vector<1x1x64xf32>
    %164 = vector.shape_cast %163 : vector<1x1x64xf32> to vector<1x64xf32>
    %c13 = arith.constant 13 : index
    %c0_82 = arith.constant 0 : index
    %c0_83 = arith.constant 0 : index
    %165 = vector.load %arg7[%c13, %c0_82, %c0_83] : memref<28x1x64xf32, #tpu.memory_space<vmem>>, vector<1x1x64xf32>
    %166 = vector.shape_cast %165 : vector<1x1x64xf32> to vector<1x64xf32>
    %cst_84 = arith.constant dense<0.000000e+00> : vector<16xf32>
    %167 = vector.multi_reduction <add>, %162, %cst_84 [1] : vector<16x64xf32> to vector<16xf32>
    %168 = vector.shape_cast %167 : vector<16xf32> to vector<16x1xf32>
    %cst_85 = arith.constant 6.400000e+01 : f32
    %169 = vector.broadcast %cst_85 : f32 to vector<16x1xf32>
    %170 = arith.divf %168, %169 : vector<16x1xf32>
    %171 = vector.broadcast %170 : vector<16x1xf32> to vector<16x64xf32>
    %172 = arith.subf %162, %171 : vector<16x64xf32>
    %173 = arith.mulf %172, %172 : vector<16x64xf32>
    %cst_86 = arith.constant dense<0.000000e+00> : vector<16xf32>
    %174 = vector.multi_reduction <add>, %173, %cst_86 [1] : vector<16x64xf32> to vector<16xf32>
    %175 = vector.shape_cast %174 : vector<16xf32> to vector<16x1xf32>
    %cst_87 = arith.constant 6.400000e+01 : f32
    %176 = vector.broadcast %cst_87 : f32 to vector<16x1xf32>
    %177 = arith.divf %175, %176 : vector<16x1xf32>
    %cst_88 = arith.constant 9.99999974E-6 : f32
    %178 = vector.broadcast %cst_88 : f32 to vector<16x1xf32>
    %179 = arith.addf %177, %178 : vector<16x1xf32>
    %180 = math.rsqrt %179 : vector<16x1xf32>
    %181 = vector.broadcast %180 : vector<16x1xf32> to vector<16x64xf32>
    %182 = arith.mulf %172, %181 : vector<16x64xf32>
    %183 = vector.broadcast %164 : vector<1x64xf32> to vector<16x64xf32>
    %184 = arith.mulf %182, %183 : vector<16x64xf32>
    %185 = vector.broadcast %166 : vector<1x64xf32> to vector<16x64xf32>
    %186 = arith.addf %184, %185 : vector<16x64xf32>
    %c1_89 = arith.constant 1 : index
    %c0_90 = arith.constant 0 : index
    %c0_91 = arith.constant 0 : index
    %187 = vector.load %arg5[%c1_89, %c0_90, %c0_91] : memref<4x65x192xf32, #tpu.memory_space<vmem>>, vector<1x65x192xf32>
    %188 = vector.shape_cast %187 : vector<1x65x192xf32> to vector<65x192xf32>
    %189 = vector.extract_strided_slice %188 {offsets = [0, 0], sizes = [64, 192], strides = [1, 1]} : vector<65x192xf32> to vector<64x192xf32>
    %190 = vector.extract_strided_slice %188 {offsets = [64, 0], sizes = [1, 192], strides = [1, 1]} : vector<65x192xf32> to vector<1x192xf32>
    %cst_92 = arith.constant dense<0.000000e+00> : vector<16x192xf32>
    %191 = tpu.matmul %186, %189, %cst_92 {dimension_numbers = #tpu.dot_dimension_numbers<[1], [0], [0], [1], [0, 0, 1, 1], [], []>} : vector<16x64xf32>, vector<64x192xf32>, vector<16x192xf32> -> vector<16x192xf32>
    %192 = vector.broadcast %190 : vector<1x192xf32> to vector<16x192xf32>
    %193 = arith.addf %191, %192 : vector<16x192xf32>
    %194 = vector.extract_strided_slice %193 {offsets = [0, 0], sizes = [16, 64], strides = [1, 1]} : vector<16x192xf32> to vector<16x64xf32>
    %195 = vector.extract_strided_slice %193 {offsets = [0, 64], sizes = [16, 64], strides = [1, 1]} : vector<16x192xf32> to vector<16x64xf32>
    %196 = vector.extract_strided_slice %193 {offsets = [0, 128], sizes = [16, 64], strides = [1, 1]} : vector<16x192xf32> to vector<16x64xf32>
    %197 = vector.extract_strided_slice %194 {offsets = [0, 0], sizes = [16, 16], strides = [1, 1]} : vector<16x64xf32> to vector<16x16xf32>
    %198 = vector.extract_strided_slice %194 {offsets = [0, 16], sizes = [16, 16], strides = [1, 1]} : vector<16x64xf32> to vector<16x16xf32>
    %199 = vector.extract_strided_slice %194 {offsets = [0, 32], sizes = [16, 16], strides = [1, 1]} : vector<16x64xf32> to vector<16x16xf32>
    %200 = vector.extract_strided_slice %194 {offsets = [0, 48], sizes = [16, 16], strides = [1, 1]} : vector<16x64xf32> to vector<16x16xf32>
    %201 = tpu.concatenate %197, %198, %199, %200 in 0 : vector<16x16xf32>, vector<16x16xf32>, vector<16x16xf32>, vector<16x16xf32> -> vector<64x16xf32>
    %202 = vector.extract_strided_slice %195 {offsets = [0, 0], sizes = [16, 16], strides = [1, 1]} : vector<16x64xf32> to vector<16x16xf32>
    %203 = vector.extract_strided_slice %195 {offsets = [0, 16], sizes = [16, 16], strides = [1, 1]} : vector<16x64xf32> to vector<16x16xf32>
    %204 = vector.extract_strided_slice %195 {offsets = [0, 32], sizes = [16, 16], strides = [1, 1]} : vector<16x64xf32> to vector<16x16xf32>
    %205 = vector.extract_strided_slice %195 {offsets = [0, 48], sizes = [16, 16], strides = [1, 1]} : vector<16x64xf32> to vector<16x16xf32>
    %206 = tpu.concatenate %202, %203, %204, %205 in 0 : vector<16x16xf32>, vector<16x16xf32>, vector<16x16xf32>, vector<16x16xf32> -> vector<64x16xf32>
    %207 = vector.extract_strided_slice %196 {offsets = [0, 0], sizes = [16, 16], strides = [1, 1]} : vector<16x64xf32> to vector<16x16xf32>
    %208 = vector.extract_strided_slice %196 {offsets = [0, 16], sizes = [16, 16], strides = [1, 1]} : vector<16x64xf32> to vector<16x16xf32>
    %209 = vector.extract_strided_slice %196 {offsets = [0, 32], sizes = [16, 16], strides = [1, 1]} : vector<16x64xf32> to vector<16x16xf32>
    %210 = vector.extract_strided_slice %196 {offsets = [0, 48], sizes = [16, 16], strides = [1, 1]} : vector<16x64xf32> to vector<16x16xf32>
    %211 = tpu.concatenate %207, %208, %209, %210 in 0 : vector<16x16xf32>, vector<16x16xf32>, vector<16x16xf32>, vector<16x16xf32> -> vector<64x16xf32>
    %cst_93 = arith.constant dense<0.000000e+00> : vector<64x64xf32>
    %212 = tpu.matmul %201, %206, %cst_93 {dimension_numbers = #tpu.dot_dimension_numbers<[1], [1], [0], [0], [0, 0, 1, 0], [], []>} : vector<64x16xf32>, vector<64x16xf32>, vector<64x64xf32> -> vector<64x64xf32>
    %c0_94 = arith.constant 0 : index
    %c0_95 = arith.constant 0 : index
    %c0_96 = arith.constant 0 : index
    %213 = vector.load %arg8[%c0_94, %c0_95, %c0_96] : memref<3x64x64xf32, #tpu.memory_space<vmem>>, vector<1x64x64xf32>
    %214 = vector.shape_cast %213 : vector<1x64x64xf32> to vector<64x64xf32>
    %215 = arith.addf %212, %214 : vector<64x64xf32>
    %cst_97 = arith.constant dense<0xFF800000> : vector<64xf32>
    %216 = vector.multi_reduction <maximumf>, %215, %cst_97 [1] : vector<64x64xf32> to vector<64xf32>
    %217 = vector.shape_cast %216 : vector<64xf32> to vector<64x1xf32>
    %218 = vector.broadcast %217 : vector<64x1xf32> to vector<64x64xf32>
    %219 = arith.subf %215, %218 : vector<64x64xf32>
    %220 = math.exp %219 : vector<64x64xf32>
    %cst_98 = arith.constant dense<0.000000e+00> : vector<64xf32>
    %221 = vector.multi_reduction <add>, %220, %cst_98 [1] : vector<64x64xf32> to vector<64xf32>
    %222 = vector.shape_cast %221 : vector<64xf32> to vector<64x1xf32>
    %223 = vector.broadcast %222 : vector<64x1xf32> to vector<64x64xf32>
    %224 = arith.divf %220, %223 : vector<64x64xf32>
    %cst_99 = arith.constant dense<0.000000e+00> : vector<64x16xf32>
    %225 = tpu.matmul %224, %211, %cst_99 {dimension_numbers = #tpu.dot_dimension_numbers<[1], [0], [0], [1], [0, 0, 1, 1], [], []>} : vector<64x64xf32>, vector<64x16xf32>, vector<64x16xf32> -> vector<64x16xf32>
    %c1_100 = arith.constant 1 : index
    %c0_101 = arith.constant 0 : index
    %c0_102 = arith.constant 0 : index
    %226 = vector.load %arg6[%c1_100, %c0_101, %c0_102] : memref<10x64x64xf32, #tpu.memory_space<vmem>>, vector<1x64x64xf32>
    %227 = vector.shape_cast %226 : vector<1x64x64xf32> to vector<64x64xf32>
    %228 = vector.extract_strided_slice %225 {offsets = [0, 0], sizes = [16, 16], strides = [1, 1]} : vector<64x16xf32> to vector<16x16xf32>
    %229 = vector.extract_strided_slice %227 {offsets = [0, 0], sizes = [16, 64], strides = [1, 1]} : vector<64x64xf32> to vector<16x64xf32>
    %cst_103 = arith.constant dense<0.000000e+00> : vector<16x64xf32>
    %230 = tpu.matmul %228, %229, %cst_103 {dimension_numbers = #tpu.dot_dimension_numbers<[1], [0], [0], [1], [0, 0, 1, 1], [], []>} : vector<16x16xf32>, vector<16x64xf32>, vector<16x64xf32> -> vector<16x64xf32>
    %231 = vector.extract_strided_slice %225 {offsets = [16, 0], sizes = [16, 16], strides = [1, 1]} : vector<64x16xf32> to vector<16x16xf32>
    %232 = vector.extract_strided_slice %227 {offsets = [16, 0], sizes = [16, 64], strides = [1, 1]} : vector<64x64xf32> to vector<16x64xf32>
    %cst_104 = arith.constant dense<0.000000e+00> : vector<16x64xf32>
    %233 = tpu.matmul %231, %232, %cst_104 {dimension_numbers = #tpu.dot_dimension_numbers<[1], [0], [0], [1], [0, 0, 1, 1], [], []>} : vector<16x16xf32>, vector<16x64xf32>, vector<16x64xf32> -> vector<16x64xf32>
    %234 = arith.addf %230, %233 : vector<16x64xf32>
    %235 = vector.extract_strided_slice %225 {offsets = [32, 0], sizes = [16, 16], strides = [1, 1]} : vector<64x16xf32> to vector<16x16xf32>
    %236 = vector.extract_strided_slice %227 {offsets = [32, 0], sizes = [16, 64], strides = [1, 1]} : vector<64x64xf32> to vector<16x64xf32>
    %cst_105 = arith.constant dense<0.000000e+00> : vector<16x64xf32>
    %237 = tpu.matmul %235, %236, %cst_105 {dimension_numbers = #tpu.dot_dimension_numbers<[1], [0], [0], [1], [0, 0, 1, 1], [], []>} : vector<16x16xf32>, vector<16x64xf32>, vector<16x64xf32> -> vector<16x64xf32>
    %238 = arith.addf %234, %237 : vector<16x64xf32>
    %239 = vector.extract_strided_slice %225 {offsets = [48, 0], sizes = [16, 16], strides = [1, 1]} : vector<64x16xf32> to vector<16x16xf32>
    %240 = vector.extract_strided_slice %227 {offsets = [48, 0], sizes = [16, 64], strides = [1, 1]} : vector<64x64xf32> to vector<16x64xf32>
    %cst_106 = arith.constant dense<0.000000e+00> : vector<16x64xf32>
    %241 = tpu.matmul %239, %240, %cst_106 {dimension_numbers = #tpu.dot_dimension_numbers<[1], [0], [0], [1], [0, 0, 1, 1], [], []>} : vector<16x16xf32>, vector<16x64xf32>, vector<16x64xf32> -> vector<16x64xf32>
    %242 = arith.addf %238, %241 : vector<16x64xf32>
    %c1_107 = arith.constant 1 : index
    %c0_108 = arith.constant 0 : index
    %c0_109 = arith.constant 0 : index
    %243 = vector.load %arg7[%c1_107, %c0_108, %c0_109] : memref<28x1x64xf32, #tpu.memory_space<vmem>>, vector<1x1x64xf32>
    %244 = vector.shape_cast %243 : vector<1x1x64xf32> to vector<1x64xf32>
    %245 = vector.broadcast %244 : vector<1x64xf32> to vector<16x64xf32>
    %246 = arith.addf %242, %245 : vector<16x64xf32>
    %247 = arith.addf %186, %246 : vector<16x64xf32>
    %c14 = arith.constant 14 : index
    %c0_110 = arith.constant 0 : index
    %c0_111 = arith.constant 0 : index
    %248 = vector.load %arg7[%c14, %c0_110, %c0_111] : memref<28x1x64xf32, #tpu.memory_space<vmem>>, vector<1x1x64xf32>
    %249 = vector.shape_cast %248 : vector<1x1x64xf32> to vector<1x64xf32>
    %c15 = arith.constant 15 : index
    %c0_112 = arith.constant 0 : index
    %c0_113 = arith.constant 0 : index
    %250 = vector.load %arg7[%c15, %c0_112, %c0_113] : memref<28x1x64xf32, #tpu.memory_space<vmem>>, vector<1x1x64xf32>
    %251 = vector.shape_cast %250 : vector<1x1x64xf32> to vector<1x64xf32>
    %cst_114 = arith.constant dense<0.000000e+00> : vector<16xf32>
    %252 = vector.multi_reduction <add>, %247, %cst_114 [1] : vector<16x64xf32> to vector<16xf32>
    %253 = vector.shape_cast %252 : vector<16xf32> to vector<16x1xf32>
    %cst_115 = arith.constant 6.400000e+01 : f32
    %254 = vector.broadcast %cst_115 : f32 to vector<16x1xf32>
    %255 = arith.divf %253, %254 : vector<16x1xf32>
    %256 = vector.broadcast %255 : vector<16x1xf32> to vector<16x64xf32>
    %257 = arith.subf %247, %256 : vector<16x64xf32>
    %258 = arith.mulf %257, %257 : vector<16x64xf32>
    %cst_116 = arith.constant dense<0.000000e+00> : vector<16xf32>
    %259 = vector.multi_reduction <add>, %258, %cst_116 [1] : vector<16x64xf32> to vector<16xf32>
    %260 = vector.shape_cast %259 : vector<16xf32> to vector<16x1xf32>
    %cst_117 = arith.constant 6.400000e+01 : f32
    %261 = vector.broadcast %cst_117 : f32 to vector<16x1xf32>
    %262 = arith.divf %260, %261 : vector<16x1xf32>
    %cst_118 = arith.constant 9.99999974E-6 : f32
    %263 = vector.broadcast %cst_118 : f32 to vector<16x1xf32>
    %264 = arith.addf %262, %263 : vector<16x1xf32>
    %265 = math.rsqrt %264 : vector<16x1xf32>
    %266 = vector.broadcast %265 : vector<16x1xf32> to vector<16x64xf32>
    %267 = arith.mulf %257, %266 : vector<16x64xf32>
    %268 = vector.broadcast %249 : vector<1x64xf32> to vector<16x64xf32>
    %269 = arith.mulf %267, %268 : vector<16x64xf32>
    %270 = vector.broadcast %251 : vector<1x64xf32> to vector<16x64xf32>
    %271 = arith.addf %269, %270 : vector<16x64xf32>
    %c5 = arith.constant 5 : index
    %c0_119 = arith.constant 0 : index
    %c0_120 = arith.constant 0 : index
    %272 = vector.load %arg6[%c5, %c0_119, %c0_120] : memref<10x64x64xf32, #tpu.memory_space<vmem>>, vector<1x64x64xf32>
    %273 = vector.shape_cast %272 : vector<1x64x64xf32> to vector<64x64xf32>
    %cst_121 = arith.constant dense<0.000000e+00> : vector<16x64xf32>
    %274 = tpu.matmul %271, %273, %cst_121 {dimension_numbers = #tpu.dot_dimension_numbers<[1], [0], [0], [1], [0, 0, 1, 1], [], []>} : vector<16x64xf32>, vector<64x64xf32>, vector<16x64xf32> -> vector<16x64xf32>
    %c5_122 = arith.constant 5 : index
    %c0_123 = arith.constant 0 : index
    %c0_124 = arith.constant 0 : index
    %275 = vector.load %arg7[%c5_122, %c0_123, %c0_124] : memref<28x1x64xf32, #tpu.memory_space<vmem>>, vector<1x1x64xf32>
    %276 = vector.shape_cast %275 : vector<1x1x64xf32> to vector<1x64xf32>
    %277 = vector.broadcast %276 : vector<1x64xf32> to vector<16x64xf32>
    %278 = arith.addf %274, %277 : vector<16x64xf32>
    %cst_125 = arith.constant 5.000000e-01 : f32
    %279 = vector.broadcast %cst_125 : f32 to vector<16x64xf32>
    %280 = arith.mulf %279, %278 : vector<16x64xf32>
    %cst_126 = arith.constant 0.707106769 : f32
    %281 = vector.broadcast %cst_126 : f32 to vector<16x64xf32>
    %282 = arith.mulf %278, %281 : vector<16x64xf32>
    %cst_127 = arith.constant 0.000000e+00 : f32
    %283 = vector.broadcast %cst_127 : f32 to vector<16x64xf32>
    %284 = arith.cmpf olt, %282, %283 : vector<16x64xf32>
    %cst_128 = arith.constant -1.000000e+00 : f32
    %cst_129 = arith.constant 1.000000e+00 : f32
    %285 = vector.broadcast %cst_128 : f32 to vector<16x64xf32>
    %286 = vector.broadcast %cst_129 : f32 to vector<16x64xf32>
    %287 = arith.select %284, %285, %286 : vector<16x64xi1>, vector<16x64xf32>
    %288 = math.absf %282 : vector<16x64xf32>
    %cst_130 = arith.constant 0.327591091 : f32
    %289 = vector.broadcast %cst_130 : f32 to vector<16x64xf32>
    %290 = arith.mulf %289, %288 : vector<16x64xf32>
    %cst_131 = arith.constant 1.000000e+00 : f32
    %291 = vector.broadcast %cst_131 : f32 to vector<16x64xf32>
    %292 = arith.addf %291, %290 : vector<16x64xf32>
    %cst_132 = arith.constant 1.000000e+00 : f32
    %293 = vector.broadcast %cst_132 : f32 to vector<16x64xf32>
    %294 = arith.divf %293, %292 : vector<16x64xf32>
    %cst_133 = arith.constant 1.06140542 : f32
    %295 = vector.broadcast %cst_133 : f32 to vector<16x64xf32>
    %296 = arith.mulf %295, %294 : vector<16x64xf32>
    %cst_134 = arith.constant -1.45315206 : f32
    %297 = vector.broadcast %cst_134 : f32 to vector<16x64xf32>
    %298 = arith.addf %296, %297 : vector<16x64xf32>
    %299 = arith.mulf %298, %294 : vector<16x64xf32>
    %cst_135 = arith.constant 1.42141378 : f32
    %300 = vector.broadcast %cst_135 : f32 to vector<16x64xf32>
    %301 = arith.addf %299, %300 : vector<16x64xf32>
    %302 = arith.mulf %301, %294 : vector<16x64xf32>
    %cst_136 = arith.constant -0.284496725 : f32
    %303 = vector.broadcast %cst_136 : f32 to vector<16x64xf32>
    %304 = arith.addf %302, %303 : vector<16x64xf32>
    %305 = arith.mulf %304, %294 : vector<16x64xf32>
    %cst_137 = arith.constant 0.254829586 : f32
    %306 = vector.broadcast %cst_137 : f32 to vector<16x64xf32>
    %307 = arith.addf %305, %306 : vector<16x64xf32>
    %308 = arith.mulf %307, %294 : vector<16x64xf32>
    %cst_138 = arith.constant 0.000000e+00 : f32
    %309 = vector.broadcast %cst_138 : f32 to vector<16x64xf32>
    %310 = arith.subf %309, %288 : vector<16x64xf32>
    %311 = arith.mulf %310, %288 : vector<16x64xf32>
    %312 = math.exp %311 : vector<16x64xf32>
    %313 = arith.mulf %308, %312 : vector<16x64xf32>
    %cst_139 = arith.constant 1.000000e+00 : f32
    %314 = vector.broadcast %cst_139 : f32 to vector<16x64xf32>
    %315 = arith.subf %314, %313 : vector<16x64xf32>
    %316 = arith.mulf %287, %315 : vector<16x64xf32>
    %cst_140 = arith.constant 1.000000e+00 : f32
    %317 = vector.broadcast %cst_140 : f32 to vector<16x64xf32>
    %318 = arith.addf %317, %316 : vector<16x64xf32>
    %319 = arith.mulf %280, %318 : vector<16x64xf32>
    %c8 = arith.constant 8 : index
    %c0_141 = arith.constant 0 : index
    %c0_142 = arith.constant 0 : index
    %320 = vector.load %arg6[%c8, %c0_141, %c0_142] : memref<10x64x64xf32, #tpu.memory_space<vmem>>, vector<1x64x64xf32>
    %321 = vector.shape_cast %320 : vector<1x64x64xf32> to vector<64x64xf32>
    %cst_143 = arith.constant dense<0.000000e+00> : vector<16x64xf32>
    %322 = tpu.matmul %319, %321, %cst_143 {dimension_numbers = #tpu.dot_dimension_numbers<[1], [0], [0], [1], [0, 0, 1, 1], [], []>} : vector<16x64xf32>, vector<64x64xf32>, vector<16x64xf32> -> vector<16x64xf32>
    %c8_144 = arith.constant 8 : index
    %c0_145 = arith.constant 0 : index
    %c0_146 = arith.constant 0 : index
    %323 = vector.load %arg7[%c8_144, %c0_145, %c0_146] : memref<28x1x64xf32, #tpu.memory_space<vmem>>, vector<1x1x64xf32>
    %324 = vector.shape_cast %323 : vector<1x1x64xf32> to vector<1x64xf32>
    %325 = vector.broadcast %324 : vector<1x64xf32> to vector<16x64xf32>
    %326 = arith.addf %322, %325 : vector<16x64xf32>
    %327 = arith.addf %271, %326 : vector<16x64xf32>
    %c16 = arith.constant 16 : index
    %c0_147 = arith.constant 0 : index
    %c0_148 = arith.constant 0 : index
    %328 = vector.load %arg7[%c16, %c0_147, %c0_148] : memref<28x1x64xf32, #tpu.memory_space<vmem>>, vector<1x1x64xf32>
    %329 = vector.shape_cast %328 : vector<1x1x64xf32> to vector<1x64xf32>
    %c17 = arith.constant 17 : index
    %c0_149 = arith.constant 0 : index
    %c0_150 = arith.constant 0 : index
    %330 = vector.load %arg7[%c17, %c0_149, %c0_150] : memref<28x1x64xf32, #tpu.memory_space<vmem>>, vector<1x1x64xf32>
    %331 = vector.shape_cast %330 : vector<1x1x64xf32> to vector<1x64xf32>
    %cst_151 = arith.constant dense<0.000000e+00> : vector<16xf32>
    %332 = vector.multi_reduction <add>, %327, %cst_151 [1] : vector<16x64xf32> to vector<16xf32>
    %333 = vector.shape_cast %332 : vector<16xf32> to vector<16x1xf32>
    %cst_152 = arith.constant 6.400000e+01 : f32
    %334 = vector.broadcast %cst_152 : f32 to vector<16x1xf32>
    %335 = arith.divf %333, %334 : vector<16x1xf32>
    %336 = vector.broadcast %335 : vector<16x1xf32> to vector<16x64xf32>
    %337 = arith.subf %327, %336 : vector<16x64xf32>
    %338 = arith.mulf %337, %337 : vector<16x64xf32>
    %cst_153 = arith.constant dense<0.000000e+00> : vector<16xf32>
    %339 = vector.multi_reduction <add>, %338, %cst_153 [1] : vector<16x64xf32> to vector<16xf32>
    %340 = vector.shape_cast %339 : vector<16xf32> to vector<16x1xf32>
    %cst_154 = arith.constant 6.400000e+01 : f32
    %341 = vector.broadcast %cst_154 : f32 to vector<16x1xf32>
    %342 = arith.divf %340, %341 : vector<16x1xf32>
    %cst_155 = arith.constant 9.99999974E-6 : f32
    %343 = vector.broadcast %cst_155 : f32 to vector<16x1xf32>
    %344 = arith.addf %342, %343 : vector<16x1xf32>
    %345 = math.rsqrt %344 : vector<16x1xf32>
    %346 = vector.broadcast %345 : vector<16x1xf32> to vector<16x64xf32>
    %347 = arith.mulf %337, %346 : vector<16x64xf32>
    %348 = vector.broadcast %329 : vector<1x64xf32> to vector<16x64xf32>
    %349 = arith.mulf %347, %348 : vector<16x64xf32>
    %350 = vector.broadcast %331 : vector<1x64xf32> to vector<16x64xf32>
    %351 = arith.addf %349, %350 : vector<16x64xf32>
    %c18 = arith.constant 18 : index
    %c0_156 = arith.constant 0 : index
    %c0_157 = arith.constant 0 : index
    %352 = vector.load %arg7[%c18, %c0_156, %c0_157] : memref<28x1x64xf32, #tpu.memory_space<vmem>>, vector<1x1x64xf32>
    %353 = vector.shape_cast %352 : vector<1x1x64xf32> to vector<1x64xf32>
    %c19 = arith.constant 19 : index
    %c0_158 = arith.constant 0 : index
    %c0_159 = arith.constant 0 : index
    %354 = vector.load %arg7[%c19, %c0_158, %c0_159] : memref<28x1x64xf32, #tpu.memory_space<vmem>>, vector<1x1x64xf32>
    %355 = vector.shape_cast %354 : vector<1x1x64xf32> to vector<1x64xf32>
    %cst_160 = arith.constant dense<0.000000e+00> : vector<16xf32>
    %356 = vector.multi_reduction <add>, %351, %cst_160 [1] : vector<16x64xf32> to vector<16xf32>
    %357 = vector.shape_cast %356 : vector<16xf32> to vector<16x1xf32>
    %cst_161 = arith.constant 6.400000e+01 : f32
    %358 = vector.broadcast %cst_161 : f32 to vector<16x1xf32>
    %359 = arith.divf %357, %358 : vector<16x1xf32>
    %360 = vector.broadcast %359 : vector<16x1xf32> to vector<16x64xf32>
    %361 = arith.subf %351, %360 : vector<16x64xf32>
    %362 = arith.mulf %361, %361 : vector<16x64xf32>
    %cst_162 = arith.constant dense<0.000000e+00> : vector<16xf32>
    %363 = vector.multi_reduction <add>, %362, %cst_162 [1] : vector<16x64xf32> to vector<16xf32>
    %364 = vector.shape_cast %363 : vector<16xf32> to vector<16x1xf32>
    %cst_163 = arith.constant 6.400000e+01 : f32
    %365 = vector.broadcast %cst_163 : f32 to vector<16x1xf32>
    %366 = arith.divf %364, %365 : vector<16x1xf32>
    %cst_164 = arith.constant 9.99999974E-6 : f32
    %367 = vector.broadcast %cst_164 : f32 to vector<16x1xf32>
    %368 = arith.addf %366, %367 : vector<16x1xf32>
    %369 = math.rsqrt %368 : vector<16x1xf32>
    %370 = vector.broadcast %369 : vector<16x1xf32> to vector<16x64xf32>
    %371 = arith.mulf %361, %370 : vector<16x64xf32>
    %372 = vector.broadcast %353 : vector<1x64xf32> to vector<16x64xf32>
    %373 = arith.mulf %371, %372 : vector<16x64xf32>
    %374 = vector.broadcast %355 : vector<1x64xf32> to vector<16x64xf32>
    %375 = arith.addf %373, %374 : vector<16x64xf32>
    %376 = vector.extract_strided_slice %5 {offsets = [8, 0], sizes = [8, 4], strides = [1, 1]} : vector<16x4xf32> to vector<8x4xf32>
    %cst_165 = arith.constant 0.000000e+00 : f32
    %377 = vector.broadcast %cst_165 : f32 to vector<8x4xf32>
    %378 = tpu.concatenate %376, %377 in 0 : vector<8x4xf32>, vector<8x4xf32> -> vector<16x4xf32>
    %cst_166 = arith.constant dense<0.000000e+00> : vector<16x4xf32>
    %379 = tpu.matmul %1, %378, %cst_166 {dimension_numbers = #tpu.dot_dimension_numbers<[1], [0], [0], [1], [0, 0, 1, 1], [], []>} : vector<16x16xf32>, vector<16x4xf32>, vector<16x4xf32> -> vector<16x4xf32>
    %c3 = arith.constant 3 : index
    %c0_167 = arith.constant 0 : index
    %c0_168 = arith.constant 0 : index
    %380 = vector.load %arg2[%c3, %c0_167, %c0_168] : memref<6x4x64xf32, #tpu.memory_space<vmem>>, vector<1x4x64xf32>
    %381 = vector.shape_cast %380 : vector<1x4x64xf32> to vector<4x64xf32>
    %cst_169 = arith.constant dense<0.000000e+00> : vector<16x64xf32>
    %382 = tpu.matmul %379, %381, %cst_169 {dimension_numbers = #tpu.dot_dimension_numbers<[1], [0], [0], [1], [0, 0, 1, 1], [], []>} : vector<16x4xf32>, vector<4x64xf32>, vector<16x64xf32> -> vector<16x64xf32>
    %c4_170 = arith.constant 4 : index
    %c0_171 = arith.constant 0 : index
    %c0_172 = arith.constant 0 : index
    %383 = vector.load %arg2[%c4_170, %c0_171, %c0_172] : memref<6x4x64xf32, #tpu.memory_space<vmem>>, vector<1x4x64xf32>
    %384 = vector.shape_cast %383 : vector<1x4x64xf32> to vector<4x64xf32>
    %cst_173 = arith.constant dense<0.000000e+00> : vector<16x64xf32>
    %385 = tpu.matmul %378, %384, %cst_173 {dimension_numbers = #tpu.dot_dimension_numbers<[1], [0], [0], [1], [0, 0, 1, 1], [], []>} : vector<16x4xf32>, vector<4x64xf32>, vector<16x64xf32> -> vector<16x64xf32>
    %386 = arith.addf %382, %385 : vector<16x64xf32>
    %cst_174 = arith.constant dense<0.000000e+00> : vector<16x4xf32>
    %387 = tpu.matmul %3, %378, %cst_174 {dimension_numbers = #tpu.dot_dimension_numbers<[1], [0], [0], [1], [0, 0, 1, 1], [], []>} : vector<16x16xf32>, vector<16x4xf32>, vector<16x4xf32> -> vector<16x4xf32>
    %c5_175 = arith.constant 5 : index
    %c0_176 = arith.constant 0 : index
    %c0_177 = arith.constant 0 : index
    %388 = vector.load %arg2[%c5_175, %c0_176, %c0_177] : memref<6x4x64xf32, #tpu.memory_space<vmem>>, vector<1x4x64xf32>
    %389 = vector.shape_cast %388 : vector<1x4x64xf32> to vector<4x64xf32>
    %cst_178 = arith.constant dense<0.000000e+00> : vector<16x64xf32>
    %390 = tpu.matmul %387, %389, %cst_178 {dimension_numbers = #tpu.dot_dimension_numbers<[1], [0], [0], [1], [0, 0, 1, 1], [], []>} : vector<16x4xf32>, vector<4x64xf32>, vector<16x64xf32> -> vector<16x64xf32>
    %391 = arith.addf %386, %390 : vector<16x64xf32>
    %c1_179 = arith.constant 1 : index
    %c0_180 = arith.constant 0 : index
    %c0_181 = arith.constant 0 : index
    %392 = vector.load %arg3[%c1_179, %c0_180, %c0_181] : memref<2x16x64xf32, #tpu.memory_space<vmem>>, vector<1x16x64xf32>
    %393 = vector.shape_cast %392 : vector<1x16x64xf32> to vector<16x64xf32>
    %394 = arith.addf %391, %393 : vector<16x64xf32>
    %c2_182 = arith.constant 2 : index
    %c0_183 = arith.constant 0 : index
    %c0_184 = arith.constant 0 : index
    %395 = vector.load %arg5[%c2_182, %c0_183, %c0_184] : memref<4x65x192xf32, #tpu.memory_space<vmem>>, vector<1x65x192xf32>
    %396 = vector.shape_cast %395 : vector<1x65x192xf32> to vector<65x192xf32>
    %397 = vector.extract_strided_slice %396 {offsets = [0, 0], sizes = [64, 192], strides = [1, 1]} : vector<65x192xf32> to vector<64x192xf32>
    %398 = vector.extract_strided_slice %396 {offsets = [64, 0], sizes = [1, 192], strides = [1, 1]} : vector<65x192xf32> to vector<1x192xf32>
    %cst_185 = arith.constant dense<0.000000e+00> : vector<16x192xf32>
    %399 = tpu.matmul %394, %397, %cst_185 {dimension_numbers = #tpu.dot_dimension_numbers<[1], [0], [0], [1], [0, 0, 1, 1], [], []>} : vector<16x64xf32>, vector<64x192xf32>, vector<16x192xf32> -> vector<16x192xf32>
    %400 = vector.broadcast %398 : vector<1x192xf32> to vector<16x192xf32>
    %401 = arith.addf %399, %400 : vector<16x192xf32>
    %402 = vector.extract_strided_slice %401 {offsets = [0, 0], sizes = [16, 64], strides = [1, 1]} : vector<16x192xf32> to vector<16x64xf32>
    %403 = vector.extract_strided_slice %401 {offsets = [0, 64], sizes = [16, 64], strides = [1, 1]} : vector<16x192xf32> to vector<16x64xf32>
    %404 = vector.extract_strided_slice %401 {offsets = [0, 128], sizes = [16, 64], strides = [1, 1]} : vector<16x192xf32> to vector<16x64xf32>
    %405 = vector.extract_strided_slice %402 {offsets = [0, 0], sizes = [16, 16], strides = [1, 1]} : vector<16x64xf32> to vector<16x16xf32>
    %406 = vector.extract_strided_slice %402 {offsets = [0, 16], sizes = [16, 16], strides = [1, 1]} : vector<16x64xf32> to vector<16x16xf32>
    %407 = vector.extract_strided_slice %402 {offsets = [0, 32], sizes = [16, 16], strides = [1, 1]} : vector<16x64xf32> to vector<16x16xf32>
    %408 = vector.extract_strided_slice %402 {offsets = [0, 48], sizes = [16, 16], strides = [1, 1]} : vector<16x64xf32> to vector<16x16xf32>
    %409 = tpu.concatenate %405, %406, %407, %408 in 0 : vector<16x16xf32>, vector<16x16xf32>, vector<16x16xf32>, vector<16x16xf32> -> vector<64x16xf32>
    %410 = vector.extract_strided_slice %403 {offsets = [0, 0], sizes = [16, 16], strides = [1, 1]} : vector<16x64xf32> to vector<16x16xf32>
    %411 = vector.extract_strided_slice %403 {offsets = [0, 16], sizes = [16, 16], strides = [1, 1]} : vector<16x64xf32> to vector<16x16xf32>
    %412 = vector.extract_strided_slice %403 {offsets = [0, 32], sizes = [16, 16], strides = [1, 1]} : vector<16x64xf32> to vector<16x16xf32>
    %413 = vector.extract_strided_slice %403 {offsets = [0, 48], sizes = [16, 16], strides = [1, 1]} : vector<16x64xf32> to vector<16x16xf32>
    %414 = tpu.concatenate %410, %411, %412, %413 in 0 : vector<16x16xf32>, vector<16x16xf32>, vector<16x16xf32>, vector<16x16xf32> -> vector<64x16xf32>
    %415 = vector.extract_strided_slice %404 {offsets = [0, 0], sizes = [16, 16], strides = [1, 1]} : vector<16x64xf32> to vector<16x16xf32>
    %416 = vector.extract_strided_slice %404 {offsets = [0, 16], sizes = [16, 16], strides = [1, 1]} : vector<16x64xf32> to vector<16x16xf32>
    %417 = vector.extract_strided_slice %404 {offsets = [0, 32], sizes = [16, 16], strides = [1, 1]} : vector<16x64xf32> to vector<16x16xf32>
    %418 = vector.extract_strided_slice %404 {offsets = [0, 48], sizes = [16, 16], strides = [1, 1]} : vector<16x64xf32> to vector<16x16xf32>
    %419 = tpu.concatenate %415, %416, %417, %418 in 0 : vector<16x16xf32>, vector<16x16xf32>, vector<16x16xf32>, vector<16x16xf32> -> vector<64x16xf32>
    %cst_186 = arith.constant dense<0.000000e+00> : vector<64x64xf32>
    %420 = tpu.matmul %409, %414, %cst_186 {dimension_numbers = #tpu.dot_dimension_numbers<[1], [1], [0], [0], [0, 0, 1, 0], [], []>} : vector<64x16xf32>, vector<64x16xf32>, vector<64x64xf32> -> vector<64x64xf32>
    %c1_187 = arith.constant 1 : index
    %c0_188 = arith.constant 0 : index
    %c0_189 = arith.constant 0 : index
    %421 = vector.load %arg8[%c1_187, %c0_188, %c0_189] : memref<3x64x64xf32, #tpu.memory_space<vmem>>, vector<1x64x64xf32>
    %422 = vector.shape_cast %421 : vector<1x64x64xf32> to vector<64x64xf32>
    %423 = arith.addf %420, %422 : vector<64x64xf32>
    %cst_190 = arith.constant dense<0xFF800000> : vector<64xf32>
    %424 = vector.multi_reduction <maximumf>, %423, %cst_190 [1] : vector<64x64xf32> to vector<64xf32>
    %425 = vector.shape_cast %424 : vector<64xf32> to vector<64x1xf32>
    %426 = vector.broadcast %425 : vector<64x1xf32> to vector<64x64xf32>
    %427 = arith.subf %423, %426 : vector<64x64xf32>
    %428 = math.exp %427 : vector<64x64xf32>
    %cst_191 = arith.constant dense<0.000000e+00> : vector<64xf32>
    %429 = vector.multi_reduction <add>, %428, %cst_191 [1] : vector<64x64xf32> to vector<64xf32>
    %430 = vector.shape_cast %429 : vector<64xf32> to vector<64x1xf32>
    %431 = vector.broadcast %430 : vector<64x1xf32> to vector<64x64xf32>
    %432 = arith.divf %428, %431 : vector<64x64xf32>
    %cst_192 = arith.constant dense<0.000000e+00> : vector<64x16xf32>
    %433 = tpu.matmul %432, %419, %cst_192 {dimension_numbers = #tpu.dot_dimension_numbers<[1], [0], [0], [1], [0, 0, 1, 1], [], []>} : vector<64x64xf32>, vector<64x16xf32>, vector<64x16xf32> -> vector<64x16xf32>
    %c2_193 = arith.constant 2 : index
    %c0_194 = arith.constant 0 : index
    %c0_195 = arith.constant 0 : index
    %434 = vector.load %arg6[%c2_193, %c0_194, %c0_195] : memref<10x64x64xf32, #tpu.memory_space<vmem>>, vector<1x64x64xf32>
    %435 = vector.shape_cast %434 : vector<1x64x64xf32> to vector<64x64xf32>
    %c2_196 = arith.constant 2 : index
    %c0_197 = arith.constant 0 : index
    %c0_198 = arith.constant 0 : index
    %436 = vector.load %arg8[%c2_196, %c0_197, %c0_198] : memref<3x64x64xf32, #tpu.memory_space<vmem>>, vector<1x64x64xf32>
    %437 = vector.shape_cast %436 : vector<1x64x64xf32> to vector<64x64xf32>
    %438 = vector.extract_strided_slice %437 {offsets = [0, 0], sizes = [16, 64], strides = [1, 1]} : vector<64x64xf32> to vector<16x64xf32>
    %cst_199 = arith.constant dense<0.000000e+00> : vector<16x16xf32>
    %439 = tpu.matmul %438, %433, %cst_199 {dimension_numbers = #tpu.dot_dimension_numbers<[1], [0], [0], [1], [0, 0, 1, 1], [], []>} : vector<16x64xf32>, vector<64x16xf32>, vector<16x16xf32> -> vector<16x16xf32>
    %440 = vector.extract_strided_slice %435 {offsets = [0, 0], sizes = [16, 64], strides = [1, 1]} : vector<64x64xf32> to vector<16x64xf32>
    %cst_200 = arith.constant dense<0.000000e+00> : vector<16x64xf32>
    %441 = tpu.matmul %439, %440, %cst_200 {dimension_numbers = #tpu.dot_dimension_numbers<[1], [0], [0], [1], [0, 0, 1, 1], [], []>} : vector<16x16xf32>, vector<16x64xf32>, vector<16x64xf32> -> vector<16x64xf32>
    %442 = vector.extract_strided_slice %437 {offsets = [16, 0], sizes = [16, 64], strides = [1, 1]} : vector<64x64xf32> to vector<16x64xf32>
    %cst_201 = arith.constant dense<0.000000e+00> : vector<16x16xf32>
    %443 = tpu.matmul %442, %433, %cst_201 {dimension_numbers = #tpu.dot_dimension_numbers<[1], [0], [0], [1], [0, 0, 1, 1], [], []>} : vector<16x64xf32>, vector<64x16xf32>, vector<16x16xf32> -> vector<16x16xf32>
    %444 = vector.extract_strided_slice %435 {offsets = [16, 0], sizes = [16, 64], strides = [1, 1]} : vector<64x64xf32> to vector<16x64xf32>
    %cst_202 = arith.constant dense<0.000000e+00> : vector<16x64xf32>
    %445 = tpu.matmul %443, %444, %cst_202 {dimension_numbers = #tpu.dot_dimension_numbers<[1], [0], [0], [1], [0, 0, 1, 1], [], []>} : vector<16x16xf32>, vector<16x64xf32>, vector<16x64xf32> -> vector<16x64xf32>
    %446 = arith.addf %441, %445 : vector<16x64xf32>
    %447 = vector.extract_strided_slice %437 {offsets = [32, 0], sizes = [16, 64], strides = [1, 1]} : vector<64x64xf32> to vector<16x64xf32>
    %cst_203 = arith.constant dense<0.000000e+00> : vector<16x16xf32>
    %448 = tpu.matmul %447, %433, %cst_203 {dimension_numbers = #tpu.dot_dimension_numbers<[1], [0], [0], [1], [0, 0, 1, 1], [], []>} : vector<16x64xf32>, vector<64x16xf32>, vector<16x16xf32> -> vector<16x16xf32>
    %449 = vector.extract_strided_slice %435 {offsets = [32, 0], sizes = [16, 64], strides = [1, 1]} : vector<64x64xf32> to vector<16x64xf32>
    %cst_204 = arith.constant dense<0.000000e+00> : vector<16x64xf32>
    %450 = tpu.matmul %448, %449, %cst_204 {dimension_numbers = #tpu.dot_dimension_numbers<[1], [0], [0], [1], [0, 0, 1, 1], [], []>} : vector<16x16xf32>, vector<16x64xf32>, vector<16x64xf32> -> vector<16x64xf32>
    %451 = arith.addf %446, %450 : vector<16x64xf32>
    %452 = vector.extract_strided_slice %437 {offsets = [48, 0], sizes = [16, 64], strides = [1, 1]} : vector<64x64xf32> to vector<16x64xf32>
    %cst_205 = arith.constant dense<0.000000e+00> : vector<16x16xf32>
    %453 = tpu.matmul %452, %433, %cst_205 {dimension_numbers = #tpu.dot_dimension_numbers<[1], [0], [0], [1], [0, 0, 1, 1], [], []>} : vector<16x64xf32>, vector<64x16xf32>, vector<16x16xf32> -> vector<16x16xf32>
    %454 = vector.extract_strided_slice %435 {offsets = [48, 0], sizes = [16, 64], strides = [1, 1]} : vector<64x64xf32> to vector<16x64xf32>
    %cst_206 = arith.constant dense<0.000000e+00> : vector<16x64xf32>
    %455 = tpu.matmul %453, %454, %cst_206 {dimension_numbers = #tpu.dot_dimension_numbers<[1], [0], [0], [1], [0, 0, 1, 1], [], []>} : vector<16x16xf32>, vector<16x64xf32>, vector<16x64xf32> -> vector<16x64xf32>
    %456 = arith.addf %451, %455 : vector<16x64xf32>
    %c2_207 = arith.constant 2 : index
    %c0_208 = arith.constant 0 : index
    %c0_209 = arith.constant 0 : index
    %457 = vector.load %arg7[%c2_207, %c0_208, %c0_209] : memref<28x1x64xf32, #tpu.memory_space<vmem>>, vector<1x1x64xf32>
    %458 = vector.shape_cast %457 : vector<1x1x64xf32> to vector<1x64xf32>
    %459 = vector.broadcast %458 : vector<1x64xf32> to vector<16x64xf32>
    %460 = arith.addf %456, %459 : vector<16x64xf32>
    %461 = arith.addf %394, %460 : vector<16x64xf32>
    %c20 = arith.constant 20 : index
    %c0_210 = arith.constant 0 : index
    %c0_211 = arith.constant 0 : index
    %462 = vector.load %arg7[%c20, %c0_210, %c0_211] : memref<28x1x64xf32, #tpu.memory_space<vmem>>, vector<1x1x64xf32>
    %463 = vector.shape_cast %462 : vector<1x1x64xf32> to vector<1x64xf32>
    %c21 = arith.constant 21 : index
    %c0_212 = arith.constant 0 : index
    %c0_213 = arith.constant 0 : index
    %464 = vector.load %arg7[%c21, %c0_212, %c0_213] : memref<28x1x64xf32, #tpu.memory_space<vmem>>, vector<1x1x64xf32>
    %465 = vector.shape_cast %464 : vector<1x1x64xf32> to vector<1x64xf32>
    %cst_214 = arith.constant dense<0.000000e+00> : vector<16xf32>
    %466 = vector.multi_reduction <add>, %461, %cst_214 [1] : vector<16x64xf32> to vector<16xf32>
    %467 = vector.shape_cast %466 : vector<16xf32> to vector<16x1xf32>
    %cst_215 = arith.constant 6.400000e+01 : f32
    %468 = vector.broadcast %cst_215 : f32 to vector<16x1xf32>
    %469 = arith.divf %467, %468 : vector<16x1xf32>
    %470 = vector.broadcast %469 : vector<16x1xf32> to vector<16x64xf32>
    %471 = arith.subf %461, %470 : vector<16x64xf32>
    %472 = arith.mulf %471, %471 : vector<16x64xf32>
    %cst_216 = arith.constant dense<0.000000e+00> : vector<16xf32>
    %473 = vector.multi_reduction <add>, %472, %cst_216 [1] : vector<16x64xf32> to vector<16xf32>
    %474 = vector.shape_cast %473 : vector<16xf32> to vector<16x1xf32>
    %cst_217 = arith.constant 6.400000e+01 : f32
    %475 = vector.broadcast %cst_217 : f32 to vector<16x1xf32>
    %476 = arith.divf %474, %475 : vector<16x1xf32>
    %cst_218 = arith.constant 9.99999974E-6 : f32
    %477 = vector.broadcast %cst_218 : f32 to vector<16x1xf32>
    %478 = arith.addf %476, %477 : vector<16x1xf32>
    %479 = math.rsqrt %478 : vector<16x1xf32>
    %480 = vector.broadcast %479 : vector<16x1xf32> to vector<16x64xf32>
    %481 = arith.mulf %471, %480 : vector<16x64xf32>
    %482 = vector.broadcast %463 : vector<1x64xf32> to vector<16x64xf32>
    %483 = arith.mulf %481, %482 : vector<16x64xf32>
    %484 = vector.broadcast %465 : vector<1x64xf32> to vector<16x64xf32>
    %485 = arith.addf %483, %484 : vector<16x64xf32>
    %c3_219 = arith.constant 3 : index
    %c0_220 = arith.constant 0 : index
    %c0_221 = arith.constant 0 : index
    %486 = vector.load %arg5[%c3_219, %c0_220, %c0_221] : memref<4x65x192xf32, #tpu.memory_space<vmem>>, vector<1x65x192xf32>
    %487 = vector.shape_cast %486 : vector<1x65x192xf32> to vector<65x192xf32>
    %488 = vector.extract_strided_slice %487 {offsets = [0, 0], sizes = [64, 192], strides = [1, 1]} : vector<65x192xf32> to vector<64x192xf32>
    %489 = vector.extract_strided_slice %487 {offsets = [64, 0], sizes = [1, 192], strides = [1, 1]} : vector<65x192xf32> to vector<1x192xf32>
    %490 = vector.extract_strided_slice %488 {offsets = [0, 0], sizes = [64, 64], strides = [1, 1]} : vector<64x192xf32> to vector<64x64xf32>
    %cst_222 = arith.constant dense<0.000000e+00> : vector<16x64xf32>
    %491 = tpu.matmul %485, %490, %cst_222 {dimension_numbers = #tpu.dot_dimension_numbers<[1], [0], [0], [1], [0, 0, 1, 1], [], []>} : vector<16x64xf32>, vector<64x64xf32>, vector<16x64xf32> -> vector<16x64xf32>
    %492 = vector.extract_strided_slice %489 {offsets = [0, 0], sizes = [1, 64], strides = [1, 1]} : vector<1x192xf32> to vector<1x64xf32>
    %493 = vector.broadcast %492 : vector<1x64xf32> to vector<16x64xf32>
    %494 = arith.addf %491, %493 : vector<16x64xf32>
    %495 = vector.extract_strided_slice %488 {offsets = [0, 64], sizes = [64, 128], strides = [1, 1]} : vector<64x192xf32> to vector<64x128xf32>
    %cst_223 = arith.constant dense<0.000000e+00> : vector<16x128xf32>
    %496 = tpu.matmul %375, %495, %cst_223 {dimension_numbers = #tpu.dot_dimension_numbers<[1], [0], [0], [1], [0, 0, 1, 1], [], []>} : vector<16x64xf32>, vector<64x128xf32>, vector<16x128xf32> -> vector<16x128xf32>
    %497 = vector.extract_strided_slice %489 {offsets = [0, 64], sizes = [1, 128], strides = [1, 1]} : vector<1x192xf32> to vector<1x128xf32>
    %498 = vector.broadcast %497 : vector<1x128xf32> to vector<16x128xf32>
    %499 = arith.addf %496, %498 : vector<16x128xf32>
    %500 = vector.extract_strided_slice %499 {offsets = [0, 0], sizes = [16, 64], strides = [1, 1]} : vector<16x128xf32> to vector<16x64xf32>
    %501 = vector.extract_strided_slice %499 {offsets = [0, 64], sizes = [16, 64], strides = [1, 1]} : vector<16x128xf32> to vector<16x64xf32>
    %502 = vector.extract_strided_slice %494 {offsets = [0, 0], sizes = [16, 16], strides = [1, 1]} : vector<16x64xf32> to vector<16x16xf32>
    %503 = vector.extract_strided_slice %494 {offsets = [0, 16], sizes = [16, 16], strides = [1, 1]} : vector<16x64xf32> to vector<16x16xf32>
    %504 = vector.extract_strided_slice %494 {offsets = [0, 32], sizes = [16, 16], strides = [1, 1]} : vector<16x64xf32> to vector<16x16xf32>
    %505 = vector.extract_strided_slice %494 {offsets = [0, 48], sizes = [16, 16], strides = [1, 1]} : vector<16x64xf32> to vector<16x16xf32>
    %506 = tpu.concatenate %502, %503, %504, %505 in 0 : vector<16x16xf32>, vector<16x16xf32>, vector<16x16xf32>, vector<16x16xf32> -> vector<64x16xf32>
    %507 = vector.extract_strided_slice %500 {offsets = [0, 0], sizes = [16, 16], strides = [1, 1]} : vector<16x64xf32> to vector<16x16xf32>
    %508 = vector.extract_strided_slice %500 {offsets = [0, 16], sizes = [16, 16], strides = [1, 1]} : vector<16x64xf32> to vector<16x16xf32>
    %509 = vector.extract_strided_slice %500 {offsets = [0, 32], sizes = [16, 16], strides = [1, 1]} : vector<16x64xf32> to vector<16x16xf32>
    %510 = vector.extract_strided_slice %500 {offsets = [0, 48], sizes = [16, 16], strides = [1, 1]} : vector<16x64xf32> to vector<16x16xf32>
    %511 = tpu.concatenate %507, %508, %509, %510 in 0 : vector<16x16xf32>, vector<16x16xf32>, vector<16x16xf32>, vector<16x16xf32> -> vector<64x16xf32>
    %512 = vector.extract_strided_slice %501 {offsets = [0, 0], sizes = [16, 16], strides = [1, 1]} : vector<16x64xf32> to vector<16x16xf32>
    %513 = vector.extract_strided_slice %501 {offsets = [0, 16], sizes = [16, 16], strides = [1, 1]} : vector<16x64xf32> to vector<16x16xf32>
    %514 = vector.extract_strided_slice %501 {offsets = [0, 32], sizes = [16, 16], strides = [1, 1]} : vector<16x64xf32> to vector<16x16xf32>
    %515 = vector.extract_strided_slice %501 {offsets = [0, 48], sizes = [16, 16], strides = [1, 1]} : vector<16x64xf32> to vector<16x16xf32>
    %516 = tpu.concatenate %512, %513, %514, %515 in 0 : vector<16x16xf32>, vector<16x16xf32>, vector<16x16xf32>, vector<16x16xf32> -> vector<64x16xf32>
    %cst_224 = arith.constant dense<0.000000e+00> : vector<64x64xf32>
    %517 = tpu.matmul %506, %511, %cst_224 {dimension_numbers = #tpu.dot_dimension_numbers<[1], [1], [0], [0], [0, 0, 1, 0], [], []>} : vector<64x16xf32>, vector<64x16xf32>, vector<64x64xf32> -> vector<64x64xf32>
    %c0_225 = arith.constant 0 : index
    %c0_226 = arith.constant 0 : index
    %c0_227 = arith.constant 0 : index
    %518 = vector.load %arg8[%c0_225, %c0_226, %c0_227] : memref<3x64x64xf32, #tpu.memory_space<vmem>>, vector<1x64x64xf32>
    %519 = vector.shape_cast %518 : vector<1x64x64xf32> to vector<64x64xf32>
    %520 = arith.addf %517, %519 : vector<64x64xf32>
    %cst_228 = arith.constant dense<0xFF800000> : vector<64xf32>
    %521 = vector.multi_reduction <maximumf>, %520, %cst_228 [1] : vector<64x64xf32> to vector<64xf32>
    %522 = vector.shape_cast %521 : vector<64xf32> to vector<64x1xf32>
    %523 = vector.broadcast %522 : vector<64x1xf32> to vector<64x64xf32>
    %524 = arith.subf %520, %523 : vector<64x64xf32>
    %525 = math.exp %524 : vector<64x64xf32>
    %cst_229 = arith.constant dense<0.000000e+00> : vector<64xf32>
    %526 = vector.multi_reduction <add>, %525, %cst_229 [1] : vector<64x64xf32> to vector<64xf32>
    %527 = vector.shape_cast %526 : vector<64xf32> to vector<64x1xf32>
    %528 = vector.broadcast %527 : vector<64x1xf32> to vector<64x64xf32>
    %529 = arith.divf %525, %528 : vector<64x64xf32>
    %cst_230 = arith.constant dense<0.000000e+00> : vector<64x16xf32>
    %530 = tpu.matmul %529, %516, %cst_230 {dimension_numbers = #tpu.dot_dimension_numbers<[1], [0], [0], [1], [0, 0, 1, 1], [], []>} : vector<64x64xf32>, vector<64x16xf32>, vector<64x16xf32> -> vector<64x16xf32>
    %c3_231 = arith.constant 3 : index
    %c0_232 = arith.constant 0 : index
    %c0_233 = arith.constant 0 : index
    %531 = vector.load %arg6[%c3_231, %c0_232, %c0_233] : memref<10x64x64xf32, #tpu.memory_space<vmem>>, vector<1x64x64xf32>
    %532 = vector.shape_cast %531 : vector<1x64x64xf32> to vector<64x64xf32>
    %533 = vector.extract_strided_slice %530 {offsets = [0, 0], sizes = [16, 16], strides = [1, 1]} : vector<64x16xf32> to vector<16x16xf32>
    %534 = vector.extract_strided_slice %532 {offsets = [0, 0], sizes = [16, 64], strides = [1, 1]} : vector<64x64xf32> to vector<16x64xf32>
    %cst_234 = arith.constant dense<0.000000e+00> : vector<16x64xf32>
    %535 = tpu.matmul %533, %534, %cst_234 {dimension_numbers = #tpu.dot_dimension_numbers<[1], [0], [0], [1], [0, 0, 1, 1], [], []>} : vector<16x16xf32>, vector<16x64xf32>, vector<16x64xf32> -> vector<16x64xf32>
    %536 = vector.extract_strided_slice %530 {offsets = [16, 0], sizes = [16, 16], strides = [1, 1]} : vector<64x16xf32> to vector<16x16xf32>
    %537 = vector.extract_strided_slice %532 {offsets = [16, 0], sizes = [16, 64], strides = [1, 1]} : vector<64x64xf32> to vector<16x64xf32>
    %cst_235 = arith.constant dense<0.000000e+00> : vector<16x64xf32>
    %538 = tpu.matmul %536, %537, %cst_235 {dimension_numbers = #tpu.dot_dimension_numbers<[1], [0], [0], [1], [0, 0, 1, 1], [], []>} : vector<16x16xf32>, vector<16x64xf32>, vector<16x64xf32> -> vector<16x64xf32>
    %539 = arith.addf %535, %538 : vector<16x64xf32>
    %540 = vector.extract_strided_slice %530 {offsets = [32, 0], sizes = [16, 16], strides = [1, 1]} : vector<64x16xf32> to vector<16x16xf32>
    %541 = vector.extract_strided_slice %532 {offsets = [32, 0], sizes = [16, 64], strides = [1, 1]} : vector<64x64xf32> to vector<16x64xf32>
    %cst_236 = arith.constant dense<0.000000e+00> : vector<16x64xf32>
    %542 = tpu.matmul %540, %541, %cst_236 {dimension_numbers = #tpu.dot_dimension_numbers<[1], [0], [0], [1], [0, 0, 1, 1], [], []>} : vector<16x16xf32>, vector<16x64xf32>, vector<16x64xf32> -> vector<16x64xf32>
    %543 = arith.addf %539, %542 : vector<16x64xf32>
    %544 = vector.extract_strided_slice %530 {offsets = [48, 0], sizes = [16, 16], strides = [1, 1]} : vector<64x16xf32> to vector<16x16xf32>
    %545 = vector.extract_strided_slice %532 {offsets = [48, 0], sizes = [16, 64], strides = [1, 1]} : vector<64x64xf32> to vector<16x64xf32>
    %cst_237 = arith.constant dense<0.000000e+00> : vector<16x64xf32>
    %546 = tpu.matmul %544, %545, %cst_237 {dimension_numbers = #tpu.dot_dimension_numbers<[1], [0], [0], [1], [0, 0, 1, 1], [], []>} : vector<16x16xf32>, vector<16x64xf32>, vector<16x64xf32> -> vector<16x64xf32>
    %547 = arith.addf %543, %546 : vector<16x64xf32>
    %c3_238 = arith.constant 3 : index
    %c0_239 = arith.constant 0 : index
    %c0_240 = arith.constant 0 : index
    %548 = vector.load %arg7[%c3_238, %c0_239, %c0_240] : memref<28x1x64xf32, #tpu.memory_space<vmem>>, vector<1x1x64xf32>
    %549 = vector.shape_cast %548 : vector<1x1x64xf32> to vector<1x64xf32>
    %550 = vector.broadcast %549 : vector<1x64xf32> to vector<16x64xf32>
    %551 = arith.addf %547, %550 : vector<16x64xf32>
    %552 = arith.addf %485, %551 : vector<16x64xf32>
    %c22 = arith.constant 22 : index
    %c0_241 = arith.constant 0 : index
    %c0_242 = arith.constant 0 : index
    %553 = vector.load %arg7[%c22, %c0_241, %c0_242] : memref<28x1x64xf32, #tpu.memory_space<vmem>>, vector<1x1x64xf32>
    %554 = vector.shape_cast %553 : vector<1x1x64xf32> to vector<1x64xf32>
    %c23 = arith.constant 23 : index
    %c0_243 = arith.constant 0 : index
    %c0_244 = arith.constant 0 : index
    %555 = vector.load %arg7[%c23, %c0_243, %c0_244] : memref<28x1x64xf32, #tpu.memory_space<vmem>>, vector<1x1x64xf32>
    %556 = vector.shape_cast %555 : vector<1x1x64xf32> to vector<1x64xf32>
    %cst_245 = arith.constant dense<0.000000e+00> : vector<16xf32>
    %557 = vector.multi_reduction <add>, %552, %cst_245 [1] : vector<16x64xf32> to vector<16xf32>
    %558 = vector.shape_cast %557 : vector<16xf32> to vector<16x1xf32>
    %cst_246 = arith.constant 6.400000e+01 : f32
    %559 = vector.broadcast %cst_246 : f32 to vector<16x1xf32>
    %560 = arith.divf %558, %559 : vector<16x1xf32>
    %561 = vector.broadcast %560 : vector<16x1xf32> to vector<16x64xf32>
    %562 = arith.subf %552, %561 : vector<16x64xf32>
    %563 = arith.mulf %562, %562 : vector<16x64xf32>
    %cst_247 = arith.constant dense<0.000000e+00> : vector<16xf32>
    %564 = vector.multi_reduction <add>, %563, %cst_247 [1] : vector<16x64xf32> to vector<16xf32>
    %565 = vector.shape_cast %564 : vector<16xf32> to vector<16x1xf32>
    %cst_248 = arith.constant 6.400000e+01 : f32
    %566 = vector.broadcast %cst_248 : f32 to vector<16x1xf32>
    %567 = arith.divf %565, %566 : vector<16x1xf32>
    %cst_249 = arith.constant 9.99999974E-6 : f32
    %568 = vector.broadcast %cst_249 : f32 to vector<16x1xf32>
    %569 = arith.addf %567, %568 : vector<16x1xf32>
    %570 = math.rsqrt %569 : vector<16x1xf32>
    %571 = vector.broadcast %570 : vector<16x1xf32> to vector<16x64xf32>
    %572 = arith.mulf %562, %571 : vector<16x64xf32>
    %573 = vector.broadcast %554 : vector<1x64xf32> to vector<16x64xf32>
    %574 = arith.mulf %572, %573 : vector<16x64xf32>
    %575 = vector.broadcast %556 : vector<1x64xf32> to vector<16x64xf32>
    %576 = arith.addf %574, %575 : vector<16x64xf32>
    %c6 = arith.constant 6 : index
    %c0_250 = arith.constant 0 : index
    %c0_251 = arith.constant 0 : index
    %577 = vector.load %arg6[%c6, %c0_250, %c0_251] : memref<10x64x64xf32, #tpu.memory_space<vmem>>, vector<1x64x64xf32>
    %578 = vector.shape_cast %577 : vector<1x64x64xf32> to vector<64x64xf32>
    %cst_252 = arith.constant dense<0.000000e+00> : vector<16x64xf32>
    %579 = tpu.matmul %576, %578, %cst_252 {dimension_numbers = #tpu.dot_dimension_numbers<[1], [0], [0], [1], [0, 0, 1, 1], [], []>} : vector<16x64xf32>, vector<64x64xf32>, vector<16x64xf32> -> vector<16x64xf32>
    %c6_253 = arith.constant 6 : index
    %c0_254 = arith.constant 0 : index
    %c0_255 = arith.constant 0 : index
    %580 = vector.load %arg7[%c6_253, %c0_254, %c0_255] : memref<28x1x64xf32, #tpu.memory_space<vmem>>, vector<1x1x64xf32>
    %581 = vector.shape_cast %580 : vector<1x1x64xf32> to vector<1x64xf32>
    %582 = vector.broadcast %581 : vector<1x64xf32> to vector<16x64xf32>
    %583 = arith.addf %579, %582 : vector<16x64xf32>
    %cst_256 = arith.constant 5.000000e-01 : f32
    %584 = vector.broadcast %cst_256 : f32 to vector<16x64xf32>
    %585 = arith.mulf %584, %583 : vector<16x64xf32>
    %cst_257 = arith.constant 0.707106769 : f32
    %586 = vector.broadcast %cst_257 : f32 to vector<16x64xf32>
    %587 = arith.mulf %583, %586 : vector<16x64xf32>
    %cst_258 = arith.constant 0.000000e+00 : f32
    %588 = vector.broadcast %cst_258 : f32 to vector<16x64xf32>
    %589 = arith.cmpf olt, %587, %588 : vector<16x64xf32>
    %cst_259 = arith.constant -1.000000e+00 : f32
    %cst_260 = arith.constant 1.000000e+00 : f32
    %590 = vector.broadcast %cst_259 : f32 to vector<16x64xf32>
    %591 = vector.broadcast %cst_260 : f32 to vector<16x64xf32>
    %592 = arith.select %589, %590, %591 : vector<16x64xi1>, vector<16x64xf32>
    %593 = math.absf %587 : vector<16x64xf32>
    %cst_261 = arith.constant 0.327591091 : f32
    %594 = vector.broadcast %cst_261 : f32 to vector<16x64xf32>
    %595 = arith.mulf %594, %593 : vector<16x64xf32>
    %cst_262 = arith.constant 1.000000e+00 : f32
    %596 = vector.broadcast %cst_262 : f32 to vector<16x64xf32>
    %597 = arith.addf %596, %595 : vector<16x64xf32>
    %cst_263 = arith.constant 1.000000e+00 : f32
    %598 = vector.broadcast %cst_263 : f32 to vector<16x64xf32>
    %599 = arith.divf %598, %597 : vector<16x64xf32>
    %cst_264 = arith.constant 1.06140542 : f32
    %600 = vector.broadcast %cst_264 : f32 to vector<16x64xf32>
    %601 = arith.mulf %600, %599 : vector<16x64xf32>
    %cst_265 = arith.constant -1.45315206 : f32
    %602 = vector.broadcast %cst_265 : f32 to vector<16x64xf32>
    %603 = arith.addf %601, %602 : vector<16x64xf32>
    %604 = arith.mulf %603, %599 : vector<16x64xf32>
    %cst_266 = arith.constant 1.42141378 : f32
    %605 = vector.broadcast %cst_266 : f32 to vector<16x64xf32>
    %606 = arith.addf %604, %605 : vector<16x64xf32>
    %607 = arith.mulf %606, %599 : vector<16x64xf32>
    %cst_267 = arith.constant -0.284496725 : f32
    %608 = vector.broadcast %cst_267 : f32 to vector<16x64xf32>
    %609 = arith.addf %607, %608 : vector<16x64xf32>
    %610 = arith.mulf %609, %599 : vector<16x64xf32>
    %cst_268 = arith.constant 0.254829586 : f32
    %611 = vector.broadcast %cst_268 : f32 to vector<16x64xf32>
    %612 = arith.addf %610, %611 : vector<16x64xf32>
    %613 = arith.mulf %612, %599 : vector<16x64xf32>
    %cst_269 = arith.constant 0.000000e+00 : f32
    %614 = vector.broadcast %cst_269 : f32 to vector<16x64xf32>
    %615 = arith.subf %614, %593 : vector<16x64xf32>
    %616 = arith.mulf %615, %593 : vector<16x64xf32>
    %617 = math.exp %616 : vector<16x64xf32>
    %618 = arith.mulf %613, %617 : vector<16x64xf32>
    %cst_270 = arith.constant 1.000000e+00 : f32
    %619 = vector.broadcast %cst_270 : f32 to vector<16x64xf32>
    %620 = arith.subf %619, %618 : vector<16x64xf32>
    %621 = arith.mulf %592, %620 : vector<16x64xf32>
    %cst_271 = arith.constant 1.000000e+00 : f32
    %622 = vector.broadcast %cst_271 : f32 to vector<16x64xf32>
    %623 = arith.addf %622, %621 : vector<16x64xf32>
    %624 = arith.mulf %585, %623 : vector<16x64xf32>
    %c9 = arith.constant 9 : index
    %c0_272 = arith.constant 0 : index
    %c0_273 = arith.constant 0 : index
    %625 = vector.load %arg6[%c9, %c0_272, %c0_273] : memref<10x64x64xf32, #tpu.memory_space<vmem>>, vector<1x64x64xf32>
    %626 = vector.shape_cast %625 : vector<1x64x64xf32> to vector<64x64xf32>
    %cst_274 = arith.constant dense<0.000000e+00> : vector<16x64xf32>
    %627 = tpu.matmul %624, %626, %cst_274 {dimension_numbers = #tpu.dot_dimension_numbers<[1], [0], [0], [1], [0, 0, 1, 1], [], []>} : vector<16x64xf32>, vector<64x64xf32>, vector<16x64xf32> -> vector<16x64xf32>
    %c9_275 = arith.constant 9 : index
    %c0_276 = arith.constant 0 : index
    %c0_277 = arith.constant 0 : index
    %628 = vector.load %arg7[%c9_275, %c0_276, %c0_277] : memref<28x1x64xf32, #tpu.memory_space<vmem>>, vector<1x1x64xf32>
    %629 = vector.shape_cast %628 : vector<1x1x64xf32> to vector<1x64xf32>
    %630 = vector.broadcast %629 : vector<1x64xf32> to vector<16x64xf32>
    %631 = arith.addf %627, %630 : vector<16x64xf32>
    %632 = arith.addf %576, %631 : vector<16x64xf32>
    %c24 = arith.constant 24 : index
    %c0_278 = arith.constant 0 : index
    %c0_279 = arith.constant 0 : index
    %633 = vector.load %arg7[%c24, %c0_278, %c0_279] : memref<28x1x64xf32, #tpu.memory_space<vmem>>, vector<1x1x64xf32>
    %634 = vector.shape_cast %633 : vector<1x1x64xf32> to vector<1x64xf32>
    %c25 = arith.constant 25 : index
    %c0_280 = arith.constant 0 : index
    %c0_281 = arith.constant 0 : index
    %635 = vector.load %arg7[%c25, %c0_280, %c0_281] : memref<28x1x64xf32, #tpu.memory_space<vmem>>, vector<1x1x64xf32>
    %636 = vector.shape_cast %635 : vector<1x1x64xf32> to vector<1x64xf32>
    %cst_282 = arith.constant dense<0.000000e+00> : vector<16xf32>
    %637 = vector.multi_reduction <add>, %632, %cst_282 [1] : vector<16x64xf32> to vector<16xf32>
    %638 = vector.shape_cast %637 : vector<16xf32> to vector<16x1xf32>
    %cst_283 = arith.constant 6.400000e+01 : f32
    %639 = vector.broadcast %cst_283 : f32 to vector<16x1xf32>
    %640 = arith.divf %638, %639 : vector<16x1xf32>
    %641 = vector.broadcast %640 : vector<16x1xf32> to vector<16x64xf32>
    %642 = arith.subf %632, %641 : vector<16x64xf32>
    %643 = arith.mulf %642, %642 : vector<16x64xf32>
    %cst_284 = arith.constant dense<0.000000e+00> : vector<16xf32>
    %644 = vector.multi_reduction <add>, %643, %cst_284 [1] : vector<16x64xf32> to vector<16xf32>
    %645 = vector.shape_cast %644 : vector<16xf32> to vector<16x1xf32>
    %cst_285 = arith.constant 6.400000e+01 : f32
    %646 = vector.broadcast %cst_285 : f32 to vector<16x1xf32>
    %647 = arith.divf %645, %646 : vector<16x1xf32>
    %cst_286 = arith.constant 9.99999974E-6 : f32
    %648 = vector.broadcast %cst_286 : f32 to vector<16x1xf32>
    %649 = arith.addf %647, %648 : vector<16x1xf32>
    %650 = math.rsqrt %649 : vector<16x1xf32>
    %651 = vector.broadcast %650 : vector<16x1xf32> to vector<16x64xf32>
    %652 = arith.mulf %642, %651 : vector<16x64xf32>
    %653 = vector.broadcast %634 : vector<1x64xf32> to vector<16x64xf32>
    %654 = arith.mulf %652, %653 : vector<16x64xf32>
    %655 = vector.broadcast %636 : vector<1x64xf32> to vector<16x64xf32>
    %656 = arith.addf %654, %655 : vector<16x64xf32>
    %c26 = arith.constant 26 : index
    %c0_287 = arith.constant 0 : index
    %c0_288 = arith.constant 0 : index
    %657 = vector.load %arg7[%c26, %c0_287, %c0_288] : memref<28x1x64xf32, #tpu.memory_space<vmem>>, vector<1x1x64xf32>
    %658 = vector.shape_cast %657 : vector<1x1x64xf32> to vector<1x64xf32>
    %c27 = arith.constant 27 : index
    %c0_289 = arith.constant 0 : index
    %c0_290 = arith.constant 0 : index
    %659 = vector.load %arg7[%c27, %c0_289, %c0_290] : memref<28x1x64xf32, #tpu.memory_space<vmem>>, vector<1x1x64xf32>
    %660 = vector.shape_cast %659 : vector<1x1x64xf32> to vector<1x64xf32>
    %cst_291 = arith.constant dense<0.000000e+00> : vector<16xf32>
    %661 = vector.multi_reduction <add>, %656, %cst_291 [1] : vector<16x64xf32> to vector<16xf32>
    %662 = vector.shape_cast %661 : vector<16xf32> to vector<16x1xf32>
    %cst_292 = arith.constant 6.400000e+01 : f32
    %663 = vector.broadcast %cst_292 : f32 to vector<16x1xf32>
    %664 = arith.divf %662, %663 : vector<16x1xf32>
    %665 = vector.broadcast %664 : vector<16x1xf32> to vector<16x64xf32>
    %666 = arith.subf %656, %665 : vector<16x64xf32>
    %667 = arith.mulf %666, %666 : vector<16x64xf32>
    %cst_293 = arith.constant dense<0.000000e+00> : vector<16xf32>
    %668 = vector.multi_reduction <add>, %667, %cst_293 [1] : vector<16x64xf32> to vector<16xf32>
    %669 = vector.shape_cast %668 : vector<16xf32> to vector<16x1xf32>
    %cst_294 = arith.constant 6.400000e+01 : f32
    %670 = vector.broadcast %cst_294 : f32 to vector<16x1xf32>
    %671 = arith.divf %669, %670 : vector<16x1xf32>
    %cst_295 = arith.constant 9.99999974E-6 : f32
    %672 = vector.broadcast %cst_295 : f32 to vector<16x1xf32>
    %673 = arith.addf %671, %672 : vector<16x1xf32>
    %674 = math.rsqrt %673 : vector<16x1xf32>
    %675 = vector.broadcast %674 : vector<16x1xf32> to vector<16x64xf32>
    %676 = arith.mulf %666, %675 : vector<16x64xf32>
    %677 = vector.broadcast %658 : vector<1x64xf32> to vector<16x64xf32>
    %678 = arith.mulf %676, %677 : vector<16x64xf32>
    %679 = vector.broadcast %660 : vector<1x64xf32> to vector<16x64xf32>
    %680 = arith.addf %678, %679 : vector<16x64xf32>
    %c0_296 = arith.constant 0 : index
    %c0_297 = arith.constant 0 : index
    %681 = vector.load %arg9[%c0_296, %c0_297] : memref<65x4xf32, #tpu.memory_space<vmem>>, vector<65x4xf32>
    %682 = vector.extract_strided_slice %681 {offsets = [0, 0], sizes = [64, 4], strides = [1, 1]} : vector<65x4xf32> to vector<64x4xf32>
    %cst_298 = arith.constant dense<0.000000e+00> : vector<16x4xf32>
    %683 = tpu.matmul %680, %682, %cst_298 {dimension_numbers = #tpu.dot_dimension_numbers<[1], [0], [0], [1], [0, 0, 1, 1], [], []>} : vector<16x64xf32>, vector<64x4xf32>, vector<16x4xf32> -> vector<16x4xf32>
    %684 = vector.extract_strided_slice %681 {offsets = [64, 0], sizes = [1, 4], strides = [1, 1]} : vector<65x4xf32> to vector<1x4xf32>
    %685 = vector.broadcast %684 : vector<1x4xf32> to vector<16x4xf32>
    %686 = arith.addf %683, %685 : vector<16x4xf32>
    %c0_299 = arith.constant 0 : index
    %c0_300 = arith.constant 0 : index
    %c0_301 = arith.constant 0 : index
    %687 = vector.load %arg10[%c0_299, %c0_300, %c0_301] : memref<1x16x4xf32, #tpu.memory_space<vmem>>, vector<1x16x4xf32>
    %688 = vector.shape_cast %687 : vector<1x16x4xf32> to vector<16x4xf32>
    %689 = vector.shape_cast %686 : vector<16x4xf32> to vector<1x16x4xf32>
    tpu.vector_store %arg10[%c0_299, %c0_300, %c0_301], %689 {strides = array<i32>} : memref<1x16x4xf32, #tpu.memory_space<vmem>>, vector<1x16x4xf32>,
    return
  }
  func.func @transform_0(%arg0: i32) -> (i32, i32, i32) {
    %c0_i32 = arith.constant 0 : i32
    %c0_i32_0 = arith.constant 0 : i32
    %c0_i32_1 = arith.constant 0 : i32
    return %arg0, %c0_i32, %c0_i32_0 : i32, i32, i32
  }
  func.func @transform_1(%arg0: i32) -> (i32, i32, i32) {
    %c0_i32 = arith.constant 0 : i32
    %c0_i32_0 = arith.constant 0 : i32
    %c0_i32_1 = arith.constant 0 : i32
    %c0_i32_2 = arith.constant 0 : i32
    return %c0_i32, %c0_i32_0, %c0_i32_1 : i32, i32, i32
  }
  func.func @transform_2(%arg0: i32) -> (i32, i32, i32) {
    %c0_i32 = arith.constant 0 : i32
    %c0_i32_0 = arith.constant 0 : i32
    %c0_i32_1 = arith.constant 0 : i32
    %c0_i32_2 = arith.constant 0 : i32
    return %c0_i32, %c0_i32_0, %c0_i32_1 : i32, i32, i32
  }
  func.func @transform_3(%arg0: i32) -> (i32, i32, i32) {
    %c0_i32 = arith.constant 0 : i32
    %c0_i32_0 = arith.constant 0 : i32
    %c0_i32_1 = arith.constant 0 : i32
    %c0_i32_2 = arith.constant 0 : i32
    return %c0_i32, %c0_i32_0, %c0_i32_1 : i32, i32, i32
  }
  func.func @transform_4(%arg0: i32) -> (i32, i32, i32) {
    %c0_i32 = arith.constant 0 : i32
    %c0_i32_0 = arith.constant 0 : i32
    %c0_i32_1 = arith.constant 0 : i32
    %c0_i32_2 = arith.constant 0 : i32
    return %c0_i32, %c0_i32_0, %c0_i32_1 : i32, i32, i32
  }
  func.func @transform_5(%arg0: i32) -> (i32, i32, i32) {
    %c0_i32 = arith.constant 0 : i32
    %c0_i32_0 = arith.constant 0 : i32
    %c0_i32_1 = arith.constant 0 : i32
    %c0_i32_2 = arith.constant 0 : i32
    return %c0_i32, %c0_i32_0, %c0_i32_1 : i32, i32, i32
  }
  func.func @transform_6(%arg0: i32) -> (i32, i32, i32) {
    %c0_i32 = arith.constant 0 : i32
    %c0_i32_0 = arith.constant 0 : i32
    %c0_i32_1 = arith.constant 0 : i32
    %c0_i32_2 = arith.constant 0 : i32
    return %c0_i32, %c0_i32_0, %c0_i32_1 : i32, i32, i32
  }
  func.func @transform_7(%arg0: i32) -> (i32, i32, i32) {
    %c0_i32 = arith.constant 0 : i32
    %c0_i32_0 = arith.constant 0 : i32
    %c0_i32_1 = arith.constant 0 : i32
    %c0_i32_2 = arith.constant 0 : i32
    return %c0_i32, %c0_i32_0, %c0_i32_1 : i32, i32, i32
  }
  func.func @transform_8(%arg0: i32) -> (i32, i32) {
    %c0_i32 = arith.constant 0 : i32
    %c0_i32_0 = arith.constant 0 : i32
    %c0_i32_1 = arith.constant 0 : i32
    return %c0_i32, %c0_i32_0 : i32, i32
  }
  func.func @transform_9(%arg0: i32) -> (i32, i32, i32) {
    %c0_i32 = arith.constant 0 : i32
    %c0_i32_0 = arith.constant 0 : i32
    %c0_i32_1 = arith.constant 0 : i32
    return %arg0, %c0_i32, %c0_i32_0 : i32, i32, i32
  }
}

</mosaic_0001>

<llo_original>
// kernel: informer_forward.1
$region0: #{informer_forward.1}
  #allocation0 [shape = 'u32[]', space=smem, size = 0x4, offset = 0x4, fixed_abs, tag = 'smem constant byte address 0x4 - core index']
  #allocation1 [shape = 'u32[144,128]{1,0:T(1,128)}', space=vmem, size = 0x12000, scoped, tag = 'internal scratch']
  %s0 = inlined_call_operand.vmem [shape: f32[2,16,4], index: 0, kind: input, shape index: {}]
  %s1 = inlined_call_operand.vmem [shape: f32[6,4,64], index: 1, kind: input, shape index: {}]
  %s2 = inlined_call_operand.vmem [shape: f32[2,16,64], index: 2, kind: input, shape index: {}]
  %s3 = inlined_call_operand.vmem [shape: f32[2,16,16], index: 3, kind: input, shape index: {}]
  %s4 = inlined_call_operand.vmem [shape: f32[4,65,192], index: 4, kind: input, shape index: {}]
  %s5 = inlined_call_operand.vmem [shape: f32[10,64,64], index: 5, kind: input, shape index: {}]
  %s6 = inlined_call_operand.vmem [shape: f32[28,1,64], index: 6, kind: input, shape index: {}]
  %s7 = inlined_call_operand.vmem [shape: f32[3,64,64], index: 7, kind: input, shape index: {}]
  %s8 = inlined_call_operand.vmem [shape: f32[65,4], index: 8, kind: input, shape index: {}]
  %s9 = inlined_call_operand.vmem [shape: f32[2,16,4], index: 9, kind: output, shape index: {}]
  %s10 = sld [smem:[#allocation0]]
  $region69: #{informer_forward.1} parent=0
    _
  %s12 = ssub.s32 1, %s10
  %s13 = scalar_select 0, %s12, %s10
  loop: start=0, step=1, limit=4
  $region2: #{informer_forward.1} parent=0 // loop_pre_header
    _
  $region3: #{informer_forward.1} parent=0 // loop_header
    %s15 = sphi 0, %s19
    %p16 = scmp.ge.s32.totalorder %s15, 4
    %s25 = sphi 0, %s27
    %s28 = sphi 0, %s25
    %s29 = sphi 0, %s28
    %s45 = sphi 0, %s29
    %s49 = sphi 0, %s49
    %s51 = sphi 0, %s49
    %s52 = sphi 0, %s51
    %s66 = sphi 0, %s52
    %s70 = sphi 0, %s70
    %s72 = sphi 0, %s70
    %s73 = sphi 0, %s72
    %s87 = sphi 0, %s73
    %s91 = sphi 0, %s91
    %s93 = sphi 0, %s91
    %s94 = sphi 0, %s93
    %s108 = sphi 0, %s94
    %s112 = sphi 0, %s112
    %s114 = sphi 0, %s112
    %s115 = sphi 0, %s114
    %s129 = sphi 0, %s115
    %s133 = sphi 0, %s133
    %s135 = sphi 0, %s133
    %s136 = sphi 0, %s135
    %s150 = sphi 0, %s136
    %s154 = sphi 0, %s154
    %s156 = sphi 0, %s154
    %s157 = sphi 0, %s156
    %s171 = sphi 0, %s157
    %s175 = sphi 0, %s175
    %s177 = sphi 0, %s175
    %s178 = sphi 0, %s177
    %s192 = sphi 0, %s178
    %s196 = sphi 0, %s196
    %s198 = sphi 0, %s196
    %s199 = sphi 0, %s198
    %s213 = sphi 0, %s199
    %s219 = sphi 0, %s221
    %s222 = sphi 0, %s219
    %s223 = sphi 0, %s222
    %s239 = sphi 0, %s223
  $region4: #{informer_forward.1} parent=0 // loop_header_branch
    %18 = sbr.rel (%p16) target = $region8
  $region5: #{informer_forward.1} parent=0 // loop_body
    %s20 = ssub.s32 %s15, 1
    %s21 = ssub.s32 %s15, 2
    %s22 = sadd.s32 %s15, 1
    %s23 = ssub.s32 %s15, %s22
    %p24 = scmp.eq.s32.totalorder %s23, 0
    %s26 = sadd.s32 %s25, 1
    %s27 = scalar_select %p24, %s25, %s26
    %p30 = pneg %p24
    %p31 = scmp.eq.s32.totalorder %s15, 1
    %p32 = por %p30, %p31
    %p33 = scmp.ne.s32.totalorder %s25, %s28
    %p34 = scmp.eq.s32.totalorder %s15, 0
    %p35 = por %p33, %p34
    %p36 = scmp.ne.s32.totalorder %s25, %s28
    %p37 = scmp.eq.s32.totalorder %s20, 1
    %p38 = por %p36, %p37
    %p39 = scmp.ne.s32.totalorder %s28, %s29
    %p40 = scmp.eq.s32.totalorder %s20, 0
    %p41 = por %p39, %p40
    %p42 = scmp.ne.s32.totalorder %s28, %s29
    %p43 = scmp.eq.s32.totalorder %s21, 1
    %p44 = por %p42, %p43
    %p46 = scmp.ne.s32.totalorder %s29, %s45
    %p47 = scmp.eq.s32.totalorder %s21, 0
    %p48 = por %p46, %p47
    %s50 = sadd.s32 %s49, 1
    %p53 = scmp.eq.s32.totalorder %s15, 1
    %p54 = scmp.ne.s32.totalorder %s49, %s51
    %p55 = scmp.eq.s32.totalorder %s15, 0
    %p56 = por %p54, %p55
    %p57 = scmp.ne.s32.totalorder %s49, %s51
    %p58 = scmp.eq.s32.totalorder %s20, 1
    %p59 = por %p57, %p58
    %p60 = scmp.ne.s32.totalorder %s51, %s52
    %p61 = scmp.eq.s32.totalorder %s20, 0
    %p62 = por %p60, %p61
    %p63 = scmp.ne.s32.totalorder %s51, %s52
    %p64 = scmp.eq.s32.totalorder %s21, 1
    %p65 = por %p63, %p64
    %p67 = scmp.ne.s32.totalorder %s52, %s66
    %p68 = scmp.eq.s32.totalorder %s21, 0
    %p69 = por %p67, %p68
    %s71 = sadd.s32 %s70, 1
    %p74 = scmp.eq.s32.totalorder %s15, 1
    %p75 = scmp.ne.s32.totalorder %s70, %s72
    %p76 = scmp.eq.s32.totalorder %s15, 0
    %p77 = por %p75, %p76
    %p78 = scmp.ne.s32.totalorder %s70, %s72
    %p79 = scmp.eq.s32.totalorder %s20, 1
    %p80 = por %p78, %p79
    %p81 = scmp.ne.s32.totalorder %s72, %s73
    %p82 = scmp.eq.s32.totalorder %s20, 0
    %p83 = por %p81, %p82
    %p84 = scmp.ne.s32.totalorder %s72, %s73
    %p85 = scmp.eq.s32.totalorder %s21, 1
    %p86 = por %p84, %p85
    %p88 = scmp.ne.s32.totalorder %s73, %s87
    %p89 = scmp.eq.s32.totalorder %s21, 0
    %p90 = por %p88, %p89
    %s92 = sadd.s32 %s91, 1
    %p95 = scmp.eq.s32.totalorder %s15, 1
    %p96 = scmp.ne.s32.totalorder %s91, %s93
    %p97 = scmp.eq.s32.totalorder %s15, 0
    %p98 = por %p96, %p97
    %p99 = scmp.ne.s32.totalorder %s91, %s93
    %p100 = scmp.eq.s32.totalorder %s20, 1
    %p101 = por %p99, %p100
    %p102 = scmp.ne.s32.totalorder %s93, %s94
    %p103 = scmp.eq.s32.totalorder %s20, 0
    %p104 = por %p102, %p103
    %p105 = scmp.ne.s32.totalorder %s93, %s94
    %p106 = scmp.eq.s32.totalorder %s21, 1
    %p107 = por %p105, %p106
    %p109 = scmp.ne.s32.totalorder %s94, %s108
    %p110 = scmp.eq.s32.totalorder %s21, 0
    %p111 = por %p109, %p110
    %s113 = sadd.s32 %s112, 1
    %p116 = scmp.eq.s32.totalorder %s15, 1
    %p117 = scmp.ne.s32.totalorder %s112, %s114
    %p118 = scmp.eq.s32.totalorder %s15, 0
    %p119 = por %p117, %p118
    %p120 = scmp.ne.s32.totalorder %s112, %s114
    %p121 = scmp.eq.s32.totalorder %s20, 1
    %p122 = por %p120, %p121
    %p123 = scmp.ne.s32.totalorder %s114, %s115
    %p124 = scmp.eq.s32.totalorder %s20, 0
    %p125 = por %p123, %p124
    %p126 = scmp.ne.s32.totalorder %s114, %s115
    %p127 = scmp.eq.s32.totalorder %s21, 1
    %p128 = por %p126, %p127
    %p130 = scmp.ne.s32.totalorder %s115, %s129
    %p131 = scmp.eq.s32.totalorder %s21, 0
    %p132 = por %p130, %p131
    %s134 = sadd.s32 %s133, 1
    %p137 = scmp.eq.s32.totalorder %s15, 1
    %p138 = scmp.ne.s32.totalorder %s133, %s135
    %p139 = scmp.eq.s32.totalorder %s15, 0
    %p140 = por %p138, %p139
    %p141 = scmp.ne.s32.totalorder %s133, %s135
    %p142 = scmp.eq.s32.totalorder %s20, 1
    %p143 = por %p141, %p142
    %p144 = scmp.ne.s32.totalorder %s135, %s136
    %p145 = scmp.eq.s32.totalorder %s20, 0
    %p146 = por %p144, %p145
    %p147 = scmp.ne.s32.totalorder %s135, %s136
    %p148 = scmp.eq.s32.totalorder %s21, 1
    %p149 = por %p147, %p148
    %p151 = scmp.ne.s32.totalorder %s136, %s150
    %p152 = scmp.eq.s32.totalorder %s21, 0
    %p153 = por %p151, %p152
    %s155 = sadd.s32 %s154, 1
    %p158 = scmp.eq.s32.totalorder %s15, 1
    %p159 = scmp.ne.s32.totalorder %s154, %s156
    %p160 = scmp.eq.s32.totalorder %s15, 0
    %p161 = por %p159, %p160
    %p162 = scmp.ne.s32.totalorder %s154, %s156
    %p163 = scmp.eq.s32.totalorder %s20, 1
    %p164 = por %p162, %p163
    %p165 = scmp.ne.s32.totalorder %s156, %s157
    %p166 = scmp.eq.s32.totalorder %s20, 0
    %p167 = por %p165, %p166
    %p168 = scmp.ne.s32.totalorder %s156, %s157
    %p169 = scmp.eq.s32.totalorder %s21, 1
    %p170 = por %p168, %p169
    %p172 = scmp.ne.s32.totalorder %s157, %s171
    %p173 = scmp.eq.s32.totalorder %s21, 0
    %p174 = por %p172, %p173
    %s176 = sadd.s32 %s175, 1
    %p179 = scmp.eq.s32.totalorder %s15, 1
    %p180 = scmp.ne.s32.totalorder %s175, %s177
    %p181 = scmp.eq.s32.totalorder %s15, 0
    %p182 = por %p180, %p181
    %p183 = scmp.ne.s32.totalorder %s175, %s177
    %p184 = scmp.eq.s32.totalorder %s20, 1
    %p185 = por %p183, %p184
    %p186 = scmp.ne.s32.totalorder %s177, %s178
    %p187 = scmp.eq.s32.totalorder %s20, 0
    %p188 = por %p186, %p187
    %p189 = scmp.ne.s32.totalorder %s177, %s178
    %p190 = scmp.eq.s32.totalorder %s21, 1
    %p191 = por %p189, %p190
    %p193 = scmp.ne.s32.totalorder %s178, %s192
    %p194 = scmp.eq.s32.totalorder %s21, 0
    %p195 = por %p193, %p194
    %s197 = sadd.s32 %s196, 1
    %p200 = scmp.eq.s32.totalorder %s15, 1
    %p201 = scmp.ne.s32.totalorder %s196, %s198
    %p202 = scmp.eq.s32.totalorder %s15, 0
    %p203 = por %p201, %p202
    %p204 = scmp.ne.s32.totalorder %s196, %s198
    %p205 = scmp.eq.s32.totalorder %s20, 1
    %p206 = por %p204, %p205
    %p207 = scmp.ne.s32.totalorder %s198, %s199
    %p208 = scmp.eq.s32.totalorder %s20, 0
    %p209 = por %p207, %p208
    %p210 = scmp.ne.s32.totalorder %s198, %s199
    %p211 = scmp.eq.s32.totalorder %s21, 1
    %p212 = por %p210, %p211
    %p214 = scmp.ne.s32.totalorder %s199, %s213
    %p215 = scmp.eq.s32.totalorder %s21, 0
    %p216 = por %p214, %p215
    %s217 = ssub.s32 %s15, %s22
    %p218 = scmp.eq.s32.totalorder %s217, 0
    %s220 = sadd.s32 %s219, 1
    %s221 = scalar_select %p218, %s219, %s220
    %p224 = pneg %p218
    %p225 = scmp.eq.s32.totalorder %s15, 1
    %p226 = por %p224, %p225
    %p227 = scmp.ne.s32.totalorder %s219, %s222
    %p228 = scmp.eq.s32.totalorder %s15, 0
    %p229 = por %p227, %p228
    %p230 = scmp.ne.s32.totalorder %s219, %s222
    %p231 = scmp.eq.s32.totalorder %s20, 1
    %p232 = por %p230, %p231
    %p233 = scmp.ne.s32.totalorder %s222, %s223
    %p234 = scmp.eq.s32.totalorder %s20, 0
    %p235 = por %p233, %p234
    %p236 = scmp.ne.s32.totalorder %s222, %s223
    %p237 = scmp.eq.s32.totalorder %s21, 1
    %p238 = por %p236, %p237
    %p240 = scmp.ne.s32.totalorder %s223, %s239
    %p241 = scmp.eq.s32.totalorder %s21, 0
    %p242 = por %p240, %p241
    %p243 = scmp.le.s32.totalorder 1, %s15
    %p244 = scmp.lt.s32.totalorder %s15, 3
    %p245 = pnand %p243, %p244
    %p246 = pneg %p245
    // Predicated region
    $region9: #{informer_forward.1} parent=5 // pred_check
      _
    $region10: #{informer_forward.1} parent=5 // pred_check_branch
      %248 = sbr.rel (%p245) target = $region12
    $region11: #{informer_forward.1} parent=5 // pred_region
      %s249 = ssub.s32 %s15, 1
      // Predicated region
      $region13: #{informer_forward.1} parent=11 // pred_check
        %p250 = pneg %p62
      $region14: #{informer_forward.1} parent=11 // pred_check_branch
        %252 = sbr.rel (%p250) target = $region16
      $region15: #{informer_forward.1} parent=11 // pred_region
        _
      $region16: #{informer_forward.1} parent=11 // pred_fallthru
        _
      // Predicated region
      $region17: #{informer_forward.1} parent=11 // pred_check
        %p253 = pneg %p83
      $region18: #{informer_forward.1} parent=11 // pred_check_branch
        %255 = sbr.rel (%p253) target = $region20
      $region19: #{informer_forward.1} parent=11 // pred_region
        _
      $region20: #{informer_forward.1} parent=11 // pred_fallthru
        _
      // Predicated region
      $region21: #{informer_forward.1} parent=11 // pred_check
        %p256 = pneg %p104
      $region22: #{informer_forward.1} parent=11 // pred_check_branch
        %258 = sbr.rel (%p256) target = $region24
      $region23: #{informer_forward.1} parent=11 // pred_region
        _
      $region24: #{informer_forward.1} parent=11 // pred_fallthru
        _
      // Predicated region
      $region25: #{informer_forward.1} parent=11 // pred_check
        %p259 = pneg %p125
      $region26: #{informer_forward.1} parent=11 // pred_check_branch
        %261 = sbr.rel (%p259) target = $region28
      $region27: #{informer_forward.1} parent=11 // pred_region
        _
      $region28: #{informer_forward.1} parent=11 // pred_fallthru
        _
      // Predicated region
      $region29: #{informer_forward.1} parent=11 // pred_check
        %p262 = pneg %p146
      $region30: #{informer_forward.1} parent=11 // pred_check_branch
        %264 = sbr.rel (%p262) target = $region32
      $region31: #{informer_forward.1} parent=11 // pred_region
        _
      $region32: #{informer_forward.1} parent=11 // pred_fallthru
        _
      // Predicated region
      $region33: #{informer_forward.1} parent=11 // pred_check
        %p265 = pneg %p167
      $region34: #{informer_forward.1} parent=11 // pred_check_branch
        %267 = sbr.rel (%p265) target = $region36
      $region35: #{informer_forward.1} parent=11 // pred_region
        _
      $region36: #{informer_forward.1} parent=11 // pred_fallthru
        _
      // Predicated region
      $region37: #{informer_forward.1} parent=11 // pred_check
        %p268 = pneg %p188
      $region38: #{informer_forward.1} parent=11 // pred_check_branch
        %270 = sbr.rel (%p268) target = $region40
      $region39: #{informer_forward.1} parent=11 // pred_region
        _
      $region40: #{informer_forward.1} parent=11 // pred_fallthru
        _
      // Predicated region
      $region41: #{informer_forward.1} parent=11 // pred_check
        %p271 = pneg %p209
      $region42: #{informer_forward.1} parent=11 // pred_check_branch
        %273 = sbr.rel (%p271) target = $region44
      $region43: #{informer_forward.1} parent=11 // pred_region
        _
      $region44: #{informer_forward.1} parent=11 // pred_fallthru
        _
    $region12: #{informer_forward.1} parent=5 // pred_fallthru
      _
    %p274 = scmp.lt.s32.totalorder %s15, 2
    // Predicated region
    $region45: #{informer_forward.1} parent=5 // pred_check
      %p275 = pneg %p274
    $region46: #{informer_forward.1} parent=5 // pred_check_branch
      %277 = sbr.rel (%p275) target = $region48
    $region47: #{informer_forward.1} parent=5 // pred_region
      // Predicated region
      $region49: #{informer_forward.1} parent=47 // pred_check
        %p278 = pneg %p35
      $region50: #{informer_forward.1} parent=47 // pred_check_branch
        %280 = sbr.rel (%p278) target = $region52
      $region51: #{informer_forward.1} parent=47 // pred_region
        %p281 = scmp.lt.s32.totalorder %s15, 1
        %s282 = scalar_select %p281, %s15, 1
        %s283 = smul.addr %s282, 2
        %s284 = smul.addr %s283, 8
        %s285 = scalar_lea.vmem %s0, %s284
      $region52: #{informer_forward.1} parent=47 // pred_fallthru
        _
    $region48: #{informer_forward.1} parent=5 // pred_fallthru
      _
    %p286 = scmp.le.s32.totalorder 1, %s15
    %p287 = scmp.lt.s32.totalorder %s15, 3
    %p288 = pnand %p286, %p287
    %p289 = pneg %p288
    // Predicated region
    $region53: #{informer_forward.1} parent=5 // pred_check
      _
    $region54: #{informer_forward.1} parent=5 // pred_check_branch
      %291 = sbr.rel (%p288) target = $region56
    $region55: #{informer_forward.1} parent=5 // pred_region
      %s292 = ssub.s32 %s15, 1
      %p293 = scmp.lt.s32.totalorder %s20, 1
      %s294 = scalar_select %p293, %s20, 1
      %s295 = smul.addr %s294, 2
      %s296 = smul.addr %s295, 8
      %s297 = scalar_lea.vmem %s0, %s296
      %p298 = pneg %p41
      %p299 = pneg %p38
      %p300 = pneg %p62
      %p301 = pneg %p59
      %p302 = pneg %p83
      %p303 = pneg %p80
      %p304 = pneg %p104
      %p305 = pneg %p101
      %p306 = pneg %p125
      %p307 = pneg %p122
      %p308 = pneg %p146
      %p309 = pneg %p143
      %p310 = pneg %p167
      %p311 = pneg %p164
      %p312 = pneg %p188
      %p313 = pneg %p185
      %p314 = pneg %p209
      %p315 = pneg %p206
      %p316 = pneg %p235
      %p317 = pneg %p232
      %p318 = scmp.lt.s32.totalorder %s20, 1
      %s319 = scalar_select %p318, %s20, 1
      %s320 = smul.addr %s319, 2
      %s321 = smul.addr %s320, 8
      %s322 = scalar_lea.vmem %s9, %s321
      %p323 = scmp.lt.s32.totalorder %s20, 1
      %s324 = scalar_select %p323, %s20, 1
      %s325 = smul.addr %s324, 2
      %s326 = smul.addr %s325, 8
      %s327 = scalar_lea.vmem %s0, %s326
      %p328 = scmp.lt.s32.totalorder %s20, 1
      %s329 = scalar_select %p328, %s20, 1
      %s330 = smul.addr %s329, 2
      %s331 = smul.addr %s330, 8
      %s332 = scalar_lea.vmem %s9, %s331
      %v333 = vld [vmem:[%s3] sm:$0xff]
      %v334 = vld [vmem:[%s3 + $0x8] sm:$0xff]
      %s335 = scalar_lea.vmem %s3, 16
      %v336 = vld [vmem:[%s335] sm:$0xff]
      %v337 = vld [vmem:[%s335 + $0x8] sm:$0xff]
      %v338 = vld [vmem:[%s327] sm:$0xff]
      %v339 = vld [vmem:[%s327 + $0x8] sm:$0xff]
      %vm340 = vcmask 130048
      %v342 = vsel %vm340, %v333, 0
      %v345 = vsel %vm340, %v334, 0
      %347 = vmatprep.subr.mxu0 0.0
      %348 = vmatpush1.msra.mxu0 %v338
      %349 = vmatprep.subr.mxu0 0.0
      %350 = vmatpush1.msra.mxu0 %v339
      %351 = vmatprep.subr.mxu0 0.0
      %352 = vmatpush1.msra.mxu0 0.0
      %353 = vmatprep.subr.mxu0 0.0
      %354 = vmatpush1.msra.mxu0 0.0
      %355 = vmatprep.subr.mxu0 0.0
      %356 = vmatpush1.msra.mxu0 0.0
      %357 = vmatprep.subr.mxu0 0.0
      %358 = vmatpush1.msra.mxu0 0.0
      %359 = vmatprep.subr.mxu0 0.0
      %360 = vmatpush1.msra.mxu0 0.0
      %361 = vmatprep.subr.mxu0 0.0
      %362 = vmatpush1.msra.mxu0 0.0
      %363 = vmatprep.subr.mxu0 0.0
      %364 = vmatpush1.msra.mxu0 0.0
      %365 = vmatprep.subr.mxu0 0.0
      %366 = vmatpush1.msra.mxu0 0.0
      %367 = vmatprep.subr.mxu0 0.0
      %368 = vmatpush1.msra.mxu0 0.0
      %369 = vmatprep.subr.mxu0 0.0
      %370 = vmatpush1.msra.mxu0 0.0
      %371 = vmatprep.subr.mxu0 0.0
      %372 = vmatpush1.msra.mxu0 0.0
      %373 = vmatprep.subr.mxu0 0.0
      %374 = vmatpush1.msra.mxu0 0.0
      %375 = vmatprep.subr.mxu0 0.0
      %376 = vmatpush1.msra.mxu0 0.0
      %377 = vmatprep.subr.mxu0 0.0
      %378 = vmatpush1.msra.mxu0 0.0
      %379 = vmatprep.subr.mxu0 0.0
      %380 = vmatpush1.msra.mxu0 0.0
      %381 = vmatprep.subr.mxu0 0.0
      %382 = vmatpush1.msra.mxu0 0.0
      %383 = vmatprep.subr.mxu0 0.0
      %384 = vmatpush1.msra.mxu0 0.0
      %385 = vmatprep.subr.mxu0 0.0
      %386 = vmatpush1.msra.mxu0 0.0
      %387 = vmatprep.subr.mxu0 0.0
      %388 = vmatpush1.msra.mxu0 0.0
      %389 = vmatprep.subr.mxu0 0.0
      %390 = vmatpush1.msra.mxu0 0.0
      %391 = vmatprep.subr.mxu0 0.0
      %392 = vmatpush1.msra.mxu0 0.0
      %393 = vmatprep.subr.mxu0 0.0
      %394 = vmatpush1.msra.mxu0 0.0
      %395 = vmatprep.subr.mxu0 0.0
      %396 = vmatpush1.msra.mxu0 0.0
      %397 = vmatprep.subr.mxu0 0.0
      %398 = vmatpush1.msra.mxu0 0.0
      %399 = vmatprep.subr.mxu0 0.0
      %400 = vmatpush1.msra.mxu0 0.0
      %401 = vmatprep.subr.mxu0 0.0
      %402 = vmatpush1.msra.mxu0 0.0
      %403 = vmatprep.subr.mxu0 0.0
      %404 = vmatpush1.msra.mxu0 0.0
      %405 = vmatprep.subr.mxu0 0.0
      %406 = vmatpush1.msra.mxu0 0.0
      %407 = vmatprep.subr.mxu0 0.0
      %408 = vmatpush1.msra.mxu0 0.0
      %409 = vmatprep.subr.mxu0 0.0
      %410 = vmatpush1.msra.mxu0 0.0
      %411 = vmatprep.mubr.f32.mxu0 0.0
      %412 = vmatmul.mubr.f32.gmra.mrb[0].mxu0 %v342
      %v413 = vpop.f32.mrb[0].mxu0
      %v414 = vadd.f32 0.0, %v413
      %v415 = vpop.f32.mrb[0].mxu0
      %416 = vmatprep.mubr.f32.mxu0 0.0
      %417 = vmatmul.mubr.f32.gmra.mrb[0].mxu0 %v345
      %v418 = vpop.f32.mrb[0].mxu0
      %v419 = vadd.f32 0.0, %v418
      %v420 = vpop.f32.mrb[0].mxu0
      %421 = vdwg.mxu0
      %v422 = vld [vmem:[%s1] sm:$0xf]
      %s423 = scalar_lea.vmem %s1, 4
      %v424 = vld [vmem:[%s423] sm:$0xf]
      %vm425 = vcmask 31744
      %v427 = vsel %vm425, %v338, 0
      %v430 = vsel %vm425, %v339, 0
      %vm432 = vcmask 1043456
      %v434 = vsel %vm432, %v424, 0
      %436 = vmatprep.subr.mxu0 0.0
      %437 = vmatpush1.msra.mxu0 %v434
      %438 = vmatprep.subr.mxu0 0.0
      %439 = vmatpush1.msra.mxu0 0.0
      %440 = vmatprep.subr.mxu0 0.0
      %441 = vmatpush1.msra.mxu0 0.0
      %442 = vmatprep.subr.mxu0 0.0
      %443 = vmatpush1.msra.mxu0 0.0
      %444 = vmatprep.subr.mxu0 0.0
      %445 = vmatpush1.msra.mxu0 0.0
      %446 = vmatprep.subr.mxu0 0.0
      %447 = vmatpush1.msra.mxu0 0.0
      %448 = vmatprep.subr.mxu0 0.0
      %449 = vmatpush1.msra.mxu0 0.0
      %450 = vmatprep.subr.mxu0 0.0
      %451 = vmatpush1.msra.mxu0 0.0
      %452 = vmatprep.subr.mxu0 0.0
      %453 = vmatpush1.msra.mxu0 0.0
      %454 = vmatprep.subr.mxu0 0.0
      %455 = vmatpush1.msra.mxu0 0.0
      %456 = vmatprep.subr.mxu0 0.0
      %457 = vmatpush1.msra.mxu0 0.0
      %458 = vmatprep.subr.mxu0 0.0
      %459 = vmatpush1.msra.mxu0 0.0
      %460 = vmatprep.subr.mxu0 0.0
      %461 = vmatpush1.msra.mxu0 0.0
      %462 = vmatprep.subr.mxu0 0.0
      %463 = vmatpush1.msra.mxu0 0.0
      %464 = vmatprep.subr.mxu0 0.0
      %465 = vmatpush1.msra.mxu0 0.0
      %466 = vmatprep.subr.mxu0 0.0
      %467 = vmatpush1.msra.mxu0 0.0
      %468 = vmatprep.subr.mxu0 0.0
      %469 = vmatpush1.msra.mxu0 0.0
      %470 = vmatprep.subr.mxu0 0.0
      %471 = vmatpush1.msra.mxu0 0.0
      %472 = vmatprep.subr.mxu0 0.0
      %473 = vmatpush1.msra.mxu0 0.0
      %474 = vmatprep.subr.mxu0 0.0
      %475 = vmatpush1.msra.mxu0 0.0
      %476 = vmatprep.subr.mxu0 0.0
      %477 = vmatpush1.msra.mxu0 0.0
      %478 = vmatprep.subr.mxu0 0.0
      %479 = vmatpush1.msra.mxu0 0.0
      %480 = vmatprep.subr.mxu0 0.0
      %481 = vmatpush1.msra.mxu0 0.0
      %482 = vmatprep.subr.mxu0 0.0
      %483 = vmatpush1.msra.mxu0 0.0
      %484 = vmatprep.subr.mxu0 0.0
      %485 = vmatpush1.msra.mxu0 0.0
      %486 = vmatprep.subr.mxu0 0.0
      %487 = vmatpush1.msra.mxu0 0.0
      %488 = vmatprep.subr.mxu0 0.0
      %489 = vmatpush1.msra.mxu0 0.0
      %490 = vmatprep.subr.mxu0 0.0
      %491 = vmatpush1.msra.mxu0 0.0
      %492 = vmatprep.subr.mxu0 0.0
      %493 = vmatpush1.msra.mxu0 0.0
      %494 = vmatprep.subr.mxu0 0.0
      %495 = vmatpush1.msra.mxu0 0.0
      %496 = vmatprep.subr.mxu0 0.0
      %497 = vmatpush1.msra.mxu0 0.0
      %498 = vmatprep.subr.mxu0 0.0
      %499 = vmatpush1.msra.mxu0 0.0
      %500 = vmatprep.mubr.f32.mxu0 0.0
      %501 = vmatmul.mubr.f32.gmra.mrb[0].mxu0 %v427
      %v502 = vpop.f32.mrb[0].mxu0
      %v503 = vadd.f32 0.0, %v502
      %v504 = vpop.f32.mrb[0].mxu0
      %505 = vmatprep.mubr.f32.mxu0 0.0
      %506 = vmatmul.mubr.f32.gmra.mrb[0].mxu0 %v430
      %v507 = vpop.f32.mrb[0].mxu0
      %v508 = vadd.f32 0.0, %v507
      %v509 = vpop.f32.mrb[0].mxu0
      %510 = vdwg.mxu0
      %v512 = vsel %vm425, %v414, 0
      %v515 = vsel %vm425, %v419, 0
      %v518 = vsel %vm432, %v422, 0
      %520 = vmatprep.subr.mxu0 0.0
      %521 = vmatpush1.msra.mxu0 %v518
      %522 = vmatprep.subr.mxu0 0.0
      %523 = vmatpush1.msra.mxu0 0.0
      %524 = vmatprep.subr.mxu0 0.0
      %525 = vmatpush1.msra.mxu0 0.0
      %526 = vmatprep.subr.mxu0 0.0
      %527 = vmatpush1.msra.mxu0 0.0
      %528 = vmatprep.subr.mxu0 0.0
      %529 = vmatpush1.msra.mxu0 0.0
      %530 = vmatprep.subr.mxu0 0.0
      %531 = vmatpush1.msra.mxu0 0.0
      %532 = vmatprep.subr.mxu0 0.0
      %533 = vmatpush1.msra.mxu0 0.0
      %534 = vmatprep.subr.mxu0 0.0
      %535 = vmatpush1.msra.mxu0 0.0
      %536 = vmatprep.subr.mxu0 0.0
      %537 = vmatpush1.msra.mxu0 0.0
      %538 = vmatprep.subr.mxu0 0.0
      %539 = vmatpush1.msra.mxu0 0.0
      %540 = vmatprep.subr.mxu0 0.0
      %541 = vmatpush1.msra.mxu0 0.0
      %542 = vmatprep.subr.mxu0 0.0
      %543 = vmatpush1.msra.mxu0 0.0
      %544 = vmatprep.subr.mxu0 0.0
      %545 = vmatpush1.msra.mxu0 0.0
      %546 = vmatprep.subr.mxu0 0.0
      %547 = vmatpush1.msra.mxu0 0.0
      %548 = vmatprep.subr.mxu0 0.0
      %549 = vmatpush1.msra.mxu0 0.0
      %550 = vmatprep.subr.mxu0 0.0
      %551 = vmatpush1.msra.mxu0 0.0
      %552 = vmatprep.subr.mxu0 0.0
      %553 = vmatpush1.msra.mxu0 0.0
      %554 = vmatprep.subr.mxu0 0.0
      %555 = vmatpush1.msra.mxu0 0.0
      %556 = vmatprep.subr.mxu0 0.0
      %557 = vmatpush1.msra.mxu0 0.0
      %558 = vmatprep.subr.mxu0 0.0
      %559 = vmatpush1.msra.mxu0 0.0
      %560 = vmatprep.subr.mxu0 0.0
      %561 = vmatpush1.msra.mxu0 0.0
      %562 = vmatprep.subr.mxu0 0.0
      %563 = vmatpush1.msra.mxu0 0.0
      %564 = vmatprep.subr.mxu0 0.0
      %565 = vmatpush1.msra.mxu0 0.0
      %566 = vmatprep.subr.mxu0 0.0
      %567 = vmatpush1.msra.mxu0 0.0
      %568 = vmatprep.subr.mxu0 0.0
      %569 = vmatpush1.msra.mxu0 0.0
      %570 = vmatprep.subr.mxu0 0.0
      %571 = vmatpush1.msra.mxu0 0.0
      %572 = vmatprep.subr.mxu0 0.0
      %573 = vmatpush1.msra.mxu0 0.0
      %574 = vmatprep.subr.mxu0 0.0
      %575 = vmatpush1.msra.mxu0 0.0
      %576 = vmatprep.subr.mxu0 0.0
      %577 = vmatpush1.msra.mxu0 0.0
      %578 = vmatprep.subr.mxu0 0.0
      %579 = vmatpush1.msra.mxu0 0.0
      %580 = vmatprep.subr.mxu0 0.0
      %581 = vmatpush1.msra.mxu0 0.0
      %582 = vmatprep.subr.mxu0 0.0
      %583 = vmatpush1.msra.mxu0 0.0
      %584 = vmatprep.mubr.f32.mxu0 0.0
      %585 = vmatmul.mubr.f32.gmra.mrb[0].mxu0 %v512
      %v586 = vpop.f32.mrb[0].mxu0
      %v587 = vadd.f32 %v503, %v586
      %v588 = vpop.f32.mrb[0].mxu0
      %589 = vmatprep.mubr.f32.mxu0 0.0
      %590 = vmatmul.mubr.f32.gmra.mrb[0].mxu0 %v515
      %v591 = vpop.f32.mrb[0].mxu0
      %v592 = vadd.f32 %v508, %v591
      %v593 = vpop.f32.mrb[0].mxu0
      %594 = vdwg.mxu0
      %v596 = vsel %vm340, %v336, 0
      %v599 = vsel %vm340, %v337, 0
      %601 = vmatprep.subr.mxu0 0.0
      %602 = vmatpush1.msra.mxu0 %v338
      %603 = vmatprep.subr.mxu0 0.0
      %604 = vmatpush1.msra.mxu0 %v339
      %605 = vmatprep.subr.mxu0 0.0
      %606 = vmatpush1.msra.mxu0 0.0
      %607 = vmatprep.subr.mxu0 0.0
      %608 = vmatpush1.msra.mxu0 0.0
      %609 = vmatprep.subr.mxu0 0.0
      %610 = vmatpush1.msra.mxu0 0.0
      %611 = vmatprep.subr.mxu0 0.0
      %612 = vmatpush1.msra.mxu0 0.0
      %613 = vmatprep.subr.mxu0 0.0
      %614 = vmatpush1.msra.mxu0 0.0
      %615 = vmatprep.subr.mxu0 0.0
      %616 = vmatpush1.msra.mxu0 0.0
      %617 = vmatprep.subr.mxu0 0.0
      %618 = vmatpush1.msra.mxu0 0.0
      %619 = vmatprep.subr.mxu0 0.0
      %620 = vmatpush1.msra.mxu0 0.0
      %621 = vmatprep.subr.mxu0 0.0
      %622 = vmatpush1.msra.mxu0 0.0
      %623 = vmatprep.subr.mxu0 0.0
      %624 = vmatpush1.msra.mxu0 0.0
      %625 = vmatprep.subr.mxu0 0.0
      %626 = vmatpush1.msra.mxu0 0.0
      %627 = vmatprep.subr.mxu0 0.0
      %628 = vmatpush1.msra.mxu0 0.0
      %629 = vmatprep.subr.mxu0 0.0
      %630 = vmatpush1.msra.mxu0 0.0
      %631 = vmatprep.subr.mxu0 0.0
      %632 = vmatpush1.msra.mxu0 0.0
      %633 = vmatprep.subr.mxu0 0.0
      %634 = vmatpush1.msra.mxu0 0.0
      %635 = vmatprep.subr.mxu0 0.0
      %636 = vmatpush1.msra.mxu0 0.0
      %637 = vmatprep.subr.mxu0 0.0
      %638 = vmatpush1.msra.mxu0 0.0
      %639 = vmatprep.subr.mxu0 0.0
      %640 = vmatpush1.msra.mxu0 0.0
      %641 = vmatprep.subr.mxu0 0.0
      %642 = vmatpush1.msra.mxu0 0.0
      %643 = vmatprep.subr.mxu0 0.0
      %644 = vmatpush1.msra.mxu0 0.0
      %645 = vmatprep.subr.mxu0 0.0
      %646 = vmatpush1.msra.mxu0 0.0
      %647 = vmatprep.subr.mxu0 0.0
      %648 = vmatpush1.msra.mxu0 0.0
      %649 = vmatprep.subr.mxu0 0.0
      %650 = vmatpush1.msra.mxu0 0.0
      %651 = vmatprep.subr.mxu0 0.0
      %652 = vmatpush1.msra.mxu0 0.0
      %653 = vmatprep.subr.mxu0 0.0
      %654 = vmatpush1.msra.mxu0 0.0
      %655 = vmatprep.subr.mxu0 0.0
      %656 = vmatpush1.msra.mxu0 0.0
      %657 = vmatprep.subr.mxu0 0.0
      %658 = vmatpush1.msra.mxu0 0.0
      %659 = vmatprep.subr.mxu0 0.0
      %660 = vmatpush1.msra.mxu0 0.0
      %661 = vmatprep.subr.mxu0 0.0
      %662 = vmatpush1.msra.mxu0 0.0
      %663 = vmatprep.subr.mxu0 0.0
      %664 = vmatpush1.msra.mxu0 0.0
      %665 = vmatprep.mubr.f32.mxu0 0.0
      %666 = vmatmul.mubr.f32.gmra.mrb[0].mxu0 %v596
      %v667 = vpop.f32.mrb[0].mxu0
      %v668 = vadd.f32 0.0, %v667
      %v669 = vpop.f32.mrb[0].mxu0
      %670 = vmatprep.mubr.f32.mxu0 0.0
      %671 = vmatmul.mubr.f32.gmra.mrb[0].mxu0 %v599
      %v672 = vpop.f32.mrb[0].mxu0
      %v673 = vadd.f32 0.0, %v672
      %v674 = vpop.f32.mrb[0].mxu0
      %675 = vdwg.mxu0
      %s676 = scalar_lea.vmem %s1, 8
      %v677 = vld [vmem:[%s676] sm:$0xf]
      %v679 = vsel %vm425, %v668, 0
      %v682 = vsel %vm425, %v673, 0
      %v685 = vsel %vm432, %v677, 0
      %687 = vmatprep.subr.mxu0 0.0
      %688 = vmatpush1.msra.mxu0 %v685
      %689 = vmatprep.subr.mxu0 0.0
      %690 = vmatpush1.msra.mxu0 0.0
      %691 = vmatprep.subr.mxu0 0.0
      %692 = vmatpush1.msra.mxu0 0.0
      %693 = vmatprep.subr.mxu0 0.0
      %694 = vmatpush1.msra.mxu0 0.0
      %695 = vmatprep.subr.mxu0 0.0
      %696 = vmatpush1.msra.mxu0 0.0
      %697 = vmatprep.subr.mxu0 0.0
      %698 = vmatpush1.msra.mxu0 0.0
      %699 = vmatprep.subr.mxu0 0.0
      %700 = vmatpush1.msra.mxu0 0.0
      %701 = vmatprep.subr.mxu0 0.0
      %702 = vmatpush1.msra.mxu0 0.0
      %703 = vmatprep.subr.mxu0 0.0
      %704 = vmatpush1.msra.mxu0 0.0
      %705 = vmatprep.subr.mxu0 0.0
      %706 = vmatpush1.msra.mxu0 0.0
      %707 = vmatprep.subr.mxu0 0.0
      %708 = vmatpush1.msra.mxu0 0.0
      %709 = vmatprep.subr.mxu0 0.0
      %710 = vmatpush1.msra.mxu0 0.0
      %711 = vmatprep.subr.mxu0 0.0
      %712 = vmatpush1.msra.mxu0 0.0
      %713 = vmatprep.subr.mxu0 0.0
      %714 = vmatpush1.msra.mxu0 0.0
      %715 = vmatprep.subr.mxu0 0.0
      %716 = vmatpush1.msra.mxu0 0.0
      %717 = vmatprep.subr.mxu0 0.0
      %718 = vmatpush1.msra.mxu0 0.0
      %719 = vmatprep.subr.mxu0 0.0
      %720 = vmatpush1.msra.mxu0 0.0
      %721 = vmatprep.subr.mxu0 0.0
      %722 = vmatpush1.msra.mxu0 0.0
      %723 = vmatprep.subr.mxu0 0.0
      %724 = vmatpush1.msra.mxu0 0.0
      %725 = vmatprep.subr.mxu0 0.0
      %726 = vmatpush1.msra.mxu0 0.0
      %727 = vmatprep.subr.mxu0 0.0
      %728 = vmatpush1.msra.mxu0 0.0
      %729 = vmatprep.subr.mxu0 0.0
      %730 = vmatpush1.msra.mxu0 0.0
      %731 = vmatprep.subr.mxu0 0.0
      %732 = vmatpush1.msra.mxu0 0.0
      %733 = vmatprep.subr.mxu0 0.0
      %734 = vmatpush1.msra.mxu0 0.0
      %735 = vmatprep.subr.mxu0 0.0
      %736 = vmatpush1.msra.mxu0 0.0
      %737 = vmatprep.subr.mxu0 0.0
      %738 = vmatpush1.msra.mxu0 0.0
      %739 = vmatprep.subr.mxu0 0.0
      %740 = vmatpush1.msra.mxu0 0.0
      %741 = vmatprep.subr.mxu0 0.0
      %742 = vmatpush1.msra.mxu0 0.0
      %743 = vmatprep.subr.mxu0 0.0
      %744 = vmatpush1.msra.mxu0 0.0
      %745 = vmatprep.subr.mxu0 0.0
      %746 = vmatpush1.msra.mxu0 0.0
      %747 = vmatprep.subr.mxu0 0.0
      %748 = vmatpush1.msra.mxu0 0.0
      %749 = vmatprep.subr.mxu0 0.0
      %750 = vmatpush1.msra.mxu0 0.0
      %751 = vmatprep.mubr.f32.mxu0 0.0
      %752 = vmatmul.mubr.f32.gmra.mrb[0].mxu0 %v679
      %v753 = vpop.f32.mrb[0].mxu0
      %v754 = vadd.f32 0.0, %v753
      %v755 = vpop.f32.mrb[0].mxu0
      %756 = vmatprep.mubr.f32.mxu0 0.0
      %757 = vmatmul.mubr.f32.gmra.mrb[0].mxu0 %v682
      %v758 = vpop.f32.mrb[0].mxu0
      %v759 = vadd.f32 0.0, %v758
      %v760 = vpop.f32.mrb[0].mxu0
      %761 = vdwg.mxu0
      %v762 = vadd.f32 %v587, %v754
      %v763 = vadd.f32 %v592, %v759
      %v764 = vld [vmem:[%s2] sm:$0xff]
      %v765 = vld [vmem:[%s2 + $0x8] sm:$0xff]
      %v766 = vadd.f32 %v762, %v764
      %v767 = vadd.f32 %v763, %v765
      %v768 = vld [vmem:[%s4] sm:$0xff]
      %v769 = vld [vmem:[%s4 + $0x8] sm:$0xff]
      %v770 = vld [vmem:[%s4 + $0x10] sm:$0xff]
      %v771 = vld [vmem:[%s4 + $0x18] sm:$0xff]
      %v772 = vld [vmem:[%s4 + $0x20] sm:$0xff]
      %v773 = vld [vmem:[%s4 + $0x28] sm:$0xff]
      %v774 = vld [vmem:[%s4 + $0x30] sm:$0xff]
      %v775 = vld [vmem:[%s4 + $0x38] sm:$0xff]
      %v776 = vld [vmem:[%s4 + $0x40] sm:$0xff]
      %v777 = vld [vmem:[%s4 + $0x48] sm:$0xff]
      %v778 = vld [vmem:[%s4 + $0x50] sm:$0xff]
      %v779 = vld [vmem:[%s4 + $0x58] sm:$0xff]
      %v780 = vld [vmem:[%s4 + $0x60] sm:$0xff]
      %v781 = vld [vmem:[%s4 + $0x68] sm:$0xff]
      %v782 = vld [vmem:[%s4 + $0x70] sm:$0xff]
      %v783 = vld [vmem:[%s4 + $0x78] sm:$0xff]
      %v784 = vld [vmem:[%s4 + $0x80] sm:$0x1]
      %v785 = vld [vmem:[%s4 + $0x88] sm:$0x1]
      %v786 = vlaneseq
      %v787 = vshrl.u32 %v786, 7
      %v788 = vsub.s32 0, %v787
      %v789 = vrot.slane %v784, %v788
      %v790 = vlaneseq
      %v791 = vshrl.u32 %v790, 7
      %v792 = vsub.s32 0, %v791
      %v793 = vrot.slane %v785, %v792
      %vm794 = vcmask 523264
      %v796 = vsel %vm794, %v766, 0
      %v799 = vsel %vm794, %v767, 0
      %801 = vmatprep.subr.mxu0 %v769
      %802 = vmatpush1.msra.mxu0 %v768
      %803 = vmatprep.subr.mxu0 %v771
      %804 = vmatpush1.msra.mxu0 %v770
      %805 = vmatprep.subr.mxu0 %v773
      %806 = vmatpush1.msra.mxu0 %v772
      %807 = vmatprep.subr.mxu0 %v775
      %808 = vmatpush1.msra.mxu0 %v774
      %809 = vmatprep.subr.mxu0 %v777
      %810 = vmatpush1.msra.mxu0 %v776
      %811 = vmatprep.subr.mxu0 %v779
      %812 = vmatpush1.msra.mxu0 %v778
      %813 = vmatprep.subr.mxu0 %v781
      %814 = vmatpush1.msra.mxu0 %v780
      %815 = vmatprep.subr.mxu0 %v783
      %816 = vmatpush1.msra.mxu0 %v782
      %817 = vmatprep.subr.mxu0 0.0
      %818 = vmatpush1.msra.mxu0 0.0
      %819 = vmatprep.subr.mxu0 0.0
      %820 = vmatpush1.msra.mxu0 0.0
      %821 = vmatprep.subr.mxu0 0.0
      %822 = vmatpush1.msra.mxu0 0.0
      %823 = vmatprep.subr.mxu0 0.0
      %824 = vmatpush1.msra.mxu0 0.0
      %825 = vmatprep.subr.mxu0 0.0
      %826 = vmatpush1.msra.mxu0 0.0
      %827 = vmatprep.subr.mxu0 0.0
      %828 = vmatpush1.msra.mxu0 0.0
      %829 = vmatprep.subr.mxu0 0.0
      %830 = vmatpush1.msra.mxu0 0.0
      %831 = vmatprep.subr.mxu0 0.0
      %832 = vmatpush1.msra.mxu0 0.0
      %833 = vmatprep.subr.mxu0 0.0
      %834 = vmatpush1.msra.mxu0 0.0
      %835 = vmatprep.subr.mxu0 0.0
      %836 = vmatpush1.msra.mxu0 0.0
      %837 = vmatprep.subr.mxu0 0.0
      %838 = vmatpush1.msra.mxu0 0.0
      %839 = vmatprep.subr.mxu0 0.0
      %840 = vmatpush1.msra.mxu0 0.0
      %841 = vmatprep.subr.mxu0 0.0
      %842 = vmatpush1.msra.mxu0 0.0
      %843 = vmatprep.subr.mxu0 0.0
      %844 = vmatpush1.msra.mxu0 0.0
      %845 = vmatprep.subr.mxu0 0.0
      %846 = vmatpush1.msra.mxu0 0.0
      %847 = vmatprep.subr.mxu0 0.0
      %848 = vmatpush1.msra.mxu0 0.0
      %849 = vmatprep.subr.mxu0 0.0
      %850 = vmatpush1.msra.mxu0 0.0
      %851 = vmatprep.subr.mxu0 0.0
      %852 = vmatpush1.msra.mxu0 0.0
      %853 = vmatprep.subr.mxu0 0.0
      %854 = vmatpush1.msra.mxu0 0.0
      %855 = vmatprep.subr.mxu0 0.0
      %856 = vmatpush1.msra.mxu0 0.0
      %857 = vmatprep.subr.mxu0 0.0
      %858 = vmatpush1.msra.mxu0 0.0
      %859 = vmatprep.subr.mxu0 0.0
      %860 = vmatpush1.msra.mxu0 0.0
      %861 = vmatprep.subr.mxu0 0.0
      %862 = vmatpush1.msra.mxu0 0.0
      %863 = vmatprep.subr.mxu0 0.0
      %864 = vmatpush1.msra.mxu0 0.0
      %865 = vmatprep.mubr.f32.mxu0 0.0
      %866 = vmatmul.mubr.f32.gmra.mrb[0].mxu0 %v796
      %v867 = vpop.f32.mrb[0].mxu0
      %v868 = vadd.f32 %v789, %v867
      %v869 = vpop.f32.mrb[0].mxu0
      %v870 = vadd.f32 %v793, %v869
      %871 = vmatprep.mubr.f32.mxu0 0.0
      %872 = vmatmul.mubr.f32.gmra.mrb[0].mxu0 %v799
      %v873 = vpop.f32.mrb[0].mxu0
      %v874 = vadd.f32 %v789, %v873
      %v875 = vpop.f32.mrb[0].mxu0
      %v876 = vadd.f32 %v793, %v875
      %877 = vdwg.mxu0
      %880 = vrot.lane.b32.xlu0 %v868, 112
      %v881 = vpop.permute.xlu0 %880
      %882 = vrot.lane.b32.xlu0 %v874, 112
      %v883 = vpop.permute.xlu0 %882
      %884 = vrot.lane.b32.xlu0 %v868, 96
      %v885 = vpop.permute.xlu0 %884
      %886 = vrot.lane.b32.xlu0 %v874, 96
      %v887 = vpop.permute.xlu0 %886
      %888 = vrot.lane.b32.xlu0 %v868, 80
      %v889 = vpop.permute.xlu0 %888
      %890 = vrot.lane.b32.xlu0 %v874, 80
      %v891 = vpop.permute.xlu0 %890
      %894 = vrot.lane.b32.xlu0 %v870, 112
      %v895 = vpop.permute.xlu0 %894
      %896 = vrot.lane.b32.xlu0 %v876, 112
      %v897 = vpop.permute.xlu0 %896
      %900 = vrot.lane.b32.xlu0 %v870, 96
      %v901 = vpop.permute.xlu0 %900
      %902 = vrot.lane.b32.xlu0 %v876, 96
      %v903 = vpop.permute.xlu0 %902
      %906 = vrot.lane.b32.xlu0 %v870, 80
      %v907 = vpop.permute.xlu0 %906
      %908 = vrot.lane.b32.xlu0 %v876, 80
      %v909 = vpop.permute.xlu0 %908
      %v912 = vld [vmem:[%s7] sm:$0xff]
      %v913 = vld [vmem:[%s7 + $0x8] sm:$0xff]
      %v914 = vld [vmem:[%s7 + $0x10] sm:$0xff]
      %v915 = vld [vmem:[%s7 + $0x18] sm:$0xff]
      %v916 = vld [vmem:[%s7 + $0x20] sm:$0xff]
      %v917 = vld [vmem:[%s7 + $0x28] sm:$0xff]
      %v918 = vld [vmem:[%s7 + $0x30] sm:$0xff]
      %v919 = vld [vmem:[%s7 + $0x38] sm:$0xff]
      %920 = vrot.lane.b32.xlu0 %v868, 64
      %v921 = vpop.permute.xlu0 %920
      %922 = vrot.lane.b32.xlu0 %v874, 64
      %v923 = vpop.permute.xlu0 %922
      %924 = vrot.lane.b32.xlu0 %v881, 64
      %v925 = vpop.permute.xlu0 %924
      %926 = vrot.lane.b32.xlu0 %v883, 64
      %v927 = vpop.permute.xlu0 %926
      %928 = vrot.lane.b32.xlu0 %v885, 64
      %v929 = vpop.permute.xlu0 %928
      %930 = vrot.lane.b32.xlu0 %v887, 64
      %v931 = vpop.permute.xlu0 %930
      %932 = vrot.lane.b32.xlu0 %v889, 64
      %v933 = vpop.permute.xlu0 %932
      %934 = vrot.lane.b32.xlu0 %v891, 64
      %v935 = vpop.permute.xlu0 %934
      %v936 = vsel %vm340, %v868, 0
      %v938 = vsel %vm340, %v874, 0
      %v940 = vsel %vm340, %v881, 0
      %v942 = vsel %vm340, %v883, 0
      %v944 = vsel %vm340, %v885, 0
      %v946 = vsel %vm340, %v887, 0
      %v948 = vsel %vm340, %v889, 0
      %v950 = vsel %vm340, %v891, 0
      %v952 = vsel %vm340, %v921, 0
      %v954 = vsel %vm340, %v923, 0
      %v956 = vsel %vm340, %v925, 0
      %v958 = vsel %vm340, %v927, 0
      %v960 = vsel %vm340, %v929, 0
      %v962 = vsel %vm340, %v931, 0
      %v964 = vsel %vm340, %v933, 0
      %v966 = vsel %vm340, %v935, 0
      %968 = vmatprep.subr.mxu0 0.0
      %969 = vmatpush1.xpose.msra.mxu0 %v952
      %970 = vmatprep.subr.mxu0 0.0
      %971 = vmatpush1.xpose.msra.mxu0 %v954
      %972 = vmatprep.subr.mxu0 0.0
      %973 = vmatpush1.xpose.msra.mxu0 %v956
      %974 = vmatprep.subr.mxu0 0.0
      %975 = vmatpush1.xpose.msra.mxu0 %v958
      %976 = vmatprep.subr.mxu0 0.0
      %977 = vmatpush1.xpose.msra.mxu0 %v960
      %978 = vmatprep.subr.mxu0 0.0
      %979 = vmatpush1.xpose.msra.mxu0 %v962
      %980 = vmatprep.subr.mxu0 0.0
      %981 = vmatpush1.xpose.msra.mxu0 %v964
      %982 = vmatprep.subr.mxu0 0.0
      %983 = vmatpush1.xpose.msra.mxu0 %v966
      %984 = vmatprep.subr.mxu0 0.0
      %985 = vmatpush1.xpose.msra.mxu0 0.0
      %986 = vmatprep.subr.mxu0 0.0
      %987 = vmatpush1.xpose.msra.mxu0 0.0
      %988 = vmatprep.subr.mxu0 0.0
      %989 = vmatpush1.xpose.msra.mxu0 0.0
      %990 = vmatprep.subr.mxu0 0.0
      %991 = vmatpush1.xpose.msra.mxu0 0.0
      %992 = vmatprep.subr.mxu0 0.0
      %993 = vmatpush1.xpose.msra.mxu0 0.0
      %994 = vmatprep.subr.mxu0 0.0
      %995 = vmatpush1.xpose.msra.mxu0 0.0
      %996 = vmatprep.subr.mxu0 0.0
      %997 = vmatpush1.xpose.msra.mxu0 0.0
      %998 = vmatprep.subr.mxu0 0.0
      %999 = vmatpush1.xpose.msra.mxu0 0.0
      %1000 = vmatprep.subr.mxu0 0.0
      %1001 = vmatpush1.xpose.msra.mxu0 0.0
      %1002 = vmatprep.subr.mxu0 0.0
      %1003 = vmatpush1.xpose.msra.mxu0 0.0
      %1004 = vmatprep.subr.mxu0 0.0
      %1005 = vmatpush1.xpose.msra.mxu0 0.0
      %1006 = vmatprep.subr.mxu0 0.0
      %1007 = vmatpush1.xpose.msra.mxu0 0.0
      %1008 = vmatprep.subr.mxu0 0.0
      %1009 = vmatpush1.xpose.msra.mxu0 0.0
      %1010 = vmatprep.subr.mxu0 0.0
      %1011 = vmatpush1.xpose.msra.mxu0 0.0
      %1012 = vmatprep.subr.mxu0 0.0
      %1013 = vmatpush1.xpose.msra.mxu0 0.0
      %1014 = vmatprep.subr.mxu0 0.0
      %1015 = vmatpush1.xpose.msra.mxu0 0.0
      %1016 = vmatprep.subr.mxu0 0.0
      %1017 = vmatpush1.xpose.msra.mxu0 0.0
      %1018 = vmatprep.subr.mxu0 0.0
      %1019 = vmatpush1.xpose.msra.mxu0 0.0
      %1020 = vmatprep.subr.mxu0 0.0
      %1021 = vmatpush1.xpose.msra.mxu0 0.0
      %1022 = vmatprep.subr.mxu0 0.0
      %1023 = vmatpush1.xpose.msra.mxu0 0.0
      %1024 = vmatprep.subr.mxu0 0.0
      %1025 = vmatpush1.xpose.msra.mxu0 0.0
      %1026 = vmatprep.subr.mxu0 0.0
      %1027 = vmatpush1.xpose.msra.mxu0 0.0
      %1028 = vmatprep.subr.mxu0 0.0
      %1029 = vmatpush1.xpose.msra.mxu0 0.0
      %1030 = vmatprep.subr.mxu0 0.0
      %1031 = vmatpush1.xpose.msra.mxu0 0.0
      %1032 = vmatprep.mubr.f32.mxu0 0.0
      %1033 = vmatmul.mubr.f32.gmra.mrb[0].mxu0 %v936
      %v1034 = vpop.f32.mrb[0].mxu0
      %v1035 = vadd.f32 %v912, %v1034
      %v1036 = vpop.f32.mrb[0].mxu0
      %1037 = vmatprep.mubr.f32.mxu0 0.0
      %1038 = vmatmul.mubr.f32.gmra.mrb[0].mxu0 %v938
      %v1039 = vpop.f32.mrb[0].mxu0
      %v1040 = vadd.f32 %v913, %v1039
      %v1041 = vpop.f32.mrb[0].mxu0
      %1042 = vmatprep.mubr.f32.mxu0 0.0
      %1043 = vmatmul.mubr.f32.gmra.mrb[0].mxu0 %v940
      %v1044 = vpop.f32.mrb[0].mxu0
      %v1045 = vadd.f32 %v914, %v1044
      %v1046 = vpop.f32.mrb[0].mxu0
      %1047 = vmatprep.mubr.f32.mxu0 0.0
      %1048 = vmatmul.mubr.f32.gmra.mrb[0].mxu0 %v942
      %v1049 = vpop.f32.mrb[0].mxu0
      %v1050 = vadd.f32 %v915, %v1049
      %v1051 = vpop.f32.mrb[0].mxu0
      %1052 = vmatprep.mubr.f32.mxu0 0.0
      %1053 = vmatmul.mubr.f32.gmra.mrb[0].mxu0 %v944
      %v1054 = vpop.f32.mrb[0].mxu0
      %v1055 = vadd.f32 %v916, %v1054
      %v1056 = vpop.f32.mrb[0].mxu0
      %1057 = vmatprep.mubr.f32.mxu0 0.0
      %1058 = vmatmul.mubr.f32.gmra.mrb[0].mxu0 %v946
      %v1059 = vpop.f32.mrb[0].mxu0
      %v1060 = vadd.f32 %v917, %v1059
      %v1061 = vpop.f32.mrb[0].mxu0
      %1062 = vmatprep.mubr.f32.mxu0 0.0
      %1063 = vmatmul.mubr.f32.gmra.mrb[0].mxu0 %v948
      %v1064 = vpop.f32.mrb[0].mxu0
      %v1065 = vadd.f32 %v918, %v1064
      %v1066 = vpop.f32.mrb[0].mxu0
      %1067 = vmatprep.mubr.f32.mxu0 0.0
      %1068 = vmatmul.mubr.f32.gmra.mrb[0].mxu0 %v950
      %v1069 = vpop.f32.mrb[0].mxu0
      %v1070 = vadd.f32 %v919, %v1069
      %v1071 = vpop.f32.mrb[0].mxu0
      %1072 = vdwg.mxu0
      %v1073 = vsel %vm794, %v1035, -inf
      %1074 = vmax.xlane.f32.xlu0 %v1073
      %v1075 = vpop.xlane.xlu0 %1074
      %v1076 = vsel %vm794, %v1040, -inf
      %1077 = vmax.xlane.f32.xlu0 %v1076
      %v1078 = vpop.xlane.xlu0 %1077
      %v1079 = vsel %vm794, %v1045, -inf
      %1080 = vmax.xlane.f32.xlu0 %v1079
      %v1081 = vpop.xlane.xlu0 %1080
      %v1082 = vsel %vm794, %v1050, -inf
      %1083 = vmax.xlane.f32.xlu0 %v1082
      %v1084 = vpop.xlane.xlu0 %1083
      %v1085 = vsel %vm794, %v1055, -inf
      %1086 = vmax.xlane.f32.xlu0 %v1085
      %v1087 = vpop.xlane.xlu0 %1086
      %v1088 = vsel %vm794, %v1060, -inf
      %1089 = vmax.xlane.f32.xlu0 %v1088
      %v1090 = vpop.xlane.xlu0 %1089
      %v1091 = vsel %vm794, %v1065, -inf
      %1092 = vmax.xlane.f32.xlu0 %v1091
      %v1093 = vpop.xlane.xlu0 %1092
      %v1094 = vsel %vm794, %v1070, -inf
      %1095 = vmax.xlane.f32.xlu0 %v1094
      %v1096 = vpop.xlane.xlu0 %1095
      %v1097 = vsub.f32 %v1035, %v1075
      %v1098 = vsub.f32 %v1040, %v1078
      %v1099 = vsub.f32 %v1045, %v1081
      %v1100 = vsub.f32 %v1050, %v1084
      %v1101 = vsub.f32 %v1055, %v1087
      %v1102 = vsub.f32 %v1060, %v1090
      %v1103 = vsub.f32 %v1065, %v1093
      %v1104 = vsub.f32 %v1070, %v1096
      %v1105 = vmul.f32 %v1097, 1.442695
      %v1106 = vpow.pop %v1105
      %v1107 = vmul.f32 %v1098, 1.442695
      %v1108 = vpow.pop %v1107
      %v1109 = vmul.f32 %v1099, 1.442695
      %v1110 = vpow.pop %v1109
      %v1111 = vmul.f32 %v1100, 1.442695
      %v1112 = vpow.pop %v1111
      %v1113 = vmul.f32 %v1101, 1.442695
      %v1114 = vpow.pop %v1113
      %v1115 = vmul.f32 %v1102, 1.442695
      %v1116 = vpow.pop %v1115
      %v1117 = vmul.f32 %v1103, 1.442695
      %v1118 = vpow.pop %v1117
      %v1119 = vmul.f32 %v1104, 1.442695
      %v1120 = vpow.pop %v1119
      %v1121 = vsel %vm794, %v1106, 0.0
      %1122 = vadd.xlane.f32.xlu0 %v1121
      %v1123 = vpop.xlane.xlu0 %1122
      %v1124 = vsel %vm794, %v1108, 0.0
      %1125 = vadd.xlane.f32.xlu0 %v1124
      %v1126 = vpop.xlane.xlu0 %1125
      %v1127 = vsel %vm794, %v1110, 0.0
      %1128 = vadd.xlane.f32.xlu0 %v1127
      %v1129 = vpop.xlane.xlu0 %1128
      %v1130 = vsel %vm794, %v1112, 0.0
      %1131 = vadd.xlane.f32.xlu0 %v1130
      %v1132 = vpop.xlane.xlu0 %1131
      %v1133 = vsel %vm794, %v1114, 0.0
      %1134 = vadd.xlane.f32.xlu0 %v1133
      %v1135 = vpop.xlane.xlu0 %1134
      %v1136 = vsel %vm794, %v1116, 0.0
      %1137 = vadd.xlane.f32.xlu0 %v1136
      %v1138 = vpop.xlane.xlu0 %1137
      %v1139 = vsel %vm794, %v1118, 0.0
      %1140 = vadd.xlane.f32.xlu0 %v1139
      %v1141 = vpop.xlane.xlu0 %1140
      %v1142 = vsel %vm794, %v1120, 0.0
      %1143 = vadd.xlane.f32.xlu0 %v1142
      %v1144 = vpop.xlane.xlu0 %1143
      %v1145 = vrcp.pop %v1123
      %v1146 = vmul.f32 %v1106, %v1145
      %v1147 = vrcp.pop %v1126
      %v1148 = vmul.f32 %v1108, %v1147
      %v1149 = vrcp.pop %v1129
      %v1150 = vmul.f32 %v1110, %v1149
      %v1151 = vrcp.pop %v1132
      %v1152 = vmul.f32 %v1112, %v1151
      %v1153 = vrcp.pop %v1135
      %v1154 = vmul.f32 %v1114, %v1153
      %v1155 = vrcp.pop %v1138
      %v1156 = vmul.f32 %v1116, %v1155
      %v1157 = vrcp.pop %v1141
      %v1158 = vmul.f32 %v1118, %v1157
      %v1159 = vrcp.pop %v1144
      %v1160 = vmul.f32 %v1120, %v1159
      %v1162 = vsel %vm794, %v1146, 0
      %v1165 = vsel %vm794, %v1148, 0
      %v1168 = vsel %vm794, %v1150, 0
      %v1171 = vsel %vm794, %v1152, 0
      %v1174 = vsel %vm794, %v1154, 0
      %v1177 = vsel %vm794, %v1156, 0
      %v1180 = vsel %vm794, %v1158, 0
      %v1183 = vsel %vm794, %v1160, 0
      %1185 = vmatprep.subr.mxu0 0.0
      %1186 = vmatpush1.msra.mxu0 %v870
      %1187 = vmatprep.subr.mxu0 0.0
      %1188 = vmatpush1.msra.mxu0 %v876
      %1189 = vmatprep.subr.mxu0 0.0
      %1190 = vmatpush1.msra.mxu0 %v895
      %1191 = vmatprep.subr.mxu0 0.0
      %1192 = vmatpush1.msra.mxu0 %v897
      %1193 = vmatprep.subr.mxu0 0.0
      %1194 = vmatpush1.msra.mxu0 %v901
      %1195 = vmatprep.subr.mxu0 0.0
      %1196 = vmatpush1.msra.mxu0 %v903
      %1197 = vmatprep.subr.mxu0 0.0
      %1198 = vmatpush1.msra.mxu0 %v907
      %1199 = vmatprep.subr.mxu0 0.0
      %1200 = vmatpush1.msra.mxu0 %v909
      %1201 = vmatprep.subr.mxu0 0.0
      %1202 = vmatpush1.msra.mxu0 0.0
      %1203 = vmatprep.subr.mxu0 0.0
      %1204 = vmatpush1.msra.mxu0 0.0
      %1205 = vmatprep.subr.mxu0 0.0
      %1206 = vmatpush1.msra.mxu0 0.0
      %1207 = vmatprep.subr.mxu0 0.0
      %1208 = vmatpush1.msra.mxu0 0.0
      %1209 = vmatprep.subr.mxu0 0.0
      %1210 = vmatpush1.msra.mxu0 0.0
      %1211 = vmatprep.subr.mxu0 0.0
      %1212 = vmatpush1.msra.mxu0 0.0
      %1213 = vmatprep.subr.mxu0 0.0
      %1214 = vmatpush1.msra.mxu0 0.0
      %1215 = vmatprep.subr.mxu0 0.0
      %1216 = vmatpush1.msra.mxu0 0.0
      %1217 = vmatprep.subr.mxu0 0.0
      %1218 = vmatpush1.msra.mxu0 0.0
      %1219 = vmatprep.subr.mxu0 0.0
      %1220 = vmatpush1.msra.mxu0 0.0
      %1221 = vmatprep.subr.mxu0 0.0
      %1222 = vmatpush1.msra.mxu0 0.0
      %1223 = vmatprep.subr.mxu0 0.0
      %1224 = vmatpush1.msra.mxu0 0.0
      %1225 = vmatprep.subr.mxu0 0.0
      %1226 = vmatpush1.msra.mxu0 0.0
      %1227 = vmatprep.subr.mxu0 0.0
      %1228 = vmatpush1.msra.mxu0 0.0
      %1229 = vmatprep.subr.mxu0 0.0
      %1230 = vmatpush1.msra.mxu0 0.0
      %1231 = vmatprep.subr.mxu0 0.0
      %1232 = vmatpush1.msra.mxu0 0.0
      %1233 = vmatprep.subr.mxu0 0.0
      %1234 = vmatpush1.msra.mxu0 0.0
      %1235 = vmatprep.subr.mxu0 0.0
      %1236 = vmatpush1.msra.mxu0 0.0
      %1237 = vmatprep.subr.mxu0 0.0
      %1238 = vmatpush1.msra.mxu0 0.0
      %1239 = vmatprep.subr.mxu0 0.0
      %1240 = vmatpush1.msra.mxu0 0.0
      %1241 = vmatprep.subr.mxu0 0.0
      %1242 = vmatpush1.msra.mxu0 0.0
      %1243 = vmatprep.subr.mxu0 0.0
      %1244 = vmatpush1.msra.mxu0 0.0
      %1245 = vmatprep.subr.mxu0 0.0
      %1246 = vmatpush1.msra.mxu0 0.0
      %1247 = vmatprep.subr.mxu0 0.0
      %1248 = vmatpush1.msra.mxu0 0.0
      %1249 = vmatprep.mubr.f32.mxu0 0.0
      %1250 = vmatmul.mubr.f32.gmra.mrb[0].mxu0 %v1162
      %v1251 = vpop.f32.mrb[0].mxu0
      %v1252 = vadd.f32 0.0, %v1251
      %v1253 = vpop.f32.mrb[0].mxu0
      %1254 = vmatprep.mubr.f32.mxu0 0.0
      %1255 = vmatmul.mubr.f32.gmra.mrb[0].mxu0 %v1165
      %v1256 = vpop.f32.mrb[0].mxu0
      %v1257 = vadd.f32 0.0, %v1256
      %v1258 = vpop.f32.mrb[0].mxu0
      %1259 = vmatprep.mubr.f32.mxu0 0.0
      %1260 = vmatmul.mubr.f32.gmra.mrb[0].mxu0 %v1168
      %v1261 = vpop.f32.mrb[0].mxu0
      %v1262 = vadd.f32 0.0, %v1261
      %v1263 = vpop.f32.mrb[0].mxu0
      %1264 = vmatprep.mubr.f32.mxu0 0.0
      %1265 = vmatmul.mubr.f32.gmra.mrb[0].mxu0 %v1171
      %v1266 = vpop.f32.mrb[0].mxu0
      %v1267 = vadd.f32 0.0, %v1266
      %v1268 = vpop.f32.mrb[0].mxu0
      %1269 = vmatprep.mubr.f32.mxu0 0.0
      %1270 = vmatmul.mubr.f32.gmra.mrb[0].mxu0 %v1174
      %v1271 = vpop.f32.mrb[0].mxu0
      %v1272 = vadd.f32 0.0, %v1271
      %v1273 = vpop.f32.mrb[0].mxu0
      %1274 = vmatprep.mubr.f32.mxu0 0.0
      %1275 = vmatmul.mubr.f32.gmra.mrb[0].mxu0 %v1177
      %v1276 = vpop.f32.mrb[0].mxu0
      %v1277 = vadd.f32 0.0, %v1276
      %v1278 = vpop.f32.mrb[0].mxu0
      %1279 = vmatprep.mubr.f32.mxu0 0.0
      %1280 = vmatmul.mubr.f32.gmra.mrb[0].mxu0 %v1180
      %v1281 = vpop.f32.mrb[0].mxu0
      %v1282 = vadd.f32 0.0, %v1281
      %v1283 = vpop.f32.mrb[0].mxu0
      %1284 = vmatprep.mubr.f32.mxu0 0.0
      %1285 = vmatmul.mubr.f32.gmra.mrb[0].mxu0 %v1183
      %v1286 = vpop.f32.mrb[0].mxu0
      %v1287 = vadd.f32 0.0, %v1286
      %v1288 = vpop.f32.mrb[0].mxu0
      %1289 = vdwg.mxu0
      %v1290 = vld [vmem:[%s5] sm:$0xff]
      %v1291 = vld [vmem:[%s5 + $0x8] sm:$0xff]
      %v1292 = vld [vmem:[%s5 + $0x10] sm:$0xff]
      %v1293 = vld [vmem:[%s5 + $0x18] sm:$0xff]
      %v1294 = vld [vmem:[%s5 + $0x20] sm:$0xff]
      %v1295 = vld [vmem:[%s5 + $0x28] sm:$0xff]
      %v1296 = vld [vmem:[%s5 + $0x30] sm:$0xff]
      %v1297 = vld [vmem:[%s5 + $0x38] sm:$0xff]
      %v1299 = vsel %vm340, %v1262, 0
      %v1302 = vsel %vm340, %v1267, 0
      %1304 = vmatprep.subr.mxu0 0.0
      %1305 = vmatpush1.msra.mxu0 %v1292
      %1306 = vmatprep.subr.mxu0 0.0
      %1307 = vmatpush1.msra.mxu0 %v1293
      %1308 = vmatprep.subr.mxu0 0.0
      %1309 = vmatpush1.msra.mxu0 0.0
      %1310 = vmatprep.subr.mxu0 0.0
      %1311 = vmatpush1.msra.mxu0 0.0
      %1312 = vmatprep.subr.mxu0 0.0
      %1313 = vmatpush1.msra.mxu0 0.0
      %1314 = vmatprep.subr.mxu0 0.0
      %1315 = vmatpush1.msra.mxu0 0.0
      %1316 = vmatprep.subr.mxu0 0.0
      %1317 = vmatpush1.msra.mxu0 0.0
      %1318 = vmatprep.subr.mxu0 0.0
      %1319 = vmatpush1.msra.mxu0 0.0
      %1320 = vmatprep.subr.mxu0 0.0
      %1321 = vmatpush1.msra.mxu0 0.0
      %1322 = vmatprep.subr.mxu0 0.0
      %1323 = vmatpush1.msra.mxu0 0.0
      %1324 = vmatprep.subr.mxu0 0.0
      %1325 = vmatpush1.msra.mxu0 0.0
      %1326 = vmatprep.subr.mxu0 0.0
      %1327 = vmatpush1.msra.mxu0 0.0
      %1328 = vmatprep.subr.mxu0 0.0
      %1329 = vmatpush1.msra.mxu0 0.0
      %1330 = vmatprep.subr.mxu0 0.0
      %1331 = vmatpush1.msra.mxu0 0.0
      %1332 = vmatprep.subr.mxu0 0.0
      %1333 = vmatpush1.msra.mxu0 0.0
      %1334 = vmatprep.subr.mxu0 0.0
      %1335 = vmatpush1.msra.mxu0 0.0
      %1336 = vmatprep.subr.mxu0 0.0
      %1337 = vmatpush1.msra.mxu0 0.0
      %1338 = vmatprep.subr.mxu0 0.0
      %1339 = vmatpush1.msra.mxu0 0.0
      %1340 = vmatprep.subr.mxu0 0.0
      %1341 = vmatpush1.msra.mxu0 0.0
      %1342 = vmatprep.subr.mxu0 0.0
      %1343 = vmatpush1.msra.mxu0 0.0
      %1344 = vmatprep.subr.mxu0 0.0
      %1345 = vmatpush1.msra.mxu0 0.0
      %1346 = vmatprep.subr.mxu0 0.0
      %1347 = vmatpush1.msra.mxu0 0.0
      %1348 = vmatprep.subr.mxu0 0.0
      %1349 = vmatpush1.msra.mxu0 0.0
      %1350 = vmatprep.subr.mxu0 0.0
      %1351 = vmatpush1.msra.mxu0 0.0
      %1352 = vmatprep.subr.mxu0 0.0
      %1353 = vmatpush1.msra.mxu0 0.0
      %1354 = vmatprep.subr.mxu0 0.0
      %1355 = vmatpush1.msra.mxu0 0.0
      %1356 = vmatprep.subr.mxu0 0.0
      %1357 = vmatpush1.msra.mxu0 0.0
      %1358 = vmatprep.subr.mxu0 0.0
      %1359 = vmatpush1.msra.mxu0 0.0
      %1360 = vmatprep.subr.mxu0 0.0
      %1361 = vmatpush1.msra.mxu0 0.0
      %1362 = vmatprep.subr.mxu0 0.0
      %1363 = vmatpush1.msra.mxu0 0.0
      %1364 = vmatprep.subr.mxu0 0.0
      %1365 = vmatpush1.msra.mxu0 0.0
      %1366 = vmatprep.subr.mxu0 0.0
      %1367 = vmatpush1.msra.mxu0 0.0
      %1368 = vmatprep.mubr.f32.mxu0 0.0
      %1369 = vmatmul.mubr.f32.gmra.mrb[0].mxu0 %v1299
      %v1370 = vpop.f32.mrb[0].mxu0
      %v1371 = vadd.f32 0.0, %v1370
      %v1372 = vpop.f32.mrb[0].mxu0
      %1373 = vmatprep.mubr.f32.mxu0 0.0
      %1374 = vmatmul.mubr.f32.gmra.mrb[0].mxu0 %v1302
      %v1375 = vpop.f32.mrb[0].mxu0
      %v1376 = vadd.f32 0.0, %v1375
      %v1377 = vpop.f32.mrb[0].mxu0
      %1378 = vdwg.mxu0
      %v1380 = vsel %vm340, %v1252, 0
      %v1383 = vsel %vm340, %v1257, 0
      %1385 = vmatprep.subr.mxu0 0.0
      %1386 = vmatpush1.msra.mxu0 %v1290
      %1387 = vmatprep.subr.mxu0 0.0
      %1388 = vmatpush1.msra.mxu0 %v1291
      %1389 = vmatprep.subr.mxu0 0.0
      %1390 = vmatpush1.msra.mxu0 0.0
      %1391 = vmatprep.subr.mxu0 0.0
      %1392 = vmatpush1.msra.mxu0 0.0
      %1393 = vmatprep.subr.mxu0 0.0
      %1394 = vmatpush1.msra.mxu0 0.0
      %1395 = vmatprep.subr.mxu0 0.0
      %1396 = vmatpush1.msra.mxu0 0.0
      %1397 = vmatprep.subr.mxu0 0.0
      %1398 = vmatpush1.msra.mxu0 0.0
      %1399 = vmatprep.subr.mxu0 0.0
      %1400 = vmatpush1.msra.mxu0 0.0
      %1401 = vmatprep.subr.mxu0 0.0
      %1402 = vmatpush1.msra.mxu0 0.0
      %1403 = vmatprep.subr.mxu0 0.0
      %1404 = vmatpush1.msra.mxu0 0.0
      %1405 = vmatprep.subr.mxu0 0.0
      %1406 = vmatpush1.msra.mxu0 0.0
      %1407 = vmatprep.subr.mxu0 0.0
      %1408 = vmatpush1.msra.mxu0 0.0
      %1409 = vmatprep.subr.mxu0 0.0
      %1410 = vmatpush1.msra.mxu0 0.0
      %1411 = vmatprep.subr.mxu0 0.0
      %1412 = vmatpush1.msra.mxu0 0.0
      %1413 = vmatprep.subr.mxu0 0.0
      %1414 = vmatpush1.msra.mxu0 0.0
      %1415 = vmatprep.subr.mxu0 0.0
      %1416 = vmatpush1.msra.mxu0 0.0
      %1417 = vmatprep.subr.mxu0 0.0
      %1418 = vmatpush1.msra.mxu0 0.0
      %1419 = vmatprep.subr.mxu0 0.0
      %1420 = vmatpush1.msra.mxu0 0.0
      %1421 = vmatprep.subr.mxu0 0.0
      %1422 = vmatpush1.msra.mxu0 0.0
      %1423 = vmatprep.subr.mxu0 0.0
      %1424 = vmatpush1.msra.mxu0 0.0
      %1425 = vmatprep.subr.mxu0 0.0
      %1426 = vmatpush1.msra.mxu0 0.0
      %1427 = vmatprep.subr.mxu0 0.0
      %1428 = vmatpush1.msra.mxu0 0.0
      %1429 = vmatprep.subr.mxu0 0.0
      %1430 = vmatpush1.msra.mxu0 0.0
      %1431 = vmatprep.subr.mxu0 0.0
      %1432 = vmatpush1.msra.mxu0 0.0
      %1433 = vmatprep.subr.mxu0 0.0
      %1434 = vmatpush1.msra.mxu0 0.0
      %1435 = vmatprep.subr.mxu0 0.0
      %1436 = vmatpush1.msra.mxu0 0.0
      %1437 = vmatprep.subr.mxu0 0.0
      %1438 = vmatpush1.msra.mxu0 0.0
      %1439 = vmatprep.subr.mxu0 0.0
      %1440 = vmatpush1.msra.mxu0 0.0
      %1441 = vmatprep.subr.mxu0 0.0
      %1442 = vmatpush1.msra.mxu0 0.0
      %1443 = vmatprep.subr.mxu0 0.0
      %1444 = vmatpush1.msra.mxu0 0.0
      %1445 = vmatprep.subr.mxu0 0.0
      %1446 = vmatpush1.msra.mxu0 0.0
      %1447 = vmatprep.subr.mxu0 0.0
      %1448 = vmatpush1.msra.mxu0 0.0
      %1449 = vmatprep.mubr.f32.mxu0 0.0
      %1450 = vmatmul.mubr.f32.gmra.mrb[0].mxu0 %v1380
      %v1451 = vpop.f32.mrb[0].mxu0
      %v1452 = vadd.f32 %v1371, %v1451
      %v1453 = vpop.f32.mrb[0].mxu0
      %1454 = vmatprep.mubr.f32.mxu0 0.0
      %1455 = vmatmul.mubr.f32.gmra.mrb[0].mxu0 %v1383
      %v1456 = vpop.f32.mrb[0].mxu0
      %v1457 = vadd.f32 %v1376, %v1456
      %v1458 = vpop.f32.mrb[0].mxu0
      %1459 = vdwg.mxu0
      %v1461 = vsel %vm340, %v1272, 0
      %v1464 = vsel %vm340, %v1277, 0
      %1466 = vmatprep.subr.mxu0 0.0
      %1467 = vmatpush1.msra.mxu0 %v1294
      %1468 = vmatprep.subr.mxu0 0.0
      %1469 = vmatpush1.msra.mxu0 %v1295
      %1470 = vmatprep.subr.mxu0 0.0
      %1471 = vmatpush1.msra.mxu0 0.0
      %1472 = vmatprep.subr.mxu0 0.0
      %1473 = vmatpush1.msra.mxu0 0.0
      %1474 = vmatprep.subr.mxu0 0.0
      %1475 = vmatpush1.msra.mxu0 0.0
      %1476 = vmatprep.subr.mxu0 0.0
      %1477 = vmatpush1.msra.mxu0 0.0
      %1478 = vmatprep.subr.mxu0 0.0
      %1479 = vmatpush1.msra.mxu0 0.0
      %1480 = vmatprep.subr.mxu0 0.0
      %1481 = vmatpush1.msra.mxu0 0.0
      %1482 = vmatprep.subr.mxu0 0.0
      %1483 = vmatpush1.msra.mxu0 0.0
      %1484 = vmatprep.subr.mxu0 0.0
      %1485 = vmatpush1.msra.mxu0 0.0
      %1486 = vmatprep.subr.mxu0 0.0
      %1487 = vmatpush1.msra.mxu0 0.0
      %1488 = vmatprep.subr.mxu0 0.0
      %1489 = vmatpush1.msra.mxu0 0.0
      %1490 = vmatprep.subr.mxu0 0.0
      %1491 = vmatpush1.msra.mxu0 0.0
      %1492 = vmatprep.subr.mxu0 0.0
      %1493 = vmatpush1.msra.mxu0 0.0
      %1494 = vmatprep.subr.mxu0 0.0
      %1495 = vmatpush1.msra.mxu0 0.0
      %1496 = vmatprep.subr.mxu0 0.0
      %1497 = vmatpush1.msra.mxu0 0.0
      %1498 = vmatprep.subr.mxu0 0.0
      %1499 = vmatpush1.msra.mxu0 0.0
      %1500 = vmatprep.subr.mxu0 0.0
      %1501 = vmatpush1.msra.mxu0 0.0
      %1502 = vmatprep.subr.mxu0 0.0
      %1503 = vmatpush1.msra.mxu0 0.0
      %1504 = vmatprep.subr.mxu0 0.0
      %1505 = vmatpush1.msra.mxu0 0.0
      %1506 = vmatprep.subr.mxu0 0.0
      %1507 = vmatpush1.msra.mxu0 0.0
      %1508 = vmatprep.subr.mxu0 0.0
      %1509 = vmatpush1.msra.mxu0 0.0
      %1510 = vmatprep.subr.mxu0 0.0
      %1511 = vmatpush1.msra.mxu0 0.0
      %1512 = vmatprep.subr.mxu0 0.0
      %1513 = vmatpush1.msra.mxu0 0.0
      %1514 = vmatprep.subr.mxu0 0.0
      %1515 = vmatpush1.msra.mxu0 0.0
      %1516 = vmatprep.subr.mxu0 0.0
      %1517 = vmatpush1.msra.mxu0 0.0
      %1518 = vmatprep.subr.mxu0 0.0
      %1519 = vmatpush1.msra.mxu0 0.0
      %1520 = vmatprep.subr.mxu0 0.0
      %1521 = vmatpush1.msra.mxu0 0.0
      %1522 = vmatprep.subr.mxu0 0.0
      %1523 = vmatpush1.msra.mxu0 0.0
      %1524 = vmatprep.subr.mxu0 0.0
      %1525 = vmatpush1.msra.mxu0 0.0
      %1526 = vmatprep.subr.mxu0 0.0
      %1527 = vmatpush1.msra.mxu0 0.0
      %1528 = vmatprep.subr.mxu0 0.0
      %1529 = vmatpush1.msra.mxu0 0.0
      %1530 = vmatprep.mubr.f32.mxu0 0.0
      %1531 = vmatmul.mubr.f32.gmra.mrb[0].mxu0 %v1461
      %v1532 = vpop.f32.mrb[0].mxu0
      %v1533 = vadd.f32 0.0, %v1532
      %v1534 = vpop.f32.mrb[0].mxu0
      %1535 = vmatprep.mubr.f32.mxu0 0.0
      %1536 = vmatmul.mubr.f32.gmra.mrb[0].mxu0 %v1464
      %v1537 = vpop.f32.mrb[0].mxu0
      %v1538 = vadd.f32 0.0, %v1537
      %v1539 = vpop.f32.mrb[0].mxu0
      %1540 = vdwg.mxu0
      %v1541 = vadd.f32 %v1452, %v1533
      %v1542 = vadd.f32 %v1457, %v1538
      %v1544 = vsel %vm340, %v1282, 0
      %v1547 = vsel %vm340, %v1287, 0
      %1549 = vmatprep.subr.mxu0 0.0
      %1550 = vmatpush1.msra.mxu0 %v1296
      %1551 = vmatprep.subr.mxu0 0.0
      %1552 = vmatpush1.msra.mxu0 %v1297
      %1553 = vmatprep.subr.mxu0 0.0
      %1554 = vmatpush1.msra.mxu0 0.0
      %1555 = vmatprep.subr.mxu0 0.0
      %1556 = vmatpush1.msra.mxu0 0.0
      %1557 = vmatprep.subr.mxu0 0.0
      %1558 = vmatpush1.msra.mxu0 0.0
      %1559 = vmatprep.subr.mxu0 0.0
      %1560 = vmatpush1.msra.mxu0 0.0
      %1561 = vmatprep.subr.mxu0 0.0
      %1562 = vmatpush1.msra.mxu0 0.0
      %1563 = vmatprep.subr.mxu0 0.0
      %1564 = vmatpush1.msra.mxu0 0.0
      %1565 = vmatprep.subr.mxu0 0.0
      %1566 = vmatpush1.msra.mxu0 0.0
      %1567 = vmatprep.subr.mxu0 0.0
      %1568 = vmatpush1.msra.mxu0 0.0
      %1569 = vmatprep.subr.mxu0 0.0
      %1570 = vmatpush1.msra.mxu0 0.0
      %1571 = vmatprep.subr.mxu0 0.0
      %1572 = vmatpush1.msra.mxu0 0.0
      %1573 = vmatprep.subr.mxu0 0.0
      %1574 = vmatpush1.msra.mxu0 0.0
      %1575 = vmatprep.subr.mxu0 0.0
      %1576 = vmatpush1.msra.mxu0 0.0
      %1577 = vmatprep.subr.mxu0 0.0
      %1578 = vmatpush1.msra.mxu0 0.0
      %1579 = vmatprep.subr.mxu0 0.0
      %1580 = vmatpush1.msra.mxu0 0.0
      %1581 = vmatprep.subr.mxu0 0.0
      %1582 = vmatpush1.msra.mxu0 0.0
      %1583 = vmatprep.subr.mxu0 0.0
      %1584 = vmatpush1.msra.mxu0 0.0
      %1585 = vmatprep.subr.mxu0 0.0
      %1586 = vmatpush1.msra.mxu0 0.0
      %1587 = vmatprep.subr.mxu0 0.0
      %1588 = vmatpush1.msra.mxu0 0.0
      %1589 = vmatprep.subr.mxu0 0.0
      %1590 = vmatpush1.msra.mxu0 0.0
      %1591 = vmatprep.subr.mxu0 0.0
      %1592 = vmatpush1.msra.mxu0 0.0
      %1593 = vmatprep.subr.mxu0 0.0
      %1594 = vmatpush1.msra.mxu0 0.0
      %1595 = vmatprep.subr.mxu0 0.0
      %1596 = vmatpush1.msra.mxu0 0.0
      %1597 = vmatprep.subr.mxu0 0.0
      %1598 = vmatpush1.msra.mxu0 0.0
      %1599 = vmatprep.subr.mxu0 0.0
      %1600 = vmatpush1.msra.mxu0 0.0
      %1601 = vmatprep.subr.mxu0 0.0
      %1602 = vmatpush1.msra.mxu0 0.0
      %1603 = vmatprep.subr.mxu0 0.0
      %1604 = vmatpush1.msra.mxu0 0.0
      %1605 = vmatprep.subr.mxu0 0.0
      %1606 = vmatpush1.msra.mxu0 0.0
      %1607 = vmatprep.subr.mxu0 0.0
      %1608 = vmatpush1.msra.mxu0 0.0
      %1609 = vmatprep.subr.mxu0 0.0
      %1610 = vmatpush1.msra.mxu0 0.0
      %1611 = vmatprep.subr.mxu0 0.0
      %1612 = vmatpush1.msra.mxu0 0.0
      %1613 = vmatprep.mubr.f32.mxu0 0.0
      %1614 = vmatmul.mubr.f32.gmra.mrb[0].mxu0 %v1544
      %v1615 = vpop.f32.mrb[0].mxu0
      %v1616 = vadd.f32 0.0, %v1615
      %v1617 = vpop.f32.mrb[0].mxu0
      %1618 = vmatprep.mubr.f32.mxu0 0.0
      %1619 = vmatmul.mubr.f32.gmra.mrb[0].mxu0 %v1547
      %v1620 = vpop.f32.mrb[0].mxu0
      %v1621 = vadd.f32 0.0, %v1620
      %v1622 = vpop.f32.mrb[0].mxu0
      %1623 = vdwg.mxu0
      %v1624 = vadd.f32 %v1541, %v1616
      %v1625 = vadd.f32 %v1542, %v1621
      %v1626 = vld [vmem:[%s6] sm:$0x1]
      %v1628 = vlaneseq
      %v1629 = vshrl.u32 %v1628, 7
      %v1630 = vsub.s32 0, %v1629
      %v1631 = vrot.slane %v1626, %v1630
      %v1633 = vadd.f32 %v1624, %v1631
      %v1634 = vadd.f32 %v1625, %v1631
      %v1635 = vadd.f32 %v766, %v1633
      %v1636 = vadd.f32 %v767, %v1634
      %s1637 = scalar_lea.vmem %s6, 10
      %v1638 = vld [vmem:[%s1637] sm:$0x1]
      %s1639 = scalar_lea.vmem %s6, 11
      %v1640 = vld [vmem:[%s1639] sm:$0x1]
      %v1641 = vsel %vm794, %v1635, 0.0
      %1642 = vadd.xlane.f32.xlu0 %v1641
      %v1643 = vpop.xlane.xlu0 %1642
      %v1644 = vsel %vm794, %v1636, 0.0
      %1645 = vadd.xlane.f32.xlu0 %v1644
      %v1646 = vpop.xlane.xlu0 %1645
      %v1647 = vrcp.pop 64.0
      %v1648 = vmul.f32 %v1643, %v1647
      %v1649 = vmul.f32 %v1646, %v1647
      %v1650 = vsub.f32 %v1635, %v1648
      %v1651 = vsub.f32 %v1636, %v1649
      %v1652 = vmul.f32 %v1650, %v1650
      %v1653 = vmul.f32 %v1651, %v1651
      %v1654 = vsel %vm794, %v1652, 0.0
      %1655 = vadd.xlane.f32.xlu0 %v1654
      %v1656 = vpop.xlane.xlu0 %1655
      %v1657 = vsel %vm794, %v1653, 0.0
      %1658 = vadd.xlane.f32.xlu0 %v1657
      %v1659 = vpop.xlane.xlu0 %1658
      %v1660 = vmul.f32 %v1656, %v1647
      %v1661 = vmul.f32 %v1659, %v1647
      %v1662 = vadd.f32 %v1660, 1e-05
      %v1663 = vadd.f32 %v1661, 1e-05
      %v1664 = vrsqrt.pop %v1662
      %v1665 = vrsqrt.pop %v1663
      %v1666 = vmul.f32 %v1650, %v1664
      %v1667 = vmul.f32 %v1651, %v1665
      %v1669 = vlaneseq
      %v1670 = vshrl.u32 %v1669, 7
      %v1671 = vsub.s32 0, %v1670
      %v1672 = vrot.slane %v1638, %v1671
      %v1674 = vmul.f32 %v1666, %v1672
      %v1675 = vmul.f32 %v1667, %v1672
      %v1677 = vlaneseq
      %v1678 = vshrl.u32 %v1677, 7
      %v1679 = vsub.s32 0, %v1678
      %v1680 = vrot.slane %v1640, %v1679
      %v1682 = vadd.f32 %v1674, %v1680
      %v1683 = vadd.f32 %v1675, %v1680
      %s1684 = scalar_lea.vmem %s5, 256
      %v1685 = vld [vmem:[%s1684] sm:$0xff]
      %v1686 = vld [vmem:[%s1684 + $0x8] sm:$0xff]
      %v1687 = vld [vmem:[%s1684 + $0x10] sm:$0xff]
      %v1688 = vld [vmem:[%s1684 + $0x18] sm:$0xff]
      %v1689 = vld [vmem:[%s1684 + $0x20] sm:$0xff]
      %v1690 = vld [vmem:[%s1684 + $0x28] sm:$0xff]
      %v1691 = vld [vmem:[%s1684 + $0x30] sm:$0xff]
      %v1692 = vld [vmem:[%s1684 + $0x38] sm:$0xff]
      %s1693 = scalar_lea.vmem %s6, 4
      %v1694 = vld [vmem:[%s1693] sm:$0x1]
      %v1696 = vlaneseq
      %v1697 = vshrl.u32 %v1696, 7
      %v1698 = vsub.s32 0, %v1697
      %v1699 = vrot.slane %v1694, %v1698
      %v1702 = vsel %vm794, %v1682, 0
      %v1705 = vsel %vm794, %v1683, 0
      %1707 = vmatprep.subr.mxu0 0.0
      %1708 = vmatpush1.msra.mxu0 %v1685
      %1709 = vmatprep.subr.mxu0 0.0
      %1710 = vmatpush1.msra.mxu0 %v1686
      %1711 = vmatprep.subr.mxu0 0.0
      %1712 = vmatpush1.msra.mxu0 %v1687
      %1713 = vmatprep.subr.mxu0 0.0
      %1714 = vmatpush1.msra.mxu0 %v1688
      %1715 = vmatprep.subr.mxu0 0.0
      %1716 = vmatpush1.msra.mxu0 %v1689
      %1717 = vmatprep.subr.mxu0 0.0
      %1718 = vmatpush1.msra.mxu0 %v1690
      %1719 = vmatprep.subr.mxu0 0.0
      %1720 = vmatpush1.msra.mxu0 %v1691
      %1721 = vmatprep.subr.mxu0 0.0
      %1722 = vmatpush1.msra.mxu0 %v1692
      %1723 = vmatprep.subr.mxu0 0.0
      %1724 = vmatpush1.msra.mxu0 0.0
      %1725 = vmatprep.subr.mxu0 0.0
      %1726 = vmatpush1.msra.mxu0 0.0
      %1727 = vmatprep.subr.mxu0 0.0
      %1728 = vmatpush1.msra.mxu0 0.0
      %1729 = vmatprep.subr.mxu0 0.0
      %1730 = vmatpush1.msra.mxu0 0.0
      %1731 = vmatprep.subr.mxu0 0.0
      %1732 = vmatpush1.msra.mxu0 0.0
      %1733 = vmatprep.subr.mxu0 0.0
      %1734 = vmatpush1.msra.mxu0 0.0
      %1735 = vmatprep.subr.mxu0 0.0
      %1736 = vmatpush1.msra.mxu0 0.0
      %1737 = vmatprep.subr.mxu0 0.0
      %1738 = vmatpush1.msra.mxu0 0.0
      %1739 = vmatprep.subr.mxu0 0.0
      %1740 = vmatpush1.msra.mxu0 0.0
      %1741 = vmatprep.subr.mxu0 0.0
      %1742 = vmatpush1.msra.mxu0 0.0
      %1743 = vmatprep.subr.mxu0 0.0
      %1744 = vmatpush1.msra.mxu0 0.0
      %1745 = vmatprep.subr.mxu0 0.0
      %1746 = vmatpush1.msra.mxu0 0.0
      %1747 = vmatprep.subr.mxu0 0.0
      %1748 = vmatpush1.msra.mxu0 0.0
      %1749 = vmatprep.subr.mxu0 0.0
      %1750 = vmatpush1.msra.mxu0 0.0
      %1751 = vmatprep.subr.mxu0 0.0
      %1752 = vmatpush1.msra.mxu0 0.0
      %1753 = vmatprep.subr.mxu0 0.0
      %1754 = vmatpush1.msra.mxu0 0.0
      %1755 = vmatprep.subr.mxu0 0.0
      %1756 = vmatpush1.msra.mxu0 0.0
      %1757 = vmatprep.subr.mxu0 0.0
      %1758 = vmatpush1.msra.mxu0 0.0
      %1759 = vmatprep.subr.mxu0 0.0
      %1760 = vmatpush1.msra.mxu0 0.0
      %1761 = vmatprep.subr.mxu0 0.0
      %1762 = vmatpush1.msra.mxu0 0.0
      %1763 = vmatprep.subr.mxu0 0.0
      %1764 = vmatpush1.msra.mxu0 0.0
      %1765 = vmatprep.subr.mxu0 0.0
      %1766 = vmatpush1.msra.mxu0 0.0
      %1767 = vmatprep.subr.mxu0 0.0
      %1768 = vmatpush1.msra.mxu0 0.0
      %1769 = vmatprep.subr.mxu0 0.0
      %1770 = vmatpush1.msra.mxu0 0.0
      %1771 = vmatprep.mubr.f32.mxu0 0.0
      %1772 = vmatmul.mubr.f32.gmra.mrb[0].mxu0 %v1702
      %v1773 = vpop.f32.mrb[0].mxu0
      %v1774 = vadd.f32 %v1699, %v1773
      %v1775 = vpop.f32.mrb[0].mxu0
      %1776 = vmatprep.mubr.f32.mxu0 0.0
      %1777 = vmatmul.mubr.f32.gmra.mrb[0].mxu0 %v1705
      %v1778 = vpop.f32.mrb[0].mxu0
      %v1779 = vadd.f32 %v1699, %v1778
      %v1780 = vpop.f32.mrb[0].mxu0
      %1781 = vdwg.mxu0
      %v1782 = vmul.f32 %v1774, 0.5
      %v1783 = vmul.f32 %v1779, 0.5
      %v1784 = vmul.f32 %v1774, 0.70710677
      %v1785 = vmul.f32 %v1779, 0.70710677
      %vm1786 = vcmp.lt.f32.partialorder %v1784, 0.0
      %vm1787 = vcmp.lt.f32.partialorder %v1785, 0.0
      %v1788 = vsel %vm1786, -1.0, 1.0
      %v1789 = vsel %vm1787, -1.0, 1.0
      %v1790 = vand.u32 2147483647, %v1784
      %v1791 = vand.u32 2147483647, %v1785
      %v1792 = vmul.f32 %v1790, 0.3275911
      %v1793 = vmul.f32 %v1791, 0.3275911
      %v1794 = vadd.f32 %v1792, 1.0
      %v1795 = vadd.f32 %v1793, 1.0
      %v1796 = vrcp.pop %v1794
      %v1797 = vmul.f32 1.0, %v1796
      %v1798 = vrcp.pop %v1795
      %v1799 = vmul.f32 1.0, %v1798
      %v1800 = vmul.f32 %v1797, 1.0614054
      %v1801 = vmul.f32 %v1799, 1.0614054
      %v1802 = vadd.f32 %v1800, -1.4531521
      %v1803 = vadd.f32 %v1801, -1.4531521
      %v1804 = vmul.f32 %v1802, %v1797
      %v1805 = vmul.f32 %v1803, %v1799
      %v1806 = vadd.f32 %v1804, 1.4214138
      %v1807 = vadd.f32 %v1805, 1.4214138
      %v1808 = vmul.f32 %v1806, %v1797
      %v1809 = vmul.f32 %v1807, %v1799
      %v1810 = vadd.f32 %v1808, -0.28449672
      %v1811 = vadd.f32 %v1809, -0.28449672
      %v1812 = vmul.f32 %v1810, %v1797
      %v1813 = vmul.f32 %v1811, %v1799
      %v1814 = vadd.f32 %v1812, 0.2548296
      %v1815 = vadd.f32 %v1813, 0.2548296
      %v1816 = vmul.f32 %v1814, %v1797
      %v1817 = vmul.f32 %v1815, %v1799
      %v1818 = vsub.f32 0.0, %v1790
      %v1819 = vsub.f32 0.0, %v1791
      %v1820 = vmul.f32 %v1818, %v1790
      %v1821 = vmul.f32 %v1819, %v1791
      %v1822 = vmul.f32 %v1820, 1.442695
      %v1823 = vpow.pop %v1822
      %v1824 = vmul.f32 %v1821, 1.442695
      %v1825 = vpow.pop %v1824
      %v1826 = vmul.f32 %v1816, %v1823
      %v1827 = vmul.f32 %v1817, %v1825
      %v1828 = vsub.f32 1.0, %v1826
      %v1829 = vsub.f32 1.0, %v1827
      %v1830 = vmul.f32 %v1788, %v1828
      %v1831 = vmul.f32 %v1789, %v1829
      %v1832 = vadd.f32 %v1830, 1.0
      %v1833 = vadd.f32 %v1831, 1.0
      %v1834 = vmul.f32 %v1782, %v1832
      %v1835 = vmul.f32 %v1783, %v1833
      %s1836 = scalar_lea.vmem %s5, 448
      %v1837 = vld [vmem:[%s1836] sm:$0xff]
      %v1838 = vld [vmem:[%s1836 + $0x8] sm:$0xff]
      %v1839 = vld [vmem:[%s1836 + $0x10] sm:$0xff]
      %v1840 = vld [vmem:[%s1836 + $0x18] sm:$0xff]
      %v1841 = vld [vmem:[%s1836 + $0x20] sm:$0xff]
      %v1842 = vld [vmem:[%s1836 + $0x28] sm:$0xff]
      %v1843 = vld [vmem:[%s1836 + $0x30] sm:$0xff]
      %v1844 = vld [vmem:[%s1836 + $0x38] sm:$0xff]
      %s1845 = scalar_lea.vmem %s6, 7
      %v1846 = vld [vmem:[%s1845] sm:$0x1]
      %v1848 = vlaneseq
      %v1849 = vshrl.u32 %v1848, 7
      %v1850 = vsub.s32 0, %v1849
      %v1851 = vrot.slane %v1846, %v1850
      %v1854 = vsel %vm794, %v1834, 0
      %v1857 = vsel %vm794, %v1835, 0
      %1859 = vmatprep.subr.mxu0 0.0
      %1860 = vmatpush1.msra.mxu0 %v1837
      %1861 = vmatprep.subr.mxu0 0.0
      %1862 = vmatpush1.msra.mxu0 %v1838
      %1863 = vmatprep.subr.mxu0 0.0
      %1864 = vmatpush1.msra.mxu0 %v1839
      %1865 = vmatprep.subr.mxu0 0.0
      %1866 = vmatpush1.msra.mxu0 %v1840
      %1867 = vmatprep.subr.mxu0 0.0
      %1868 = vmatpush1.msra.mxu0 %v1841
      %1869 = vmatprep.subr.mxu0 0.0
      %1870 = vmatpush1.msra.mxu0 %v1842
      %1871 = vmatprep.subr.mxu0 0.0
      %1872 = vmatpush1.msra.mxu0 %v1843
      %1873 = vmatprep.subr.mxu0 0.0
      %1874 = vmatpush1.msra.mxu0 %v1844
      %1875 = vmatprep.subr.mxu0 0.0
      %1876 = vmatpush1.msra.mxu0 0.0
      %1877 = vmatprep.subr.mxu0 0.0
      %1878 = vmatpush1.msra.mxu0 0.0
      %1879 = vmatprep.subr.mxu0 0.0
      %1880 = vmatpush1.msra.mxu0 0.0
      %1881 = vmatprep.subr.mxu0 0.0
      %1882 = vmatpush1.msra.mxu0 0.0
      %1883 = vmatprep.subr.mxu0 0.0
      %1884 = vmatpush1.msra.mxu0 0.0
      %1885 = vmatprep.subr.mxu0 0.0
      %1886 = vmatpush1.msra.mxu0 0.0
      %1887 = vmatprep.subr.mxu0 0.0
      %1888 = vmatpush1.msra.mxu0 0.0
      %1889 = vmatprep.subr.mxu0 0.0
      %1890 = vmatpush1.msra.mxu0 0.0
      %1891 = vmatprep.subr.mxu0 0.0
      %1892 = vmatpush1.msra.mxu0 0.0
      %1893 = vmatprep.subr.mxu0 0.0
      %1894 = vmatpush1.msra.mxu0 0.0
      %1895 = vmatprep.subr.mxu0 0.0
      %1896 = vmatpush1.msra.mxu0 0.0
      %1897 = vmatprep.subr.mxu0 0.0
      %1898 = vmatpush1.msra.mxu0 0.0
      %1899 = vmatprep.subr.mxu0 0.0
      %1900 = vmatpush1.msra.mxu0 0.0
      %1901 = vmatprep.subr.mxu0 0.0
      %1902 = vmatpush1.msra.mxu0 0.0
      %1903 = vmatprep.subr.mxu0 0.0
      %1904 = vmatpush1.msra.mxu0 0.0
      %1905 = vmatprep.subr.mxu0 0.0
      %1906 = vmatpush1.msra.mxu0 0.0
      %1907 = vmatprep.subr.mxu0 0.0
      %1908 = vmatpush1.msra.mxu0 0.0
      %1909 = vmatprep.subr.mxu0 0.0
      %1910 = vmatpush1.msra.mxu0 0.0
      %1911 = vmatprep.subr.mxu0 0.0
      %1912 = vmatpush1.msra.mxu0 0.0
      %1913 = vmatprep.subr.mxu0 0.0
      %1914 = vmatpush1.msra.mxu0 0.0
      %1915 = vmatprep.subr.mxu0 0.0
      %1916 = vmatpush1.msra.mxu0 0.0
      %1917 = vmatprep.subr.mxu0 0.0
      %1918 = vmatpush1.msra.mxu0 0.0
      %1919 = vmatprep.subr.mxu0 0.0
      %1920 = vmatpush1.msra.mxu0 0.0
      %1921 = vmatprep.subr.mxu0 0.0
      %1922 = vmatpush1.msra.mxu0 0.0
      %1923 = vmatprep.mubr.f32.mxu0 0.0
      %1924 = vmatmul.mubr.f32.gmra.mrb[0].mxu0 %v1854
      %v1925 = vpop.f32.mrb[0].mxu0
      %v1926 = vadd.f32 %v1851, %v1925
      %v1927 = vpop.f32.mrb[0].mxu0
      %1928 = vmatprep.mubr.f32.mxu0 0.0
      %1929 = vmatmul.mubr.f32.gmra.mrb[0].mxu0 %v1857
      %v1930 = vpop.f32.mrb[0].mxu0
      %v1931 = vadd.f32 %v1851, %v1930
      %v1932 = vpop.f32.mrb[0].mxu0
      %1933 = vdwg.mxu0
      %v1934 = vadd.f32 %v1682, %v1926
      %v1935 = vadd.f32 %v1683, %v1931
      %s1936 = scalar_lea.vmem %s6, 12
      %v1937 = vld [vmem:[%s1936] sm:$0x1]
      %s1938 = scalar_lea.vmem %s6, 13
      %v1939 = vld [vmem:[%s1938] sm:$0x1]
      %v1940 = vsel %vm794, %v1934, 0.0
      %1941 = vadd.xlane.f32.xlu0 %v1940
      %v1942 = vpop.xlane.xlu0 %1941
      %v1943 = vsel %vm794, %v1935, 0.0
      %1944 = vadd.xlane.f32.xlu0 %v1943
      %v1945 = vpop.xlane.xlu0 %1944
      %v1946 = vmul.f32 %v1942, %v1647
      %v1947 = vmul.f32 %v1945, %v1647
      %v1948 = vsub.f32 %v1934, %v1946
      %v1949 = vsub.f32 %v1935, %v1947
      %v1950 = vmul.f32 %v1948, %v1948
      %v1951 = vmul.f32 %v1949, %v1949
      %v1952 = vsel %vm794, %v1950, 0.0
      %1953 = vadd.xlane.f32.xlu0 %v1952
      %v1954 = vpop.xlane.xlu0 %1953
      %v1955 = vsel %vm794, %v1951, 0.0
      %1956 = vadd.xlane.f32.xlu0 %v1955
      %v1957 = vpop.xlane.xlu0 %1956
      %v1958 = vmul.f32 %v1954, %v1647
      %v1959 = vmul.f32 %v1957, %v1647
      %v1960 = vadd.f32 %v1958, 1e-05
      %v1961 = vadd.f32 %v1959, 1e-05
      %v1962 = vrsqrt.pop %v1960
      %v1963 = vrsqrt.pop %v1961
      %v1964 = vmul.f32 %v1948, %v1962
      %v1965 = vmul.f32 %v1949, %v1963
      %v1967 = vlaneseq
      %v1968 = vshrl.u32 %v1967, 7
      %v1969 = vsub.s32 0, %v1968
      %v1970 = vrot.slane %v1937, %v1969
      %v1972 = vmul.f32 %v1964, %v1970
      %v1973 = vmul.f32 %v1965, %v1970
      %v1975 = vlaneseq
      %v1976 = vshrl.u32 %v1975, 7
      %v1977 = vsub.s32 0, %v1976
      %v1978 = vrot.slane %v1939, %v1977
      %v1980 = vadd.f32 %v1972, %v1978
      %v1981 = vadd.f32 %v1973, %v1978
      %s1982 = scalar_lea.vmem %s4, 144
      %v1983 = vld [vmem:[%s1982] sm:$0xff]
      %v1984 = vld [vmem:[%s1982 + $0x8] sm:$0xff]
      %v1985 = vld [vmem:[%s1982 + $0x10] sm:$0xff]
      %v1986 = vld [vmem:[%s1982 + $0x18] sm:$0xff]
      %v1987 = vld [vmem:[%s1982 + $0x20] sm:$0xff]
      %v1988 = vld [vmem:[%s1982 + $0x28] sm:$0xff]
      %v1989 = vld [vmem:[%s1982 + $0x30] sm:$0xff]
      %v1990 = vld [vmem:[%s1982 + $0x38] sm:$0xff]
      %v1991 = vld [vmem:[%s1982 + $0x40] sm:$0xff]
      %v1992 = vld [vmem:[%s1982 + $0x48] sm:$0xff]
      %v1993 = vld [vmem:[%s1982 + $0x50] sm:$0xff]
      %v1994 = vld [vmem:[%s1982 + $0x58] sm:$0xff]
      %v1995 = vld [vmem:[%s1982 + $0x60] sm:$0xff]
      %v1996 = vld [vmem:[%s1982 + $0x68] sm:$0xff]
      %v1997 = vld [vmem:[%s1982 + $0x70] sm:$0xff]
      %v1998 = vld [vmem:[%s1982 + $0x78] sm:$0xff]
      %v1999 = vld [vmem:[%s1982 + $0x80] sm:$0x1]
      %v2000 = vld [vmem:[%s1982 + $0x88] sm:$0x1]
      %v2001 = vlaneseq
      %v2002 = vshrl.u32 %v2001, 7
      %v2003 = vsub.s32 0, %v2002
      %v2004 = vrot.slane %v1999, %v2003
      %v2005 = vlaneseq
      %v2006 = vshrl.u32 %v2005, 7
      %v2007 = vsub.s32 0, %v2006
      %v2008 = vrot.slane %v2000, %v2007
      %v2010 = vsel %vm794, %v1980, 0
      %v2013 = vsel %vm794, %v1981, 0
      %2015 = vmatprep.subr.mxu0 %v1984
      %2016 = vmatpush1.msra.mxu0 %v1983
      %2017 = vmatprep.subr.mxu0 %v1986
      %2018 = vmatpush1.msra.mxu0 %v1985
      %2019 = vmatprep.subr.mxu0 %v1988
      %2020 = vmatpush1.msra.mxu0 %v1987
      %2021 = vmatprep.subr.mxu0 %v1990
      %2022 = vmatpush1.msra.mxu0 %v1989
      %2023 = vmatprep.subr.mxu0 %v1992
      %2024 = vmatpush1.msra.mxu0 %v1991
      %2025 = vmatprep.subr.mxu0 %v1994
      %2026 = vmatpush1.msra.mxu0 %v1993
      %2027 = vmatprep.subr.mxu0 %v1996
      %2028 = vmatpush1.msra.mxu0 %v1995
      %2029 = vmatprep.subr.mxu0 %v1998
      %2030 = vmatpush1.msra.mxu0 %v1997
      %2031 = vmatprep.subr.mxu0 0.0
      %2032 = vmatpush1.msra.mxu0 0.0
      %2033 = vmatprep.subr.mxu0 0.0
      %2034 = vmatpush1.msra.mxu0 0.0
      %2035 = vmatprep.subr.mxu0 0.0
      %2036 = vmatpush1.msra.mxu0 0.0
      %2037 = vmatprep.subr.mxu0 0.0
      %2038 = vmatpush1.msra.mxu0 0.0
      %2039 = vmatprep.subr.mxu0 0.0
      %2040 = vmatpush1.msra.mxu0 0.0
      %2041 = vmatprep.subr.mxu0 0.0
      %2042 = vmatpush1.msra.mxu0 0.0
      %2043 = vmatprep.subr.mxu0 0.0
      %2044 = vmatpush1.msra.mxu0 0.0
      %2045 = vmatprep.subr.mxu0 0.0
      %2046 = vmatpush1.msra.mxu0 0.0
      %2047 = vmatprep.subr.mxu0 0.0
      %2048 = vmatpush1.msra.mxu0 0.0
      %2049 = vmatprep.subr.mxu0 0.0
      %2050 = vmatpush1.msra.mxu0 0.0
      %2051 = vmatprep.subr.mxu0 0.0
      %2052 = vmatpush1.msra.mxu0 0.0
      %2053 = vmatprep.subr.mxu0 0.0
      %2054 = vmatpush1.msra.mxu0 0.0
      %2055 = vmatprep.subr.mxu0 0.0
      %2056 = vmatpush1.msra.mxu0 0.0
      %2057 = vmatprep.subr.mxu0 0.0
      %2058 = vmatpush1.msra.mxu0 0.0
      %2059 = vmatprep.subr.mxu0 0.0
      %2060 = vmatpush1.msra.mxu0 0.0
      %2061 = vmatprep.subr.mxu0 0.0
      %2062 = vmatpush1.msra.mxu0 0.0
      %2063 = vmatprep.subr.mxu0 0.0
      %2064 = vmatpush1.msra.mxu0 0.0
      %2065 = vmatprep.subr.mxu0 0.0
      %2066 = vmatpush1.msra.mxu0 0.0
      %2067 = vmatprep.subr.mxu0 0.0
      %2068 = vmatpush1.msra.mxu0 0.0
      %2069 = vmatprep.subr.mxu0 0.0
      %2070 = vmatpush1.msra.mxu0 0.0
      %2071 = vmatprep.subr.mxu0 0.0
      %2072 = vmatpush1.msra.mxu0 0.0
      %2073 = vmatprep.subr.mxu0 0.0
      %2074 = vmatpush1.msra.mxu0 0.0
      %2075 = vmatprep.subr.mxu0 0.0
      %2076 = vmatpush1.msra.mxu0 0.0
      %2077 = vmatprep.subr.mxu0 0.0
      %2078 = vmatpush1.msra.mxu0 0.0
      %2079 = vmatprep.mubr.f32.mxu0 0.0
      %2080 = vmatmul.mubr.f32.gmra.mrb[0].mxu0 %v2010
      %v2081 = vpop.f32.mrb[0].mxu0
      %v2082 = vadd.f32 %v2004, %v2081
      %v2083 = vpop.f32.mrb[0].mxu0
      %v2084 = vadd.f32 %v2008, %v2083
      %2085 = vmatprep.mubr.f32.mxu0 0.0
      %2086 = vmatmul.mubr.f32.gmra.mrb[0].mxu0 %v2013
      %v2087 = vpop.f32.mrb[0].mxu0
      %v2088 = vadd.f32 %v2004, %v2087
      %v2089 = vpop.f32.mrb[0].mxu0
      %v2090 = vadd.f32 %v2008, %v2089
      %2091 = vdwg.mxu0
      %2094 = vrot.lane.b32.xlu0 %v2082, 112
      %v2095 = vpop.permute.xlu0 %2094
      %2096 = vrot.lane.b32.xlu0 %v2088, 112
      %v2097 = vpop.permute.xlu0 %2096
      %2098 = vrot.lane.b32.xlu0 %v2082, 96
      %v2099 = vpop.permute.xlu0 %2098
      %2100 = vrot.lane.b32.xlu0 %v2088, 96
      %v2101 = vpop.permute.xlu0 %2100
      %2102 = vrot.lane.b32.xlu0 %v2082, 80
      %v2103 = vpop.permute.xlu0 %2102
      %2104 = vrot.lane.b32.xlu0 %v2088, 80
      %v2105 = vpop.permute.xlu0 %2104
      %2108 = vrot.lane.b32.xlu0 %v2084, 112
      %v2109 = vpop.permute.xlu0 %2108
      %2110 = vrot.lane.b32.xlu0 %v2090, 112
      %v2111 = vpop.permute.xlu0 %2110
      %2114 = vrot.lane.b32.xlu0 %v2084, 96
      %v2115 = vpop.permute.xlu0 %2114
      %2116 = vrot.lane.b32.xlu0 %v2090, 96
      %v2117 = vpop.permute.xlu0 %2116
      %2120 = vrot.lane.b32.xlu0 %v2084, 80
      %v2121 = vpop.permute.xlu0 %2120
      %2122 = vrot.lane.b32.xlu0 %v2090, 80
      %v2123 = vpop.permute.xlu0 %2122
      %2126 = vrot.lane.b32.xlu0 %v2082, 64
      %v2127 = vpop.permute.xlu0 %2126
      %2128 = vrot.lane.b32.xlu0 %v2088, 64
      %v2129 = vpop.permute.xlu0 %2128
      %2130 = vrot.lane.b32.xlu0 %v2095, 64
      %v2131 = vpop.permute.xlu0 %2130
      %2132 = vrot.lane.b32.xlu0 %v2097, 64
      %v2133 = vpop.permute.xlu0 %2132
      %2134 = vrot.lane.b32.xlu0 %v2099, 64
      %v2135 = vpop.permute.xlu0 %2134
      %2136 = vrot.lane.b32.xlu0 %v2101, 64
      %v2137 = vpop.permute.xlu0 %2136
      %2138 = vrot.lane.b32.xlu0 %v2103, 64
      %v2139 = vpop.permute.xlu0 %2138
      %2140 = vrot.lane.b32.xlu0 %v2105, 64
      %v2141 = vpop.permute.xlu0 %2140
      %v2142 = vsel %vm340, %v2082, 0
      %v2144 = vsel %vm340, %v2088, 0
      %v2146 = vsel %vm340, %v2095, 0
      %v2148 = vsel %vm340, %v2097, 0
      %v2150 = vsel %vm340, %v2099, 0
      %v2152 = vsel %vm340, %v2101, 0
      %v2154 = vsel %vm340, %v2103, 0
      %v2156 = vsel %vm340, %v2105, 0
      %v2158 = vsel %vm340, %v2127, 0
      %v2160 = vsel %vm340, %v2129, 0
      %v2162 = vsel %vm340, %v2131, 0
      %v2164 = vsel %vm340, %v2133, 0
      %v2166 = vsel %vm340, %v2135, 0
      %v2168 = vsel %vm340, %v2137, 0
      %v2170 = vsel %vm340, %v2139, 0
      %v2172 = vsel %vm340, %v2141, 0
      %2174 = vmatprep.subr.mxu0 0.0
      %2175 = vmatpush1.xpose.msra.mxu0 %v2158
      %2176 = vmatprep.subr.mxu0 0.0
      %2177 = vmatpush1.xpose.msra.mxu0 %v2160
      %2178 = vmatprep.subr.mxu0 0.0
      %2179 = vmatpush1.xpose.msra.mxu0 %v2162
      %2180 = vmatprep.subr.mxu0 0.0
      %2181 = vmatpush1.xpose.msra.mxu0 %v2164
      %2182 = vmatprep.subr.mxu0 0.0
      %2183 = vmatpush1.xpose.msra.mxu0 %v2166
      %2184 = vmatprep.subr.mxu0 0.0
      %2185 = vmatpush1.xpose.msra.mxu0 %v2168
      %2186 = vmatprep.subr.mxu0 0.0
      %2187 = vmatpush1.xpose.msra.mxu0 %v2170
      %2188 = vmatprep.subr.mxu0 0.0
      %2189 = vmatpush1.xpose.msra.mxu0 %v2172
      %2190 = vmatprep.subr.mxu0 0.0
      %2191 = vmatpush1.xpose.msra.mxu0 0.0
      %2192 = vmatprep.subr.mxu0 0.0
      %2193 = vmatpush1.xpose.msra.mxu0 0.0
      %2194 = vmatprep.subr.mxu0 0.0
      %2195 = vmatpush1.xpose.msra.mxu0 0.0
      %2196 = vmatprep.subr.mxu0 0.0
      %2197 = vmatpush1.xpose.msra.mxu0 0.0
      %2198 = vmatprep.subr.mxu0 0.0
      %2199 = vmatpush1.xpose.msra.mxu0 0.0
      %2200 = vmatprep.subr.mxu0 0.0
      %2201 = vmatpush1.xpose.msra.mxu0 0.0
      %2202 = vmatprep.subr.mxu0 0.0
      %2203 = vmatpush1.xpose.msra.mxu0 0.0
      %2204 = vmatprep.subr.mxu0 0.0
      %2205 = vmatpush1.xpose.msra.mxu0 0.0
      %2206 = vmatprep.subr.mxu0 0.0
      %2207 = vmatpush1.xpose.msra.mxu0 0.0
      %2208 = vmatprep.subr.mxu0 0.0
      %2209 = vmatpush1.xpose.msra.mxu0 0.0
      %2210 = vmatprep.subr.mxu0 0.0
      %2211 = vmatpush1.xpose.msra.mxu0 0.0
      %2212 = vmatprep.subr.mxu0 0.0
      %2213 = vmatpush1.xpose.msra.mxu0 0.0
      %2214 = vmatprep.subr.mxu0 0.0
      %2215 = vmatpush1.xpose.msra.mxu0 0.0
      %2216 = vmatprep.subr.mxu0 0.0
      %2217 = vmatpush1.xpose.msra.mxu0 0.0
      %2218 = vmatprep.subr.mxu0 0.0
      %2219 = vmatpush1.xpose.msra.mxu0 0.0
      %2220 = vmatprep.subr.mxu0 0.0
      %2221 = vmatpush1.xpose.msra.mxu0 0.0
      %2222 = vmatprep.subr.mxu0 0.0
      %2223 = vmatpush1.xpose.msra.mxu0 0.0
      %2224 = vmatprep.subr.mxu0 0.0
      %2225 = vmatpush1.xpose.msra.mxu0 0.0
      %2226 = vmatprep.subr.mxu0 0.0
      %2227 = vmatpush1.xpose.msra.mxu0 0.0
      %2228 = vmatprep.subr.mxu0 0.0
      %2229 = vmatpush1.xpose.msra.mxu0 0.0
      %2230 = vmatprep.subr.mxu0 0.0
      %2231 = vmatpush1.xpose.msra.mxu0 0.0
      %2232 = vmatprep.subr.mxu0 0.0
      %2233 = vmatpush1.xpose.msra.mxu0 0.0
      %2234 = vmatprep.subr.mxu0 0.0
      %2235 = vmatpush1.xpose.msra.mxu0 0.0
      %2236 = vmatprep.subr.mxu0 0.0
      %2237 = vmatpush1.xpose.msra.mxu0 0.0
      %2238 = vmatprep.mubr.f32.mxu0 0.0
      %2239 = vmatmul.mubr.f32.gmra.mrb[0].mxu0 %v2142
      %v2240 = vpop.f32.mrb[0].mxu0
      %v2241 = vadd.f32 %v912, %v2240
      %v2242 = vpop.f32.mrb[0].mxu0
      %2243 = vmatprep.mubr.f32.mxu0 0.0
      %2244 = vmatmul.mubr.f32.gmra.mrb[0].mxu0 %v2144
      %v2245 = vpop.f32.mrb[0].mxu0
      %v2246 = vadd.f32 %v913, %v2245
      %v2247 = vpop.f32.mrb[0].mxu0
      %2248 = vmatprep.mubr.f32.mxu0 0.0
      %2249 = vmatmul.mubr.f32.gmra.mrb[0].mxu0 %v2146
      %v2250 = vpop.f32.mrb[0].mxu0
      %v2251 = vadd.f32 %v914, %v2250
      %v2252 = vpop.f32.mrb[0].mxu0
      %2253 = vmatprep.mubr.f32.mxu0 0.0
      %2254 = vmatmul.mubr.f32.gmra.mrb[0].mxu0 %v2148
      %v2255 = vpop.f32.mrb[0].mxu0
      %v2256 = vadd.f32 %v915, %v2255
      %v2257 = vpop.f32.mrb[0].mxu0
      %2258 = vmatprep.mubr.f32.mxu0 0.0
      %2259 = vmatmul.mubr.f32.gmra.mrb[0].mxu0 %v2150
      %v2260 = vpop.f32.mrb[0].mxu0
      %v2261 = vadd.f32 %v916, %v2260
      %v2262 = vpop.f32.mrb[0].mxu0
      %2263 = vmatprep.mubr.f32.mxu0 0.0
      %2264 = vmatmul.mubr.f32.gmra.mrb[0].mxu0 %v2152
      %v2265 = vpop.f32.mrb[0].mxu0
      %v2266 = vadd.f32 %v917, %v2265
      %v2267 = vpop.f32.mrb[0].mxu0
      %2268 = vmatprep.mubr.f32.mxu0 0.0
      %2269 = vmatmul.mubr.f32.gmra.mrb[0].mxu0 %v2154
      %v2270 = vpop.f32.mrb[0].mxu0
      %v2271 = vadd.f32 %v918, %v2270
      %v2272 = vpop.f32.mrb[0].mxu0
      %2273 = vmatprep.mubr.f32.mxu0 0.0
      %2274 = vmatmul.mubr.f32.gmra.mrb[0].mxu0 %v2156
      %v2275 = vpop.f32.mrb[0].mxu0
      %v2276 = vadd.f32 %v919, %v2275
      %v2277 = vpop.f32.mrb[0].mxu0
      %2278 = vdwg.mxu0
      %v2279 = vsel %vm794, %v2241, -inf
      %2280 = vmax.xlane.f32.xlu0 %v2279
      %v2281 = vpop.xlane.xlu0 %2280
      %v2282 = vsel %vm794, %v2246, -inf
      %2283 = vmax.xlane.f32.xlu0 %v2282
      %v2284 = vpop.xlane.xlu0 %2283
      %v2285 = vsel %vm794, %v2251, -inf
      %2286 = vmax.xlane.f32.xlu0 %v2285
      %v2287 = vpop.xlane.xlu0 %2286
      %v2288 = vsel %vm794, %v2256, -inf
      %2289 = vmax.xlane.f32.xlu0 %v2288
      %v2290 = vpop.xlane.xlu0 %2289
      %v2291 = vsel %vm794, %v2261, -inf
      %2292 = vmax.xlane.f32.xlu0 %v2291
      %v2293 = vpop.xlane.xlu0 %2292
      %v2294 = vsel %vm794, %v2266, -inf
      %2295 = vmax.xlane.f32.xlu0 %v2294
      %v2296 = vpop.xlane.xlu0 %2295
      %v2297 = vsel %vm794, %v2271, -inf
      %2298 = vmax.xlane.f32.xlu0 %v2297
      %v2299 = vpop.xlane.xlu0 %2298
      %v2300 = vsel %vm794, %v2276, -inf
      %2301 = vmax.xlane.f32.xlu0 %v2300
      %v2302 = vpop.xlane.xlu0 %2301
      %v2303 = vsub.f32 %v2241, %v2281
      %v2304 = vsub.f32 %v2246, %v2284
      %v2305 = vsub.f32 %v2251, %v2287
      %v2306 = vsub.f32 %v2256, %v2290
      %v2307 = vsub.f32 %v2261, %v2293
      %v2308 = vsub.f32 %v2266, %v2296
      %v2309 = vsub.f32 %v2271, %v2299
      %v2310 = vsub.f32 %v2276, %v2302
      %v2311 = vmul.f32 %v2303, 1.442695
      %v2312 = vpow.pop %v2311
      %v2313 = vmul.f32 %v2304, 1.442695
      %v2314 = vpow.pop %v2313
      %v2315 = vmul.f32 %v2305, 1.442695
      %v2316 = vpow.pop %v2315
      %v2317 = vmul.f32 %v2306, 1.442695
      %v2318 = vpow.pop %v2317
      %v2319 = vmul.f32 %v2307, 1.442695
      %v2320 = vpow.pop %v2319
      %v2321 = vmul.f32 %v2308, 1.442695
      %v2322 = vpow.pop %v2321
      %v2323 = vmul.f32 %v2309, 1.442695
      %v2324 = vpow.pop %v2323
      %v2325 = vmul.f32 %v2310, 1.442695
      %v2326 = vpow.pop %v2325
      %v2327 = vsel %vm794, %v2312, 0.0
      %2328 = vadd.xlane.f32.xlu0 %v2327
      %v2329 = vpop.xlane.xlu0 %2328
      %v2330 = vsel %vm794, %v2314, 0.0
      %2331 = vadd.xlane.f32.xlu0 %v2330
      %v2332 = vpop.xlane.xlu0 %2331
      %v2333 = vsel %vm794, %v2316, 0.0
      %2334 = vadd.xlane.f32.xlu0 %v2333
      %v2335 = vpop.xlane.xlu0 %2334
      %v2336 = vsel %vm794, %v2318, 0.0
      %2337 = vadd.xlane.f32.xlu0 %v2336
      %v2338 = vpop.xlane.xlu0 %2337
      %v2339 = vsel %vm794, %v2320, 0.0
      %2340 = vadd.xlane.f32.xlu0 %v2339
      %v2341 = vpop.xlane.xlu0 %2340
      %v2342 = vsel %vm794, %v2322, 0.0
      %2343 = vadd.xlane.f32.xlu0 %v2342
      %v2344 = vpop.xlane.xlu0 %2343
      %v2345 = vsel %vm794, %v2324, 0.0
      %2346 = vadd.xlane.f32.xlu0 %v2345
      %v2347 = vpop.xlane.xlu0 %2346
      %v2348 = vsel %vm794, %v2326, 0.0
      %2349 = vadd.xlane.f32.xlu0 %v2348
      %v2350 = vpop.xlane.xlu0 %2349
      %v2351 = vrcp.pop %v2329
      %v2352 = vmul.f32 %v2312, %v2351
      %v2353 = vrcp.pop %v2332
      %v2354 = vmul.f32 %v2314, %v2353
      %v2355 = vrcp.pop %v2335
      %v2356 = vmul.f32 %v2316, %v2355
      %v2357 = vrcp.pop %v2338
      %v2358 = vmul.f32 %v2318, %v2357
      %v2359 = vrcp.pop %v2341
      %v2360 = vmul.f32 %v2320, %v2359
      %v2361 = vrcp.pop %v2344
      %v2362 = vmul.f32 %v2322, %v2361
      %v2363 = vrcp.pop %v2347
      %v2364 = vmul.f32 %v2324, %v2363
      %v2365 = vrcp.pop %v2350
      %v2366 = vmul.f32 %v2326, %v2365
      %v2368 = vsel %vm794, %v2352, 0
      %v2371 = vsel %vm794, %v2354, 0
      %v2374 = vsel %vm794, %v2356, 0
      %v2377 = vsel %vm794, %v2358, 0
      %v2380 = vsel %vm794, %v2360, 0
      %v2383 = vsel %vm794, %v2362, 0
      %v2386 = vsel %vm794, %v2364, 0
      %v2389 = vsel %vm794, %v2366, 0
      %2391 = vmatprep.subr.mxu0 0.0
      %2392 = vmatpush1.msra.mxu0 %v2084
      %2393 = vmatprep.subr.mxu0 0.0
      %2394 = vmatpush1.msra.mxu0 %v2090
      %2395 = vmatprep.subr.mxu0 0.0
      %2396 = vmatpush1.msra.mxu0 %v2109
      %2397 = vmatprep.subr.mxu0 0.0
      %2398 = vmatpush1.msra.mxu0 %v2111
      %2399 = vmatprep.subr.mxu0 0.0
      %2400 = vmatpush1.msra.mxu0 %v2115
      %2401 = vmatprep.subr.mxu0 0.0
      %2402 = vmatpush1.msra.mxu0 %v2117
      %2403 = vmatprep.subr.mxu0 0.0
      %2404 = vmatpush1.msra.mxu0 %v2121
      %2405 = vmatprep.subr.mxu0 0.0
      %2406 = vmatpush1.msra.mxu0 %v2123
      %2407 = vmatprep.subr.mxu0 0.0
      %2408 = vmatpush1.msra.mxu0 0.0
      %2409 = vmatprep.subr.mxu0 0.0
      %2410 = vmatpush1.msra.mxu0 0.0
      %2411 = vmatprep.subr.mxu0 0.0
      %2412 = vmatpush1.msra.mxu0 0.0
      %2413 = vmatprep.subr.mxu0 0.0
      %2414 = vmatpush1.msra.mxu0 0.0
      %2415 = vmatprep.subr.mxu0 0.0
      %2416 = vmatpush1.msra.mxu0 0.0
      %2417 = vmatprep.subr.mxu0 0.0
      %2418 = vmatpush1.msra.mxu0 0.0
      %2419 = vmatprep.subr.mxu0 0.0
      %2420 = vmatpush1.msra.mxu0 0.0
      %2421 = vmatprep.subr.mxu0 0.0
      %2422 = vmatpush1.msra.mxu0 0.0
      %2423 = vmatprep.subr.mxu0 0.0
      %2424 = vmatpush1.msra.mxu0 0.0
      %2425 = vmatprep.subr.mxu0 0.0
      %2426 = vmatpush1.msra.mxu0 0.0
      %2427 = vmatprep.subr.mxu0 0.0
      %2428 = vmatpush1.msra.mxu0 0.0
      %2429 = vmatprep.subr.mxu0 0.0
      %2430 = vmatpush1.msra.mxu0 0.0
      %2431 = vmatprep.subr.mxu0 0.0
      %2432 = vmatpush1.msra.mxu0 0.0
      %2433 = vmatprep.subr.mxu0 0.0
      %2434 = vmatpush1.msra.mxu0 0.0
      %2435 = vmatprep.subr.mxu0 0.0
      %2436 = vmatpush1.msra.mxu0 0.0
      %2437 = vmatprep.subr.mxu0 0.0
      %2438 = vmatpush1.msra.mxu0 0.0
      %2439 = vmatprep.subr.mxu0 0.0
      %2440 = vmatpush1.msra.mxu0 0.0
      %2441 = vmatprep.subr.mxu0 0.0
      %2442 = vmatpush1.msra.mxu0 0.0
      %2443 = vmatprep.subr.mxu0 0.0
      %2444 = vmatpush1.msra.mxu0 0.0
      %2445 = vmatprep.subr.mxu0 0.0
      %2446 = vmatpush1.msra.mxu0 0.0
      %2447 = vmatprep.subr.mxu0 0.0
      %2448 = vmatpush1.msra.mxu0 0.0
      %2449 = vmatprep.subr.mxu0 0.0
      %2450 = vmatpush1.msra.mxu0 0.0
      %2451 = vmatprep.subr.mxu0 0.0
      %2452 = vmatpush1.msra.mxu0 0.0
      %2453 = vmatprep.subr.mxu0 0.0
      %2454 = vmatpush1.msra.mxu0 0.0
      %2455 = vmatprep.mubr.f32.mxu0 0.0
      %2456 = vmatmul.mubr.f32.gmra.mrb[0].mxu0 %v2368
      %v2457 = vpop.f32.mrb[0].mxu0
      %v2458 = vadd.f32 0.0, %v2457
      %v2459 = vpop.f32.mrb[0].mxu0
      %2460 = vmatprep.mubr.f32.mxu0 0.0
      %2461 = vmatmul.mubr.f32.gmra.mrb[0].mxu0 %v2371
      %v2462 = vpop.f32.mrb[0].mxu0
      %v2463 = vadd.f32 0.0, %v2462
      %v2464 = vpop.f32.mrb[0].mxu0
      %2465 = vmatprep.mubr.f32.mxu0 0.0
      %2466 = vmatmul.mubr.f32.gmra.mrb[0].mxu0 %v2374
      %v2467 = vpop.f32.mrb[0].mxu0
      %v2468 = vadd.f32 0.0, %v2467
      %v2469 = vpop.f32.mrb[0].mxu0
      %2470 = vmatprep.mubr.f32.mxu0 0.0
      %2471 = vmatmul.mubr.f32.gmra.mrb[0].mxu0 %v2377
      %v2472 = vpop.f32.mrb[0].mxu0
      %v2473 = vadd.f32 0.0, %v2472
      %v2474 = vpop.f32.mrb[0].mxu0
      %2475 = vmatprep.mubr.f32.mxu0 0.0
      %2476 = vmatmul.mubr.f32.gmra.mrb[0].mxu0 %v2380
      %v2477 = vpop.f32.mrb[0].mxu0
      %v2478 = vadd.f32 0.0, %v2477
      %v2479 = vpop.f32.mrb[0].mxu0
      %2480 = vmatprep.mubr.f32.mxu0 0.0
      %2481 = vmatmul.mubr.f32.gmra.mrb[0].mxu0 %v2383
      %v2482 = vpop.f32.mrb[0].mxu0
      %v2483 = vadd.f32 0.0, %v2482
      %v2484 = vpop.f32.mrb[0].mxu0
      %2485 = vmatprep.mubr.f32.mxu0 0.0
      %2486 = vmatmul.mubr.f32.gmra.mrb[0].mxu0 %v2386
      %v2487 = vpop.f32.mrb[0].mxu0
      %v2488 = vadd.f32 0.0, %v2487
      %v2489 = vpop.f32.mrb[0].mxu0
      %2490 = vmatprep.mubr.f32.mxu0 0.0
      %2491 = vmatmul.mubr.f32.gmra.mrb[0].mxu0 %v2389
      %v2492 = vpop.f32.mrb[0].mxu0
      %v2493 = vadd.f32 0.0, %v2492
      %v2494 = vpop.f32.mrb[0].mxu0
      %2495 = vdwg.mxu0
      %s2496 = scalar_lea.vmem %s5, 64
      %v2497 = vld [vmem:[%s2496] sm:$0xff]
      %v2498 = vld [vmem:[%s2496 + $0x8] sm:$0xff]
      %v2499 = vld [vmem:[%s2496 + $0x10] sm:$0xff]
      %v2500 = vld [vmem:[%s2496 + $0x18] sm:$0xff]
      %v2501 = vld [vmem:[%s2496 + $0x20] sm:$0xff]
      %v2502 = vld [vmem:[%s2496 + $0x28] sm:$0xff]
      %v2503 = vld [vmem:[%s2496 + $0x30] sm:$0xff]
      %v2504 = vld [vmem:[%s2496 + $0x38] sm:$0xff]
      %v2506 = vsel %vm340, %v2468, 0
      %v2509 = vsel %vm340, %v2473, 0
      %2511 = vmatprep.subr.mxu0 0.0
      %2512 = vmatpush1.msra.mxu0 %v2499
      %2513 = vmatprep.subr.mxu0 0.0
      %2514 = vmatpush1.msra.mxu0 %v2500
      %2515 = vmatprep.subr.mxu0 0.0
      %2516 = vmatpush1.msra.mxu0 0.0
      %2517 = vmatprep.subr.mxu0 0.0
      %2518 = vmatpush1.msra.mxu0 0.0
      %2519 = vmatprep.subr.mxu0 0.0
      %2520 = vmatpush1.msra.mxu0 0.0
      %2521 = vmatprep.subr.mxu0 0.0
      %2522 = vmatpush1.msra.mxu0 0.0
      %2523 = vmatprep.subr.mxu0 0.0
      %2524 = vmatpush1.msra.mxu0 0.0
      %2525 = vmatprep.subr.mxu0 0.0
      %2526 = vmatpush1.msra.mxu0 0.0
      %2527 = vmatprep.subr.mxu0 0.0
      %2528 = vmatpush1.msra.mxu0 0.0
      %2529 = vmatprep.subr.mxu0 0.0
      %2530 = vmatpush1.msra.mxu0 0.0
      %2531 = vmatprep.subr.mxu0 0.0
      %2532 = vmatpush1.msra.mxu0 0.0
      %2533 = vmatprep.subr.mxu0 0.0
      %2534 = vmatpush1.msra.mxu0 0.0
      %2535 = vmatprep.subr.mxu0 0.0
      %2536 = vmatpush1.msra.mxu0 0.0
      %2537 = vmatprep.subr.mxu0 0.0
      %2538 = vmatpush1.msra.mxu0 0.0
      %2539 = vmatprep.subr.mxu0 0.0
      %2540 = vmatpush1.msra.mxu0 0.0
      %2541 = vmatprep.subr.mxu0 0.0
      %2542 = vmatpush1.msra.mxu0 0.0
      %2543 = vmatprep.subr.mxu0 0.0
      %2544 = vmatpush1.msra.mxu0 0.0
      %2545 = vmatprep.subr.mxu0 0.0
      %2546 = vmatpush1.msra.mxu0 0.0
      %2547 = vmatprep.subr.mxu0 0.0
      %2548 = vmatpush1.msra.mxu0 0.0
      %2549 = vmatprep.subr.mxu0 0.0
      %2550 = vmatpush1.msra.mxu0 0.0
      %2551 = vmatprep.subr.mxu0 0.0
      %2552 = vmatpush1.msra.mxu0 0.0
      %2553 = vmatprep.subr.mxu0 0.0
      %2554 = vmatpush1.msra.mxu0 0.0
      %2555 = vmatprep.subr.mxu0 0.0
      %2556 = vmatpush1.msra.mxu0 0.0
      %2557 = vmatprep.subr.mxu0 0.0
      %2558 = vmatpush1.msra.mxu0 0.0
      %2559 = vmatprep.subr.mxu0 0.0
      %2560 = vmatpush1.msra.mxu0 0.0
      %2561 = vmatprep.subr.mxu0 0.0
      %2562 = vmatpush1.msra.mxu0 0.0
      %2563 = vmatprep.subr.mxu0 0.0
      %2564 = vmatpush1.msra.mxu0 0.0
      %2565 = vmatprep.subr.mxu0 0.0
      %2566 = vmatpush1.msra.mxu0 0.0
      %2567 = vmatprep.subr.mxu0 0.0
      %2568 = vmatpush1.msra.mxu0 0.0
      %2569 = vmatprep.subr.mxu0 0.0
      %2570 = vmatpush1.msra.mxu0 0.0
      %2571 = vmatprep.subr.mxu0 0.0
      %2572 = vmatpush1.msra.mxu0 0.0
      %2573 = vmatprep.subr.mxu0 0.0
      %2574 = vmatpush1.msra.mxu0 0.0
      %2575 = vmatprep.mubr.f32.mxu0 0.0
      %2576 = vmatmul.mubr.f32.gmra.mrb[0].mxu0 %v2506
      %v2577 = vpop.f32.mrb[0].mxu0
      %v2578 = vadd.f32 0.0, %v2577
      %v2579 = vpop.f32.mrb[0].mxu0
      %2580 = vmatprep.mubr.f32.mxu0 0.0
      %2581 = vmatmul.mubr.f32.gmra.mrb[0].mxu0 %v2509
      %v2582 = vpop.f32.mrb[0].mxu0
      %v2583 = vadd.f32 0.0, %v2582
      %v2584 = vpop.f32.mrb[0].mxu0
      %2585 = vdwg.mxu0
      %v2587 = vsel %vm340, %v2458, 0
      %v2590 = vsel %vm340, %v2463, 0
      %2592 = vmatprep.subr.mxu0 0.0
      %2593 = vmatpush1.msra.mxu0 %v2497
      %2594 = vmatprep.subr.mxu0 0.0
      %2595 = vmatpush1.msra.mxu0 %v2498
      %2596 = vmatprep.subr.mxu0 0.0
      %2597 = vmatpush1.msra.mxu0 0.0
      %2598 = vmatprep.subr.mxu0 0.0
      %2599 = vmatpush1.msra.mxu0 0.0
      %2600 = vmatprep.subr.mxu0 0.0
      %2601 = vmatpush1.msra.mxu0 0.0
      %2602 = vmatprep.subr.mxu0 0.0
      %2603 = vmatpush1.msra.mxu0 0.0
      %2604 = vmatprep.subr.mxu0 0.0
      %2605 = vmatpush1.msra.mxu0 0.0
      %2606 = vmatprep.subr.mxu0 0.0
      %2607 = vmatpush1.msra.mxu0 0.0
      %2608 = vmatprep.subr.mxu0 0.0
      %2609 = vmatpush1.msra.mxu0 0.0
      %2610 = vmatprep.subr.mxu0 0.0
      %2611 = vmatpush1.msra.mxu0 0.0
      %2612 = vmatprep.subr.mxu0 0.0
      %2613 = vmatpush1.msra.mxu0 0.0
      %2614 = vmatprep.subr.mxu0 0.0
      %2615 = vmatpush1.msra.mxu0 0.0
      %2616 = vmatprep.subr.mxu0 0.0
      %2617 = vmatpush1.msra.mxu0 0.0
      %2618 = vmatprep.subr.mxu0 0.0
      %2619 = vmatpush1.msra.mxu0 0.0
      %2620 = vmatprep.subr.mxu0 0.0
      %2621 = vmatpush1.msra.mxu0 0.0
      %2622 = vmatprep.subr.mxu0 0.0
      %2623 = vmatpush1.msra.mxu0 0.0
      %2624 = vmatprep.subr.mxu0 0.0
      %2625 = vmatpush1.msra.mxu0 0.0
      %2626 = vmatprep.subr.mxu0 0.0
      %2627 = vmatpush1.msra.mxu0 0.0
      %2628 = vmatprep.subr.mxu0 0.0
      %2629 = vmatpush1.msra.mxu0 0.0
      %2630 = vmatprep.subr.mxu0 0.0
      %2631 = vmatpush1.msra.mxu0 0.0
      %2632 = vmatprep.subr.mxu0 0.0
      %2633 = vmatpush1.msra.mxu0 0.0
      %2634 = vmatprep.subr.mxu0 0.0
      %2635 = vmatpush1.msra.mxu0 0.0
      %2636 = vmatprep.subr.mxu0 0.0
      %2637 = vmatpush1.msra.mxu0 0.0
      %2638 = vmatprep.subr.mxu0 0.0
      %2639 = vmatpush1.msra.mxu0 0.0
      %2640 = vmatprep.subr.mxu0 0.0
      %2641 = vmatpush1.msra.mxu0 0.0
      %2642 = vmatprep.subr.mxu0 0.0
      %2643 = vmatpush1.msra.mxu0 0.0
      %2644 = vmatprep.subr.mxu0 0.0
      %2645 = vmatpush1.msra.mxu0 0.0
      %2646 = vmatprep.subr.mxu0 0.0
      %2647 = vmatpush1.msra.mxu0 0.0
      %2648 = vmatprep.subr.mxu0 0.0
      %2649 = vmatpush1.msra.mxu0 0.0
      %2650 = vmatprep.subr.mxu0 0.0
      %2651 = vmatpush1.msra.mxu0 0.0
      %2652 = vmatprep.subr.mxu0 0.0
      %2653 = vmatpush1.msra.mxu0 0.0
      %2654 = vmatprep.subr.mxu0 0.0
      %2655 = vmatpush1.msra.mxu0 0.0
      %2656 = vmatprep.mubr.f32.mxu0 0.0
      %2657 = vmatmul.mubr.f32.gmra.mrb[0].mxu0 %v2587
      %v2658 = vpop.f32.mrb[0].mxu0
      %v2659 = vadd.f32 %v2578, %v2658
      %v2660 = vpop.f32.mrb[0].mxu0
      %2661 = vmatprep.mubr.f32.mxu0 0.0
      %2662 = vmatmul.mubr.f32.gmra.mrb[0].mxu0 %v2590
      %v2663 = vpop.f32.mrb[0].mxu0
      %v2664 = vadd.f32 %v2583, %v2663
      %v2665 = vpop.f32.mrb[0].mxu0
      %2666 = vdwg.mxu0
      %v2668 = vsel %vm340, %v2478, 0
      %v2671 = vsel %vm340, %v2483, 0
      %2673 = vmatprep.subr.mxu0 0.0
      %2674 = vmatpush1.msra.mxu0 %v2501
      %2675 = vmatprep.subr.mxu0 0.0
      %2676 = vmatpush1.msra.mxu0 %v2502
      %2677 = vmatprep.subr.mxu0 0.0
      %2678 = vmatpush1.msra.mxu0 0.0
      %2679 = vmatprep.subr.mxu0 0.0
      %2680 = vmatpush1.msra.mxu0 0.0
      %2681 = vmatprep.subr.mxu0 0.0
      %2682 = vmatpush1.msra.mxu0 0.0
      %2683 = vmatprep.subr.mxu0 0.0
      %2684 = vmatpush1.msra.mxu0 0.0
      %2685 = vmatprep.subr.mxu0 0.0
      %2686 = vmatpush1.msra.mxu0 0.0
      %2687 = vmatprep.subr.mxu0 0.0
      %2688 = vmatpush1.msra.mxu0 0.0
      %2689 = vmatprep.subr.mxu0 0.0
      %2690 = vmatpush1.msra.mxu0 0.0
      %2691 = vmatprep.subr.mxu0 0.0
      %2692 = vmatpush1.msra.mxu0 0.0
      %2693 = vmatprep.subr.mxu0 0.0
      %2694 = vmatpush1.msra.mxu0 0.0
      %2695 = vmatprep.subr.mxu0 0.0
      %2696 = vmatpush1.msra.mxu0 0.0
      %2697 = vmatprep.subr.mxu0 0.0
      %2698 = vmatpush1.msra.mxu0 0.0
      %2699 = vmatprep.subr.mxu0 0.0
      %2700 = vmatpush1.msra.mxu0 0.0
      %2701 = vmatprep.subr.mxu0 0.0
      %2702 = vmatpush1.msra.mxu0 0.0
      %2703 = vmatprep.subr.mxu0 0.0
      %2704 = vmatpush1.msra.mxu0 0.0
      %2705 = vmatprep.subr.mxu0 0.0
      %2706 = vmatpush1.msra.mxu0 0.0
      %2707 = vmatprep.subr.mxu0 0.0
      %2708 = vmatpush1.msra.mxu0 0.0
      %2709 = vmatprep.subr.mxu0 0.0
      %2710 = vmatpush1.msra.mxu0 0.0
      %2711 = vmatprep.subr.mxu0 0.0
      %2712 = vmatpush1.msra.mxu0 0.0
      %2713 = vmatprep.subr.mxu0 0.0
      %2714 = vmatpush1.msra.mxu0 0.0
      %2715 = vmatprep.subr.mxu0 0.0
      %2716 = vmatpush1.msra.mxu0 0.0
      %2717 = vmatprep.subr.mxu0 0.0
      %2718 = vmatpush1.msra.mxu0 0.0
      %2719 = vmatprep.subr.mxu0 0.0
      %2720 = vmatpush1.msra.mxu0 0.0
      %2721 = vmatprep.subr.mxu0 0.0
      %2722 = vmatpush1.msra.mxu0 0.0
      %2723 = vmatprep.subr.mxu0 0.0
      %2724 = vmatpush1.msra.mxu0 0.0
      %2725 = vmatprep.subr.mxu0 0.0
      %2726 = vmatpush1.msra.mxu0 0.0
      %2727 = vmatprep.subr.mxu0 0.0
      %2728 = vmatpush1.msra.mxu0 0.0
      %2729 = vmatprep.subr.mxu0 0.0
      %2730 = vmatpush1.msra.mxu0 0.0
      %2731 = vmatprep.subr.mxu0 0.0
      %2732 = vmatpush1.msra.mxu0 0.0
      %2733 = vmatprep.subr.mxu0 0.0
      %2734 = vmatpush1.msra.mxu0 0.0
      %2735 = vmatprep.subr.mxu0 0.0
      %2736 = vmatpush1.msra.mxu0 0.0
      %2737 = vmatprep.mubr.f32.mxu0 0.0
      %2738 = vmatmul.mubr.f32.gmra.mrb[0].mxu0 %v2668
      %v2739 = vpop.f32.mrb[0].mxu0
      %v2740 = vadd.f32 0.0, %v2739
      %v2741 = vpop.f32.mrb[0].mxu0
      %2742 = vmatprep.mubr.f32.mxu0 0.0
      %2743 = vmatmul.mubr.f32.gmra.mrb[0].mxu0 %v2671
      %v2744 = vpop.f32.mrb[0].mxu0
      %v2745 = vadd.f32 0.0, %v2744
      %v2746 = vpop.f32.mrb[0].mxu0
      %2747 = vdwg.mxu0
      %v2748 = vadd.f32 %v2659, %v2740
      %v2749 = vadd.f32 %v2664, %v2745
      %v2751 = vsel %vm340, %v2488, 0
      %v2754 = vsel %vm340, %v2493, 0
      %2756 = vmatprep.subr.mxu0 0.0
      %2757 = vmatpush1.msra.mxu0 %v2503
      %2758 = vmatprep.subr.mxu0 0.0
      %2759 = vmatpush1.msra.mxu0 %v2504
      %2760 = vmatprep.subr.mxu0 0.0
      %2761 = vmatpush1.msra.mxu0 0.0
      %2762 = vmatprep.subr.mxu0 0.0
      %2763 = vmatpush1.msra.mxu0 0.0
      %2764 = vmatprep.subr.mxu0 0.0
      %2765 = vmatpush1.msra.mxu0 0.0
      %2766 = vmatprep.subr.mxu0 0.0
      %2767 = vmatpush1.msra.mxu0 0.0
      %2768 = vmatprep.subr.mxu0 0.0
      %2769 = vmatpush1.msra.mxu0 0.0
      %2770 = vmatprep.subr.mxu0 0.0
      %2771 = vmatpush1.msra.mxu0 0.0
      %2772 = vmatprep.subr.mxu0 0.0
      %2773 = vmatpush1.msra.mxu0 0.0
      %2774 = vmatprep.subr.mxu0 0.0
      %2775 = vmatpush1.msra.mxu0 0.0
      %2776 = vmatprep.subr.mxu0 0.0
      %2777 = vmatpush1.msra.mxu0 0.0
      %2778 = vmatprep.subr.mxu0 0.0
      %2779 = vmatpush1.msra.mxu0 0.0
      %2780 = vmatprep.subr.mxu0 0.0
      %2781 = vmatpush1.msra.mxu0 0.0
      %2782 = vmatprep.subr.mxu0 0.0
      %2783 = vmatpush1.msra.mxu0 0.0
      %2784 = vmatprep.subr.mxu0 0.0
      %2785 = vmatpush1.msra.mxu0 0.0
      %2786 = vmatprep.subr.mxu0 0.0
      %2787 = vmatpush1.msra.mxu0 0.0
      %2788 = vmatprep.subr.mxu0 0.0
      %2789 = vmatpush1.msra.mxu0 0.0
      %2790 = vmatprep.subr.mxu0 0.0
      %2791 = vmatpush1.msra.mxu0 0.0
      %2792 = vmatprep.subr.mxu0 0.0
      %2793 = vmatpush1.msra.mxu0 0.0
      %2794 = vmatprep.subr.mxu0 0.0
      %2795 = vmatpush1.msra.mxu0 0.0
      %2796 = vmatprep.subr.mxu0 0.0
      %2797 = vmatpush1.msra.mxu0 0.0
      %2798 = vmatprep.subr.mxu0 0.0
      %2799 = vmatpush1.msra.mxu0 0.0
      %2800 = vmatprep.subr.mxu0 0.0
      %2801 = vmatpush1.msra.mxu0 0.0
      %2802 = vmatprep.subr.mxu0 0.0
      %2803 = vmatpush1.msra.mxu0 0.0
      %2804 = vmatprep.subr.mxu0 0.0
      %2805 = vmatpush1.msra.mxu0 0.0
      %2806 = vmatprep.subr.mxu0 0.0
      %2807 = vmatpush1.msra.mxu0 0.0
      %2808 = vmatprep.subr.mxu0 0.0
      %2809 = vmatpush1.msra.mxu0 0.0
      %2810 = vmatprep.subr.mxu0 0.0
      %2811 = vmatpush1.msra.mxu0 0.0
      %2812 = vmatprep.subr.mxu0 0.0
      %2813 = vmatpush1.msra.mxu0 0.0
      %2814 = vmatprep.subr.mxu0 0.0
      %2815 = vmatpush1.msra.mxu0 0.0
      %2816 = vmatprep.subr.mxu0 0.0
      %2817 = vmatpush1.msra.mxu0 0.0
      %2818 = vmatprep.subr.mxu0 0.0
      %2819 = vmatpush1.msra.mxu0 0.0
      %2820 = vmatprep.mubr.f32.mxu0 0.0
      %2821 = vmatmul.mubr.f32.gmra.mrb[0].mxu0 %v2751
      %v2822 = vpop.f32.mrb[0].mxu0
      %v2823 = vadd.f32 0.0, %v2822
      %v2824 = vpop.f32.mrb[0].mxu0
      %2825 = vmatprep.mubr.f32.mxu0 0.0
      %2826 = vmatmul.mubr.f32.gmra.mrb[0].mxu0 %v2754
      %v2827 = vpop.f32.mrb[0].mxu0
      %v2828 = vadd.f32 0.0, %v2827
      %v2829 = vpop.f32.mrb[0].mxu0
      %2830 = vdwg.mxu0
      %v2831 = vadd.f32 %v2748, %v2823
      %v2832 = vadd.f32 %v2749, %v2828
      %s2833 = scalar_lea.vmem %s6, 1
      %v2834 = vld [vmem:[%s2833] sm:$0x1]
      %v2836 = vlaneseq
      %v2837 = vshrl.u32 %v2836, 7
      %v2838 = vsub.s32 0, %v2837
      %v2839 = vrot.slane %v2834, %v2838
      %v2841 = vadd.f32 %v2831, %v2839
      %v2842 = vadd.f32 %v2832, %v2839
      %v2843 = vadd.f32 %v1980, %v2841
      %v2844 = vadd.f32 %v1981, %v2842
      %s2845 = scalar_lea.vmem %s6, 14
      %v2846 = vld [vmem:[%s2845] sm:$0x1]
      %s2847 = scalar_lea.vmem %s6, 15
      %v2848 = vld [vmem:[%s2847] sm:$0x1]
      %v2849 = vsel %vm794, %v2843, 0.0
      %2850 = vadd.xlane.f32.xlu0 %v2849
      %v2851 = vpop.xlane.xlu0 %2850
      %v2852 = vsel %vm794, %v2844, 0.0
      %2853 = vadd.xlane.f32.xlu0 %v2852
      %v2854 = vpop.xlane.xlu0 %2853
      %v2855 = vmul.f32 %v2851, %v1647
      %v2856 = vmul.f32 %v2854, %v1647
      %v2857 = vsub.f32 %v2843, %v2855
      %v2858 = vsub.f32 %v2844, %v2856
      %v2859 = vmul.f32 %v2857, %v2857
      %v2860 = vmul.f32 %v2858, %v2858
      %v2861 = vsel %vm794, %v2859, 0.0
      %2862 = vadd.xlane.f32.xlu0 %v2861
      %v2863 = vpop.xlane.xlu0 %2862
      %v2864 = vsel %vm794, %v2860, 0.0
      %2865 = vadd.xlane.f32.xlu0 %v2864
      %v2866 = vpop.xlane.xlu0 %2865
      %v2867 = vmul.f32 %v2863, %v1647
      %v2868 = vmul.f32 %v2866, %v1647
      %v2869 = vadd.f32 %v2867, 1e-05
      %v2870 = vadd.f32 %v2868, 1e-05
      %v2871 = vrsqrt.pop %v2869
      %v2872 = vrsqrt.pop %v2870
      %v2873 = vmul.f32 %v2857, %v2871
      %v2874 = vmul.f32 %v2858, %v2872
      %v2876 = vlaneseq
      %v2877 = vshrl.u32 %v2876, 7
      %v2878 = vsub.s32 0, %v2877
      %v2879 = vrot.slane %v2846, %v2878
      %v2881 = vmul.f32 %v2873, %v2879
      %v2882 = vmul.f32 %v2874, %v2879
      %v2884 = vlaneseq
      %v2885 = vshrl.u32 %v2884, 7
      %v2886 = vsub.s32 0, %v2885
      %v2887 = vrot.slane %v2848, %v2886
      %v2889 = vadd.f32 %v2881, %v2887
      %v2890 = vadd.f32 %v2882, %v2887
      %s2891 = scalar_lea.vmem %s5, 320
      %v2892 = vld [vmem:[%s2891] sm:$0xff]
      %v2893 = vld [vmem:[%s2891 + $0x8] sm:$0xff]
      %v2894 = vld [vmem:[%s2891 + $0x10] sm:$0xff]
      %v2895 = vld [vmem:[%s2891 + $0x18] sm:$0xff]
      %v2896 = vld [vmem:[%s2891 + $0x20] sm:$0xff]
      %v2897 = vld [vmem:[%s2891 + $0x28] sm:$0xff]
      %v2898 = vld [vmem:[%s2891 + $0x30] sm:$0xff]
      %v2899 = vld [vmem:[%s2891 + $0x38] sm:$0xff]
      %s2900 = scalar_lea.vmem %s6, 5
      %v2901 = vld [vmem:[%s2900] sm:$0x1]
      %v2903 = vlaneseq
      %v2904 = vshrl.u32 %v2903, 7
      %v2905 = vsub.s32 0, %v2904
      %v2906 = vrot.slane %v2901, %v2905
      %v2909 = vsel %vm794, %v2889, 0
      %v2912 = vsel %vm794, %v2890, 0
      %2914 = vmatprep.subr.mxu0 0.0
      %2915 = vmatpush1.msra.mxu0 %v2892
      %2916 = vmatprep.subr.mxu0 0.0
      %2917 = vmatpush1.msra.mxu0 %v2893
      %2918 = vmatprep.subr.mxu0 0.0
      %2919 = vmatpush1.msra.mxu0 %v2894
      %2920 = vmatprep.subr.mxu0 0.0
      %2921 = vmatpush1.msra.mxu0 %v2895
      %2922 = vmatprep.subr.mxu0 0.0
      %2923 = vmatpush1.msra.mxu0 %v2896
      %2924 = vmatprep.subr.mxu0 0.0
      %2925 = vmatpush1.msra.mxu0 %v2897
      %2926 = vmatprep.subr.mxu0 0.0
      %2927 = vmatpush1.msra.mxu0 %v2898
      %2928 = vmatprep.subr.mxu0 0.0
      %2929 = vmatpush1.msra.mxu0 %v2899
      %2930 = vmatprep.subr.mxu0 0.0
      %2931 = vmatpush1.msra.mxu0 0.0
      %2932 = vmatprep.subr.mxu0 0.0
      %2933 = vmatpush1.msra.mxu0 0.0
      %2934 = vmatprep.subr.mxu0 0.0
      %2935 = vmatpush1.msra.mxu0 0.0
      %2936 = vmatprep.subr.mxu0 0.0
      %2937 = vmatpush1.msra.mxu0 0.0
      %2938 = vmatprep.subr.mxu0 0.0
      %2939 = vmatpush1.msra.mxu0 0.0
      %2940 = vmatprep.subr.mxu0 0.0
      %2941 = vmatpush1.msra.mxu0 0.0
      %2942 = vmatprep.subr.mxu0 0.0
      %2943 = vmatpush1.msra.mxu0 0.0
      %2944 = vmatprep.subr.mxu0 0.0
      %2945 = vmatpush1.msra.mxu0 0.0
      %2946 = vmatprep.subr.mxu0 0.0
      %2947 = vmatpush1.msra.mxu0 0.0
      %2948 = vmatprep.subr.mxu0 0.0
      %2949 = vmatpush1.msra.mxu0 0.0
      %2950 = vmatprep.subr.mxu0 0.0
      %2951 = vmatpush1.msra.mxu0 0.0
      %2952 = vmatprep.subr.mxu0 0.0
      %2953 = vmatpush1.msra.mxu0 0.0
      %2954 = vmatprep.subr.mxu0 0.0
      %2955 = vmatpush1.msra.mxu0 0.0
      %2956 = vmatprep.subr.mxu0 0.0
      %2957 = vmatpush1.msra.mxu0 0.0
      %2958 = vmatprep.subr.mxu0 0.0
      %2959 = vmatpush1.msra.mxu0 0.0
      %2960 = vmatprep.subr.mxu0 0.0
      %2961 = vmatpush1.msra.mxu0 0.0
      %2962 = vmatprep.subr.mxu0 0.0
      %2963 = vmatpush1.msra.mxu0 0.0
      %2964 = vmatprep.subr.mxu0 0.0
      %2965 = vmatpush1.msra.mxu0 0.0
      %2966 = vmatprep.subr.mxu0 0.0
      %2967 = vmatpush1.msra.mxu0 0.0
      %2968 = vmatprep.subr.mxu0 0.0
      %2969 = vmatpush1.msra.mxu0 0.0
      %2970 = vmatprep.subr.mxu0 0.0
      %2971 = vmatpush1.msra.mxu0 0.0
      %2972 = vmatprep.subr.mxu0 0.0
      %2973 = vmatpush1.msra.mxu0 0.0
      %2974 = vmatprep.subr.mxu0 0.0
      %2975 = vmatpush1.msra.mxu0 0.0
      %2976 = vmatprep.subr.mxu0 0.0
      %2977 = vmatpush1.msra.mxu0 0.0
      %2978 = vmatprep.mubr.f32.mxu0 0.0
      %2979 = vmatmul.mubr.f32.gmra.mrb[0].mxu0 %v2909
      %v2980 = vpop.f32.mrb[0].mxu0
      %v2981 = vadd.f32 %v2906, %v2980
      %v2982 = vpop.f32.mrb[0].mxu0
      %2983 = vmatprep.mubr.f32.mxu0 0.0
      %2984 = vmatmul.mubr.f32.gmra.mrb[0].mxu0 %v2912
      %v2985 = vpop.f32.mrb[0].mxu0
      %v2986 = vadd.f32 %v2906, %v2985
      %v2987 = vpop.f32.mrb[0].mxu0
      %2988 = vdwg.mxu0
      %v2989 = vmul.f32 %v2981, 0.5
      %v2990 = vmul.f32 %v2986, 0.5
      %v2991 = vmul.f32 %v2981, 0.70710677
      %v2992 = vmul.f32 %v2986, 0.70710677
      %vm2993 = vcmp.lt.f32.partialorder %v2991, 0.0
      %vm2994 = vcmp.lt.f32.partialorder %v2992, 0.0
      %v2995 = vsel %vm2993, -1.0, 1.0
      %v2996 = vsel %vm2994, -1.0, 1.0
      %v2997 = vand.u32 2147483647, %v2991
      %v2998 = vand.u32 2147483647, %v2992
      %v2999 = vmul.f32 %v2997, 0.3275911
      %v3000 = vmul.f32 %v2998, 0.3275911
      %v3001 = vadd.f32 %v2999, 1.0
      %v3002 = vadd.f32 %v3000, 1.0
      %v3003 = vrcp.pop %v3001
      %v3004 = vmul.f32 1.0, %v3003
      %v3005 = vrcp.pop %v3002
      %v3006 = vmul.f32 1.0, %v3005
      %v3007 = vmul.f32 %v3004, 1.0614054
      %v3008 = vmul.f32 %v3006, 1.0614054
      %v3009 = vadd.f32 %v3007, -1.4531521
      %v3010 = vadd.f32 %v3008, -1.4531521
      %v3011 = vmul.f32 %v3009, %v3004
      %v3012 = vmul.f32 %v3010, %v3006
      %v3013 = vadd.f32 %v3011, 1.4214138
      %v3014 = vadd.f32 %v3012, 1.4214138
      %v3015 = vmul.f32 %v3013, %v3004
      %v3016 = vmul.f32 %v3014, %v3006
      %v3017 = vadd.f32 %v3015, -0.28449672
      %v3018 = vadd.f32 %v3016, -0.28449672
      %v3019 = vmul.f32 %v3017, %v3004
      %v3020 = vmul.f32 %v3018, %v3006
      %v3021 = vadd.f32 %v3019, 0.2548296
      %v3022 = vadd.f32 %v3020, 0.2548296
      %v3023 = vmul.f32 %v3021, %v3004
      %v3024 = vmul.f32 %v3022, %v3006
      %v3025 = vsub.f32 0.0, %v2997
      %v3026 = vsub.f32 0.0, %v2998
      %v3027 = vmul.f32 %v3025, %v2997
      %v3028 = vmul.f32 %v3026, %v2998
      %v3029 = vmul.f32 %v3027, 1.442695
      %v3030 = vpow.pop %v3029
      %v3031 = vmul.f32 %v3028, 1.442695
      %v3032 = vpow.pop %v3031
      %v3033 = vmul.f32 %v3023, %v3030
      %v3034 = vmul.f32 %v3024, %v3032
      %v3035 = vsub.f32 1.0, %v3033
      %v3036 = vsub.f32 1.0, %v3034
      %v3037 = vmul.f32 %v2995, %v3035
      %v3038 = vmul.f32 %v2996, %v3036
      %v3039 = vadd.f32 %v3037, 1.0
      %v3040 = vadd.f32 %v3038, 1.0
      %v3041 = vmul.f32 %v2989, %v3039
      %v3042 = vmul.f32 %v2990, %v3040
      %s3043 = scalar_lea.vmem %s5, 512
      %v3044 = vld [vmem:[%s3043] sm:$0xff]
      %v3045 = vld [vmem:[%s3043 + $0x8] sm:$0xff]
      %v3046 = vld [vmem:[%s3043 + $0x10] sm:$0xff]
      %v3047 = vld [vmem:[%s3043 + $0x18] sm:$0xff]
      %v3048 = vld [vmem:[%s3043 + $0x20] sm:$0xff]
      %v3049 = vld [vmem:[%s3043 + $0x28] sm:$0xff]
      %v3050 = vld [vmem:[%s3043 + $0x30] sm:$0xff]
      %v3051 = vld [vmem:[%s3043 + $0x38] sm:$0xff]
      %s3052 = scalar_lea.vmem %s6, 8
      %v3053 = vld [vmem:[%s3052] sm:$0x1]
      %v3055 = vlaneseq
      %v3056 = vshrl.u32 %v3055, 7
      %v3057 = vsub.s32 0, %v3056
      %v3058 = vrot.slane %v3053, %v3057
      %v3061 = vsel %vm794, %v3041, 0
      %v3064 = vsel %vm794, %v3042, 0
      %3066 = vmatprep.subr.mxu0 0.0
      %3067 = vmatpush1.msra.mxu0 %v3044
      %3068 = vmatprep.subr.mxu0 0.0
      %3069 = vmatpush1.msra.mxu0 %v3045
      %3070 = vmatprep.subr.mxu0 0.0
      %3071 = vmatpush1.msra.mxu0 %v3046
      %3072 = vmatprep.subr.mxu0 0.0
      %3073 = vmatpush1.msra.mxu0 %v3047
      %3074 = vmatprep.subr.mxu0 0.0
      %3075 = vmatpush1.msra.mxu0 %v3048
      %3076 = vmatprep.subr.mxu0 0.0
      %3077 = vmatpush1.msra.mxu0 %v3049
      %3078 = vmatprep.subr.mxu0 0.0
      %3079 = vmatpush1.msra.mxu0 %v3050
      %3080 = vmatprep.subr.mxu0 0.0
      %3081 = vmatpush1.msra.mxu0 %v3051
      %3082 = vmatprep.subr.mxu0 0.0
      %3083 = vmatpush1.msra.mxu0 0.0
      %3084 = vmatprep.subr.mxu0 0.0
      %3085 = vmatpush1.msra.mxu0 0.0
      %3086 = vmatprep.subr.mxu0 0.0
      %3087 = vmatpush1.msra.mxu0 0.0
      %3088 = vmatprep.subr.mxu0 0.0
      %3089 = vmatpush1.msra.mxu0 0.0
      %3090 = vmatprep.subr.mxu0 0.0
      %3091 = vmatpush1.msra.mxu0 0.0
      %3092 = vmatprep.subr.mxu0 0.0
      %3093 = vmatpush1.msra.mxu0 0.0
      %3094 = vmatprep.subr.mxu0 0.0
      %3095 = vmatpush1.msra.mxu0 0.0
      %3096 = vmatprep.subr.mxu0 0.0
      %3097 = vmatpush1.msra.mxu0 0.0
      %3098 = vmatprep.subr.mxu0 0.0
      %3099 = vmatpush1.msra.mxu0 0.0
      %3100 = vmatprep.subr.mxu0 0.0
      %3101 = vmatpush1.msra.mxu0 0.0
      %3102 = vmatprep.subr.mxu0 0.0
      %3103 = vmatpush1.msra.mxu0 0.0
      %3104 = vmatprep.subr.mxu0 0.0
      %3105 = vmatpush1.msra.mxu0 0.0
      %3106 = vmatprep.subr.mxu0 0.0
      %3107 = vmatpush1.msra.mxu0 0.0
      %3108 = vmatprep.subr.mxu0 0.0
      %3109 = vmatpush1.msra.mxu0 0.0
      %3110 = vmatprep.subr.mxu0 0.0
      %3111 = vmatpush1.msra.mxu0 0.0
      %3112 = vmatprep.subr.mxu0 0.0
      %3113 = vmatpush1.msra.mxu0 0.0
      %3114 = vmatprep.subr.mxu0 0.0
      %3115 = vmatpush1.msra.mxu0 0.0
      %3116 = vmatprep.subr.mxu0 0.0
      %3117 = vmatpush1.msra.mxu0 0.0
      %3118 = vmatprep.subr.mxu0 0.0
      %3119 = vmatpush1.msra.mxu0 0.0
      %3120 = vmatprep.subr.mxu0 0.0
      %3121 = vmatpush1.msra.mxu0 0.0
      %3122 = vmatprep.subr.mxu0 0.0
      %3123 = vmatpush1.msra.mxu0 0.0
      %3124 = vmatprep.subr.mxu0 0.0
      %3125 = vmatpush1.msra.mxu0 0.0
      %3126 = vmatprep.subr.mxu0 0.0
      %3127 = vmatpush1.msra.mxu0 0.0
      %3128 = vmatprep.subr.mxu0 0.0
      %3129 = vmatpush1.msra.mxu0 0.0
      %3130 = vmatprep.mubr.f32.mxu0 0.0
      %3131 = vmatmul.mubr.f32.gmra.mrb[0].mxu0 %v3061
      %v3132 = vpop.f32.mrb[0].mxu0
      %v3133 = vadd.f32 %v3058, %v3132
      %v3134 = vpop.f32.mrb[0].mxu0
      %3135 = vmatprep.mubr.f32.mxu0 0.0
      %3136 = vmatmul.mubr.f32.gmra.mrb[0].mxu0 %v3064
      %v3137 = vpop.f32.mrb[0].mxu0
      %v3138 = vadd.f32 %v3058, %v3137
      %v3139 = vpop.f32.mrb[0].mxu0
      %3140 = vdwg.mxu0
      %v3141 = vadd.f32 %v2889, %v3133
      %v3142 = vadd.f32 %v2890, %v3138
      %s3143 = scalar_lea.vmem %s6, 16
      %v3144 = vld [vmem:[%s3143] sm:$0x1]
      %s3145 = scalar_lea.vmem %s6, 17
      %v3146 = vld [vmem:[%s3145] sm:$0x1]
      %v3147 = vsel %vm794, %v3141, 0.0
      %3148 = vadd.xlane.f32.xlu0 %v3147
      %v3149 = vpop.xlane.xlu0 %3148
      %v3150 = vsel %vm794, %v3142, 0.0
      %3151 = vadd.xlane.f32.xlu0 %v3150
      %v3152 = vpop.xlane.xlu0 %3151
      %v3153 = vmul.f32 %v3149, %v1647
      %v3154 = vmul.f32 %v3152, %v1647
      %v3155 = vsub.f32 %v3141, %v3153
      %v3156 = vsub.f32 %v3142, %v3154
      %v3157 = vmul.f32 %v3155, %v3155
      %v3158 = vmul.f32 %v3156, %v3156
      %v3159 = vsel %vm794, %v3157, 0.0
      %3160 = vadd.xlane.f32.xlu0 %v3159
      %v3161 = vpop.xlane.xlu0 %3160
      %v3162 = vsel %vm794, %v3158, 0.0
      %3163 = vadd.xlane.f32.xlu0 %v3162
      %v3164 = vpop.xlane.xlu0 %3163
      %v3165 = vmul.f32 %v3161, %v1647
      %v3166 = vmul.f32 %v3164, %v1647
      %v3167 = vadd.f32 %v3165, 1e-05
      %v3168 = vadd.f32 %v3166, 1e-05
      %v3169 = vrsqrt.pop %v3167
      %v3170 = vrsqrt.pop %v3168
      %v3171 = vmul.f32 %v3155, %v3169
      %v3172 = vmul.f32 %v3156, %v3170
      %v3174 = vlaneseq
      %v3175 = vshrl.u32 %v3174, 7
      %v3176 = vsub.s32 0, %v3175
      %v3177 = vrot.slane %v3144, %v3176
      %v3179 = vmul.f32 %v3171, %v3177
      %v3180 = vmul.f32 %v3172, %v3177
      %v3182 = vlaneseq
      %v3183 = vshrl.u32 %v3182, 7
      %v3184 = vsub.s32 0, %v3183
      %v3185 = vrot.slane %v3146, %v3184
      %v3187 = vadd.f32 %v3179, %v3185
      %v3188 = vadd.f32 %v3180, %v3185
      %s3189 = scalar_lea.vmem %s6, 18
      %v3190 = vld [vmem:[%s3189] sm:$0x1]
      %s3191 = scalar_lea.vmem %s6, 19
      %v3192 = vld [vmem:[%s3191] sm:$0x1]
      %v3193 = vsel %vm794, %v3187, 0.0
      %3194 = vadd.xlane.f32.xlu0 %v3193
      %v3195 = vpop.xlane.xlu0 %3194
      %v3196 = vsel %vm794, %v3188, 0.0
      %3197 = vadd.xlane.f32.xlu0 %v3196
      %v3198 = vpop.xlane.xlu0 %3197
      %v3199 = vmul.f32 %v3195, %v1647
      %v3200 = vmul.f32 %v3198, %v1647
      %v3201 = vsub.f32 %v3187, %v3199
      %v3202 = vsub.f32 %v3188, %v3200
      %v3203 = vmul.f32 %v3201, %v3201
      %v3204 = vmul.f32 %v3202, %v3202
      %v3205 = vsel %vm794, %v3203, 0.0
      %3206 = vadd.xlane.f32.xlu0 %v3205
      %v3207 = vpop.xlane.xlu0 %3206
      %v3208 = vsel %vm794, %v3204, 0.0
      %3209 = vadd.xlane.f32.xlu0 %v3208
      %v3210 = vpop.xlane.xlu0 %3209
      %v3211 = vmul.f32 %v3207, %v1647
      %v3212 = vmul.f32 %v3210, %v1647
      %v3213 = vadd.f32 %v3211, 1e-05
      %v3214 = vadd.f32 %v3212, 1e-05
      %v3215 = vrsqrt.pop %v3213
      %v3216 = vrsqrt.pop %v3214
      %v3217 = vmul.f32 %v3201, %v3215
      %v3218 = vmul.f32 %v3202, %v3216
      %v3220 = vlaneseq
      %v3221 = vshrl.u32 %v3220, 7
      %v3222 = vsub.s32 0, %v3221
      %v3223 = vrot.slane %v3190, %v3222
      %v3225 = vmul.f32 %v3217, %v3223
      %v3226 = vmul.f32 %v3218, %v3223
      %v3228 = vlaneseq
      %v3229 = vshrl.u32 %v3228, 7
      %v3230 = vsub.s32 0, %v3229
      %v3231 = vrot.slane %v3192, %v3230
      %v3233 = vadd.f32 %v3225, %v3231
      %v3234 = vadd.f32 %v3226, %v3231
      %3235 = vmatprep.subr.mxu0 0.0
      %3236 = vmatpush1.msra.mxu0 %v339
      %3237 = vmatprep.subr.mxu0 0.0
      %3238 = vmatpush1.msra.mxu0 0.0
      %3239 = vmatprep.subr.mxu0 0.0
      %3240 = vmatpush1.msra.mxu0 0.0
      %3241 = vmatprep.subr.mxu0 0.0
      %3242 = vmatpush1.msra.mxu0 0.0
      %3243 = vmatprep.subr.mxu0 0.0
      %3244 = vmatpush1.msra.mxu0 0.0
      %3245 = vmatprep.subr.mxu0 0.0
      %3246 = vmatpush1.msra.mxu0 0.0
      %3247 = vmatprep.subr.mxu0 0.0
      %3248 = vmatpush1.msra.mxu0 0.0
      %3249 = vmatprep.subr.mxu0 0.0
      %3250 = vmatpush1.msra.mxu0 0.0
      %3251 = vmatprep.subr.mxu0 0.0
      %3252 = vmatpush1.msra.mxu0 0.0
      %3253 = vmatprep.subr.mxu0 0.0
      %3254 = vmatpush1.msra.mxu0 0.0
      %3255 = vmatprep.subr.mxu0 0.0
      %3256 = vmatpush1.msra.mxu0 0.0
      %3257 = vmatprep.subr.mxu0 0.0
      %3258 = vmatpush1.msra.mxu0 0.0
      %3259 = vmatprep.subr.mxu0 0.0
      %3260 = vmatpush1.msra.mxu0 0.0
      %3261 = vmatprep.subr.mxu0 0.0
      %3262 = vmatpush1.msra.mxu0 0.0
      %3263 = vmatprep.subr.mxu0 0.0
      %3264 = vmatpush1.msra.mxu0 0.0
      %3265 = vmatprep.subr.mxu0 0.0
      %3266 = vmatpush1.msra.mxu0 0.0
      %3267 = vmatprep.subr.mxu0 0.0
      %3268 = vmatpush1.msra.mxu0 0.0
      %3269 = vmatprep.subr.mxu0 0.0
      %3270 = vmatpush1.msra.mxu0 0.0
      %3271 = vmatprep.subr.mxu0 0.0
      %3272 = vmatpush1.msra.mxu0 0.0
      %3273 = vmatprep.subr.mxu0 0.0
      %3274 = vmatpush1.msra.mxu0 0.0
      %3275 = vmatprep.subr.mxu0 0.0
      %3276 = vmatpush1.msra.mxu0 0.0
      %3277 = vmatprep.subr.mxu0 0.0
      %3278 = vmatpush1.msra.mxu0 0.0
      %3279 = vmatprep.subr.mxu0 0.0
      %3280 = vmatpush1.msra.mxu0 0.0
      %3281 = vmatprep.subr.mxu0 0.0
      %3282 = vmatpush1.msra.mxu0 0.0
      %3283 = vmatprep.subr.mxu0 0.0
      %3284 = vmatpush1.msra.mxu0 0.0
      %3285 = vmatprep.subr.mxu0 0.0
      %3286 = vmatpush1.msra.mxu0 0.0
      %3287 = vmatprep.subr.mxu0 0.0
      %3288 = vmatpush1.msra.mxu0 0.0
      %3289 = vmatprep.subr.mxu0 0.0
      %3290 = vmatpush1.msra.mxu0 0.0
      %3291 = vmatprep.subr.mxu0 0.0
      %3292 = vmatpush1.msra.mxu0 0.0
      %3293 = vmatprep.subr.mxu0 0.0
      %3294 = vmatpush1.msra.mxu0 0.0
      %3295 = vmatprep.subr.mxu0 0.0
      %3296 = vmatpush1.msra.mxu0 0.0
      %3297 = vmatprep.subr.mxu0 0.0
      %3298 = vmatpush1.msra.mxu0 0.0
      %3299 = vmatprep.mubr.f32.mxu0 0.0
      %3300 = vmatmul.mubr.f32.gmra.mrb[0].mxu0 %v342
      %v3301 = vpop.f32.mrb[0].mxu0
      %v3302 = vadd.f32 0.0, %v3301
      %v3303 = vpop.f32.mrb[0].mxu0
      %3304 = vmatprep.mubr.f32.mxu0 0.0
      %3305 = vmatmul.mubr.f32.gmra.mrb[0].mxu0 %v345
      %v3306 = vpop.f32.mrb[0].mxu0
      %v3307 = vadd.f32 0.0, %v3306
      %v3308 = vpop.f32.mrb[0].mxu0
      %3309 = vdwg.mxu0
      %s3310 = scalar_lea.vmem %s1, 12
      %v3311 = vld [vmem:[%s3310] sm:$0xf]
      %s3312 = scalar_lea.vmem %s1, 16
      %v3313 = vld [vmem:[%s3312] sm:$0xf]
      %v3315 = vsel %vm425, 0.0, 0
      %v3318 = vsel %vm432, %v3313, 0
      %3320 = vmatprep.subr.mxu0 0.0
      %3321 = vmatpush1.msra.mxu0 %v3318
      %3322 = vmatprep.subr.mxu0 0.0
      %3323 = vmatpush1.msra.mxu0 0.0
      %3324 = vmatprep.subr.mxu0 0.0
      %3325 = vmatpush1.msra.mxu0 0.0
      %3326 = vmatprep.subr.mxu0 0.0
      %3327 = vmatpush1.msra.mxu0 0.0
      %3328 = vmatprep.subr.mxu0 0.0
      %3329 = vmatpush1.msra.mxu0 0.0
      %3330 = vmatprep.subr.mxu0 0.0
      %3331 = vmatpush1.msra.mxu0 0.0
      %3332 = vmatprep.subr.mxu0 0.0
      %3333 = vmatpush1.msra.mxu0 0.0
      %3334 = vmatprep.subr.mxu0 0.0
      %3335 = vmatpush1.msra.mxu0 0.0
      %3336 = vmatprep.subr.mxu0 0.0
      %3337 = vmatpush1.msra.mxu0 0.0
      %3338 = vmatprep.subr.mxu0 0.0
      %3339 = vmatpush1.msra.mxu0 0.0
      %3340 = vmatprep.subr.mxu0 0.0
      %3341 = vmatpush1.msra.mxu0 0.0
      %3342 = vmatprep.subr.mxu0 0.0
      %3343 = vmatpush1.msra.mxu0 0.0
      %3344 = vmatprep.subr.mxu0 0.0
      %3345 = vmatpush1.msra.mxu0 0.0
      %3346 = vmatprep.subr.mxu0 0.0
      %3347 = vmatpush1.msra.mxu0 0.0
      %3348 = vmatprep.subr.mxu0 0.0
      %3349 = vmatpush1.msra.mxu0 0.0
      %3350 = vmatprep.subr.mxu0 0.0
      %3351 = vmatpush1.msra.mxu0 0.0
      %3352 = vmatprep.subr.mxu0 0.0
      %3353 = vmatpush1.msra.mxu0 0.0
      %3354 = vmatprep.subr.mxu0 0.0
      %3355 = vmatpush1.msra.mxu0 0.0
      %3356 = vmatprep.subr.mxu0 0.0
      %3357 = vmatpush1.msra.mxu0 0.0
      %3358 = vmatprep.subr.mxu0 0.0
      %3359 = vmatpush1.msra.mxu0 0.0
      %3360 = vmatprep.subr.mxu0 0.0
      %3361 = vmatpush1.msra.mxu0 0.0
      %3362 = vmatprep.subr.mxu0 0.0
      %3363 = vmatpush1.msra.mxu0 0.0
      %3364 = vmatprep.subr.mxu0 0.0
      %3365 = vmatpush1.msra.mxu0 0.0
      %3366 = vmatprep.subr.mxu0 0.0
      %3367 = vmatpush1.msra.mxu0 0.0
      %3368 = vmatprep.subr.mxu0 0.0
      %3369 = vmatpush1.msra.mxu0 0.0
      %3370 = vmatprep.subr.mxu0 0.0
      %3371 = vmatpush1.msra.mxu0 0.0
      %3372 = vmatprep.subr.mxu0 0.0
      %3373 = vmatpush1.msra.mxu0 0.0
      %3374 = vmatprep.subr.mxu0 0.0
      %3375 = vmatpush1.msra.mxu0 0.0
      %3376 = vmatprep.subr.mxu0 0.0
      %3377 = vmatpush1.msra.mxu0 0.0
      %3378 = vmatprep.subr.mxu0 0.0
      %3379 = vmatpush1.msra.mxu0 0.0
      %3380 = vmatprep.subr.mxu0 0.0
      %3381 = vmatpush1.msra.mxu0 0.0
      %3382 = vmatprep.subr.mxu0 0.0
      %3383 = vmatpush1.msra.mxu0 0.0
      %3384 = vmatprep.mubr.f32.mxu0 0.0
      %3385 = vmatmul.mubr.f32.gmra.mrb[0].mxu0 %v430
      %v3386 = vpop.f32.mrb[0].mxu0
      %v3387 = vadd.f32 0.0, %v3386
      %v3388 = vpop.f32.mrb[0].mxu0
      %3389 = vmatprep.mubr.f32.mxu0 0.0
      %3390 = vmatmul.mubr.f32.gmra.mrb[0].mxu0 %v3315
      %v3391 = vpop.f32.mrb[0].mxu0
      %v3392 = vadd.f32 0.0, %v3391
      %v3393 = vpop.f32.mrb[0].mxu0
      %3394 = vdwg.mxu0
      %v3396 = vsel %vm425, %v3302, 0
      %v3399 = vsel %vm425, %v3307, 0
      %v3402 = vsel %vm432, %v3311, 0
      %3404 = vmatprep.subr.mxu0 0.0
      %3405 = vmatpush1.msra.mxu0 %v3402
      %3406 = vmatprep.subr.mxu0 0.0
      %3407 = vmatpush1.msra.mxu0 0.0
      %3408 = vmatprep.subr.mxu0 0.0
      %3409 = vmatpush1.msra.mxu0 0.0
      %3410 = vmatprep.subr.mxu0 0.0
      %3411 = vmatpush1.msra.mxu0 0.0
      %3412 = vmatprep.subr.mxu0 0.0
      %3413 = vmatpush1.msra.mxu0 0.0
      %3414 = vmatprep.subr.mxu0 0.0
      %3415 = vmatpush1.msra.mxu0 0.0
      %3416 = vmatprep.subr.mxu0 0.0
      %3417 = vmatpush1.msra.mxu0 0.0
      %3418 = vmatprep.subr.mxu0 0.0
      %3419 = vmatpush1.msra.mxu0 0.0
      %3420 = vmatprep.subr.mxu0 0.0
      %3421 = vmatpush1.msra.mxu0 0.0
      %3422 = vmatprep.subr.mxu0 0.0
      %3423 = vmatpush1.msra.mxu0 0.0
      %3424 = vmatprep.subr.mxu0 0.0
      %3425 = vmatpush1.msra.mxu0 0.0
      %3426 = vmatprep.subr.mxu0 0.0
      %3427 = vmatpush1.msra.mxu0 0.0
      %3428 = vmatprep.subr.mxu0 0.0
      %3429 = vmatpush1.msra.mxu0 0.0
      %3430 = vmatprep.subr.mxu0 0.0
      %3431 = vmatpush1.msra.mxu0 0.0
      %3432 = vmatprep.subr.mxu0 0.0
      %3433 = vmatpush1.msra.mxu0 0.0
      %3434 = vmatprep.subr.mxu0 0.0
      %3435 = vmatpush1.msra.mxu0 0.0
      %3436 = vmatprep.subr.mxu0 0.0
      %3437 = vmatpush1.msra.mxu0 0.0
      %3438 = vmatprep.subr.mxu0 0.0
      %3439 = vmatpush1.msra.mxu0 0.0
      %3440 = vmatprep.subr.mxu0 0.0
      %3441 = vmatpush1.msra.mxu0 0.0
      %3442 = vmatprep.subr.mxu0 0.0
      %3443 = vmatpush1.msra.mxu0 0.0
      %3444 = vmatprep.subr.mxu0 0.0
      %3445 = vmatpush1.msra.mxu0 0.0
      %3446 = vmatprep.subr.mxu0 0.0
      %3447 = vmatpush1.msra.mxu0 0.0
      %3448 = vmatprep.subr.mxu0 0.0
      %3449 = vmatpush1.msra.mxu0 0.0
      %3450 = vmatprep.subr.mxu0 0.0
      %3451 = vmatpush1.msra.mxu0 0.0
      %3452 = vmatprep.subr.mxu0 0.0
      %3453 = vmatpush1.msra.mxu0 0.0
      %3454 = vmatprep.subr.mxu0 0.0
      %3455 = vmatpush1.msra.mxu0 0.0
      %3456 = vmatprep.subr.mxu0 0.0
      %3457 = vmatpush1.msra.mxu0 0.0
      %3458 = vmatprep.subr.mxu0 0.0
      %3459 = vmatpush1.msra.mxu0 0.0
      %3460 = vmatprep.subr.mxu0 0.0
      %3461 = vmatpush1.msra.mxu0 0.0
      %3462 = vmatprep.subr.mxu0 0.0
      %3463 = vmatpush1.msra.mxu0 0.0
      %3464 = vmatprep.subr.mxu0 0.0
      %3465 = vmatpush1.msra.mxu0 0.0
      %3466 = vmatprep.subr.mxu0 0.0
      %3467 = vmatpush1.msra.mxu0 0.0
      %3468 = vmatprep.mubr.f32.mxu0 0.0
      %3469 = vmatmul.mubr.f32.gmra.mrb[0].mxu0 %v3396
      %v3470 = vpop.f32.mrb[0].mxu0
      %v3471 = vadd.f32 %v3387, %v3470
      %v3472 = vpop.f32.mrb[0].mxu0
      %3473 = vmatprep.mubr.f32.mxu0 0.0
      %3474 = vmatmul.mubr.f32.gmra.mrb[0].mxu0 %v3399
      %v3475 = vpop.f32.mrb[0].mxu0
      %v3476 = vadd.f32 %v3392, %v3475
      %v3477 = vpop.f32.mrb[0].mxu0
      %3478 = vdwg.mxu0
      %3479 = vmatprep.subr.mxu0 0.0
      %3480 = vmatpush1.msra.mxu0 %v339
      %3481 = vmatprep.subr.mxu0 0.0
      %3482 = vmatpush1.msra.mxu0 0.0
      %3483 = vmatprep.subr.mxu0 0.0
      %3484 = vmatpush1.msra.mxu0 0.0
      %3485 = vmatprep.subr.mxu0 0.0
      %3486 = vmatpush1.msra.mxu0 0.0
      %3487 = vmatprep.subr.mxu0 0.0
      %3488 = vmatpush1.msra.mxu0 0.0
      %3489 = vmatprep.subr.mxu0 0.0
      %3490 = vmatpush1.msra.mxu0 0.0
      %3491 = vmatprep.subr.mxu0 0.0
      %3492 = vmatpush1.msra.mxu0 0.0
      %3493 = vmatprep.subr.mxu0 0.0
      %3494 = vmatpush1.msra.mxu0 0.0
      %3495 = vmatprep.subr.mxu0 0.0
      %3496 = vmatpush1.msra.mxu0 0.0
      %3497 = vmatprep.subr.mxu0 0.0
      %3498 = vmatpush1.msra.mxu0 0.0
      %3499 = vmatprep.subr.mxu0 0.0
      %3500 = vmatpush1.msra.mxu0 0.0
      %3501 = vmatprep.subr.mxu0 0.0
      %3502 = vmatpush1.msra.mxu0 0.0
      %3503 = vmatprep.subr.mxu0 0.0
      %3504 = vmatpush1.msra.mxu0 0.0
      %3505 = vmatprep.subr.mxu0 0.0
      %3506 = vmatpush1.msra.mxu0 0.0
      %3507 = vmatprep.subr.mxu0 0.0
      %3508 = vmatpush1.msra.mxu0 0.0
      %3509 = vmatprep.subr.mxu0 0.0
      %3510 = vmatpush1.msra.mxu0 0.0
      %3511 = vmatprep.subr.mxu0 0.0
      %3512 = vmatpush1.msra.mxu0 0.0
      %3513 = vmatprep.subr.mxu0 0.0
      %3514 = vmatpush1.msra.mxu0 0.0
      %3515 = vmatprep.subr.mxu0 0.0
      %3516 = vmatpush1.msra.mxu0 0.0
      %3517 = vmatprep.subr.mxu0 0.0
      %3518 = vmatpush1.msra.mxu0 0.0
      %3519 = vmatprep.subr.mxu0 0.0
      %3520 = vmatpush1.msra.mxu0 0.0
      %3521 = vmatprep.subr.mxu0 0.0
      %3522 = vmatpush1.msra.mxu0 0.0
      %3523 = vmatprep.subr.mxu0 0.0
      %3524 = vmatpush1.msra.mxu0 0.0
      %3525 = vmatprep.subr.mxu0 0.0
      %3526 = vmatpush1.msra.mxu0 0.0
      %3527 = vmatprep.subr.mxu0 0.0
      %3528 = vmatpush1.msra.mxu0 0.0
      %3529 = vmatprep.subr.mxu0 0.0
      %3530 = vmatpush1.msra.mxu0 0.0
      %3531 = vmatprep.subr.mxu0 0.0
      %3532 = vmatpush1.msra.mxu0 0.0
      %3533 = vmatprep.subr.mxu0 0.0
      %3534 = vmatpush1.msra.mxu0 0.0
      %3535 = vmatprep.subr.mxu0 0.0
      %3536 = vmatpush1.msra.mxu0 0.0
      %3537 = vmatprep.subr.mxu0 0.0
      %3538 = vmatpush1.msra.mxu0 0.0
      %3539 = vmatprep.subr.mxu0 0.0
      %3540 = vmatpush1.msra.mxu0 0.0
      %3541 = vmatprep.subr.mxu0 0.0
      %3542 = vmatpush1.msra.mxu0 0.0
      %3543 = vmatprep.mubr.f32.mxu0 0.0
      %3544 = vmatmul.mubr.f32.gmra.mrb[0].mxu0 %v596
      %v3545 = vpop.f32.mrb[0].mxu0
      %v3546 = vadd.f32 0.0, %v3545
      %v3547 = vpop.f32.mrb[0].mxu0
      %3548 = vmatprep.mubr.f32.mxu0 0.0
      %3549 = vmatmul.mubr.f32.gmra.mrb[0].mxu0 %v599
      %v3550 = vpop.f32.mrb[0].mxu0
      %v3551 = vadd.f32 0.0, %v3550
      %v3552 = vpop.f32.mrb[0].mxu0
      %3553 = vdwg.mxu0
      %s3554 = scalar_lea.vmem %s1, 20
      %v3555 = vld [vmem:[%s3554] sm:$0xf]
      %v3557 = vsel %vm425, %v3546, 0
      %v3560 = vsel %vm425, %v3551, 0
      %v3563 = vsel %vm432, %v3555, 0
      %3565 = vmatprep.subr.mxu0 0.0
      %3566 = vmatpush1.msra.mxu0 %v3563
      %3567 = vmatprep.subr.mxu0 0.0
      %3568 = vmatpush1.msra.mxu0 0.0
      %3569 = vmatprep.subr.mxu0 0.0
      %3570 = vmatpush1.msra.mxu0 0.0
      %3571 = vmatprep.subr.mxu0 0.0
      %3572 = vmatpush1.msra.mxu0 0.0
      %3573 = vmatprep.subr.mxu0 0.0
      %3574 = vmatpush1.msra.mxu0 0.0
      %3575 = vmatprep.subr.mxu0 0.0
      %3576 = vmatpush1.msra.mxu0 0.0
      %3577 = vmatprep.subr.mxu0 0.0
      %3578 = vmatpush1.msra.mxu0 0.0
      %3579 = vmatprep.subr.mxu0 0.0
      %3580 = vmatpush1.msra.mxu0 0.0
      %3581 = vmatprep.subr.mxu0 0.0
      %3582 = vmatpush1.msra.mxu0 0.0
      %3583 = vmatprep.subr.mxu0 0.0
      %3584 = vmatpush1.msra.mxu0 0.0
      %3585 = vmatprep.subr.mxu0 0.0
      %3586 = vmatpush1.msra.mxu0 0.0
      %3587 = vmatprep.subr.mxu0 0.0
      %3588 = vmatpush1.msra.mxu0 0.0
      %3589 = vmatprep.subr.mxu0 0.0
      %3590 = vmatpush1.msra.mxu0 0.0
      %3591 = vmatprep.subr.mxu0 0.0
      %3592 = vmatpush1.msra.mxu0 0.0
      %3593 = vmatprep.subr.mxu0 0.0
      %3594 = vmatpush1.msra.mxu0 0.0
      %3595 = vmatprep.subr.mxu0 0.0
      %3596 = vmatpush1.msra.mxu0 0.0
      %3597 = vmatprep.subr.mxu0 0.0
      %3598 = vmatpush1.msra.mxu0 0.0
      %3599 = vmatprep.subr.mxu0 0.0
      %3600 = vmatpush1.msra.mxu0 0.0
      %3601 = vmatprep.subr.mxu0 0.0
      %3602 = vmatpush1.msra.mxu0 0.0
      %3603 = vmatprep.subr.mxu0 0.0
      %3604 = vmatpush1.msra.mxu0 0.0
      %3605 = vmatprep.subr.mxu0 0.0
      %3606 = vmatpush1.msra.mxu0 0.0
      %3607 = vmatprep.subr.mxu0 0.0
      %3608 = vmatpush1.msra.mxu0 0.0
      %3609 = vmatprep.subr.mxu0 0.0
      %3610 = vmatpush1.msra.mxu0 0.0
      %3611 = vmatprep.subr.mxu0 0.0
      %3612 = vmatpush1.msra.mxu0 0.0
      %3613 = vmatprep.subr.mxu0 0.0
      %3614 = vmatpush1.msra.mxu0 0.0
      %3615 = vmatprep.subr.mxu0 0.0
      %3616 = vmatpush1.msra.mxu0 0.0
      %3617 = vmatprep.subr.mxu0 0.0
      %3618 = vmatpush1.msra.mxu0 0.0
      %3619 = vmatprep.subr.mxu0 0.0
      %3620 = vmatpush1.msra.mxu0 0.0
      %3621 = vmatprep.subr.mxu0 0.0
      %3622 = vmatpush1.msra.mxu0 0.0
      %3623 = vmatprep.subr.mxu0 0.0
      %3624 = vmatpush1.msra.mxu0 0.0
      %3625 = vmatprep.subr.mxu0 0.0
      %3626 = vmatpush1.msra.mxu0 0.0
      %3627 = vmatprep.subr.mxu0 0.0
      %3628 = vmatpush1.msra.mxu0 0.0
      %3629 = vmatprep.mubr.f32.mxu0 0.0
      %3630 = vmatmul.mubr.f32.gmra.mrb[0].mxu0 %v3557
      %v3631 = vpop.f32.mrb[0].mxu0
      %v3632 = vadd.f32 0.0, %v3631
      %v3633 = vpop.f32.mrb[0].mxu0
      %3634 = vmatprep.mubr.f32.mxu0 0.0
      %3635 = vmatmul.mubr.f32.gmra.mrb[0].mxu0 %v3560
      %v3636 = vpop.f32.mrb[0].mxu0
      %v3637 = vadd.f32 0.0, %v3636
      %v3638 = vpop.f32.mrb[0].mxu0
      %3639 = vdwg.mxu0
      %v3640 = vadd.f32 %v3471, %v3632
      %v3641 = vadd.f32 %v3476, %v3637
      %s3642 = scalar_lea.vmem %s2, 16
      %v3643 = vld [vmem:[%s3642] sm:$0xff]
      %v3644 = vld [vmem:[%s3642 + $0x8] sm:$0xff]
      %v3645 = vadd.f32 %v3640, %v3643
      %v3646 = vadd.f32 %v3641, %v3644
      %s3647 = scalar_lea.vmem %s4, 288
      %v3648 = vld [vmem:[%s3647] sm:$0xff]
      %v3649 = vld [vmem:[%s3647 + $0x8] sm:$0xff]
      %v3650 = vld [vmem:[%s3647 + $0x10] sm:$0xff]
      %v3651 = vld [vmem:[%s3647 + $0x18] sm:$0xff]
      %v3652 = vld [vmem:[%s3647 + $0x20] sm:$0xff]
      %v3653 = vld [vmem:[%s3647 + $0x28] sm:$0xff]
      %v3654 = vld [vmem:[%s3647 + $0x30] sm:$0xff]
      %v3655 = vld [vmem:[%s3647 + $0x38] sm:$0xff]
      %v3656 = vld [vmem:[%s3647 + $0x40] sm:$0xff]
      %v3657 = vld [vmem:[%s3647 + $0x48] sm:$0xff]
      %v3658 = vld [vmem:[%s3647 + $0x50] sm:$0xff]
      %v3659 = vld [vmem:[%s3647 + $0x58] sm:$0xff]
      %v3660 = vld [vmem:[%s3647 + $0x60] sm:$0xff]
      %v3661 = vld [vmem:[%s3647 + $0x68] sm:$0xff]
      %v3662 = vld [vmem:[%s3647 + $0x70] sm:$0xff]
      %v3663 = vld [vmem:[%s3647 + $0x78] sm:$0xff]
      %v3664 = vld [vmem:[%s3647 + $0x80] sm:$0x1]
      %v3665 = vld [vmem:[%s3647 + $0x88] sm:$0x1]
      %v3666 = vlaneseq
      %v3667 = vshrl.u32 %v3666, 7
      %v3668 = vsub.s32 0, %v3667
      %v3669 = vrot.slane %v3664, %v3668
      %v3670 = vlaneseq
      %v3671 = vshrl.u32 %v3670, 7
      %v3672 = vsub.s32 0, %v3671
      %v3673 = vrot.slane %v3665, %v3672
      %v3675 = vsel %vm794, %v3645, 0
      %v3678 = vsel %vm794, %v3646, 0
      %3680 = vmatprep.subr.mxu0 %v3649
      %3681 = vmatpush1.msra.mxu0 %v3648
      %3682 = vmatprep.subr.mxu0 %v3651
      %3683 = vmatpush1.msra.mxu0 %v3650
      %3684 = vmatprep.subr.mxu0 %v3653
      %3685 = vmatpush1.msra.mxu0 %v3652
      %3686 = vmatprep.subr.mxu0 %v3655
      %3687 = vmatpush1.msra.mxu0 %v3654
      %3688 = vmatprep.subr.mxu0 %v3657
      %3689 = vmatpush1.msra.mxu0 %v3656
      %3690 = vmatprep.subr.mxu0 %v3659
      %3691 = vmatpush1.msra.mxu0 %v3658
      %3692 = vmatprep.subr.mxu0 %v3661
      %3693 = vmatpush1.msra.mxu0 %v3660
      %3694 = vmatprep.subr.mxu0 %v3663
      %3695 = vmatpush1.msra.mxu0 %v3662
      %3696 = vmatprep.subr.mxu0 0.0
      %3697 = vmatpush1.msra.mxu0 0.0
      %3698 = vmatprep.subr.mxu0 0.0
      %3699 = vmatpush1.msra.mxu0 0.0
      %3700 = vmatprep.subr.mxu0 0.0
      %3701 = vmatpush1.msra.mxu0 0.0
      %3702 = vmatprep.subr.mxu0 0.0
      %3703 = vmatpush1.msra.mxu0 0.0
      %3704 = vmatprep.subr.mxu0 0.0
      %3705 = vmatpush1.msra.mxu0 0.0
      %3706 = vmatprep.subr.mxu0 0.0
      %3707 = vmatpush1.msra.mxu0 0.0
      %3708 = vmatprep.subr.mxu0 0.0
      %3709 = vmatpush1.msra.mxu0 0.0
      %3710 = vmatprep.subr.mxu0 0.0
      %3711 = vmatpush1.msra.mxu0 0.0
      %3712 = vmatprep.subr.mxu0 0.0
      %3713 = vmatpush1.msra.mxu0 0.0
      %3714 = vmatprep.subr.mxu0 0.0
      %3715 = vmatpush1.msra.mxu0 0.0
      %3716 = vmatprep.subr.mxu0 0.0
      %3717 = vmatpush1.msra.mxu0 0.0
      %3718 = vmatprep.subr.mxu0 0.0
      %3719 = vmatpush1.msra.mxu0 0.0
      %3720 = vmatprep.subr.mxu0 0.0
      %3721 = vmatpush1.msra.mxu0 0.0
      %3722 = vmatprep.subr.mxu0 0.0
      %3723 = vmatpush1.msra.mxu0 0.0
      %3724 = vmatprep.subr.mxu0 0.0
      %3725 = vmatpush1.msra.mxu0 0.0
      %3726 = vmatprep.subr.mxu0 0.0
      %3727 = vmatpush1.msra.mxu0 0.0
      %3728 = vmatprep.subr.mxu0 0.0
      %3729 = vmatpush1.msra.mxu0 0.0
      %3730 = vmatprep.subr.mxu0 0.0
      %3731 = vmatpush1.msra.mxu0 0.0
      %3732 = vmatprep.subr.mxu0 0.0
      %3733 = vmatpush1.msra.mxu0 0.0
      %3734 = vmatprep.subr.mxu0 0.0
      %3735 = vmatpush1.msra.mxu0 0.0
      %3736 = vmatprep.subr.mxu0 0.0
      %3737 = vmatpush1.msra.mxu0 0.0
      %3738 = vmatprep.subr.mxu0 0.0
      %3739 = vmatpush1.msra.mxu0 0.0
      %3740 = vmatprep.subr.mxu0 0.0
      %3741 = vmatpush1.msra.mxu0 0.0
      %3742 = vmatprep.subr.mxu0 0.0
      %3743 = vmatpush1.msra.mxu0 0.0
      %3744 = vmatprep.mubr.f32.mxu0 0.0
      %3745 = vmatmul.mubr.f32.gmra.mrb[0].mxu0 %v3675
      %v3746 = vpop.f32.mrb[0].mxu0
      %v3747 = vadd.f32 %v3669, %v3746
      %v3748 = vpop.f32.mrb[0].mxu0
      %v3749 = vadd.f32 %v3673, %v3748
      %3750 = vmatprep.mubr.f32.mxu0 0.0
      %3751 = vmatmul.mubr.f32.gmra.mrb[0].mxu0 %v3678
      %v3752 = vpop.f32.mrb[0].mxu0
      %v3753 = vadd.f32 %v3669, %v3752
      %v3754 = vpop.f32.mrb[0].mxu0
      %v3755 = vadd.f32 %v3673, %v3754
      %3756 = vdwg.mxu0
      %3759 = vrot.lane.b32.xlu0 %v3747, 112
      %v3760 = vpop.permute.xlu0 %3759
      %3761 = vrot.lane.b32.xlu0 %v3753, 112
      %v3762 = vpop.permute.xlu0 %3761
      %3763 = vrot.lane.b32.xlu0 %v3747, 96
      %v3764 = vpop.permute.xlu0 %3763
      %3765 = vrot.lane.b32.xlu0 %v3753, 96
      %v3766 = vpop.permute.xlu0 %3765
      %3767 = vrot.lane.b32.xlu0 %v3747, 80
      %v3768 = vpop.permute.xlu0 %3767
      %3769 = vrot.lane.b32.xlu0 %v3753, 80
      %v3770 = vpop.permute.xlu0 %3769
      %3773 = vrot.lane.b32.xlu0 %v3749, 112
      %v3774 = vpop.permute.xlu0 %3773
      %3775 = vrot.lane.b32.xlu0 %v3755, 112
      %v3776 = vpop.permute.xlu0 %3775
      %3779 = vrot.lane.b32.xlu0 %v3749, 96
      %v3780 = vpop.permute.xlu0 %3779
      %3781 = vrot.lane.b32.xlu0 %v3755, 96
      %v3782 = vpop.permute.xlu0 %3781
      %3785 = vrot.lane.b32.xlu0 %v3749, 80
      %v3786 = vpop.permute.xlu0 %3785
      %3787 = vrot.lane.b32.xlu0 %v3755, 80
      %v3788 = vpop.permute.xlu0 %3787
      %s3791 = scalar_lea.vmem %s7, 64
      %v3792 = vld [vmem:[%s3791] sm:$0xff]
      %v3793 = vld [vmem:[%s3791 + $0x8] sm:$0xff]
      %v3794 = vld [vmem:[%s3791 + $0x10] sm:$0xff]
      %v3795 = vld [vmem:[%s3791 + $0x18] sm:$0xff]
      %v3796 = vld [vmem:[%s3791 + $0x20] sm:$0xff]
      %v3797 = vld [vmem:[%s3791 + $0x28] sm:$0xff]
      %v3798 = vld [vmem:[%s3791 + $0x30] sm:$0xff]
      %v3799 = vld [vmem:[%s3791 + $0x38] sm:$0xff]
      %3800 = vrot.lane.b32.xlu0 %v3747, 64
      %v3801 = vpop.permute.xlu0 %3800
      %3802 = vrot.lane.b32.xlu0 %v3753, 64
      %v3803 = vpop.permute.xlu0 %3802
      %3804 = vrot.lane.b32.xlu0 %v3760, 64
      %v3805 = vpop.permute.xlu0 %3804
      %3806 = vrot.lane.b32.xlu0 %v3762, 64
      %v3807 = vpop.permute.xlu0 %3806
      %3808 = vrot.lane.b32.xlu0 %v3764, 64
      %v3809 = vpop.permute.xlu0 %3808
      %3810 = vrot.lane.b32.xlu0 %v3766, 64
      %v3811 = vpop.permute.xlu0 %3810
      %3812 = vrot.lane.b32.xlu0 %v3768, 64
      %v3813 = vpop.permute.xlu0 %3812
      %3814 = vrot.lane.b32.xlu0 %v3770, 64
      %v3815 = vpop.permute.xlu0 %3814
      %v3816 = vsel %vm340, %v3747, 0
      %v3818 = vsel %vm340, %v3753, 0
      %v3820 = vsel %vm340, %v3760, 0
      %v3822 = vsel %vm340, %v3762, 0
      %v3824 = vsel %vm340, %v3764, 0
      %v3826 = vsel %vm340, %v3766, 0
      %v3828 = vsel %vm340, %v3768, 0
      %v3830 = vsel %vm340, %v3770, 0
      %v3832 = vsel %vm340, %v3801, 0
      %v3834 = vsel %vm340, %v3803, 0
      %v3836 = vsel %vm340, %v3805, 0
      %v3838 = vsel %vm340, %v3807, 0
      %v3840 = vsel %vm340, %v3809, 0
      %v3842 = vsel %vm340, %v3811, 0
      %v3844 = vsel %vm340, %v3813, 0
      %v3846 = vsel %vm340, %v3815, 0
      %3848 = vmatprep.subr.mxu0 0.0
      %3849 = vmatpush1.xpose.msra.mxu0 %v3832
      %3850 = vmatprep.subr.mxu0 0.0
      %3851 = vmatpush1.xpose.msra.mxu0 %v3834
      %3852 = vmatprep.subr.mxu0 0.0
      %3853 = vmatpush1.xpose.msra.mxu0 %v3836
      %3854 = vmatprep.subr.mxu0 0.0
      %3855 = vmatpush1.xpose.msra.mxu0 %v3838
      %3856 = vmatprep.subr.mxu0 0.0
      %3857 = vmatpush1.xpose.msra.mxu0 %v3840
      %3858 = vmatprep.subr.mxu0 0.0
      %3859 = vmatpush1.xpose.msra.mxu0 %v3842
      %3860 = vmatprep.subr.mxu0 0.0
      %3861 = vmatpush1.xpose.msra.mxu0 %v3844
      %3862 = vmatprep.subr.mxu0 0.0
      %3863 = vmatpush1.xpose.msra.mxu0 %v3846
      %3864 = vmatprep.subr.mxu0 0.0
      %3865 = vmatpush1.xpose.msra.mxu0 0.0
      %3866 = vmatprep.subr.mxu0 0.0
      %3867 = vmatpush1.xpose.msra.mxu0 0.0
      %3868 = vmatprep.subr.mxu0 0.0
      %3869 = vmatpush1.xpose.msra.mxu0 0.0
      %3870 = vmatprep.subr.mxu0 0.0
      %3871 = vmatpush1.xpose.msra.mxu0 0.0
      %3872 = vmatprep.subr.mxu0 0.0
      %3873 = vmatpush1.xpose.msra.mxu0 0.0
      %3874 = vmatprep.subr.mxu0 0.0
      %3875 = vmatpush1.xpose.msra.mxu0 0.0
      %3876 = vmatprep.subr.mxu0 0.0
      %3877 = vmatpush1.xpose.msra.mxu0 0.0
      %3878 = vmatprep.subr.mxu0 0.0
      %3879 = vmatpush1.xpose.msra.mxu0 0.0
      %3880 = vmatprep.subr.mxu0 0.0
      %3881 = vmatpush1.xpose.msra.mxu0 0.0
      %3882 = vmatprep.subr.mxu0 0.0
      %3883 = vmatpush1.xpose.msra.mxu0 0.0
      %3884 = vmatprep.subr.mxu0 0.0
      %3885 = vmatpush1.xpose.msra.mxu0 0.0
      %3886 = vmatprep.subr.mxu0 0.0
      %3887 = vmatpush1.xpose.msra.mxu0 0.0
      %3888 = vmatprep.subr.mxu0 0.0
      %3889 = vmatpush1.xpose.msra.mxu0 0.0
      %3890 = vmatprep.subr.mxu0 0.0
      %3891 = vmatpush1.xpose.msra.mxu0 0.0
      %3892 = vmatprep.subr.mxu0 0.0
      %3893 = vmatpush1.xpose.msra.mxu0 0.0
      %3894 = vmatprep.subr.mxu0 0.0
      %3895 = vmatpush1.xpose.msra.mxu0 0.0
      %3896 = vmatprep.subr.mxu0 0.0
      %3897 = vmatpush1.xpose.msra.mxu0 0.0
      %3898 = vmatprep.subr.mxu0 0.0
      %3899 = vmatpush1.xpose.msra.mxu0 0.0
      %3900 = vmatprep.subr.mxu0 0.0
      %3901 = vmatpush1.xpose.msra.mxu0 0.0
      %3902 = vmatprep.subr.mxu0 0.0
      %3903 = vmatpush1.xpose.msra.mxu0 0.0
      %3904 = vmatprep.subr.mxu0 0.0
      %3905 = vmatpush1.xpose.msra.mxu0 0.0
      %3906 = vmatprep.subr.mxu0 0.0
      %3907 = vmatpush1.xpose.msra.mxu0 0.0
      %3908 = vmatprep.subr.mxu0 0.0
      %3909 = vmatpush1.xpose.msra.mxu0 0.0
      %3910 = vmatprep.subr.mxu0 0.0
      %3911 = vmatpush1.xpose.msra.mxu0 0.0
      %3912 = vmatprep.mubr.f32.mxu0 0.0
      %3913 = vmatmul.mubr.f32.gmra.mrb[0].mxu0 %v3816
      %v3914 = vpop.f32.mrb[0].mxu0
      %v3915 = vadd.f32 %v3792, %v3914
      %v3916 = vpop.f32.mrb[0].mxu0
      %3917 = vmatprep.mubr.f32.mxu0 0.0
      %3918 = vmatmul.mubr.f32.gmra.mrb[0].mxu0 %v3818
      %v3919 = vpop.f32.mrb[0].mxu0
      %v3920 = vadd.f32 %v3793, %v3919
      %v3921 = vpop.f32.mrb[0].mxu0
      %3922 = vmatprep.mubr.f32.mxu0 0.0
      %3923 = vmatmul.mubr.f32.gmra.mrb[0].mxu0 %v3820
      %v3924 = vpop.f32.mrb[0].mxu0
      %v3925 = vadd.f32 %v3794, %v3924
      %v3926 = vpop.f32.mrb[0].mxu0
      %3927 = vmatprep.mubr.f32.mxu0 0.0
      %3928 = vmatmul.mubr.f32.gmra.mrb[0].mxu0 %v3822
      %v3929 = vpop.f32.mrb[0].mxu0
      %v3930 = vadd.f32 %v3795, %v3929
      %v3931 = vpop.f32.mrb[0].mxu0
      %3932 = vmatprep.mubr.f32.mxu0 0.0
      %3933 = vmatmul.mubr.f32.gmra.mrb[0].mxu0 %v3824
      %v3934 = vpop.f32.mrb[0].mxu0
      %v3935 = vadd.f32 %v3796, %v3934
      %v3936 = vpop.f32.mrb[0].mxu0
      %3937 = vmatprep.mubr.f32.mxu0 0.0
      %3938 = vmatmul.mubr.f32.gmra.mrb[0].mxu0 %v3826
      %v3939 = vpop.f32.mrb[0].mxu0
      %v3940 = vadd.f32 %v3797, %v3939
      %v3941 = vpop.f32.mrb[0].mxu0
      %3942 = vmatprep.mubr.f32.mxu0 0.0
      %3943 = vmatmul.mubr.f32.gmra.mrb[0].mxu0 %v3828
      %v3944 = vpop.f32.mrb[0].mxu0
      %v3945 = vadd.f32 %v3798, %v3944
      %v3946 = vpop.f32.mrb[0].mxu0
      %3947 = vmatprep.mubr.f32.mxu0 0.0
      %3948 = vmatmul.mubr.f32.gmra.mrb[0].mxu0 %v3830
      %v3949 = vpop.f32.mrb[0].mxu0
      %v3950 = vadd.f32 %v3799, %v3949
      %v3951 = vpop.f32.mrb[0].mxu0
      %3952 = vdwg.mxu0
      %v3953 = vsel %vm794, %v3915, -inf
      %3954 = vmax.xlane.f32.xlu0 %v3953
      %v3955 = vpop.xlane.xlu0 %3954
      %v3956 = vsel %vm794, %v3920, -inf
      %3957 = vmax.xlane.f32.xlu0 %v3956
      %v3958 = vpop.xlane.xlu0 %3957
      %v3959 = vsel %vm794, %v3925, -inf
      %3960 = vmax.xlane.f32.xlu0 %v3959
      %v3961 = vpop.xlane.xlu0 %3960
      %v3962 = vsel %vm794, %v3930, -inf
      %3963 = vmax.xlane.f32.xlu0 %v3962
      %v3964 = vpop.xlane.xlu0 %3963
      %v3965 = vsel %vm794, %v3935, -inf
      %3966 = vmax.xlane.f32.xlu0 %v3965
      %v3967 = vpop.xlane.xlu0 %3966
      %v3968 = vsel %vm794, %v3940, -inf
      %3969 = vmax.xlane.f32.xlu0 %v3968
      %v3970 = vpop.xlane.xlu0 %3969
      %v3971 = vsel %vm794, %v3945, -inf
      %3972 = vmax.xlane.f32.xlu0 %v3971
      %v3973 = vpop.xlane.xlu0 %3972
      %v3974 = vsel %vm794, %v3950, -inf
      %3975 = vmax.xlane.f32.xlu0 %v3974
      %v3976 = vpop.xlane.xlu0 %3975
      %v3977 = vsub.f32 %v3915, %v3955
      %v3978 = vsub.f32 %v3920, %v3958
      %v3979 = vsub.f32 %v3925, %v3961
      %v3980 = vsub.f32 %v3930, %v3964
      %v3981 = vsub.f32 %v3935, %v3967
      %v3982 = vsub.f32 %v3940, %v3970
      %v3983 = vsub.f32 %v3945, %v3973
      %v3984 = vsub.f32 %v3950, %v3976
      %v3985 = vmul.f32 %v3977, 1.442695
      %v3986 = vpow.pop %v3985
      %v3987 = vmul.f32 %v3978, 1.442695
      %v3988 = vpow.pop %v3987
      %v3989 = vmul.f32 %v3979, 1.442695
      %v3990 = vpow.pop %v3989
      %v3991 = vmul.f32 %v3980, 1.442695
      %v3992 = vpow.pop %v3991
      %v3993 = vmul.f32 %v3981, 1.442695
      %v3994 = vpow.pop %v3993
      %v3995 = vmul.f32 %v3982, 1.442695
      %v3996 = vpow.pop %v3995
      %v3997 = vmul.f32 %v3983, 1.442695
      %v3998 = vpow.pop %v3997
      %v3999 = vmul.f32 %v3984, 1.442695
      %v4000 = vpow.pop %v3999
      %v4001 = vsel %vm794, %v3986, 0.0
      %4002 = vadd.xlane.f32.xlu0 %v4001
      %v4003 = vpop.xlane.xlu0 %4002
      %v4004 = vsel %vm794, %v3988, 0.0
      %4005 = vadd.xlane.f32.xlu0 %v4004
      %v4006 = vpop.xlane.xlu0 %4005
      %v4007 = vsel %vm794, %v3990, 0.0
      %4008 = vadd.xlane.f32.xlu0 %v4007
      %v4009 = vpop.xlane.xlu0 %4008
      %v4010 = vsel %vm794, %v3992, 0.0
      %4011 = vadd.xlane.f32.xlu0 %v4010
      %v4012 = vpop.xlane.xlu0 %4011
      %v4013 = vsel %vm794, %v3994, 0.0
      %4014 = vadd.xlane.f32.xlu0 %v4013
      %v4015 = vpop.xlane.xlu0 %4014
      %v4016 = vsel %vm794, %v3996, 0.0
      %4017 = vadd.xlane.f32.xlu0 %v4016
      %v4018 = vpop.xlane.xlu0 %4017
      %v4019 = vsel %vm794, %v3998, 0.0
      %4020 = vadd.xlane.f32.xlu0 %v4019
      %v4021 = vpop.xlane.xlu0 %4020
      %v4022 = vsel %vm794, %v4000, 0.0
      %4023 = vadd.xlane.f32.xlu0 %v4022
      %v4024 = vpop.xlane.xlu0 %4023
      %v4025 = vrcp.pop %v4003
      %v4026 = vmul.f32 %v3986, %v4025
      %v4027 = vrcp.pop %v4006
      %v4028 = vmul.f32 %v3988, %v4027
      %v4029 = vrcp.pop %v4009
      %v4030 = vmul.f32 %v3990, %v4029
      %v4031 = vrcp.pop %v4012
      %v4032 = vmul.f32 %v3992, %v4031
      %v4033 = vrcp.pop %v4015
      %v4034 = vmul.f32 %v3994, %v4033
      %v4035 = vrcp.pop %v4018
      %v4036 = vmul.f32 %v3996, %v4035
      %v4037 = vrcp.pop %v4021
      %v4038 = vmul.f32 %v3998, %v4037
      %v4039 = vrcp.pop %v4024
      %v4040 = vmul.f32 %v4000, %v4039
      %v4042 = vsel %vm794, %v4026, 0
      %v4045 = vsel %vm794, %v4028, 0
      %v4048 = vsel %vm794, %v4030, 0
      %v4051 = vsel %vm794, %v4032, 0
      %v4054 = vsel %vm794, %v4034, 0
      %v4057 = vsel %vm794, %v4036, 0
      %v4060 = vsel %vm794, %v4038, 0
      %v4063 = vsel %vm794, %v4040, 0
      %4065 = vmatprep.subr.mxu0 0.0
      %4066 = vmatpush1.msra.mxu0 %v3749
      %4067 = vmatprep.subr.mxu0 0.0
      %4068 = vmatpush1.msra.mxu0 %v3755
      %4069 = vmatprep.subr.mxu0 0.0
      %4070 = vmatpush1.msra.mxu0 %v3774
      %4071 = vmatprep.subr.mxu0 0.0
      %4072 = vmatpush1.msra.mxu0 %v3776
      %4073 = vmatprep.subr.mxu0 0.0
      %4074 = vmatpush1.msra.mxu0 %v3780
      %4075 = vmatprep.subr.mxu0 0.0
      %4076 = vmatpush1.msra.mxu0 %v3782
      %4077 = vmatprep.subr.mxu0 0.0
      %4078 = vmatpush1.msra.mxu0 %v3786
      %4079 = vmatprep.subr.mxu0 0.0
      %4080 = vmatpush1.msra.mxu0 %v3788
      %4081 = vmatprep.subr.mxu0 0.0
      %4082 = vmatpush1.msra.mxu0 0.0
      %4083 = vmatprep.subr.mxu0 0.0
      %4084 = vmatpush1.msra.mxu0 0.0
      %4085 = vmatprep.subr.mxu0 0.0
      %4086 = vmatpush1.msra.mxu0 0.0
      %4087 = vmatprep.subr.mxu0 0.0
      %4088 = vmatpush1.msra.mxu0 0.0
      %4089 = vmatprep.subr.mxu0 0.0
      %4090 = vmatpush1.msra.mxu0 0.0
      %4091 = vmatprep.subr.mxu0 0.0
      %4092 = vmatpush1.msra.mxu0 0.0
      %4093 = vmatprep.subr.mxu0 0.0
      %4094 = vmatpush1.msra.mxu0 0.0
      %4095 = vmatprep.subr.mxu0 0.0
      %4096 = vmatpush1.msra.mxu0 0.0
      %4097 = vmatprep.subr.mxu0 0.0
      %4098 = vmatpush1.msra.mxu0 0.0
      %4099 = vmatprep.subr.mxu0 0.0
      %4100 = vmatpush1.msra.mxu0 0.0
      %4101 = vmatprep.subr.mxu0 0.0
      %4102 = vmatpush1.msra.mxu0 0.0
      %4103 = vmatprep.subr.mxu0 0.0
      %4104 = vmatpush1.msra.mxu0 0.0
      %4105 = vmatprep.subr.mxu0 0.0
      %4106 = vmatpush1.msra.mxu0 0.0
      %4107 = vmatprep.subr.mxu0 0.0
      %4108 = vmatpush1.msra.mxu0 0.0
      %4109 = vmatprep.subr.mxu0 0.0
      %4110 = vmatpush1.msra.mxu0 0.0
      %4111 = vmatprep.subr.mxu0 0.0
      %4112 = vmatpush1.msra.mxu0 0.0
      %4113 = vmatprep.subr.mxu0 0.0
      %4114 = vmatpush1.msra.mxu0 0.0
      %4115 = vmatprep.subr.mxu0 0.0
      %4116 = vmatpush1.msra.mxu0 0.0
      %4117 = vmatprep.subr.mxu0 0.0
      %4118 = vmatpush1.msra.mxu0 0.0
      %4119 = vmatprep.subr.mxu0 0.0
      %4120 = vmatpush1.msra.mxu0 0.0
      %4121 = vmatprep.subr.mxu0 0.0
      %4122 = vmatpush1.msra.mxu0 0.0
      %4123 = vmatprep.subr.mxu0 0.0
      %4124 = vmatpush1.msra.mxu0 0.0
      %4125 = vmatprep.subr.mxu0 0.0
      %4126 = vmatpush1.msra.mxu0 0.0
      %4127 = vmatprep.subr.mxu0 0.0
      %4128 = vmatpush1.msra.mxu0 0.0
      %4129 = vmatprep.mubr.f32.mxu0 0.0
      %4130 = vmatmul.mubr.f32.gmra.mrb[0].mxu0 %v4042
      %v4131 = vpop.f32.mrb[0].mxu0
      %v4132 = vadd.f32 0.0, %v4131
      %v4133 = vpop.f32.mrb[0].mxu0
      %4134 = vmatprep.mubr.f32.mxu0 0.0
      %4135 = vmatmul.mubr.f32.gmra.mrb[0].mxu0 %v4045
      %v4136 = vpop.f32.mrb[0].mxu0
      %v4137 = vadd.f32 0.0, %v4136
      %v4138 = vpop.f32.mrb[0].mxu0
      %4139 = vmatprep.mubr.f32.mxu0 0.0
      %4140 = vmatmul.mubr.f32.gmra.mrb[0].mxu0 %v4048
      %v4141 = vpop.f32.mrb[0].mxu0
      %v4142 = vadd.f32 0.0, %v4141
      %v4143 = vpop.f32.mrb[0].mxu0
      %4144 = vmatprep.mubr.f32.mxu0 0.0
      %4145 = vmatmul.mubr.f32.gmra.mrb[0].mxu0 %v4051
      %v4146 = vpop.f32.mrb[0].mxu0
      %v4147 = vadd.f32 0.0, %v4146
      %v4148 = vpop.f32.mrb[0].mxu0
      %4149 = vmatprep.mubr.f32.mxu0 0.0
      %4150 = vmatmul.mubr.f32.gmra.mrb[0].mxu0 %v4054
      %v4151 = vpop.f32.mrb[0].mxu0
      %v4152 = vadd.f32 0.0, %v4151
      %v4153 = vpop.f32.mrb[0].mxu0
      %4154 = vmatprep.mubr.f32.mxu0 0.0
      %4155 = vmatmul.mubr.f32.gmra.mrb[0].mxu0 %v4057
      %v4156 = vpop.f32.mrb[0].mxu0
      %v4157 = vadd.f32 0.0, %v4156
      %v4158 = vpop.f32.mrb[0].mxu0
      %4159 = vmatprep.mubr.f32.mxu0 0.0
      %4160 = vmatmul.mubr.f32.gmra.mrb[0].mxu0 %v4060
      %v4161 = vpop.f32.mrb[0].mxu0
      %v4162 = vadd.f32 0.0, %v4161
      %v4163 = vpop.f32.mrb[0].mxu0
      %4164 = vmatprep.mubr.f32.mxu0 0.0
      %4165 = vmatmul.mubr.f32.gmra.mrb[0].mxu0 %v4063
      %v4166 = vpop.f32.mrb[0].mxu0
      %v4167 = vadd.f32 0.0, %v4166
      %v4168 = vpop.f32.mrb[0].mxu0
      %4169 = vdwg.mxu0
      %s4170 = scalar_lea.vmem %s5, 128
      %v4171 = vld [vmem:[%s4170] sm:$0xff]
      %v4172 = vld [vmem:[%s4170 + $0x8] sm:$0xff]
      %v4173 = vld [vmem:[%s4170 + $0x10] sm:$0xff]
      %v4174 = vld [vmem:[%s4170 + $0x18] sm:$0xff]
      %v4175 = vld [vmem:[%s4170 + $0x20] sm:$0xff]
      %v4176 = vld [vmem:[%s4170 + $0x28] sm:$0xff]
      %v4177 = vld [vmem:[%s4170 + $0x30] sm:$0xff]
      %v4178 = vld [vmem:[%s4170 + $0x38] sm:$0xff]
      %s4179 = scalar_lea.vmem %s7, 128
      %v4180 = vld [vmem:[%s4179] sm:$0xff]
      %v4181 = vld [vmem:[%s4179 + $0x8] sm:$0xff]
      %v4182 = vld [vmem:[%s4179 + $0x10] sm:$0xff]
      %v4183 = vld [vmem:[%s4179 + $0x18] sm:$0xff]
      %v4184 = vld [vmem:[%s4179 + $0x20] sm:$0xff]
      %v4185 = vld [vmem:[%s4179 + $0x28] sm:$0xff]
      %v4186 = vld [vmem:[%s4179 + $0x30] sm:$0xff]
      %v4187 = vld [vmem:[%s4179 + $0x38] sm:$0xff]
      %v4189 = vsel %vm794, %v4180, 0
      %v4192 = vsel %vm794, %v4181, 0
      %4194 = vmatprep.subr.mxu0 0.0
      %4195 = vmatpush1.msra.mxu0 %v4132
      %4196 = vmatprep.subr.mxu0 0.0
      %4197 = vmatpush1.msra.mxu0 %v4137
      %4198 = vmatprep.subr.mxu0 0.0
      %4199 = vmatpush1.msra.mxu0 %v4142
      %4200 = vmatprep.subr.mxu0 0.0
      %4201 = vmatpush1.msra.mxu0 %v4147
      %4202 = vmatprep.subr.mxu0 0.0
      %4203 = vmatpush1.msra.mxu0 %v4152
      %4204 = vmatprep.subr.mxu0 0.0
      %4205 = vmatpush1.msra.mxu0 %v4157
      %4206 = vmatprep.subr.mxu0 0.0
      %4207 = vmatpush1.msra.mxu0 %v4162
      %4208 = vmatprep.subr.mxu0 0.0
      %4209 = vmatpush1.msra.mxu0 %v4167
      %4210 = vmatprep.subr.mxu0 0.0
      %4211 = vmatpush1.msra.mxu0 0.0
      %4212 = vmatprep.subr.mxu0 0.0
      %4213 = vmatpush1.msra.mxu0 0.0
      %4214 = vmatprep.subr.mxu0 0.0
      %4215 = vmatpush1.msra.mxu0 0.0
      %4216 = vmatprep.subr.mxu0 0.0
      %4217 = vmatpush1.msra.mxu0 0.0
      %4218 = vmatprep.subr.mxu0 0.0
      %4219 = vmatpush1.msra.mxu0 0.0
      %4220 = vmatprep.subr.mxu0 0.0
      %4221 = vmatpush1.msra.mxu0 0.0
      %4222 = vmatprep.subr.mxu0 0.0
      %4223 = vmatpush1.msra.mxu0 0.0
      %4224 = vmatprep.subr.mxu0 0.0
      %4225 = vmatpush1.msra.mxu0 0.0
      %4226 = vmatprep.subr.mxu0 0.0
      %4227 = vmatpush1.msra.mxu0 0.0
      %4228 = vmatprep.subr.mxu0 0.0
      %4229 = vmatpush1.msra.mxu0 0.0
      %4230 = vmatprep.subr.mxu0 0.0
      %4231 = vmatpush1.msra.mxu0 0.0
      %4232 = vmatprep.subr.mxu0 0.0
      %4233 = vmatpush1.msra.mxu0 0.0
      %4234 = vmatprep.subr.mxu0 0.0
      %4235 = vmatpush1.msra.mxu0 0.0
      %4236 = vmatprep.subr.mxu0 0.0
      %4237 = vmatpush1.msra.mxu0 0.0
      %4238 = vmatprep.subr.mxu0 0.0
      %4239 = vmatpush1.msra.mxu0 0.0
      %4240 = vmatprep.subr.mxu0 0.0
      %4241 = vmatpush1.msra.mxu0 0.0
      %4242 = vmatprep.subr.mxu0 0.0
      %4243 = vmatpush1.msra.mxu0 0.0
      %4244 = vmatprep.subr.mxu0 0.0
      %4245 = vmatpush1.msra.mxu0 0.0
      %4246 = vmatprep.subr.mxu0 0.0
      %4247 = vmatpush1.msra.mxu0 0.0
      %4248 = vmatprep.subr.mxu0 0.0
      %4249 = vmatpush1.msra.mxu0 0.0
      %4250 = vmatprep.subr.mxu0 0.0
      %4251 = vmatpush1.msra.mxu0 0.0
      %4252 = vmatprep.subr.mxu0 0.0
      %4253 = vmatpush1.msra.mxu0 0.0
      %4254 = vmatprep.subr.mxu0 0.0
      %4255 = vmatpush1.msra.mxu0 0.0
      %4256 = vmatprep.subr.mxu0 0.0
      %4257 = vmatpush1.msra.mxu0 0.0
      %4258 = vmatprep.mubr.f32.mxu0 0.0
      %4259 = vmatmul.mubr.f32.gmra.mrb[0].mxu0 %v4189
      %v4260 = vpop.f32.mrb[0].mxu0
      %v4261 = vadd.f32 0.0, %v4260
      %v4262 = vpop.f32.mrb[0].mxu0
      %4263 = vmatprep.mubr.f32.mxu0 0.0
      %4264 = vmatmul.mubr.f32.gmra.mrb[0].mxu0 %v4192
      %v4265 = vpop.f32.mrb[0].mxu0
      %v4266 = vadd.f32 0.0, %v4265
      %v4267 = vpop.f32.mrb[0].mxu0
      %4268 = vdwg.mxu0
      %v4270 = vsel %vm794, %v4182, 0
      %v4273 = vsel %vm794, %v4183, 0
      %4275 = vmatprep.subr.mxu0 0.0
      %4276 = vmatpush1.msra.mxu0 %v4132
      %4277 = vmatprep.subr.mxu0 0.0
      %4278 = vmatpush1.msra.mxu0 %v4137
      %4279 = vmatprep.subr.mxu0 0.0
      %4280 = vmatpush1.msra.mxu0 %v4142
      %4281 = vmatprep.subr.mxu0 0.0
      %4282 = vmatpush1.msra.mxu0 %v4147
      %4283 = vmatprep.subr.mxu0 0.0
      %4284 = vmatpush1.msra.mxu0 %v4152
      %4285 = vmatprep.subr.mxu0 0.0
      %4286 = vmatpush1.msra.mxu0 %v4157
      %4287 = vmatprep.subr.mxu0 0.0
      %4288 = vmatpush1.msra.mxu0 %v4162
      %4289 = vmatprep.subr.mxu0 0.0
      %4290 = vmatpush1.msra.mxu0 %v4167
      %4291 = vmatprep.subr.mxu0 0.0
      %4292 = vmatpush1.msra.mxu0 0.0
      %4293 = vmatprep.subr.mxu0 0.0
      %4294 = vmatpush1.msra.mxu0 0.0
      %4295 = vmatprep.subr.mxu0 0.0
      %4296 = vmatpush1.msra.mxu0 0.0
      %4297 = vmatprep.subr.mxu0 0.0
      %4298 = vmatpush1.msra.mxu0 0.0
      %4299 = vmatprep.subr.mxu0 0.0
      %4300 = vmatpush1.msra.mxu0 0.0
      %4301 = vmatprep.subr.mxu0 0.0
      %4302 = vmatpush1.msra.mxu0 0.0
      %4303 = vmatprep.subr.mxu0 0.0
      %4304 = vmatpush1.msra.mxu0 0.0
      %4305 = vmatprep.subr.mxu0 0.0
      %4306 = vmatpush1.msra.mxu0 0.0
      %4307 = vmatprep.subr.mxu0 0.0
      %4308 = vmatpush1.msra.mxu0 0.0
      %4309 = vmatprep.subr.mxu0 0.0
      %4310 = vmatpush1.msra.mxu0 0.0
      %4311 = vmatprep.subr.mxu0 0.0
      %4312 = vmatpush1.msra.mxu0 0.0
      %4313 = vmatprep.subr.mxu0 0.0
      %4314 = vmatpush1.msra.mxu0 0.0
      %4315 = vmatprep.subr.mxu0 0.0
      %4316 = vmatpush1.msra.mxu0 0.0
      %4317 = vmatprep.subr.mxu0 0.0
      %4318 = vmatpush1.msra.mxu0 0.0
      %4319 = vmatprep.subr.mxu0 0.0
      %4320 = vmatpush1.msra.mxu0 0.0
      %4321 = vmatprep.subr.mxu0 0.0
      %4322 = vmatpush1.msra.mxu0 0.0
      %4323 = vmatprep.subr.mxu0 0.0
      %4324 = vmatpush1.msra.mxu0 0.0
      %4325 = vmatprep.subr.mxu0 0.0
      %4326 = vmatpush1.msra.mxu0 0.0
      %4327 = vmatprep.subr.mxu0 0.0
      %4328 = vmatpush1.msra.mxu0 0.0
      %4329 = vmatprep.subr.mxu0 0.0
      %4330 = vmatpush1.msra.mxu0 0.0
      %4331 = vmatprep.subr.mxu0 0.0
      %4332 = vmatpush1.msra.mxu0 0.0
      %4333 = vmatprep.subr.mxu0 0.0
      %4334 = vmatpush1.msra.mxu0 0.0
      %4335 = vmatprep.subr.mxu0 0.0
      %4336 = vmatpush1.msra.mxu0 0.0
      %4337 = vmatprep.subr.mxu0 0.0
      %4338 = vmatpush1.msra.mxu0 0.0
      %4339 = vmatprep.mubr.f32.mxu0 0.0
      %4340 = vmatmul.mubr.f32.gmra.mrb[0].mxu0 %v4270
      %v4341 = vpop.f32.mrb[0].mxu0
      %v4342 = vadd.f32 0.0, %v4341
      %v4343 = vpop.f32.mrb[0].mxu0
      %4344 = vmatprep.mubr.f32.mxu0 0.0
      %4345 = vmatmul.mubr.f32.gmra.mrb[0].mxu0 %v4273
      %v4346 = vpop.f32.mrb[0].mxu0
      %v4347 = vadd.f32 0.0, %v4346
      %v4348 = vpop.f32.mrb[0].mxu0
      %4349 = vdwg.mxu0
      %v4351 = vsel %vm340, %v4342, 0
      %v4354 = vsel %vm340, %v4347, 0
      %4356 = vmatprep.subr.mxu0 0.0
      %4357 = vmatpush1.msra.mxu0 %v4173
      %4358 = vmatprep.subr.mxu0 0.0
      %4359 = vmatpush1.msra.mxu0 %v4174
      %4360 = vmatprep.subr.mxu0 0.0
      %4361 = vmatpush1.msra.mxu0 0.0
      %4362 = vmatprep.subr.mxu0 0.0
      %4363 = vmatpush1.msra.mxu0 0.0
      %4364 = vmatprep.subr.mxu0 0.0
      %4365 = vmatpush1.msra.mxu0 0.0
      %4366 = vmatprep.subr.mxu0 0.0
      %4367 = vmatpush1.msra.mxu0 0.0
      %4368 = vmatprep.subr.mxu0 0.0
      %4369 = vmatpush1.msra.mxu0 0.0
      %4370 = vmatprep.subr.mxu0 0.0
      %4371 = vmatpush1.msra.mxu0 0.0
      %4372 = vmatprep.subr.mxu0 0.0
      %4373 = vmatpush1.msra.mxu0 0.0
      %4374 = vmatprep.subr.mxu0 0.0
      %4375 = vmatpush1.msra.mxu0 0.0
      %4376 = vmatprep.subr.mxu0 0.0
      %4377 = vmatpush1.msra.mxu0 0.0
      %4378 = vmatprep.subr.mxu0 0.0
      %4379 = vmatpush1.msra.mxu0 0.0
      %4380 = vmatprep.subr.mxu0 0.0
      %4381 = vmatpush1.msra.mxu0 0.0
      %4382 = vmatprep.subr.mxu0 0.0
      %4383 = vmatpush1.msra.mxu0 0.0
      %4384 = vmatprep.subr.mxu0 0.0
      %4385 = vmatpush1.msra.mxu0 0.0
      %4386 = vmatprep.subr.mxu0 0.0
      %4387 = vmatpush1.msra.mxu0 0.0
      %4388 = vmatprep.subr.mxu0 0.0
      %4389 = vmatpush1.msra.mxu0 0.0
      %4390 = vmatprep.subr.mxu0 0.0
      %4391 = vmatpush1.msra.mxu0 0.0
      %4392 = vmatprep.subr.mxu0 0.0
      %4393 = vmatpush1.msra.mxu0 0.0
      %4394 = vmatprep.subr.mxu0 0.0
      %4395 = vmatpush1.msra.mxu0 0.0
      %4396 = vmatprep.subr.mxu0 0.0
      %4397 = vmatpush1.msra.mxu0 0.0
      %4398 = vmatprep.subr.mxu0 0.0
      %4399 = vmatpush1.msra.mxu0 0.0
      %4400 = vmatprep.subr.mxu0 0.0
      %4401 = vmatpush1.msra.mxu0 0.0
      %4402 = vmatprep.subr.mxu0 0.0
      %4403 = vmatpush1.msra.mxu0 0.0
      %4404 = vmatprep.subr.mxu0 0.0
      %4405 = vmatpush1.msra.mxu0 0.0
      %4406 = vmatprep.subr.mxu0 0.0
      %4407 = vmatpush1.msra.mxu0 0.0
      %4408 = vmatprep.subr.mxu0 0.0
      %4409 = vmatpush1.msra.mxu0 0.0
      %4410 = vmatprep.subr.mxu0 0.0
      %4411 = vmatpush1.msra.mxu0 0.0
      %4412 = vmatprep.subr.mxu0 0.0
      %4413 = vmatpush1.msra.mxu0 0.0
      %4414 = vmatprep.subr.mxu0 0.0
      %4415 = vmatpush1.msra.mxu0 0.0
      %4416 = vmatprep.subr.mxu0 0.0
      %4417 = vmatpush1.msra.mxu0 0.0
      %4418 = vmatprep.subr.mxu0 0.0
      %4419 = vmatpush1.msra.mxu0 0.0
      %4420 = vmatprep.mubr.f32.mxu0 0.0
      %4421 = vmatmul.mubr.f32.gmra.mrb[0].mxu0 %v4351
      %v4422 = vpop.f32.mrb[0].mxu0
      %v4423 = vadd.f32 0.0, %v4422
      %v4424 = vpop.f32.mrb[0].mxu0
      %4425 = vmatprep.mubr.f32.mxu0 0.0
      %4426 = vmatmul.mubr.f32.gmra.mrb[0].mxu0 %v4354
      %v4427 = vpop.f32.mrb[0].mxu0
      %v4428 = vadd.f32 0.0, %v4427
      %v4429 = vpop.f32.mrb[0].mxu0
      %4430 = vdwg.mxu0
      %v4432 = vsel %vm340, %v4261, 0
      %v4435 = vsel %vm340, %v4266, 0
      %4437 = vmatprep.subr.mxu0 0.0
      %4438 = vmatpush1.msra.mxu0 %v4171
      %4439 = vmatprep.subr.mxu0 0.0
      %4440 = vmatpush1.msra.mxu0 %v4172
      %4441 = vmatprep.subr.mxu0 0.0
      %4442 = vmatpush1.msra.mxu0 0.0
      %4443 = vmatprep.subr.mxu0 0.0
      %4444 = vmatpush1.msra.mxu0 0.0
      %4445 = vmatprep.subr.mxu0 0.0
      %4446 = vmatpush1.msra.mxu0 0.0
      %4447 = vmatprep.subr.mxu0 0.0
      %4448 = vmatpush1.msra.mxu0 0.0
      %4449 = vmatprep.subr.mxu0 0.0
      %4450 = vmatpush1.msra.mxu0 0.0
      %4451 = vmatprep.subr.mxu0 0.0
      %4452 = vmatpush1.msra.mxu0 0.0
      %4453 = vmatprep.subr.mxu0 0.0
      %4454 = vmatpush1.msra.mxu0 0.0
      %4455 = vmatprep.subr.mxu0 0.0
      %4456 = vmatpush1.msra.mxu0 0.0
      %4457 = vmatprep.subr.mxu0 0.0
      %4458 = vmatpush1.msra.mxu0 0.0
      %4459 = vmatprep.subr.mxu0 0.0
      %4460 = vmatpush1.msra.mxu0 0.0
      %4461 = vmatprep.subr.mxu0 0.0
      %4462 = vmatpush1.msra.mxu0 0.0
      %4463 = vmatprep.subr.mxu0 0.0
      %4464 = vmatpush1.msra.mxu0 0.0
      %4465 = vmatprep.subr.mxu0 0.0
      %4466 = vmatpush1.msra.mxu0 0.0
      %4467 = vmatprep.subr.mxu0 0.0
      %4468 = vmatpush1.msra.mxu0 0.0
      %4469 = vmatprep.subr.mxu0 0.0
      %4470 = vmatpush1.msra.mxu0 0.0
      %4471 = vmatprep.subr.mxu0 0.0
      %4472 = vmatpush1.msra.mxu0 0.0
      %4473 = vmatprep.subr.mxu0 0.0
      %4474 = vmatpush1.msra.mxu0 0.0
      %4475 = vmatprep.subr.mxu0 0.0
      %4476 = vmatpush1.msra.mxu0 0.0
      %4477 = vmatprep.subr.mxu0 0.0
      %4478 = vmatpush1.msra.mxu0 0.0
      %4479 = vmatprep.subr.mxu0 0.0
      %4480 = vmatpush1.msra.mxu0 0.0
      %4481 = vmatprep.subr.mxu0 0.0
      %4482 = vmatpush1.msra.mxu0 0.0
      %4483 = vmatprep.subr.mxu0 0.0
      %4484 = vmatpush1.msra.mxu0 0.0
      %4485 = vmatprep.subr.mxu0 0.0
      %4486 = vmatpush1.msra.mxu0 0.0
      %4487 = vmatprep.subr.mxu0 0.0
      %4488 = vmatpush1.msra.mxu0 0.0
      %4489 = vmatprep.subr.mxu0 0.0
      %4490 = vmatpush1.msra.mxu0 0.0
      %4491 = vmatprep.subr.mxu0 0.0
      %4492 = vmatpush1.msra.mxu0 0.0
      %4493 = vmatprep.subr.mxu0 0.0
      %4494 = vmatpush1.msra.mxu0 0.0
      %4495 = vmatprep.subr.mxu0 0.0
      %4496 = vmatpush1.msra.mxu0 0.0
      %4497 = vmatprep.subr.mxu0 0.0
      %4498 = vmatpush1.msra.mxu0 0.0
      %4499 = vmatprep.subr.mxu0 0.0
      %4500 = vmatpush1.msra.mxu0 0.0
      %4501 = vmatprep.mubr.f32.mxu0 0.0
      %4502 = vmatmul.mubr.f32.gmra.mrb[0].mxu0 %v4432
      %v4503 = vpop.f32.mrb[0].mxu0
      %v4504 = vadd.f32 %v4423, %v4503
      %v4505 = vpop.f32.mrb[0].mxu0
      %4506 = vmatprep.mubr.f32.mxu0 0.0
      %4507 = vmatmul.mubr.f32.gmra.mrb[0].mxu0 %v4435
      %v4508 = vpop.f32.mrb[0].mxu0
      %v4509 = vadd.f32 %v4428, %v4508
      %v4510 = vpop.f32.mrb[0].mxu0
      %4511 = vdwg.mxu0
      %v4513 = vsel %vm794, %v4184, 0
      %v4516 = vsel %vm794, %v4185, 0
      %4518 = vmatprep.subr.mxu0 0.0
      %4519 = vmatpush1.msra.mxu0 %v4132
      %4520 = vmatprep.subr.mxu0 0.0
      %4521 = vmatpush1.msra.mxu0 %v4137
      %4522 = vmatprep.subr.mxu0 0.0
      %4523 = vmatpush1.msra.mxu0 %v4142
      %4524 = vmatprep.subr.mxu0 0.0
      %4525 = vmatpush1.msra.mxu0 %v4147
      %4526 = vmatprep.subr.mxu0 0.0
      %4527 = vmatpush1.msra.mxu0 %v4152
      %4528 = vmatprep.subr.mxu0 0.0
      %4529 = vmatpush1.msra.mxu0 %v4157
      %4530 = vmatprep.subr.mxu0 0.0
      %4531 = vmatpush1.msra.mxu0 %v4162
      %4532 = vmatprep.subr.mxu0 0.0
      %4533 = vmatpush1.msra.mxu0 %v4167
      %4534 = vmatprep.subr.mxu0 0.0
      %4535 = vmatpush1.msra.mxu0 0.0
      %4536 = vmatprep.subr.mxu0 0.0
      %4537 = vmatpush1.msra.mxu0 0.0
      %4538 = vmatprep.subr.mxu0 0.0
      %4539 = vmatpush1.msra.mxu0 0.0
      %4540 = vmatprep.subr.mxu0 0.0
      %4541 = vmatpush1.msra.mxu0 0.0
      %4542 = vmatprep.subr.mxu0 0.0
      %4543 = vmatpush1.msra.mxu0 0.0
      %4544 = vmatprep.subr.mxu0 0.0
      %4545 = vmatpush1.msra.mxu0 0.0
      %4546 = vmatprep.subr.mxu0 0.0
      %4547 = vmatpush1.msra.mxu0 0.0
      %4548 = vmatprep.subr.mxu0 0.0
      %4549 = vmatpush1.msra.mxu0 0.0
      %4550 = vmatprep.subr.mxu0 0.0
      %4551 = vmatpush1.msra.mxu0 0.0
      %4552 = vmatprep.subr.mxu0 0.0
      %4553 = vmatpush1.msra.mxu0 0.0
      %4554 = vmatprep.subr.mxu0 0.0
      %4555 = vmatpush1.msra.mxu0 0.0
      %4556 = vmatprep.subr.mxu0 0.0
      %4557 = vmatpush1.msra.mxu0 0.0
      %4558 = vmatprep.subr.mxu0 0.0
      %4559 = vmatpush1.msra.mxu0 0.0
      %4560 = vmatprep.subr.mxu0 0.0
      %4561 = vmatpush1.msra.mxu0 0.0
      %4562 = vmatprep.subr.mxu0 0.0
      %4563 = vmatpush1.msra.mxu0 0.0
      %4564 = vmatprep.subr.mxu0 0.0
      %4565 = vmatpush1.msra.mxu0 0.0
      %4566 = vmatprep.subr.mxu0 0.0
      %4567 = vmatpush1.msra.mxu0 0.0
      %4568 = vmatprep.subr.mxu0 0.0
      %4569 = vmatpush1.msra.mxu0 0.0
      %4570 = vmatprep.subr.mxu0 0.0
      %4571 = vmatpush1.msra.mxu0 0.0
      %4572 = vmatprep.subr.mxu0 0.0
      %4573 = vmatpush1.msra.mxu0 0.0
      %4574 = vmatprep.subr.mxu0 0.0
      %4575 = vmatpush1.msra.mxu0 0.0
      %4576 = vmatprep.subr.mxu0 0.0
      %4577 = vmatpush1.msra.mxu0 0.0
      %4578 = vmatprep.subr.mxu0 0.0
      %4579 = vmatpush1.msra.mxu0 0.0
      %4580 = vmatprep.subr.mxu0 0.0
      %4581 = vmatpush1.msra.mxu0 0.0
      %4582 = vmatprep.mubr.f32.mxu0 0.0
      %4583 = vmatmul.mubr.f32.gmra.mrb[0].mxu0 %v4513
      %v4584 = vpop.f32.mrb[0].mxu0
      %v4585 = vadd.f32 0.0, %v4584
      %v4586 = vpop.f32.mrb[0].mxu0
      %4587 = vmatprep.mubr.f32.mxu0 0.0
      %4588 = vmatmul.mubr.f32.gmra.mrb[0].mxu0 %v4516
      %v4589 = vpop.f32.mrb[0].mxu0
      %v4590 = vadd.f32 0.0, %v4589
      %v4591 = vpop.f32.mrb[0].mxu0
      %4592 = vdwg.mxu0
      %v4594 = vsel %vm340, %v4585, 0
      %v4597 = vsel %vm340, %v4590, 0
      %4599 = vmatprep.subr.mxu0 0.0
      %4600 = vmatpush1.msra.mxu0 %v4175
      %4601 = vmatprep.subr.mxu0 0.0
      %4602 = vmatpush1.msra.mxu0 %v4176
      %4603 = vmatprep.subr.mxu0 0.0
      %4604 = vmatpush1.msra.mxu0 0.0
      %4605 = vmatprep.subr.mxu0 0.0
      %4606 = vmatpush1.msra.mxu0 0.0
      %4607 = vmatprep.subr.mxu0 0.0
      %4608 = vmatpush1.msra.mxu0 0.0
      %4609 = vmatprep.subr.mxu0 0.0
      %4610 = vmatpush1.msra.mxu0 0.0
      %4611 = vmatprep.subr.mxu0 0.0
      %4612 = vmatpush1.msra.mxu0 0.0
      %4613 = vmatprep.subr.mxu0 0.0
      %4614 = vmatpush1.msra.mxu0 0.0
      %4615 = vmatprep.subr.mxu0 0.0
      %4616 = vmatpush1.msra.mxu0 0.0
      %4617 = vmatprep.subr.mxu0 0.0
      %4618 = vmatpush1.msra.mxu0 0.0
      %4619 = vmatprep.subr.mxu0 0.0
      %4620 = vmatpush1.msra.mxu0 0.0
      %4621 = vmatprep.subr.mxu0 0.0
      %4622 = vmatpush1.msra.mxu0 0.0
      %4623 = vmatprep.subr.mxu0 0.0
      %4624 = vmatpush1.msra.mxu0 0.0
      %4625 = vmatprep.subr.mxu0 0.0
      %4626 = vmatpush1.msra.mxu0 0.0
      %4627 = vmatprep.subr.mxu0 0.0
      %4628 = vmatpush1.msra.mxu0 0.0
      %4629 = vmatprep.subr.mxu0 0.0
      %4630 = vmatpush1.msra.mxu0 0.0
      %4631 = vmatprep.subr.mxu0 0.0
      %4632 = vmatpush1.msra.mxu0 0.0
      %4633 = vmatprep.subr.mxu0 0.0
      %4634 = vmatpush1.msra.mxu0 0.0
      %4635 = vmatprep.subr.mxu0 0.0
      %4636 = vmatpush1.msra.mxu0 0.0
      %4637 = vmatprep.subr.mxu0 0.0
      %4638 = vmatpush1.msra.mxu0 0.0
      %4639 = vmatprep.subr.mxu0 0.0
      %4640 = vmatpush1.msra.mxu0 0.0
      %4641 = vmatprep.subr.mxu0 0.0
      %4642 = vmatpush1.msra.mxu0 0.0
      %4643 = vmatprep.subr.mxu0 0.0
      %4644 = vmatpush1.msra.mxu0 0.0
      %4645 = vmatprep.subr.mxu0 0.0
      %4646 = vmatpush1.msra.mxu0 0.0
      %4647 = vmatprep.subr.mxu0 0.0
      %4648 = vmatpush1.msra.mxu0 0.0
      %4649 = vmatprep.subr.mxu0 0.0
      %4650 = vmatpush1.msra.mxu0 0.0
      %4651 = vmatprep.subr.mxu0 0.0
      %4652 = vmatpush1.msra.mxu0 0.0
      %4653 = vmatprep.subr.mxu0 0.0
      %4654 = vmatpush1.msra.mxu0 0.0
      %4655 = vmatprep.subr.mxu0 0.0
      %4656 = vmatpush1.msra.mxu0 0.0
      %4657 = vmatprep.subr.mxu0 0.0
      %4658 = vmatpush1.msra.mxu0 0.0
      %4659 = vmatprep.subr.mxu0 0.0
      %4660 = vmatpush1.msra.mxu0 0.0
      %4661 = vmatprep.subr.mxu0 0.0
      %4662 = vmatpush1.msra.mxu0 0.0
      %4663 = vmatprep.mubr.f32.mxu0 0.0
      %4664 = vmatmul.mubr.f32.gmra.mrb[0].mxu0 %v4594
      %v4665 = vpop.f32.mrb[0].mxu0
      %v4666 = vadd.f32 0.0, %v4665
      %v4667 = vpop.f32.mrb[0].mxu0
      %4668 = vmatprep.mubr.f32.mxu0 0.0
      %4669 = vmatmul.mubr.f32.gmra.mrb[0].mxu0 %v4597
      %v4670 = vpop.f32.mrb[0].mxu0
      %v4671 = vadd.f32 0.0, %v4670
      %v4672 = vpop.f32.mrb[0].mxu0
      %4673 = vdwg.mxu0
      %v4674 = vadd.f32 %v4504, %v4666
      %v4675 = vadd.f32 %v4509, %v4671
      %v4677 = vsel %vm794, %v4186, 0
      %v4680 = vsel %vm794, %v4187, 0
      %4682 = vmatprep.subr.mxu0 0.0
      %4683 = vmatpush1.msra.mxu0 %v4132
      %4684 = vmatprep.subr.mxu0 0.0
      %4685 = vmatpush1.msra.mxu0 %v4137
      %4686 = vmatprep.subr.mxu0 0.0
      %4687 = vmatpush1.msra.mxu0 %v4142
      %4688 = vmatprep.subr.mxu0 0.0
      %4689 = vmatpush1.msra.mxu0 %v4147
      %4690 = vmatprep.subr.mxu0 0.0
      %4691 = vmatpush1.msra.mxu0 %v4152
      %4692 = vmatprep.subr.mxu0 0.0
      %4693 = vmatpush1.msra.mxu0 %v4157
      %4694 = vmatprep.subr.mxu0 0.0
      %4695 = vmatpush1.msra.mxu0 %v4162
      %4696 = vmatprep.subr.mxu0 0.0
      %4697 = vmatpush1.msra.mxu0 %v4167
      %4698 = vmatprep.subr.mxu0 0.0
      %4699 = vmatpush1.msra.mxu0 0.0
      %4700 = vmatprep.subr.mxu0 0.0
      %4701 = vmatpush1.msra.mxu0 0.0
      %4702 = vmatprep.subr.mxu0 0.0
      %4703 = vmatpush1.msra.mxu0 0.0
      %4704 = vmatprep.subr.mxu0 0.0
      %4705 = vmatpush1.msra.mxu0 0.0
      %4706 = vmatprep.subr.mxu0 0.0
      %4707 = vmatpush1.msra.mxu0 0.0
      %4708 = vmatprep.subr.mxu0 0.0
      %4709 = vmatpush1.msra.mxu0 0.0
      %4710 = vmatprep.subr.mxu0 0.0
      %4711 = vmatpush1.msra.mxu0 0.0
      %4712 = vmatprep.subr.mxu0 0.0
      %4713 = vmatpush1.msra.mxu0 0.0
      %4714 = vmatprep.subr.mxu0 0.0
      %4715 = vmatpush1.msra.mxu0 0.0
      %4716 = vmatprep.subr.mxu0 0.0
      %4717 = vmatpush1.msra.mxu0 0.0
      %4718 = vmatprep.subr.mxu0 0.0
      %4719 = vmatpush1.msra.mxu0 0.0
      %4720 = vmatprep.subr.mxu0 0.0
      %4721 = vmatpush1.msra.mxu0 0.0
      %4722 = vmatprep.subr.mxu0 0.0
      %4723 = vmatpush1.msra.mxu0 0.0
      %4724 = vmatprep.subr.mxu0 0.0
      %4725 = vmatpush1.msra.mxu0 0.0
      %4726 = vmatprep.subr.mxu0 0.0
      %4727 = vmatpush1.msra.mxu0 0.0
      %4728 = vmatprep.subr.mxu0 0.0
      %4729 = vmatpush1.msra.mxu0 0.0
      %4730 = vmatprep.subr.mxu0 0.0
      %4731 = vmatpush1.msra.mxu0 0.0
      %4732 = vmatprep.subr.mxu0 0.0
      %4733 = vmatpush1.msra.mxu0 0.0
      %4734 = vmatprep.subr.mxu0 0.0
      %4735 = vmatpush1.msra.mxu0 0.0
      %4736 = vmatprep.subr.mxu0 0.0
      %4737 = vmatpush1.msra.mxu0 0.0
      %4738 = vmatprep.subr.mxu0 0.0
      %4739 = vmatpush1.msra.mxu0 0.0
      %4740 = vmatprep.subr.mxu0 0.0
      %4741 = vmatpush1.msra.mxu0 0.0
      %4742 = vmatprep.subr.mxu0 0.0
      %4743 = vmatpush1.msra.mxu0 0.0
      %4744 = vmatprep.subr.mxu0 0.0
      %4745 = vmatpush1.msra.mxu0 0.0
      %4746 = vmatprep.mubr.f32.mxu0 0.0
      %4747 = vmatmul.mubr.f32.gmra.mrb[0].mxu0 %v4677
      %v4748 = vpop.f32.mrb[0].mxu0
      %v4749 = vadd.f32 0.0, %v4748
      %v4750 = vpop.f32.mrb[0].mxu0
      %4751 = vmatprep.mubr.f32.mxu0 0.0
      %4752 = vmatmul.mubr.f32.gmra.mrb[0].mxu0 %v4680
      %v4753 = vpop.f32.mrb[0].mxu0
      %v4754 = vadd.f32 0.0, %v4753
      %v4755 = vpop.f32.mrb[0].mxu0
      %4756 = vdwg.mxu0
      %v4758 = vsel %vm340, %v4749, 0
      %v4761 = vsel %vm340, %v4754, 0
      %4763 = vmatprep.subr.mxu0 0.0
      %4764 = vmatpush1.msra.mxu0 %v4177
      %4765 = vmatprep.subr.mxu0 0.0
      %4766 = vmatpush1.msra.mxu0 %v4178
      %4767 = vmatprep.subr.mxu0 0.0
      %4768 = vmatpush1.msra.mxu0 0.0
      %4769 = vmatprep.subr.mxu0 0.0
      %4770 = vmatpush1.msra.mxu0 0.0
      %4771 = vmatprep.subr.mxu0 0.0
      %4772 = vmatpush1.msra.mxu0 0.0
      %4773 = vmatprep.subr.mxu0 0.0
      %4774 = vmatpush1.msra.mxu0 0.0
      %4775 = vmatprep.subr.mxu0 0.0
      %4776 = vmatpush1.msra.mxu0 0.0
      %4777 = vmatprep.subr.mxu0 0.0
      %4778 = vmatpush1.msra.mxu0 0.0
      %4779 = vmatprep.subr.mxu0 0.0
      %4780 = vmatpush1.msra.mxu0 0.0
      %4781 = vmatprep.subr.mxu0 0.0
      %4782 = vmatpush1.msra.mxu0 0.0
      %4783 = vmatprep.subr.mxu0 0.0
      %4784 = vmatpush1.msra.mxu0 0.0
      %4785 = vmatprep.subr.mxu0 0.0
      %4786 = vmatpush1.msra.mxu0 0.0
      %4787 = vmatprep.subr.mxu0 0.0
      %4788 = vmatpush1.msra.mxu0 0.0
      %4789 = vmatprep.subr.mxu0 0.0
      %4790 = vmatpush1.msra.mxu0 0.0
      %4791 = vmatprep.subr.mxu0 0.0
      %4792 = vmatpush1.msra.mxu0 0.0
      %4793 = vmatprep.subr.mxu0 0.0
      %4794 = vmatpush1.msra.mxu0 0.0
      %4795 = vmatprep.subr.mxu0 0.0
      %4796 = vmatpush1.msra.mxu0 0.0
      %4797 = vmatprep.subr.mxu0 0.0
      %4798 = vmatpush1.msra.mxu0 0.0
      %4799 = vmatprep.subr.mxu0 0.0
      %4800 = vmatpush1.msra.mxu0 0.0
      %4801 = vmatprep.subr.mxu0 0.0
      %4802 = vmatpush1.msra.mxu0 0.0
      %4803 = vmatprep.subr.mxu0 0.0
      %4804 = vmatpush1.msra.mxu0 0.0
      %4805 = vmatprep.subr.mxu0 0.0
      %4806 = vmatpush1.msra.mxu0 0.0
      %4807 = vmatprep.subr.mxu0 0.0
      %4808 = vmatpush1.msra.mxu0 0.0
      %4809 = vmatprep.subr.mxu0 0.0
      %4810 = vmatpush1.msra.mxu0 0.0
      %4811 = vmatprep.subr.mxu0 0.0
      %4812 = vmatpush1.msra.mxu0 0.0
      %4813 = vmatprep.subr.mxu0 0.0
      %4814 = vmatpush1.msra.mxu0 0.0
      %4815 = vmatprep.subr.mxu0 0.0
      %4816 = vmatpush1.msra.mxu0 0.0
      %4817 = vmatprep.subr.mxu0 0.0
      %4818 = vmatpush1.msra.mxu0 0.0
      %4819 = vmatprep.subr.mxu0 0.0
      %4820 = vmatpush1.msra.mxu0 0.0
      %4821 = vmatprep.subr.mxu0 0.0
      %4822 = vmatpush1.msra.mxu0 0.0
      %4823 = vmatprep.subr.mxu0 0.0
      %4824 = vmatpush1.msra.mxu0 0.0
      %4825 = vmatprep.subr.mxu0 0.0
      %4826 = vmatpush1.msra.mxu0 0.0
      %4827 = vmatprep.mubr.f32.mxu0 0.0
      %4828 = vmatmul.mubr.f32.gmra.mrb[0].mxu0 %v4758
      %v4829 = vpop.f32.mrb[0].mxu0
      %v4830 = vadd.f32 0.0, %v4829
      %v4831 = vpop.f32.mrb[0].mxu0
      %4832 = vmatprep.mubr.f32.mxu0 0.0
      %4833 = vmatmul.mubr.f32.gmra.mrb[0].mxu0 %v4761
      %v4834 = vpop.f32.mrb[0].mxu0
      %v4835 = vadd.f32 0.0, %v4834
      %v4836 = vpop.f32.mrb[0].mxu0
      %4837 = vdwg.mxu0
      %v4838 = vadd.f32 %v4674, %v4830
      %v4839 = vadd.f32 %v4675, %v4835
      %s4840 = scalar_lea.vmem %s6, 2
      %v4841 = vld [vmem:[%s4840] sm:$0x1]
      %v4843 = vlaneseq
      %v4844 = vshrl.u32 %v4843, 7
      %v4845 = vsub.s32 0, %v4844
      %v4846 = vrot.slane %v4841, %v4845
      %v4848 = vadd.f32 %v4838, %v4846
      %v4849 = vadd.f32 %v4839, %v4846
      %v4850 = vadd.f32 %v3645, %v4848
      %v4851 = vadd.f32 %v3646, %v4849
      %s4852 = scalar_lea.vmem %s6, 20
      %v4853 = vld [vmem:[%s4852] sm:$0x1]
      %s4854 = scalar_lea.vmem %s6, 21
      %v4855 = vld [vmem:[%s4854] sm:$0x1]
      %v4856 = vsel %vm794, %v4850, 0.0
      %4857 = vadd.xlane.f32.xlu0 %v4856
      %v4858 = vpop.xlane.xlu0 %4857
      %v4859 = vsel %vm794, %v4851, 0.0
      %4860 = vadd.xlane.f32.xlu0 %v4859
      %v4861 = vpop.xlane.xlu0 %4860
      %v4862 = vmul.f32 %v4858, %v1647
      %v4863 = vmul.f32 %v4861, %v1647
      %v4864 = vsub.f32 %v4850, %v4862
      %v4865 = vsub.f32 %v4851, %v4863
      %v4866 = vmul.f32 %v4864, %v4864
      %v4867 = vmul.f32 %v4865, %v4865
      %v4868 = vsel %vm794, %v4866, 0.0
      %4869 = vadd.xlane.f32.xlu0 %v4868
      %v4870 = vpop.xlane.xlu0 %4869
      %v4871 = vsel %vm794, %v4867, 0.0
      %4872 = vadd.xlane.f32.xlu0 %v4871
      %v4873 = vpop.xlane.xlu0 %4872
      %v4874 = vmul.f32 %v4870, %v1647
      %v4875 = vmul.f32 %v4873, %v1647
      %v4876 = vadd.f32 %v4874, 1e-05
      %v4877 = vadd.f32 %v4875, 1e-05
      %v4878 = vrsqrt.pop %v4876
      %v4879 = vrsqrt.pop %v4877
      %v4880 = vmul.f32 %v4864, %v4878
      %v4881 = vmul.f32 %v4865, %v4879
      %v4883 = vlaneseq
      %v4884 = vshrl.u32 %v4883, 7
      %v4885 = vsub.s32 0, %v4884
      %v4886 = vrot.slane %v4853, %v4885
      %v4888 = vmul.f32 %v4880, %v4886
      %v4889 = vmul.f32 %v4881, %v4886
      %v4891 = vlaneseq
      %v4892 = vshrl.u32 %v4891, 7
      %v4893 = vsub.s32 0, %v4892
      %v4894 = vrot.slane %v4855, %v4893
      %v4896 = vadd.f32 %v4888, %v4894
      %v4897 = vadd.f32 %v4889, %v4894
      %s4898 = scalar_lea.vmem %s4, 432
      %v4899 = vld [vmem:[%s4898] sm:$0xff]
      %v4900 = vld [vmem:[%s4898 + $0x8] sm:$0xff]
      %v4901 = vld [vmem:[%s4898 + $0x10] sm:$0xff]
      %v4902 = vld [vmem:[%s4898 + $0x18] sm:$0xff]
      %v4903 = vld [vmem:[%s4898 + $0x20] sm:$0xff]
      %v4904 = vld [vmem:[%s4898 + $0x28] sm:$0xff]
      %v4905 = vld [vmem:[%s4898 + $0x30] sm:$0xff]
      %v4906 = vld [vmem:[%s4898 + $0x38] sm:$0xff]
      %v4907 = vld [vmem:[%s4898 + $0x40] sm:$0xff]
      %v4908 = vld [vmem:[%s4898 + $0x48] sm:$0xff]
      %v4909 = vld [vmem:[%s4898 + $0x50] sm:$0xff]
      %v4910 = vld [vmem:[%s4898 + $0x58] sm:$0xff]
      %v4911 = vld [vmem:[%s4898 + $0x60] sm:$0xff]
      %v4912 = vld [vmem:[%s4898 + $0x68] sm:$0xff]
      %v4913 = vld [vmem:[%s4898 + $0x70] sm:$0xff]
      %v4914 = vld [vmem:[%s4898 + $0x78] sm:$0xff]
      %v4915 = vld [vmem:[%s4898 + $0x80] sm:$0x1]
      %v4916 = vld [vmem:[%s4898 + $0x88] sm:$0x1]
      %v4917 = vlaneseq
      %v4918 = vshrl.u32 %v4917, 7
      %v4919 = vsub.s32 0, %v4918
      %v4920 = vrot.slane %v4915, %v4919
      %v4922 = vsel %vm794, %v4896, 0
      %v4925 = vsel %vm794, %v4897, 0
      %4927 = vmatprep.subr.mxu0 0.0
      %4928 = vmatpush1.msra.mxu0 %v4899
      %4929 = vmatprep.subr.mxu0 0.0
      %4930 = vmatpush1.msra.mxu0 %v4901
      %4931 = vmatprep.subr.mxu0 0.0
      %4932 = vmatpush1.msra.mxu0 %v4903
      %4933 = vmatprep.subr.mxu0 0.0
      %4934 = vmatpush1.msra.mxu0 %v4905
      %4935 = vmatprep.subr.mxu0 0.0
      %4936 = vmatpush1.msra.mxu0 %v4907
      %4937 = vmatprep.subr.mxu0 0.0
      %4938 = vmatpush1.msra.mxu0 %v4909
      %4939 = vmatprep.subr.mxu0 0.0
      %4940 = vmatpush1.msra.mxu0 %v4911
      %4941 = vmatprep.subr.mxu0 0.0
      %4942 = vmatpush1.msra.mxu0 %v4913
      %4943 = vmatprep.subr.mxu0 0.0
      %4944 = vmatpush1.msra.mxu0 0.0
      %4945 = vmatprep.subr.mxu0 0.0
      %4946 = vmatpush1.msra.mxu0 0.0
      %4947 = vmatprep.subr.mxu0 0.0
      %4948 = vmatpush1.msra.mxu0 0.0
      %4949 = vmatprep.subr.mxu0 0.0
      %4950 = vmatpush1.msra.mxu0 0.0
      %4951 = vmatprep.subr.mxu0 0.0
      %4952 = vmatpush1.msra.mxu0 0.0
      %4953 = vmatprep.subr.mxu0 0.0
      %4954 = vmatpush1.msra.mxu0 0.0
      %4955 = vmatprep.subr.mxu0 0.0
      %4956 = vmatpush1.msra.mxu0 0.0
      %4957 = vmatprep.subr.mxu0 0.0
      %4958 = vmatpush1.msra.mxu0 0.0
      %4959 = vmatprep.subr.mxu0 0.0
      %4960 = vmatpush1.msra.mxu0 0.0
      %4961 = vmatprep.subr.mxu0 0.0
      %4962 = vmatpush1.msra.mxu0 0.0
      %4963 = vmatprep.subr.mxu0 0.0
      %4964 = vmatpush1.msra.mxu0 0.0
      %4965 = vmatprep.subr.mxu0 0.0
      %4966 = vmatpush1.msra.mxu0 0.0
      %4967 = vmatprep.subr.mxu0 0.0
      %4968 = vmatpush1.msra.mxu0 0.0
      %4969 = vmatprep.subr.mxu0 0.0
      %4970 = vmatpush1.msra.mxu0 0.0
      %4971 = vmatprep.subr.mxu0 0.0
      %4972 = vmatpush1.msra.mxu0 0.0
      %4973 = vmatprep.subr.mxu0 0.0
      %4974 = vmatpush1.msra.mxu0 0.0
      %4975 = vmatprep.subr.mxu0 0.0
      %4976 = vmatpush1.msra.mxu0 0.0
      %4977 = vmatprep.subr.mxu0 0.0
      %4978 = vmatpush1.msra.mxu0 0.0
      %4979 = vmatprep.subr.mxu0 0.0
      %4980 = vmatpush1.msra.mxu0 0.0
      %4981 = vmatprep.subr.mxu0 0.0
      %4982 = vmatpush1.msra.mxu0 0.0
      %4983 = vmatprep.subr.mxu0 0.0
      %4984 = vmatpush1.msra.mxu0 0.0
      %4985 = vmatprep.subr.mxu0 0.0
      %4986 = vmatpush1.msra.mxu0 0.0
      %4987 = vmatprep.subr.mxu0 0.0
      %4988 = vmatpush1.msra.mxu0 0.0
      %4989 = vmatprep.subr.mxu0 0.0
      %4990 = vmatpush1.msra.mxu0 0.0
      %4991 = vmatprep.mubr.f32.mxu0 0.0
      %4992 = vmatmul.mubr.f32.gmra.mrb[0].mxu0 %v4922
      %v4993 = vpop.f32.mrb[0].mxu0
      %v4994 = vadd.f32 %v4920, %v4993
      %v4995 = vpop.f32.mrb[0].mxu0
      %4996 = vmatprep.mubr.f32.mxu0 0.0
      %4997 = vmatmul.mubr.f32.gmra.mrb[0].mxu0 %v4925
      %v4998 = vpop.f32.mrb[0].mxu0
      %v4999 = vadd.f32 %v4920, %v4998
      %v5000 = vpop.f32.mrb[0].mxu0
      %5001 = vdwg.mxu0
      %v5002 = vlaneseq
      %v5003 = vshrl.u32 %v5002, 7
      %v5004 = vsub.s32 0, %v5003
      %v5005 = vrot.slane %v4916, %v5004
      %5022 = vrot.lane.b32.xlu0 %v4899, 64
      %v5023 = vpop.permute.xlu0 %5022
      %5024 = vrot.lane.b32.xlu0 %v4900, 64
      %v5025 = vpop.permute.xlu0 %5024
      %5026 = vrot.lane.b32.xlu0 %v4901, 64
      %v5027 = vpop.permute.xlu0 %5026
      %5028 = vrot.lane.b32.xlu0 %v4902, 64
      %v5029 = vpop.permute.xlu0 %5028
      %5030 = vrot.lane.b32.xlu0 %v4903, 64
      %v5031 = vpop.permute.xlu0 %5030
      %5032 = vrot.lane.b32.xlu0 %v4904, 64
      %v5033 = vpop.permute.xlu0 %5032
      %5034 = vrot.lane.b32.xlu0 %v4905, 64
      %v5035 = vpop.permute.xlu0 %5034
      %5036 = vrot.lane.b32.xlu0 %v4906, 64
      %v5037 = vpop.permute.xlu0 %5036
      %5038 = vrot.lane.b32.xlu0 %v4907, 64
      %v5039 = vpop.permute.xlu0 %5038
      %5040 = vrot.lane.b32.xlu0 %v4908, 64
      %v5041 = vpop.permute.xlu0 %5040
      %5042 = vrot.lane.b32.xlu0 %v4909, 64
      %v5043 = vpop.permute.xlu0 %5042
      %5044 = vrot.lane.b32.xlu0 %v4910, 64
      %v5045 = vpop.permute.xlu0 %5044
      %5046 = vrot.lane.b32.xlu0 %v4911, 64
      %v5047 = vpop.permute.xlu0 %5046
      %5048 = vrot.lane.b32.xlu0 %v4912, 64
      %v5049 = vpop.permute.xlu0 %5048
      %5050 = vrot.lane.b32.xlu0 %v4913, 64
      %v5051 = vpop.permute.xlu0 %5050
      %5052 = vrot.lane.b32.xlu0 %v4914, 64
      %v5053 = vpop.permute.xlu0 %5052
      %v5054 = vsel %vm794, %v5023, %v5025
      %v5055 = vsel %vm794, %v5027, %v5029
      %v5056 = vsel %vm794, %v5031, %v5033
      %v5057 = vsel %vm794, %v5035, %v5037
      %v5058 = vsel %vm794, %v5039, %v5041
      %v5059 = vsel %vm794, %v5043, %v5045
      %v5060 = vsel %vm794, %v5047, %v5049
      %v5061 = vsel %vm794, %v5051, %v5053
      %5072 = vrot.lane.b32.xlu0 %v4920, 64
      %v5073 = vpop.permute.xlu0 %5072
      %5074 = vrot.lane.b32.xlu0 %v5005, 64
      %v5075 = vpop.permute.xlu0 %5074
      %v5076 = vsel %vm794, %v5073, %v5075
      %v5079 = vsel %vm794, %v3233, 0
      %v5082 = vsel %vm794, %v3234, 0
      %5084 = vmatprep.subr.mxu0 0.0
      %5085 = vmatpush1.msra.mxu0 %v5054
      %5086 = vmatprep.subr.mxu0 0.0
      %5087 = vmatpush1.msra.mxu0 %v5055
      %5088 = vmatprep.subr.mxu0 0.0
      %5089 = vmatpush1.msra.mxu0 %v5056
      %5090 = vmatprep.subr.mxu0 0.0
      %5091 = vmatpush1.msra.mxu0 %v5057
      %5092 = vmatprep.subr.mxu0 0.0
      %5093 = vmatpush1.msra.mxu0 %v5058
      %5094 = vmatprep.subr.mxu0 0.0
      %5095 = vmatpush1.msra.mxu0 %v5059
      %5096 = vmatprep.subr.mxu0 0.0
      %5097 = vmatpush1.msra.mxu0 %v5060
      %5098 = vmatprep.subr.mxu0 0.0
      %5099 = vmatpush1.msra.mxu0 %v5061
      %5100 = vmatprep.subr.mxu0 0.0
      %5101 = vmatpush1.msra.mxu0 0.0
      %5102 = vmatprep.subr.mxu0 0.0
      %5103 = vmatpush1.msra.mxu0 0.0
      %5104 = vmatprep.subr.mxu0 0.0
      %5105 = vmatpush1.msra.mxu0 0.0
      %5106 = vmatprep.subr.mxu0 0.0
      %5107 = vmatpush1.msra.mxu0 0.0
      %5108 = vmatprep.subr.mxu0 0.0
      %5109 = vmatpush1.msra.mxu0 0.0
      %5110 = vmatprep.subr.mxu0 0.0
      %5111 = vmatpush1.msra.mxu0 0.0
      %5112 = vmatprep.subr.mxu0 0.0
      %5113 = vmatpush1.msra.mxu0 0.0
      %5114 = vmatprep.subr.mxu0 0.0
      %5115 = vmatpush1.msra.mxu0 0.0
      %5116 = vmatprep.subr.mxu0 0.0
      %5117 = vmatpush1.msra.mxu0 0.0
      %5118 = vmatprep.subr.mxu0 0.0
      %5119 = vmatpush1.msra.mxu0 0.0
      %5120 = vmatprep.subr.mxu0 0.0
      %5121 = vmatpush1.msra.mxu0 0.0
      %5122 = vmatprep.subr.mxu0 0.0
      %5123 = vmatpush1.msra.mxu0 0.0
      %5124 = vmatprep.subr.mxu0 0.0
      %5125 = vmatpush1.msra.mxu0 0.0
      %5126 = vmatprep.subr.mxu0 0.0
      %5127 = vmatpush1.msra.mxu0 0.0
      %5128 = vmatprep.subr.mxu0 0.0
      %5129 = vmatpush1.msra.mxu0 0.0
      %5130 = vmatprep.subr.mxu0 0.0
      %5131 = vmatpush1.msra.mxu0 0.0
      %5132 = vmatprep.subr.mxu0 0.0
      %5133 = vmatpush1.msra.mxu0 0.0
      %5134 = vmatprep.subr.mxu0 0.0
      %5135 = vmatpush1.msra.mxu0 0.0
      %5136 = vmatprep.subr.mxu0 0.0
      %5137 = vmatpush1.msra.mxu0 0.0
      %5138 = vmatprep.subr.mxu0 0.0
      %5139 = vmatpush1.msra.mxu0 0.0
      %5140 = vmatprep.subr.mxu0 0.0
      %5141 = vmatpush1.msra.mxu0 0.0
      %5142 = vmatprep.subr.mxu0 0.0
      %5143 = vmatpush1.msra.mxu0 0.0
      %5144 = vmatprep.subr.mxu0 0.0
      %5145 = vmatpush1.msra.mxu0 0.0
      %5146 = vmatprep.subr.mxu0 0.0
      %5147 = vmatpush1.msra.mxu0 0.0
      %5148 = vmatprep.mubr.f32.mxu0 0.0
      %5149 = vmatmul.mubr.f32.gmra.mrb[0].mxu0 %v5079
      %v5150 = vpop.f32.mrb[0].mxu0
      %v5151 = vadd.f32 %v5076, %v5150
      %v5152 = vpop.f32.mrb[0].mxu0
      %5153 = vmatprep.mubr.f32.mxu0 0.0
      %5154 = vmatmul.mubr.f32.gmra.mrb[0].mxu0 %v5082
      %v5155 = vpop.f32.mrb[0].mxu0
      %v5156 = vadd.f32 %v5076, %v5155
      %v5157 = vpop.f32.mrb[0].mxu0
      %5158 = vdwg.mxu0
      %5161 = vrot.lane.b32.xlu0 %v4994, 112
      %v5162 = vpop.permute.xlu0 %5161
      %5163 = vrot.lane.b32.xlu0 %v4999, 112
      %v5164 = vpop.permute.xlu0 %5163
      %5165 = vrot.lane.b32.xlu0 %v4994, 96
      %v5166 = vpop.permute.xlu0 %5165
      %5167 = vrot.lane.b32.xlu0 %v4999, 96
      %v5168 = vpop.permute.xlu0 %5167
      %5169 = vrot.lane.b32.xlu0 %v4994, 80
      %v5170 = vpop.permute.xlu0 %5169
      %5171 = vrot.lane.b32.xlu0 %v4999, 80
      %v5172 = vpop.permute.xlu0 %5171
      %5175 = vrot.lane.b32.xlu0 %v5151, 112
      %v5176 = vpop.permute.xlu0 %5175
      %5177 = vrot.lane.b32.xlu0 %v5156, 112
      %v5178 = vpop.permute.xlu0 %5177
      %5179 = vrot.lane.b32.xlu0 %v5151, 96
      %v5180 = vpop.permute.xlu0 %5179
      %5181 = vrot.lane.b32.xlu0 %v5156, 96
      %v5182 = vpop.permute.xlu0 %5181
      %5183 = vrot.lane.b32.xlu0 %v5151, 80
      %v5184 = vpop.permute.xlu0 %5183
      %5185 = vrot.lane.b32.xlu0 %v5156, 80
      %v5186 = vpop.permute.xlu0 %5185
      %v5187 = vsel %vm340, %v4994, 0
      %v5189 = vsel %vm340, %v4999, 0
      %v5191 = vsel %vm340, %v5162, 0
      %v5193 = vsel %vm340, %v5164, 0
      %v5195 = vsel %vm340, %v5166, 0
      %v5197 = vsel %vm340, %v5168, 0
      %v5199 = vsel %vm340, %v5170, 0
      %v5201 = vsel %vm340, %v5172, 0
      %v5203 = vsel %vm340, %v5151, 0
      %v5205 = vsel %vm340, %v5156, 0
      %v5207 = vsel %vm340, %v5176, 0
      %v5209 = vsel %vm340, %v5178, 0
      %v5211 = vsel %vm340, %v5180, 0
      %v5213 = vsel %vm340, %v5182, 0
      %v5215 = vsel %vm340, %v5184, 0
      %v5217 = vsel %vm340, %v5186, 0
      %5219 = vmatprep.subr.mxu0 0.0
      %5220 = vmatpush1.xpose.msra.mxu0 %v5203
      %5221 = vmatprep.subr.mxu0 0.0
      %5222 = vmatpush1.xpose.msra.mxu0 %v5205
      %5223 = vmatprep.subr.mxu0 0.0
      %5224 = vmatpush1.xpose.msra.mxu0 %v5207
      %5225 = vmatprep.subr.mxu0 0.0
      %5226 = vmatpush1.xpose.msra.mxu0 %v5209
      %5227 = vmatprep.subr.mxu0 0.0
      %5228 = vmatpush1.xpose.msra.mxu0 %v5211
      %5229 = vmatprep.subr.mxu0 0.0
      %5230 = vmatpush1.xpose.msra.mxu0 %v5213
      %5231 = vmatprep.subr.mxu0 0.0
      %5232 = vmatpush1.xpose.msra.mxu0 %v5215
      %5233 = vmatprep.subr.mxu0 0.0
      %5234 = vmatpush1.xpose.msra.mxu0 %v5217
      %5235 = vmatprep.subr.mxu0 0.0
      %5236 = vmatpush1.xpose.msra.mxu0 0.0
      %5237 = vmatprep.subr.mxu0 0.0
      %5238 = vmatpush1.xpose.msra.mxu0 0.0
      %5239 = vmatprep.subr.mxu0 0.0
      %5240 = vmatpush1.xpose.msra.mxu0 0.0
      %5241 = vmatprep.subr.mxu0 0.0
      %5242 = vmatpush1.xpose.msra.mxu0 0.0
      %5243 = vmatprep.subr.mxu0 0.0
      %5244 = vmatpush1.xpose.msra.mxu0 0.0
      %5245 = vmatprep.subr.mxu0 0.0
      %5246 = vmatpush1.xpose.msra.mxu0 0.0
      %5247 = vmatprep.subr.mxu0 0.0
      %5248 = vmatpush1.xpose.msra.mxu0 0.0
      %5249 = vmatprep.subr.mxu0 0.0
      %5250 = vmatpush1.xpose.msra.mxu0 0.0
      %5251 = vmatprep.subr.mxu0 0.0
      %5252 = vmatpush1.xpose.msra.mxu0 0.0
      %5253 = vmatprep.subr.mxu0 0.0
      %5254 = vmatpush1.xpose.msra.mxu0 0.0
      %5255 = vmatprep.subr.mxu0 0.0
      %5256 = vmatpush1.xpose.msra.mxu0 0.0
      %5257 = vmatprep.subr.mxu0 0.0
      %5258 = vmatpush1.xpose.msra.mxu0 0.0
      %5259 = vmatprep.subr.mxu0 0.0
      %5260 = vmatpush1.xpose.msra.mxu0 0.0
      %5261 = vmatprep.subr.mxu0 0.0
      %5262 = vmatpush1.xpose.msra.mxu0 0.0
      %5263 = vmatprep.subr.mxu0 0.0
      %5264 = vmatpush1.xpose.msra.mxu0 0.0
      %5265 = vmatprep.subr.mxu0 0.0
      %5266 = vmatpush1.xpose.msra.mxu0 0.0
      %5267 = vmatprep.subr.mxu0 0.0
      %5268 = vmatpush1.xpose.msra.mxu0 0.0
      %5269 = vmatprep.subr.mxu0 0.0
      %5270 = vmatpush1.xpose.msra.mxu0 0.0
      %5271 = vmatprep.subr.mxu0 0.0
      %5272 = vmatpush1.xpose.msra.mxu0 0.0
      %5273 = vmatprep.subr.mxu0 0.0
      %5274 = vmatpush1.xpose.msra.mxu0 0.0
      %5275 = vmatprep.subr.mxu0 0.0
      %5276 = vmatpush1.xpose.msra.mxu0 0.0
      %5277 = vmatprep.subr.mxu0 0.0
      %5278 = vmatpush1.xpose.msra.mxu0 0.0
      %5279 = vmatprep.subr.mxu0 0.0
      %5280 = vmatpush1.xpose.msra.mxu0 0.0
      %5281 = vmatprep.subr.mxu0 0.0
      %5282 = vmatpush1.xpose.msra.mxu0 0.0
      %5283 = vmatprep.mubr.f32.mxu0 0.0
      %5284 = vmatmul.mubr.f32.gmra.mrb[0].mxu0 %v5187
      %v5285 = vpop.f32.mrb[0].mxu0
      %v5286 = vadd.f32 %v912, %v5285
      %v5287 = vpop.f32.mrb[0].mxu0
      %5288 = vmatprep.mubr.f32.mxu0 0.0
      %5289 = vmatmul.mubr.f32.gmra.mrb[0].mxu0 %v5189
      %v5290 = vpop.f32.mrb[0].mxu0
      %v5291 = vadd.f32 %v913, %v5290
      %v5292 = vpop.f32.mrb[0].mxu0
      %5293 = vmatprep.mubr.f32.mxu0 0.0
      %5294 = vmatmul.mubr.f32.gmra.mrb[0].mxu0 %v5191
      %v5295 = vpop.f32.mrb[0].mxu0
      %v5296 = vadd.f32 %v914, %v5295
      %v5297 = vpop.f32.mrb[0].mxu0
      %5298 = vmatprep.mubr.f32.mxu0 0.0
      %5299 = vmatmul.mubr.f32.gmra.mrb[0].mxu0 %v5193
      %v5300 = vpop.f32.mrb[0].mxu0
      %v5301 = vadd.f32 %v915, %v5300
      %v5302 = vpop.f32.mrb[0].mxu0
      %5303 = vmatprep.mubr.f32.mxu0 0.0
      %5304 = vmatmul.mubr.f32.gmra.mrb[0].mxu0 %v5195
      %v5305 = vpop.f32.mrb[0].mxu0
      %v5306 = vadd.f32 %v916, %v5305
      %v5307 = vpop.f32.mrb[0].mxu0
      %5308 = vmatprep.mubr.f32.mxu0 0.0
      %5309 = vmatmul.mubr.f32.gmra.mrb[0].mxu0 %v5197
      %v5310 = vpop.f32.mrb[0].mxu0
      %v5311 = vadd.f32 %v917, %v5310
      %v5312 = vpop.f32.mrb[0].mxu0
      %5313 = vmatprep.mubr.f32.mxu0 0.0
      %5314 = vmatmul.mubr.f32.gmra.mrb[0].mxu0 %v5199
      %v5315 = vpop.f32.mrb[0].mxu0
      %v5316 = vadd.f32 %v918, %v5315
      %v5317 = vpop.f32.mrb[0].mxu0
      %5318 = vmatprep.mubr.f32.mxu0 0.0
      %5319 = vmatmul.mubr.f32.gmra.mrb[0].mxu0 %v5201
      %v5320 = vpop.f32.mrb[0].mxu0
      %v5321 = vadd.f32 %v919, %v5320
      %v5322 = vpop.f32.mrb[0].mxu0
      %5323 = vdwg.mxu0
      %v5324 = vsel %vm794, %v5286, -inf
      %5325 = vmax.xlane.f32.xlu0 %v5324
      %v5326 = vpop.xlane.xlu0 %5325
      %v5327 = vsel %vm794, %v5291, -inf
      %5328 = vmax.xlane.f32.xlu0 %v5327
      %v5329 = vpop.xlane.xlu0 %5328
      %v5330 = vsel %vm794, %v5296, -inf
      %5331 = vmax.xlane.f32.xlu0 %v5330
      %v5332 = vpop.xlane.xlu0 %5331
      %v5333 = vsel %vm794, %v5301, -inf
      %5334 = vmax.xlane.f32.xlu0 %v5333
      %v5335 = vpop.xlane.xlu0 %5334
      %v5336 = vsel %vm794, %v5306, -inf
      %5337 = vmax.xlane.f32.xlu0 %v5336
      %v5338 = vpop.xlane.xlu0 %5337
      %v5339 = vsel %vm794, %v5311, -inf
      %5340 = vmax.xlane.f32.xlu0 %v5339
      %v5341 = vpop.xlane.xlu0 %5340
      %v5342 = vsel %vm794, %v5316, -inf
      %5343 = vmax.xlane.f32.xlu0 %v5342
      %v5344 = vpop.xlane.xlu0 %5343
      %v5345 = vsel %vm794, %v5321, -inf
      %5346 = vmax.xlane.f32.xlu0 %v5345
      %v5347 = vpop.xlane.xlu0 %5346
      %v5348 = vsub.f32 %v5286, %v5326
      %v5349 = vsub.f32 %v5291, %v5329
      %v5350 = vsub.f32 %v5296, %v5332
      %v5351 = vsub.f32 %v5301, %v5335
      %v5352 = vsub.f32 %v5306, %v5338
      %v5353 = vsub.f32 %v5311, %v5341
      %v5354 = vsub.f32 %v5316, %v5344
      %v5355 = vsub.f32 %v5321, %v5347
      %v5356 = vmul.f32 %v5348, 1.442695
      %v5357 = vpow.pop %v5356
      %v5358 = vmul.f32 %v5349, 1.442695
      %v5359 = vpow.pop %v5358
      %v5360 = vmul.f32 %v5350, 1.442695
      %v5361 = vpow.pop %v5360
      %v5362 = vmul.f32 %v5351, 1.442695
      %v5363 = vpow.pop %v5362
      %v5364 = vmul.f32 %v5352, 1.442695
      %v5365 = vpow.pop %v5364
      %v5366 = vmul.f32 %v5353, 1.442695
      %v5367 = vpow.pop %v5366
      %v5368 = vmul.f32 %v5354, 1.442695
      %v5369 = vpow.pop %v5368
      %v5370 = vmul.f32 %v5355, 1.442695
      %v5371 = vpow.pop %v5370
      %v5372 = vsel %vm794, %v5357, 0.0
      %5373 = vadd.xlane.f32.xlu0 %v5372
      %v5374 = vpop.xlane.xlu0 %5373
      %v5375 = vsel %vm794, %v5359, 0.0
      %5376 = vadd.xlane.f32.xlu0 %v5375
      %v5377 = vpop.xlane.xlu0 %5376
      %v5378 = vsel %vm794, %v5361, 0.0
      %5379 = vadd.xlane.f32.xlu0 %v5378
      %v5380 = vpop.xlane.xlu0 %5379
      %v5381 = vsel %vm794, %v5363, 0.0
      %5382 = vadd.xlane.f32.xlu0 %v5381
      %v5383 = vpop.xlane.xlu0 %5382
      %v5384 = vsel %vm794, %v5365, 0.0
      %5385 = vadd.xlane.f32.xlu0 %v5384
      %v5386 = vpop.xlane.xlu0 %5385
      %v5387 = vsel %vm794, %v5367, 0.0
      %5388 = vadd.xlane.f32.xlu0 %v5387
      %v5389 = vpop.xlane.xlu0 %5388
      %v5390 = vsel %vm794, %v5369, 0.0
      %5391 = vadd.xlane.f32.xlu0 %v5390
      %v5392 = vpop.xlane.xlu0 %5391
      %v5393 = vsel %vm794, %v5371, 0.0
      %5394 = vadd.xlane.f32.xlu0 %v5393
      %v5395 = vpop.xlane.xlu0 %5394
      %v5396 = vrcp.pop %v5374
      %v5397 = vmul.f32 %v5357, %v5396
      %v5398 = vrcp.pop %v5377
      %v5399 = vmul.f32 %v5359, %v5398
      %v5400 = vrcp.pop %v5380
      %v5401 = vmul.f32 %v5361, %v5400
      %v5402 = vrcp.pop %v5383
      %v5403 = vmul.f32 %v5363, %v5402
      %v5404 = vrcp.pop %v5386
      %v5405 = vmul.f32 %v5365, %v5404
      %v5406 = vrcp.pop %v5389
      %v5407 = vmul.f32 %v5367, %v5406
      %v5408 = vrcp.pop %v5392
      %v5409 = vmul.f32 %v5369, %v5408
      %v5410 = vrcp.pop %v5395
      %v5411 = vmul.f32 %v5371, %v5410
      %5412 = vrot.lane.b32.xlu0 %v5151, 64
      %v5413 = vpop.permute.xlu0 %5412
      %5414 = vrot.lane.b32.xlu0 %v5156, 64
      %v5415 = vpop.permute.xlu0 %5414
      %5416 = vrot.lane.b32.xlu0 %v5176, 64
      %v5417 = vpop.permute.xlu0 %5416
      %5418 = vrot.lane.b32.xlu0 %v5178, 64
      %v5419 = vpop.permute.xlu0 %5418
      %5420 = vrot.lane.b32.xlu0 %v5180, 64
      %v5421 = vpop.permute.xlu0 %5420
      %5422 = vrot.lane.b32.xlu0 %v5182, 64
      %v5423 = vpop.permute.xlu0 %5422
      %5424 = vrot.lane.b32.xlu0 %v5184, 64
      %v5425 = vpop.permute.xlu0 %5424
      %5426 = vrot.lane.b32.xlu0 %v5186, 64
      %v5427 = vpop.permute.xlu0 %5426
      %v5437 = vsel %vm794, %v5397, 0
      %v5440 = vsel %vm794, %v5399, 0
      %v5443 = vsel %vm794, %v5401, 0
      %v5446 = vsel %vm794, %v5403, 0
      %v5449 = vsel %vm794, %v5405, 0
      %v5452 = vsel %vm794, %v5407, 0
      %v5455 = vsel %vm794, %v5409, 0
      %v5458 = vsel %vm794, %v5411, 0
      %5460 = vmatprep.subr.mxu0 0.0
      %5461 = vmatpush1.msra.mxu0 %v5413
      %5462 = vmatprep.subr.mxu0 0.0
      %5463 = vmatpush1.msra.mxu0 %v5415
      %5464 = vmatprep.subr.mxu0 0.0
      %5465 = vmatpush1.msra.mxu0 %v5417
      %5466 = vmatprep.subr.mxu0 0.0
      %5467 = vmatpush1.msra.mxu0 %v5419
      %5468 = vmatprep.subr.mxu0 0.0
      %5469 = vmatpush1.msra.mxu0 %v5421
      %5470 = vmatprep.subr.mxu0 0.0
      %5471 = vmatpush1.msra.mxu0 %v5423
      %5472 = vmatprep.subr.mxu0 0.0
      %5473 = vmatpush1.msra.mxu0 %v5425
      %5474 = vmatprep.subr.mxu0 0.0
      %5475 = vmatpush1.msra.mxu0 %v5427
      %5476 = vmatprep.subr.mxu0 0.0
      %5477 = vmatpush1.msra.mxu0 0.0
      %5478 = vmatprep.subr.mxu0 0.0
      %5479 = vmatpush1.msra.mxu0 0.0
      %5480 = vmatprep.subr.mxu0 0.0
      %5481 = vmatpush1.msra.mxu0 0.0
      %5482 = vmatprep.subr.mxu0 0.0
      %5483 = vmatpush1.msra.mxu0 0.0
      %5484 = vmatprep.subr.mxu0 0.0
      %5485 = vmatpush1.msra.mxu0 0.0
      %5486 = vmatprep.subr.mxu0 0.0
      %5487 = vmatpush1.msra.mxu0 0.0
      %5488 = vmatprep.subr.mxu0 0.0
      %5489 = vmatpush1.msra.mxu0 0.0
      %5490 = vmatprep.subr.mxu0 0.0
      %5491 = vmatpush1.msra.mxu0 0.0
      %5492 = vmatprep.subr.mxu0 0.0
      %5493 = vmatpush1.msra.mxu0 0.0
      %5494 = vmatprep.subr.mxu0 0.0
      %5495 = vmatpush1.msra.mxu0 0.0
      %5496 = vmatprep.subr.mxu0 0.0
      %5497 = vmatpush1.msra.mxu0 0.0
      %5498 = vmatprep.subr.mxu0 0.0
      %5499 = vmatpush1.msra.mxu0 0.0
      %5500 = vmatprep.subr.mxu0 0.0
      %5501 = vmatpush1.msra.mxu0 0.0
      %5502 = vmatprep.subr.mxu0 0.0
      %5503 = vmatpush1.msra.mxu0 0.0
      %5504 = vmatprep.subr.mxu0 0.0
      %5505 = vmatpush1.msra.mxu0 0.0
      %5506 = vmatprep.subr.mxu0 0.0
      %5507 = vmatpush1.msra.mxu0 0.0
      %5508 = vmatprep.subr.mxu0 0.0
      %5509 = vmatpush1.msra.mxu0 0.0
      %5510 = vmatprep.subr.mxu0 0.0
      %5511 = vmatpush1.msra.mxu0 0.0
      %5512 = vmatprep.subr.mxu0 0.0
      %5513 = vmatpush1.msra.mxu0 0.0
      %5514 = vmatprep.subr.mxu0 0.0
      %5515 = vmatpush1.msra.mxu0 0.0
      %5516 = vmatprep.subr.mxu0 0.0
      %5517 = vmatpush1.msra.mxu0 0.0
      %5518 = vmatprep.subr.mxu0 0.0
      %5519 = vmatpush1.msra.mxu0 0.0
      %5520 = vmatprep.subr.mxu0 0.0
      %5521 = vmatpush1.msra.mxu0 0.0
      %5522 = vmatprep.subr.mxu0 0.0
      %5523 = vmatpush1.msra.mxu0 0.0
      %5524 = vmatprep.mubr.f32.mxu0 0.0
      %5525 = vmatmul.mubr.f32.gmra.mrb[0].mxu0 %v5437
      %v5526 = vpop.f32.mrb[0].mxu0
      %v5527 = vadd.f32 0.0, %v5526
      %v5528 = vpop.f32.mrb[0].mxu0
      %5529 = vmatprep.mubr.f32.mxu0 0.0
      %5530 = vmatmul.mubr.f32.gmra.mrb[0].mxu0 %v5440
      %v5531 = vpop.f32.mrb[0].mxu0
      %v5532 = vadd.f32 0.0, %v5531
      %v5533 = vpop.f32.mrb[0].mxu0
      %5534 = vmatprep.mubr.f32.mxu0 0.0
      %5535 = vmatmul.mubr.f32.gmra.mrb[0].mxu0 %v5443
      %v5536 = vpop.f32.mrb[0].mxu0
      %v5537 = vadd.f32 0.0, %v5536
      %v5538 = vpop.f32.mrb[0].mxu0
      %5539 = vmatprep.mubr.f32.mxu0 0.0
      %5540 = vmatmul.mubr.f32.gmra.mrb[0].mxu0 %v5446
      %v5541 = vpop.f32.mrb[0].mxu0
      %v5542 = vadd.f32 0.0, %v5541
      %v5543 = vpop.f32.mrb[0].mxu0
      %5544 = vmatprep.mubr.f32.mxu0 0.0
      %5545 = vmatmul.mubr.f32.gmra.mrb[0].mxu0 %v5449
      %v5546 = vpop.f32.mrb[0].mxu0
      %v5547 = vadd.f32 0.0, %v5546
      %v5548 = vpop.f32.mrb[0].mxu0
      %5549 = vmatprep.mubr.f32.mxu0 0.0
      %5550 = vmatmul.mubr.f32.gmra.mrb[0].mxu0 %v5452
      %v5551 = vpop.f32.mrb[0].mxu0
      %v5552 = vadd.f32 0.0, %v5551
      %v5553 = vpop.f32.mrb[0].mxu0
      %5554 = vmatprep.mubr.f32.mxu0 0.0
      %5555 = vmatmul.mubr.f32.gmra.mrb[0].mxu0 %v5455
      %v5556 = vpop.f32.mrb[0].mxu0
      %v5557 = vadd.f32 0.0, %v5556
      %v5558 = vpop.f32.mrb[0].mxu0
      %5559 = vmatprep.mubr.f32.mxu0 0.0
      %5560 = vmatmul.mubr.f32.gmra.mrb[0].mxu0 %v5458
      %v5561 = vpop.f32.mrb[0].mxu0
      %v5562 = vadd.f32 0.0, %v5561
      %v5563 = vpop.f32.mrb[0].mxu0
      %5564 = vdwg.mxu0
      %s5565 = scalar_lea.vmem %s5, 192
      %v5566 = vld [vmem:[%s5565] sm:$0xff]
      %v5567 = vld [vmem:[%s5565 + $0x8] sm:$0xff]
      %v5568 = vld [vmem:[%s5565 + $0x10] sm:$0xff]
      %v5569 = vld [vmem:[%s5565 + $0x18] sm:$0xff]
      %v5570 = vld [vmem:[%s5565 + $0x20] sm:$0xff]
      %v5571 = vld [vmem:[%s5565 + $0x28] sm:$0xff]
      %v5572 = vld [vmem:[%s5565 + $0x30] sm:$0xff]
      %v5573 = vld [vmem:[%s5565 + $0x38] sm:$0xff]
      %v5575 = vsel %vm340, %v5537, 0
      %v5578 = vsel %vm340, %v5542, 0
      %5580 = vmatprep.subr.mxu0 0.0
      %5581 = vmatpush1.msra.mxu0 %v5568
      %5582 = vmatprep.subr.mxu0 0.0
      %5583 = vmatpush1.msra.mxu0 %v5569
      %5584 = vmatprep.subr.mxu0 0.0
      %5585 = vmatpush1.msra.mxu0 0.0
      %5586 = vmatprep.subr.mxu0 0.0
      %5587 = vmatpush1.msra.mxu0 0.0
      %5588 = vmatprep.subr.mxu0 0.0
      %5589 = vmatpush1.msra.mxu0 0.0
      %5590 = vmatprep.subr.mxu0 0.0
      %5591 = vmatpush1.msra.mxu0 0.0
      %5592 = vmatprep.subr.mxu0 0.0
      %5593 = vmatpush1.msra.mxu0 0.0
      %5594 = vmatprep.subr.mxu0 0.0
      %5595 = vmatpush1.msra.mxu0 0.0
      %5596 = vmatprep.subr.mxu0 0.0
      %5597 = vmatpush1.msra.mxu0 0.0
      %5598 = vmatprep.subr.mxu0 0.0
      %5599 = vmatpush1.msra.mxu0 0.0
      %5600 = vmatprep.subr.mxu0 0.0
      %5601 = vmatpush1.msra.mxu0 0.0
      %5602 = vmatprep.subr.mxu0 0.0
      %5603 = vmatpush1.msra.mxu0 0.0
      %5604 = vmatprep.subr.mxu0 0.0
      %5605 = vmatpush1.msra.mxu0 0.0
      %5606 = vmatprep.subr.mxu0 0.0
      %5607 = vmatpush1.msra.mxu0 0.0
      %5608 = vmatprep.subr.mxu0 0.0
      %5609 = vmatpush1.msra.mxu0 0.0
      %5610 = vmatprep.subr.mxu0 0.0
      %5611 = vmatpush1.msra.mxu0 0.0
      %5612 = vmatprep.subr.mxu0 0.0
      %5613 = vmatpush1.msra.mxu0 0.0
      %5614 = vmatprep.subr.mxu0 0.0
      %5615 = vmatpush1.msra.mxu0 0.0
      %5616 = vmatprep.subr.mxu0 0.0
      %5617 = vmatpush1.msra.mxu0 0.0
      %5618 = vmatprep.subr.mxu0 0.0
      %5619 = vmatpush1.msra.mxu0 0.0
      %5620 = vmatprep.subr.mxu0 0.0
      %5621 = vmatpush1.msra.mxu0 0.0
      %5622 = vmatprep.subr.mxu0 0.0
      %5623 = vmatpush1.msra.mxu0 0.0
      %5624 = vmatprep.subr.mxu0 0.0
      %5625 = vmatpush1.msra.mxu0 0.0
      %5626 = vmatprep.subr.mxu0 0.0
      %5627 = vmatpush1.msra.mxu0 0.0
      %5628 = vmatprep.subr.mxu0 0.0
      %5629 = vmatpush1.msra.mxu0 0.0
      %5630 = vmatprep.subr.mxu0 0.0
      %5631 = vmatpush1.msra.mxu0 0.0
      %5632 = vmatprep.subr.mxu0 0.0
      %5633 = vmatpush1.msra.mxu0 0.0
      %5634 = vmatprep.subr.mxu0 0.0
      %5635 = vmatpush1.msra.mxu0 0.0
      %5636 = vmatprep.subr.mxu0 0.0
      %5637 = vmatpush1.msra.mxu0 0.0
      %5638 = vmatprep.subr.mxu0 0.0
      %5639 = vmatpush1.msra.mxu0 0.0
      %5640 = vmatprep.subr.mxu0 0.0
      %5641 = vmatpush1.msra.mxu0 0.0
      %5642 = vmatprep.subr.mxu0 0.0
      %5643 = vmatpush1.msra.mxu0 0.0
      %5644 = vmatprep.mubr.f32.mxu0 0.0
      %5645 = vmatmul.mubr.f32.gmra.mrb[0].mxu0 %v5575
      %v5646 = vpop.f32.mrb[0].mxu0
      %v5647 = vadd.f32 0.0, %v5646
      %v5648 = vpop.f32.mrb[0].mxu0
      %5649 = vmatprep.mubr.f32.mxu0 0.0
      %5650 = vmatmul.mubr.f32.gmra.mrb[0].mxu0 %v5578
      %v5651 = vpop.f32.mrb[0].mxu0
      %v5652 = vadd.f32 0.0, %v5651
      %v5653 = vpop.f32.mrb[0].mxu0
      %5654 = vdwg.mxu0
      %v5656 = vsel %vm340, %v5527, 0
      %v5659 = vsel %vm340, %v5532, 0
      %5661 = vmatprep.subr.mxu0 0.0
      %5662 = vmatpush1.msra.mxu0 %v5566
      %5663 = vmatprep.subr.mxu0 0.0
      %5664 = vmatpush1.msra.mxu0 %v5567
      %5665 = vmatprep.subr.mxu0 0.0
      %5666 = vmatpush1.msra.mxu0 0.0
      %5667 = vmatprep.subr.mxu0 0.0
      %5668 = vmatpush1.msra.mxu0 0.0
      %5669 = vmatprep.subr.mxu0 0.0
      %5670 = vmatpush1.msra.mxu0 0.0
      %5671 = vmatprep.subr.mxu0 0.0
      %5672 = vmatpush1.msra.mxu0 0.0
      %5673 = vmatprep.subr.mxu0 0.0
      %5674 = vmatpush1.msra.mxu0 0.0
      %5675 = vmatprep.subr.mxu0 0.0
      %5676 = vmatpush1.msra.mxu0 0.0
      %5677 = vmatprep.subr.mxu0 0.0
      %5678 = vmatpush1.msra.mxu0 0.0
      %5679 = vmatprep.subr.mxu0 0.0
      %5680 = vmatpush1.msra.mxu0 0.0
      %5681 = vmatprep.subr.mxu0 0.0
      %5682 = vmatpush1.msra.mxu0 0.0
      %5683 = vmatprep.subr.mxu0 0.0
      %5684 = vmatpush1.msra.mxu0 0.0
      %5685 = vmatprep.subr.mxu0 0.0
      %5686 = vmatpush1.msra.mxu0 0.0
      %5687 = vmatprep.subr.mxu0 0.0
      %5688 = vmatpush1.msra.mxu0 0.0
      %5689 = vmatprep.subr.mxu0 0.0
      %5690 = vmatpush1.msra.mxu0 0.0
      %5691 = vmatprep.subr.mxu0 0.0
      %5692 = vmatpush1.msra.mxu0 0.0
      %5693 = vmatprep.subr.mxu0 0.0
      %5694 = vmatpush1.msra.mxu0 0.0
      %5695 = vmatprep.subr.mxu0 0.0
      %5696 = vmatpush1.msra.mxu0 0.0
      %5697 = vmatprep.subr.mxu0 0.0
      %5698 = vmatpush1.msra.mxu0 0.0
      %5699 = vmatprep.subr.mxu0 0.0
      %5700 = vmatpush1.msra.mxu0 0.0
      %5701 = vmatprep.subr.mxu0 0.0
      %5702 = vmatpush1.msra.mxu0 0.0
      %5703 = vmatprep.subr.mxu0 0.0
      %5704 = vmatpush1.msra.mxu0 0.0
      %5705 = vmatprep.subr.mxu0 0.0
      %5706 = vmatpush1.msra.mxu0 0.0
      %5707 = vmatprep.subr.mxu0 0.0
      %5708 = vmatpush1.msra.mxu0 0.0
      %5709 = vmatprep.subr.mxu0 0.0
      %5710 = vmatpush1.msra.mxu0 0.0
      %5711 = vmatprep.subr.mxu0 0.0
      %5712 = vmatpush1.msra.mxu0 0.0
      %5713 = vmatprep.subr.mxu0 0.0
      %5714 = vmatpush1.msra.mxu0 0.0
      %5715 = vmatprep.subr.mxu0 0.0
      %5716 = vmatpush1.msra.mxu0 0.0
      %5717 = vmatprep.subr.mxu0 0.0
      %5718 = vmatpush1.msra.mxu0 0.0
      %5719 = vmatprep.subr.mxu0 0.0
      %5720 = vmatpush1.msra.mxu0 0.0
      %5721 = vmatprep.subr.mxu0 0.0
      %5722 = vmatpush1.msra.mxu0 0.0
      %5723 = vmatprep.subr.mxu0 0.0
      %5724 = vmatpush1.msra.mxu0 0.0
      %5725 = vmatprep.mubr.f32.mxu0 0.0
      %5726 = vmatmul.mubr.f32.gmra.mrb[0].mxu0 %v5656
      %v5727 = vpop.f32.mrb[0].mxu0
      %v5728 = vadd.f32 %v5647, %v5727
      %v5729 = vpop.f32.mrb[0].mxu0
      %5730 = vmatprep.mubr.f32.mxu0 0.0
      %5731 = vmatmul.mubr.f32.gmra.mrb[0].mxu0 %v5659
      %v5732 = vpop.f32.mrb[0].mxu0
      %v5733 = vadd.f32 %v5652, %v5732
      %v5734 = vpop.f32.mrb[0].mxu0
      %5735 = vdwg.mxu0
      %v5737 = vsel %vm340, %v5547, 0
      %v5740 = vsel %vm340, %v5552, 0
      %5742 = vmatprep.subr.mxu0 0.0
      %5743 = vmatpush1.msra.mxu0 %v5570
      %5744 = vmatprep.subr.mxu0 0.0
      %5745 = vmatpush1.msra.mxu0 %v5571
      %5746 = vmatprep.subr.mxu0 0.0
      %5747 = vmatpush1.msra.mxu0 0.0
      %5748 = vmatprep.subr.mxu0 0.0
      %5749 = vmatpush1.msra.mxu0 0.0
      %5750 = vmatprep.subr.mxu0 0.0
      %5751 = vmatpush1.msra.mxu0 0.0
      %5752 = vmatprep.subr.mxu0 0.0
      %5753 = vmatpush1.msra.mxu0 0.0
      %5754 = vmatprep.subr.mxu0 0.0
      %5755 = vmatpush1.msra.mxu0 0.0
      %5756 = vmatprep.subr.mxu0 0.0
      %5757 = vmatpush1.msra.mxu0 0.0
      %5758 = vmatprep.subr.mxu0 0.0
      %5759 = vmatpush1.msra.mxu0 0.0
      %5760 = vmatprep.subr.mxu0 0.0
      %5761 = vmatpush1.msra.mxu0 0.0
      %5762 = vmatprep.subr.mxu0 0.0
      %5763 = vmatpush1.msra.mxu0 0.0
      %5764 = vmatprep.subr.mxu0 0.0
      %5765 = vmatpush1.msra.mxu0 0.0
      %5766 = vmatprep.subr.mxu0 0.0
      %5767 = vmatpush1.msra.mxu0 0.0
      %5768 = vmatprep.subr.mxu0 0.0
      %5769 = vmatpush1.msra.mxu0 0.0
      %5770 = vmatprep.subr.mxu0 0.0
      %5771 = vmatpush1.msra.mxu0 0.0
      %5772 = vmatprep.subr.mxu0 0.0
      %5773 = vmatpush1.msra.mxu0 0.0
      %5774 = vmatprep.subr.mxu0 0.0
      %5775 = vmatpush1.msra.mxu0 0.0
      %5776 = vmatprep.subr.mxu0 0.0
      %5777 = vmatpush1.msra.mxu0 0.0
      %5778 = vmatprep.subr.mxu0 0.0
      %5779 = vmatpush1.msra.mxu0 0.0
      %5780 = vmatprep.subr.mxu0 0.0
      %5781 = vmatpush1.msra.mxu0 0.0
      %5782 = vmatprep.subr.mxu0 0.0
      %5783 = vmatpush1.msra.mxu0 0.0
      %5784 = vmatprep.subr.mxu0 0.0
      %5785 = vmatpush1.msra.mxu0 0.0
      %5786 = vmatprep.subr.mxu0 0.0
      %5787 = vmatpush1.msra.mxu0 0.0
      %5788 = vmatprep.subr.mxu0 0.0
      %5789 = vmatpush1.msra.mxu0 0.0
      %5790 = vmatprep.subr.mxu0 0.0
      %5791 = vmatpush1.msra.mxu0 0.0
      %5792 = vmatprep.subr.mxu0 0.0
      %5793 = vmatpush1.msra.mxu0 0.0
      %5794 = vmatprep.subr.mxu0 0.0
      %5795 = vmatpush1.msra.mxu0 0.0
      %5796 = vmatprep.subr.mxu0 0.0
      %5797 = vmatpush1.msra.mxu0 0.0
      %5798 = vmatprep.subr.mxu0 0.0
      %5799 = vmatpush1.msra.mxu0 0.0
      %5800 = vmatprep.subr.mxu0 0.0
      %5801 = vmatpush1.msra.mxu0 0.0
      %5802 = vmatprep.subr.mxu0 0.0
      %5803 = vmatpush1.msra.mxu0 0.0
      %5804 = vmatprep.subr.mxu0 0.0
      %5805 = vmatpush1.msra.mxu0 0.0
      %5806 = vmatprep.mubr.f32.mxu0 0.0
      %5807 = vmatmul.mubr.f32.gmra.mrb[0].mxu0 %v5737
      %v5808 = vpop.f32.mrb[0].mxu0
      %v5809 = vadd.f32 0.0, %v5808
      %v5810 = vpop.f32.mrb[0].mxu0
      %5811 = vmatprep.mubr.f32.mxu0 0.0
      %5812 = vmatmul.mubr.f32.gmra.mrb[0].mxu0 %v5740
      %v5813 = vpop.f32.mrb[0].mxu0
      %v5814 = vadd.f32 0.0, %v5813
      %v5815 = vpop.f32.mrb[0].mxu0
      %5816 = vdwg.mxu0
      %v5817 = vadd.f32 %v5728, %v5809
      %v5818 = vadd.f32 %v5733, %v5814
      %v5820 = vsel %vm340, %v5557, 0
      %v5823 = vsel %vm340, %v5562, 0
      %5825 = vmatprep.subr.mxu0 0.0
      %5826 = vmatpush1.msra.mxu0 %v5572
      %5827 = vmatprep.subr.mxu0 0.0
      %5828 = vmatpush1.msra.mxu0 %v5573
      %5829 = vmatprep.subr.mxu0 0.0
      %5830 = vmatpush1.msra.mxu0 0.0
      %5831 = vmatprep.subr.mxu0 0.0
      %5832 = vmatpush1.msra.mxu0 0.0
      %5833 = vmatprep.subr.mxu0 0.0
      %5834 = vmatpush1.msra.mxu0 0.0
      %5835 = vmatprep.subr.mxu0 0.0
      %5836 = vmatpush1.msra.mxu0 0.0
      %5837 = vmatprep.subr.mxu0 0.0
      %5838 = vmatpush1.msra.mxu0 0.0
      %5839 = vmatprep.subr.mxu0 0.0
      %5840 = vmatpush1.msra.mxu0 0.0
      %5841 = vmatprep.subr.mxu0 0.0
      %5842 = vmatpush1.msra.mxu0 0.0
      %5843 = vmatprep.subr.mxu0 0.0
      %5844 = vmatpush1.msra.mxu0 0.0
      %5845 = vmatprep.subr.mxu0 0.0
      %5846 = vmatpush1.msra.mxu0 0.0
      %5847 = vmatprep.subr.mxu0 0.0
      %5848 = vmatpush1.msra.mxu0 0.0
      %5849 = vmatprep.subr.mxu0 0.0
      %5850 = vmatpush1.msra.mxu0 0.0
      %5851 = vmatprep.subr.mxu0 0.0
      %5852 = vmatpush1.msra.mxu0 0.0
      %5853 = vmatprep.subr.mxu0 0.0
      %5854 = vmatpush1.msra.mxu0 0.0
      %5855 = vmatprep.subr.mxu0 0.0
      %5856 = vmatpush1.msra.mxu0 0.0
      %5857 = vmatprep.subr.mxu0 0.0
      %5858 = vmatpush1.msra.mxu0 0.0
      %5859 = vmatprep.subr.mxu0 0.0
      %5860 = vmatpush1.msra.mxu0 0.0
      %5861 = vmatprep.subr.mxu0 0.0
      %5862 = vmatpush1.msra.mxu0 0.0
      %5863 = vmatprep.subr.mxu0 0.0
      %5864 = vmatpush1.msra.mxu0 0.0
      %5865 = vmatprep.subr.mxu0 0.0
      %5866 = vmatpush1.msra.mxu0 0.0
      %5867 = vmatprep.subr.mxu0 0.0
      %5868 = vmatpush1.msra.mxu0 0.0
      %5869 = vmatprep.subr.mxu0 0.0
      %5870 = vmatpush1.msra.mxu0 0.0
      %5871 = vmatprep.subr.mxu0 0.0
      %5872 = vmatpush1.msra.mxu0 0.0
      %5873 = vmatprep.subr.mxu0 0.0
      %5874 = vmatpush1.msra.mxu0 0.0
      %5875 = vmatprep.subr.mxu0 0.0
      %5876 = vmatpush1.msra.mxu0 0.0
      %5877 = vmatprep.subr.mxu0 0.0
      %5878 = vmatpush1.msra.mxu0 0.0
      %5879 = vmatprep.subr.mxu0 0.0
      %5880 = vmatpush1.msra.mxu0 0.0
      %5881 = vmatprep.subr.mxu0 0.0
      %5882 = vmatpush1.msra.mxu0 0.0
      %5883 = vmatprep.subr.mxu0 0.0
      %5884 = vmatpush1.msra.mxu0 0.0
      %5885 = vmatprep.subr.mxu0 0.0
      %5886 = vmatpush1.msra.mxu0 0.0
      %5887 = vmatprep.subr.mxu0 0.0
      %5888 = vmatpush1.msra.mxu0 0.0
      %5889 = vmatprep.mubr.f32.mxu0 0.0
      %5890 = vmatmul.mubr.f32.gmra.mrb[0].mxu0 %v5820
      %v5891 = vpop.f32.mrb[0].mxu0
      %v5892 = vadd.f32 0.0, %v5891
      %v5893 = vpop.f32.mrb[0].mxu0
      %5894 = vmatprep.mubr.f32.mxu0 0.0
      %5895 = vmatmul.mubr.f32.gmra.mrb[0].mxu0 %v5823
      %v5896 = vpop.f32.mrb[0].mxu0
      %v5897 = vadd.f32 0.0, %v5896
      %v5898 = vpop.f32.mrb[0].mxu0
      %5899 = vdwg.mxu0
      %v5900 = vadd.f32 %v5817, %v5892
      %v5901 = vadd.f32 %v5818, %v5897
      %s5902 = scalar_lea.vmem %s6, 3
      %v5903 = vld [vmem:[%s5902] sm:$0x1]
      %v5905 = vlaneseq
      %v5906 = vshrl.u32 %v5905, 7
      %v5907 = vsub.s32 0, %v5906
      %v5908 = vrot.slane %v5903, %v5907
      %v5910 = vadd.f32 %v5900, %v5908
      %v5911 = vadd.f32 %v5901, %v5908
      %v5912 = vadd.f32 %v4896, %v5910
      %v5913 = vadd.f32 %v4897, %v5911
      %s5914 = scalar_lea.vmem %s6, 22
      %v5915 = vld [vmem:[%s5914] sm:$0x1]
      %s5916 = scalar_lea.vmem %s6, 23
      %v5917 = vld [vmem:[%s5916] sm:$0x1]
      %v5918 = vsel %vm794, %v5912, 0.0
      %5919 = vadd.xlane.f32.xlu0 %v5918
      %v5920 = vpop.xlane.xlu0 %5919
      %v5921 = vsel %vm794, %v5913, 0.0
      %5922 = vadd.xlane.f32.xlu0 %v5921
      %v5923 = vpop.xlane.xlu0 %5922
      %v5924 = vmul.f32 %v5920, %v1647
      %v5925 = vmul.f32 %v5923, %v1647
      %v5926 = vsub.f32 %v5912, %v5924
      %v5927 = vsub.f32 %v5913, %v5925
      %v5928 = vmul.f32 %v5926, %v5926
      %v5929 = vmul.f32 %v5927, %v5927
      %v5930 = vsel %vm794, %v5928, 0.0
      %5931 = vadd.xlane.f32.xlu0 %v5930
      %v5932 = vpop.xlane.xlu0 %5931
      %v5933 = vsel %vm794, %v5929, 0.0
      %5934 = vadd.xlane.f32.xlu0 %v5933
      %v5935 = vpop.xlane.xlu0 %5934
      %v5936 = vmul.f32 %v5932, %v1647
      %v5937 = vmul.f32 %v5935, %v1647
      %v5938 = vadd.f32 %v5936, 1e-05
      %v5939 = vadd.f32 %v5937, 1e-05
      %v5940 = vrsqrt.pop %v5938
      %v5941 = vrsqrt.pop %v5939
      %v5942 = vmul.f32 %v5926, %v5940
      %v5943 = vmul.f32 %v5927, %v5941
      %v5945 = vlaneseq
      %v5946 = vshrl.u32 %v5945, 7
      %v5947 = vsub.s32 0, %v5946
      %v5948 = vrot.slane %v5915, %v5947
      %v5950 = vmul.f32 %v5942, %v5948
      %v5951 = vmul.f32 %v5943, %v5948
      %v5953 = vlaneseq
      %v5954 = vshrl.u32 %v5953, 7
      %v5955 = vsub.s32 0, %v5954
      %v5956 = vrot.slane %v5917, %v5955
      %v5958 = vadd.f32 %v5950, %v5956
      %v5959 = vadd.f32 %v5951, %v5956
      %s5960 = scalar_lea.vmem %s5, 384
      %v5961 = vld [vmem:[%s5960] sm:$0xff]
      %v5962 = vld [vmem:[%s5960 + $0x8] sm:$0xff]
      %v5963 = vld [vmem:[%s5960 + $0x10] sm:$0xff]
      %v5964 = vld [vmem:[%s5960 + $0x18] sm:$0xff]
      %v5965 = vld [vmem:[%s5960 + $0x20] sm:$0xff]
      %v5966 = vld [vmem:[%s5960 + $0x28] sm:$0xff]
      %v5967 = vld [vmem:[%s5960 + $0x30] sm:$0xff]
      %v5968 = vld [vmem:[%s5960 + $0x38] sm:$0xff]
      %s5969 = scalar_lea.vmem %s6, 6
      %v5970 = vld [vmem:[%s5969] sm:$0x1]
      %v5972 = vlaneseq
      %v5973 = vshrl.u32 %v5972, 7
      %v5974 = vsub.s32 0, %v5973
      %v5975 = vrot.slane %v5970, %v5974
      %v5978 = vsel %vm794, %v5958, 0
      %v5981 = vsel %vm794, %v5959, 0
      %5983 = vmatprep.subr.mxu0 0.0
      %5984 = vmatpush1.msra.mxu0 %v5961
      %5985 = vmatprep.subr.mxu0 0.0
      %5986 = vmatpush1.msra.mxu0 %v5962
      %5987 = vmatprep.subr.mxu0 0.0
      %5988 = vmatpush1.msra.mxu0 %v5963
      %5989 = vmatprep.subr.mxu0 0.0
      %5990 = vmatpush1.msra.mxu0 %v5964
      %5991 = vmatprep.subr.mxu0 0.0
      %5992 = vmatpush1.msra.mxu0 %v5965
      %5993 = vmatprep.subr.mxu0 0.0
      %5994 = vmatpush1.msra.mxu0 %v5966
      %5995 = vmatprep.subr.mxu0 0.0
      %5996 = vmatpush1.msra.mxu0 %v5967
      %5997 = vmatprep.subr.mxu0 0.0
      %5998 = vmatpush1.msra.mxu0 %v5968
      %5999 = vmatprep.subr.mxu0 0.0
      %6000 = vmatpush1.msra.mxu0 0.0
      %6001 = vmatprep.subr.mxu0 0.0
      %6002 = vmatpush1.msra.mxu0 0.0
      %6003 = vmatprep.subr.mxu0 0.0
      %6004 = vmatpush1.msra.mxu0 0.0
      %6005 = vmatprep.subr.mxu0 0.0
      %6006 = vmatpush1.msra.mxu0 0.0
      %6007 = vmatprep.subr.mxu0 0.0
      %6008 = vmatpush1.msra.mxu0 0.0
      %6009 = vmatprep.subr.mxu0 0.0
      %6010 = vmatpush1.msra.mxu0 0.0
      %6011 = vmatprep.subr.mxu0 0.0
      %6012 = vmatpush1.msra.mxu0 0.0
      %6013 = vmatprep.subr.mxu0 0.0
      %6014 = vmatpush1.msra.mxu0 0.0
      %6015 = vmatprep.subr.mxu0 0.0
      %6016 = vmatpush1.msra.mxu0 0.0
      %6017 = vmatprep.subr.mxu0 0.0
      %6018 = vmatpush1.msra.mxu0 0.0
      %6019 = vmatprep.subr.mxu0 0.0
      %6020 = vmatpush1.msra.mxu0 0.0
      %6021 = vmatprep.subr.mxu0 0.0
      %6022 = vmatpush1.msra.mxu0 0.0
      %6023 = vmatprep.subr.mxu0 0.0
      %6024 = vmatpush1.msra.mxu0 0.0
      %6025 = vmatprep.subr.mxu0 0.0
      %6026 = vmatpush1.msra.mxu0 0.0
      %6027 = vmatprep.subr.mxu0 0.0
      %6028 = vmatpush1.msra.mxu0 0.0
      %6029 = vmatprep.subr.mxu0 0.0
      %6030 = vmatpush1.msra.mxu0 0.0
      %6031 = vmatprep.subr.mxu0 0.0
      %6032 = vmatpush1.msra.mxu0 0.0
      %6033 = vmatprep.subr.mxu0 0.0
      %6034 = vmatpush1.msra.mxu0 0.0
      %6035 = vmatprep.subr.mxu0 0.0
      %6036 = vmatpush1.msra.mxu0 0.0
      %6037 = vmatprep.subr.mxu0 0.0
      %6038 = vmatpush1.msra.mxu0 0.0
      %6039 = vmatprep.subr.mxu0 0.0
      %6040 = vmatpush1.msra.mxu0 0.0
      %6041 = vmatprep.subr.mxu0 0.0
      %6042 = vmatpush1.msra.mxu0 0.0
      %6043 = vmatprep.subr.mxu0 0.0
      %6044 = vmatpush1.msra.mxu0 0.0
      %6045 = vmatprep.subr.mxu0 0.0
      %6046 = vmatpush1.msra.mxu0 0.0
      %6047 = vmatprep.mubr.f32.mxu0 0.0
      %6048 = vmatmul.mubr.f32.gmra.mrb[0].mxu0 %v5978
      %v6049 = vpop.f32.mrb[0].mxu0
      %v6050 = vadd.f32 %v5975, %v6049
      %v6051 = vpop.f32.mrb[0].mxu0
      %6052 = vmatprep.mubr.f32.mxu0 0.0
      %6053 = vmatmul.mubr.f32.gmra.mrb[0].mxu0 %v5981
      %v6054 = vpop.f32.mrb[0].mxu0
      %v6055 = vadd.f32 %v5975, %v6054
      %v6056 = vpop.f32.mrb[0].mxu0
      %6057 = vdwg.mxu0
      %v6058 = vmul.f32 %v6050, 0.5
      %v6059 = vmul.f32 %v6055, 0.5
      %v6060 = vmul.f32 %v6050, 0.70710677
      %v6061 = vmul.f32 %v6055, 0.70710677
      %vm6062 = vcmp.lt.f32.partialorder %v6060, 0.0
      %vm6063 = vcmp.lt.f32.partialorder %v6061, 0.0
      %v6064 = vsel %vm6062, -1.0, 1.0
      %v6065 = vsel %vm6063, -1.0, 1.0
      %v6066 = vand.u32 2147483647, %v6060
      %v6067 = vand.u32 2147483647, %v6061
      %v6068 = vmul.f32 %v6066, 0.3275911
      %v6069 = vmul.f32 %v6067, 0.3275911
      %v6070 = vadd.f32 %v6068, 1.0
      %v6071 = vadd.f32 %v6069, 1.0
      %v6072 = vrcp.pop %v6070
      %v6073 = vmul.f32 1.0, %v6072
      %v6074 = vrcp.pop %v6071
      %v6075 = vmul.f32 1.0, %v6074
      %v6076 = vmul.f32 %v6073, 1.0614054
      %v6077 = vmul.f32 %v6075, 1.0614054
      %v6078 = vadd.f32 %v6076, -1.4531521
      %v6079 = vadd.f32 %v6077, -1.4531521
      %v6080 = vmul.f32 %v6078, %v6073
      %v6081 = vmul.f32 %v6079, %v6075
      %v6082 = vadd.f32 %v6080, 1.4214138
      %v6083 = vadd.f32 %v6081, 1.4214138
      %v6084 = vmul.f32 %v6082, %v6073
      %v6085 = vmul.f32 %v6083, %v6075
      %v6086 = vadd.f32 %v6084, -0.28449672
      %v6087 = vadd.f32 %v6085, -0.28449672
      %v6088 = vmul.f32 %v6086, %v6073
      %v6089 = vmul.f32 %v6087, %v6075
      %v6090 = vadd.f32 %v6088, 0.2548296
      %v6091 = vadd.f32 %v6089, 0.2548296
      %v6092 = vmul.f32 %v6090, %v6073
      %v6093 = vmul.f32 %v6091, %v6075
      %v6094 = vsub.f32 0.0, %v6066
      %v6095 = vsub.f32 0.0, %v6067
      %v6096 = vmul.f32 %v6094, %v6066
      %v6097 = vmul.f32 %v6095, %v6067
      %v6098 = vmul.f32 %v6096, 1.442695
      %v6099 = vpow.pop %v6098
      %v6100 = vmul.f32 %v6097, 1.442695
      %v6101 = vpow.pop %v6100
      %v6102 = vmul.f32 %v6092, %v6099
      %v6103 = vmul.f32 %v6093, %v6101
      %v6104 = vsub.f32 1.0, %v6102
      %v6105 = vsub.f32 1.0, %v6103
      %v6106 = vmul.f32 %v6064, %v6104
      %v6107 = vmul.f32 %v6065, %v6105
      %v6108 = vadd.f32 %v6106, 1.0
      %v6109 = vadd.f32 %v6107, 1.0
      %v6110 = vmul.f32 %v6058, %v6108
      %v6111 = vmul.f32 %v6059, %v6109
      %s6112 = scalar_lea.vmem %s5, 576
      %v6113 = vld [vmem:[%s6112] sm:$0xff]
      %v6114 = vld [vmem:[%s6112 + $0x8] sm:$0xff]
      %v6115 = vld [vmem:[%s6112 + $0x10] sm:$0xff]
      %v6116 = vld [vmem:[%s6112 + $0x18] sm:$0xff]
      %v6117 = vld [vmem:[%s6112 + $0x20] sm:$0xff]
      %v6118 = vld [vmem:[%s6112 + $0x28] sm:$0xff]
      %v6119 = vld [vmem:[%s6112 + $0x30] sm:$0xff]
      %v6120 = vld [vmem:[%s6112 + $0x38] sm:$0xff]
      %s6121 = scalar_lea.vmem %s6, 9
      %v6122 = vld [vmem:[%s6121] sm:$0x1]
      %v6124 = vlaneseq
      %v6125 = vshrl.u32 %v6124, 7
      %v6126 = vsub.s32 0, %v6125
      %v6127 = vrot.slane %v6122, %v6126
      %v6130 = vsel %vm794, %v6110, 0
      %v6133 = vsel %vm794, %v6111, 0
      %6135 = vmatprep.subr.mxu0 0.0
      %6136 = vmatpush1.msra.mxu0 %v6113
      %6137 = vmatprep.subr.mxu0 0.0
      %6138 = vmatpush1.msra.mxu0 %v6114
      %6139 = vmatprep.subr.mxu0 0.0
      %6140 = vmatpush1.msra.mxu0 %v6115
      %6141 = vmatprep.subr.mxu0 0.0
      %6142 = vmatpush1.msra.mxu0 %v6116
      %6143 = vmatprep.subr.mxu0 0.0
      %6144 = vmatpush1.msra.mxu0 %v6117
      %6145 = vmatprep.subr.mxu0 0.0
      %6146 = vmatpush1.msra.mxu0 %v6118
      %6147 = vmatprep.subr.mxu0 0.0
      %6148 = vmatpush1.msra.mxu0 %v6119
      %6149 = vmatprep.subr.mxu0 0.0
      %6150 = vmatpush1.msra.mxu0 %v6120
      %6151 = vmatprep.subr.mxu0 0.0
      %6152 = vmatpush1.msra.mxu0 0.0
      %6153 = vmatprep.subr.mxu0 0.0
      %6154 = vmatpush1.msra.mxu0 0.0
      %6155 = vmatprep.subr.mxu0 0.0
      %6156 = vmatpush1.msra.mxu0 0.0
      %6157 = vmatprep.subr.mxu0 0.0
      %6158 = vmatpush1.msra.mxu0 0.0
      %6159 = vmatprep.subr.mxu0 0.0
      %6160 = vmatpush1.msra.mxu0 0.0
      %6161 = vmatprep.subr.mxu0 0.0
      %6162 = vmatpush1.msra.mxu0 0.0
      %6163 = vmatprep.subr.mxu0 0.0
      %6164 = vmatpush1.msra.mxu0 0.0
      %6165 = vmatprep.subr.mxu0 0.0
      %6166 = vmatpush1.msra.mxu0 0.0
      %6167 = vmatprep.subr.mxu0 0.0
      %6168 = vmatpush1.msra.mxu0 0.0
      %6169 = vmatprep.subr.mxu0 0.0
      %6170 = vmatpush1.msra.mxu0 0.0
      %6171 = vmatprep.subr.mxu0 0.0
      %6172 = vmatpush1.msra.mxu0 0.0
      %6173 = vmatprep.subr.mxu0 0.0
      %6174 = vmatpush1.msra.mxu0 0.0
      %6175 = vmatprep.subr.mxu0 0.0
      %6176 = vmatpush1.msra.mxu0 0.0
      %6177 = vmatprep.subr.mxu0 0.0
      %6178 = vmatpush1.msra.mxu0 0.0
      %6179 = vmatprep.subr.mxu0 0.0
      %6180 = vmatpush1.msra.mxu0 0.0
      %6181 = vmatprep.subr.mxu0 0.0
      %6182 = vmatpush1.msra.mxu0 0.0
      %6183 = vmatprep.subr.mxu0 0.0
      %6184 = vmatpush1.msra.mxu0 0.0
      %6185 = vmatprep.subr.mxu0 0.0
      %6186 = vmatpush1.msra.mxu0 0.0
      %6187 = vmatprep.subr.mxu0 0.0
      %6188 = vmatpush1.msra.mxu0 0.0
      %6189 = vmatprep.subr.mxu0 0.0
      %6190 = vmatpush1.msra.mxu0 0.0
      %6191 = vmatprep.subr.mxu0 0.0
      %6192 = vmatpush1.msra.mxu0 0.0
      %6193 = vmatprep.subr.mxu0 0.0
      %6194 = vmatpush1.msra.mxu0 0.0
      %6195 = vmatprep.subr.mxu0 0.0
      %6196 = vmatpush1.msra.mxu0 0.0
      %6197 = vmatprep.subr.mxu0 0.0
      %6198 = vmatpush1.msra.mxu0 0.0
      %6199 = vmatprep.mubr.f32.mxu0 0.0
      %6200 = vmatmul.mubr.f32.gmra.mrb[0].mxu0 %v6130
      %v6201 = vpop.f32.mrb[0].mxu0
      %v6202 = vadd.f32 %v6127, %v6201
      %v6203 = vpop.f32.mrb[0].mxu0
      %6204 = vmatprep.mubr.f32.mxu0 0.0
      %6205 = vmatmul.mubr.f32.gmra.mrb[0].mxu0 %v6133
      %v6206 = vpop.f32.mrb[0].mxu0
      %v6207 = vadd.f32 %v6127, %v6206
      %v6208 = vpop.f32.mrb[0].mxu0
      %6209 = vdwg.mxu0
      %v6210 = vadd.f32 %v5958, %v6202
      %v6211 = vadd.f32 %v5959, %v6207
      %s6212 = scalar_lea.vmem %s6, 24
      %v6213 = vld [vmem:[%s6212] sm:$0x1]
      %s6214 = scalar_lea.vmem %s6, 25
      %v6215 = vld [vmem:[%s6214] sm:$0x1]
      %v6216 = vsel %vm794, %v6210, 0.0
      %6217 = vadd.xlane.f32.xlu0 %v6216
      %v6218 = vpop.xlane.xlu0 %6217
      %v6219 = vsel %vm794, %v6211, 0.0
      %6220 = vadd.xlane.f32.xlu0 %v6219
      %v6221 = vpop.xlane.xlu0 %6220
      %v6222 = vmul.f32 %v6218, %v1647
      %v6223 = vmul.f32 %v6221, %v1647
      %v6224 = vsub.f32 %v6210, %v6222
      %v6225 = vsub.f32 %v6211, %v6223
      %v6226 = vmul.f32 %v6224, %v6224
      %v6227 = vmul.f32 %v6225, %v6225
      %v6228 = vsel %vm794, %v6226, 0.0
      %6229 = vadd.xlane.f32.xlu0 %v6228
      %v6230 = vpop.xlane.xlu0 %6229
      %v6231 = vsel %vm794, %v6227, 0.0
      %6232 = vadd.xlane.f32.xlu0 %v6231
      %v6233 = vpop.xlane.xlu0 %6232
      %v6234 = vmul.f32 %v6230, %v1647
      %v6235 = vmul.f32 %v6233, %v1647
      %v6236 = vadd.f32 %v6234, 1e-05
      %v6237 = vadd.f32 %v6235, 1e-05
      %v6238 = vrsqrt.pop %v6236
      %v6239 = vrsqrt.pop %v6237
      %v6240 = vmul.f32 %v6224, %v6238
      %v6241 = vmul.f32 %v6225, %v6239
      %v6243 = vlaneseq
      %v6244 = vshrl.u32 %v6243, 7
      %v6245 = vsub.s32 0, %v6244
      %v6246 = vrot.slane %v6213, %v6245
      %v6248 = vmul.f32 %v6240, %v6246
      %v6249 = vmul.f32 %v6241, %v6246
      %v6251 = vlaneseq
      %v6252 = vshrl.u32 %v6251, 7
      %v6253 = vsub.s32 0, %v6252
      %v6254 = vrot.slane %v6215, %v6253
      %v6256 = vadd.f32 %v6248, %v6254
      %v6257 = vadd.f32 %v6249, %v6254
      %s6258 = scalar_lea.vmem %s6, 26
      %v6259 = vld [vmem:[%s6258] sm:$0x1]
      %s6260 = scalar_lea.vmem %s6, 27
      %v6261 = vld [vmem:[%s6260] sm:$0x1]
      %v6262 = vsel %vm794, %v6256, 0.0
      %6263 = vadd.xlane.f32.xlu0 %v6262
      %v6264 = vpop.xlane.xlu0 %6263
      %v6265 = vsel %vm794, %v6257, 0.0
      %6266 = vadd.xlane.f32.xlu0 %v6265
      %v6267 = vpop.xlane.xlu0 %6266
      %v6268 = vmul.f32 %v6264, %v1647
      %v6269 = vmul.f32 %v6267, %v1647
      %v6270 = vsub.f32 %v6256, %v6268
      %v6271 = vsub.f32 %v6257, %v6269
      %v6272 = vmul.f32 %v6270, %v6270
      %v6273 = vmul.f32 %v6271, %v6271
      %v6274 = vsel %vm794, %v6272, 0.0
      %6275 = vadd.xlane.f32.xlu0 %v6274
      %v6276 = vpop.xlane.xlu0 %6275
      %v6277 = vsel %vm794, %v6273, 0.0
      %6278 = vadd.xlane.f32.xlu0 %v6277
      %v6279 = vpop.xlane.xlu0 %6278
      %v6280 = vmul.f32 %v6276, %v1647
      %v6281 = vmul.f32 %v6279, %v1647
      %v6282 = vadd.f32 %v6280, 1e-05
      %v6283 = vadd.f32 %v6281, 1e-05
      %v6284 = vrsqrt.pop %v6282
      %v6285 = vrsqrt.pop %v6283
      %v6286 = vmul.f32 %v6270, %v6284
      %v6287 = vmul.f32 %v6271, %v6285
      %v6289 = vlaneseq
      %v6290 = vshrl.u32 %v6289, 7
      %v6291 = vsub.s32 0, %v6290
      %v6292 = vrot.slane %v6259, %v6291
      %v6294 = vmul.f32 %v6286, %v6292
      %v6295 = vmul.f32 %v6287, %v6292
      %v6297 = vlaneseq
      %v6298 = vshrl.u32 %v6297, 7
      %v6299 = vsub.s32 0, %v6298
      %v6300 = vrot.slane %v6261, %v6299
      %v6302 = vadd.f32 %v6294, %v6300
      %v6303 = vadd.f32 %v6295, %v6300
      %v6304 = vld [vmem:[%s8] sm:$0xff]
      %v6305 = vld [vmem:[%s8 + $0x8] sm:$0xff]
      %v6306 = vld [vmem:[%s8 + $0x10] sm:$0xff]
      %v6307 = vld [vmem:[%s8 + $0x18] sm:$0xff]
      %v6308 = vld [vmem:[%s8 + $0x20] sm:$0xff]
      %v6309 = vld [vmem:[%s8 + $0x28] sm:$0xff]
      %v6310 = vld [vmem:[%s8 + $0x30] sm:$0xff]
      %v6311 = vld [vmem:[%s8 + $0x38] sm:$0xff]
      %v6312 = vld [vmem:[%s8 + $0x40] sm:$0x1]
      %v6313 = vlaneseq
      %v6314 = vshrl.u32 %v6313, 7
      %v6315 = vsub.s32 0, %v6314
      %v6316 = vrot.slane %v6312, %v6315
      %v6318 = vsel %vm794, %v6302, 0
      %v6321 = vsel %vm794, %v6303, 0
      %6323 = vmatprep.subr.mxu0 0.0
      %6324 = vmatpush1.msra.mxu0 %v6304
      %6325 = vmatprep.subr.mxu0 0.0
      %6326 = vmatpush1.msra.mxu0 %v6305
      %6327 = vmatprep.subr.mxu0 0.0
      %6328 = vmatpush1.msra.mxu0 %v6306
      %6329 = vmatprep.subr.mxu0 0.0
      %6330 = vmatpush1.msra.mxu0 %v6307
      %6331 = vmatprep.subr.mxu0 0.0
      %6332 = vmatpush1.msra.mxu0 %v6308
      %6333 = vmatprep.subr.mxu0 0.0
      %6334 = vmatpush1.msra.mxu0 %v6309
      %6335 = vmatprep.subr.mxu0 0.0
      %6336 = vmatpush1.msra.mxu0 %v6310
      %6337 = vmatprep.subr.mxu0 0.0
      %6338 = vmatpush1.msra.mxu0 %v6311
      %6339 = vmatprep.subr.mxu0 0.0
      %6340 = vmatpush1.msra.mxu0 0.0
      %6341 = vmatprep.subr.mxu0 0.0
      %6342 = vmatpush1.msra.mxu0 0.0
      %6343 = vmatprep.subr.mxu0 0.0
      %6344 = vmatpush1.msra.mxu0 0.0
      %6345 = vmatprep.subr.mxu0 0.0
      %6346 = vmatpush1.msra.mxu0 0.0
      %6347 = vmatprep.subr.mxu0 0.0
      %6348 = vmatpush1.msra.mxu0 0.0
      %6349 = vmatprep.subr.mxu0 0.0
      %6350 = vmatpush1.msra.mxu0 0.0
      %6351 = vmatprep.subr.mxu0 0.0
      %6352 = vmatpush1.msra.mxu0 0.0
      %6353 = vmatprep.subr.mxu0 0.0
      %6354 = vmatpush1.msra.mxu0 0.0
      %6355 = vmatprep.subr.mxu0 0.0
      %6356 = vmatpush1.msra.mxu0 0.0
      %6357 = vmatprep.subr.mxu0 0.0
      %6358 = vmatpush1.msra.mxu0 0.0
      %6359 = vmatprep.subr.mxu0 0.0
      %6360 = vmatpush1.msra.mxu0 0.0
      %6361 = vmatprep.subr.mxu0 0.0
      %6362 = vmatpush1.msra.mxu0 0.0
      %6363 = vmatprep.subr.mxu0 0.0
      %6364 = vmatpush1.msra.mxu0 0.0
      %6365 = vmatprep.subr.mxu0 0.0
      %6366 = vmatpush1.msra.mxu0 0.0
      %6367 = vmatprep.subr.mxu0 0.0
      %6368 = vmatpush1.msra.mxu0 0.0
      %6369 = vmatprep.subr.mxu0 0.0
      %6370 = vmatpush1.msra.mxu0 0.0
      %6371 = vmatprep.subr.mxu0 0.0
      %6372 = vmatpush1.msra.mxu0 0.0
      %6373 = vmatprep.subr.mxu0 0.0
      %6374 = vmatpush1.msra.mxu0 0.0
      %6375 = vmatprep.subr.mxu0 0.0
      %6376 = vmatpush1.msra.mxu0 0.0
      %6377 = vmatprep.subr.mxu0 0.0
      %6378 = vmatpush1.msra.mxu0 0.0
      %6379 = vmatprep.subr.mxu0 0.0
      %6380 = vmatpush1.msra.mxu0 0.0
      %6381 = vmatprep.subr.mxu0 0.0
      %6382 = vmatpush1.msra.mxu0 0.0
      %6383 = vmatprep.subr.mxu0 0.0
      %6384 = vmatpush1.msra.mxu0 0.0
      %6385 = vmatprep.subr.mxu0 0.0
      %6386 = vmatpush1.msra.mxu0 0.0
      %6387 = vmatprep.mubr.f32.mxu0 0.0
      %6388 = vmatmul.mubr.f32.gmra.mrb[0].mxu0 %v6318
      %v6389 = vpop.f32.mrb[0].mxu0
      %v6390 = vadd.f32 %v6316, %v6389
      %v6391 = vpop.f32.mrb[0].mxu0
      %6392 = vmatprep.mubr.f32.mxu0 0.0
      %6393 = vmatmul.mubr.f32.gmra.mrb[0].mxu0 %v6321
      %v6394 = vpop.f32.mrb[0].mxu0
      %v6395 = vadd.f32 %v6316, %v6394
      %v6396 = vpop.f32.mrb[0].mxu0
      %6397 = vdwg.mxu0
      %6398 = vst.msk [vmem:[%s332] sm:$0xff] %vm425, %v6390
      %6399 = vst.msk [vmem:[%s332 + $0x8] sm:$0xff] %vm425, %v6395
      %p6400 = scmp.lt.s32.totalorder %s20, 1
      %s6401 = scalar_select %p6400, %s20, 1
      %s6402 = smul.addr %s6401, 2
      %s6403 = smul.addr %s6402, 8
      %s6404 = scalar_lea.vmem %s9, %s6403
      // Predicated region
      $region57: #{informer_forward.1} parent=55 // pred_check
        %p6405 = pneg %p232
      $region58: #{informer_forward.1} parent=55 // pred_check_branch
        %6407 = sbr.rel (%p6405) target = $region60
      $region59: #{informer_forward.1} parent=55 // pred_region
        _
      $region60: #{informer_forward.1} parent=55 // pred_fallthru
        _
    $region56: #{informer_forward.1} parent=5 // pred_fallthru
      _
    %p6408 = scmp.le.s32.totalorder 2, %s15
    // Predicated region
    $region61: #{informer_forward.1} parent=5 // pred_check
      %p6409 = pneg %p6408
    $region62: #{informer_forward.1} parent=5 // pred_check_branch
      %6411 = sbr.rel (%p6409) target = $region64
    $region63: #{informer_forward.1} parent=5 // pred_region
      %s6412 = ssub.s32 %s15, 2
      // Predicated region
      $region65: #{informer_forward.1} parent=63 // pred_check
        %p6413 = pneg %p238
      $region66: #{informer_forward.1} parent=63 // pred_check_branch
        %6415 = sbr.rel (%p6413) target = $region68
      $region67: #{informer_forward.1} parent=63 // pred_region
        %p6416 = scmp.lt.s32.totalorder %s21, 1
        %s6417 = scalar_select %p6416, %s21, 1
        %s6418 = smul.addr %s6417, 2
        %s6419 = smul.addr %s6418, 8
        %s6420 = scalar_lea.vmem %s9, %s6419
      $region68: #{informer_forward.1} parent=63 // pred_fallthru
        _
    $region64: #{informer_forward.1} parent=5 // pred_fallthru
      _
  $region6: #{informer_forward.1} parent=0 // loop_footer
    %s19 = sadd.s32 1, %s15
  $region7: #{informer_forward.1} parent=0 // loop_footer_branch
    %14 = sbr.rel target = $region3
  $region8: #{informer_forward.1} parent=0 // loop_exit
    _

</llo_original>
